<compile_context>
chip_gen: v5e
topology: v5e:2x2
jax: 0.10.0
libtpu: 0.0.40
codegen_flags: <defaults>
</compile_context>

<pallas_src>
import functools

import jax
import jax.numpy as jnp
from jax import lax
from jax.experimental import pallas as pl
from jax.experimental.pallas import tpu as pltpu


def _fused_cnn_kernel(x_ref, *refs, H, W, nb, n_layers):
    """Whole-network forward for one block of NB batch elements.

    x_ref : (nb, H, W, Cin)   input images (NHWC), f32
    refs  : w1, b1, ..., wL, bL, o_ref
            wi : (9*Cin_i, Cout_i)  matmul dtype (bf16 or f32)
            bi : (1, Cout_i)        f32
            o  : (nb, H*W, 1)       f32 (final layer has Cout == 1)
    """
    HW = H * W
    R = nb * HW                          # im2col rows (all images stacked)
    o_ref = refs[-1]
    wb_refs = refs[:-1]
    compute_dtype = wb_refs[0].dtype     # bf16 (perf) or f32 (checking)

    def pad_hw(a):
        # (nb, H, W, C) -> (nb, H+2, W+2, C), zero border built in-kernel.
        C = a.shape[-1]
        zc = jnp.zeros((nb, H, 1, C), a.dtype)
        a = jnp.concatenate([zc, a, zc], axis=2)          # (nb, H, W+2, C)
        zr = jnp.zeros((nb, 1, W + 2, C), a.dtype)
        return jnp.concatenate([zr, a, zr], axis=1)       # (nb, H+2, W+2, C)

    def conv3x3(a, w_ref, b_ref, relu):
        # a: (nb, H, W, Cin) already in the matmul dtype (bf16 patches).
        # One im2col matmul per layer: (R, 9*Cin) @ (9*Cin, Cout), f32 acc.
        C = a.shape[-1]
        ap = pad_hw(a)
        cols = [ap[:, dy:dy + H, dx:dx + W, :].reshape(R, C)
                for dy in range(3) for dx in range(3)]
        patches = jnp.concatenate(cols, axis=-1)          # (R, 9*Cin), bf16
        acc = jnp.dot(patches, w_ref[...],
                      preferred_element_type=jnp.float32)  # (R, Cout), f32 acc
        acc = acc + b_ref[...]                            # bias in f32 (VPU)
        if relu:
            acc = jnp.maximum(acc, 0.0)
        # TODO(synk): dropout is identity in eval mode; no mask applied here.
        return acc

    # Cast activations to the MXU dtype ONCE before any patch data movement.
    a = x_ref[...].astype(compute_dtype)                  # (nb, H, W, Cin)
    acc = None
    for i in range(n_layers):
        w_ref, b_ref = wb_refs[2 * i], wb_refs[2 * i + 1]
        last = i == n_layers - 1
        acc = conv3x3(a, w_ref, b_ref, relu=not last)
        if not last:
            a = acc.astype(compute_dtype).reshape(nb, H, W, acc.shape[-1])

    # Final layer has Cout == 1: acc is (R, 1) = (nb*HW, 1).  Store it directly
    # as (nb, HW, 1) — a free split of the sublane dim (HW multiple of 8).
    o_ref[...] = acc.reshape(nb, HW, 1)


def init_conv_params(key, cin, cout, ksize=3):
    """Deterministic init mimicking PyTorch Conv2d default (uniform +-1/sqrt(fan_in))."""
    kw, kb = jax.random.split(key)
    fan_in = cin * ksize * ksize
    bound = 1.0 / jnp.sqrt(fan_in)
    # PyTorch stores (Cout, Cin, kh, kw); we keep HWIO = (kh, kw, Cin, Cout).
    w_oihw = jax.random.uniform(kw, (cout, cin, ksize, ksize), jnp.float32,
                                minval=-bound, maxval=bound)
    w_hwio = jnp.transpose(w_oihw, (2, 3, 1, 0))
    b = jax.random.uniform(kb, (cout,), jnp.float32, minval=-bound, maxval=bound)
    return w_hwio, b


def make_cnn_params(key, n_channel):
    chans = [n_channel, 16, 32, 64, 128, 1]
    params = []
    for i in range(5):
        key, sub = jax.random.split(key)
        params.append(init_conv_params(sub, chans[i], chans[i + 1]))
    return params


def _pick_batch_block(n, nb_max):
    """Largest divisor of n (<= nb_max), preferring >=2 grid steps (v7x megacore)."""
    divisors = [d for d in range(1, min(n, nb_max) + 1) if n % d == 0]
    multi = [d for d in divisors if n // d >= 2]
    return max(multi) if multi else max(divisors)


def cnn_forward(x_nchw, params, *, matmul_dtype=jnp.bfloat16, nb_max=8,
                vmem_limit_bytes=None):
    """Forward pass matching the PyTorch CNN module (inference mode). NCHW in/out.

    nb_max caps the number of images per grid step; with bf16 patches peak temps
    are ~1 MB/image, so the default fits comfortably in the default scoped VMEM
    limit on v5e/v6e/v7x.  Raise nb_max + vmem_limit_bytes for larger batches.
    """
    x = jnp.transpose(x_nchw, (0, 2, 3, 1)).astype(jnp.float32)   # NCHW -> NHWC
    N, H, W, cin0 = x.shape
    nb = _pick_batch_block(N, nb_max)
    n_layers = len(params)

    flat_args = [x]
    in_specs = [pl.BlockSpec((nb, H, W, cin0), lambda n: (n, 0, 0, 0))]
    for w_hwio, b in params:
        kh, kw, cin, cout = w_hwio.shape
        # Tap-major flatten: row index = (dy*3 + dx)*Cin + cin (matches im2col).
        w_mat = w_hwio.reshape(kh * kw * cin, cout).astype(matmul_dtype)
        flat_args.append(w_mat)
        flat_args.append(b.reshape(1, cout).astype(jnp.float32))
        in_specs.append(pl.BlockSpec((kh * kw * cin, cout), lambda n: (0, 0)))
        in_specs.append(pl.BlockSpec((1, cout), lambda n: (0, 0)))

    kernel = functools.partial(_fused_cnn_kernel, H=H, W=W, nb=nb,
                               n_layers=n_layers)
    out_flat = pl.pallas_call(
        kernel,
        out_shape=jax.ShapeDtypeStruct((N, H * W, 1), jnp.float32),
        grid=(N // nb,),
        in_specs=in_specs,
        out_specs=pl.BlockSpec((nb, H * W, 1), lambda n: (n, 0, 0)),
        compiler_params=pltpu.CompilerParams(
            dimension_semantics=("parallel",),
            vmem_limit_bytes=vmem_limit_bytes),
    )(*flat_args)

    # Final layer has a single output channel: (N, H*W, 1) -> NCHW (N, 1, H, W).
    return out_flat.reshape(N, H, W)[:, None, :, :]


def cnn_reference(x_nchw, params):
    """Pure-XLA reference (lax.conv) for correctness checking."""
    x = jnp.transpose(x_nchw, (0, 2, 3, 1)).astype(jnp.float32)
    for i, (w, b) in enumerate(params):
        x = lax.conv_general_dilated(
            x, w, window_strides=(1, 1), padding=((1, 1), (1, 1)),
            dimension_numbers=("NHWC", "HWIO", "NHWC"),
            precision=lax.Precision.HIGHEST)
        x = x + b
        if i < len(params) - 1:
            x = jnp.maximum(x, 0.0)
    return jnp.transpose(x, (0, 3, 1, 2))


if __name__ == "__main__":
    key = jax.random.PRNGKey(0)
    k_x, k_p, k_x8 = jax.random.split(key, 3)

    n_channel = 4
    params = make_cnn_params(k_p, n_channel)

    # --- batch=2 input (spec-sized) ---
    x = jax.random.normal(k_x, (2, n_channel, 16, 16), jnp.float32)  # NCHW
    ref = jax.block_until_ready(cnn_reference(x, params))

    # Correctness check of the f32 matmul path against the XLA conv reference.
    out_f32 = jax.block_until_ready(cnn_forward(x, params, matmul_dtype=jnp.float32))
    assert out_f32.shape == (2, 1, 16, 16), out_f32.shape
    err = float(jnp.max(jnp.abs(out_f32 - ref)))
    tol = 1e-2 * float(jnp.max(jnp.abs(ref))) + 1e-4
    assert err < tol, f"f32 path: max|err| vs reference = {err} (tol {tol})"

    # Performance path (bf16 MXU inputs, f32 accumulation) with rel-tol check.
    out_bf16 = jax.block_until_ready(cnn_forward(x, params, matmul_dtype=jnp.bfloat16))
    assert out_bf16.shape == (2, 1, 16, 16), out_bf16.shape
    assert out_bf16.dtype == jnp.float32
    err = float(jnp.max(jnp.abs(out_bf16 - ref)))
    tol = 3e-2 * float(jnp.max(jnp.abs(ref))) + 1e-3
    assert err < tol, f"bf16 path: max|err| vs reference = {err} (tol {tol})"

    # Larger batch to exercise the batch-blocked path (nb > 1, multi-step grid).
    x8 = jax.random.normal(k_x8, (8, n_channel, 16, 16), jnp.float32)
    ref8 = jax.block_until_ready(cnn_reference(x8, params))
    out8 = jax.block_until_ready(cnn_forward(x8, params, matmul_dtype=jnp.bfloat16))
    assert out8.shape == (8, 1, 16, 16), out8.shape
    err8 = float(jnp.max(jnp.abs(out8 - ref8)))
    tol8 = 3e-2 * float(jnp.max(jnp.abs(ref8))) + 1e-3
    assert err8 < tol8, f"bf16 batched path: max|err| vs reference = {err8} (tol {tol8})"
    assert bool(jnp.all(jnp.isfinite(out8)))

    print("KERNEL_OK")
</pallas_src>

<mosaic_0001>
module attributes {stable_mosaic.version = 11 : i64} {
  func.func @_fused_cnn_kernel(%arg0: i32, %arg1: memref<1x16x16x4xf32, #tpu.memory_space<vmem>>, %arg2: memref<36x16xf32, #tpu.memory_space<vmem>>, %arg3: memref<1x16xf32, #tpu.memory_space<vmem>>, %arg4: memref<144x32xf32, #tpu.memory_space<vmem>>, %arg5: memref<1x32xf32, #tpu.memory_space<vmem>>, %arg6: memref<288x64xf32, #tpu.memory_space<vmem>>, %arg7: memref<1x64xf32, #tpu.memory_space<vmem>>, %arg8: memref<576x128xf32, #tpu.memory_space<vmem>>, %arg9: memref<1x128xf32, #tpu.memory_space<vmem>>, %arg10: memref<1152x1xf32, #tpu.memory_space<vmem>>, %arg11: memref<1x1xf32, #tpu.memory_space<vmem>>, %arg12: memref<1x256x1xf32, #tpu.memory_space<vmem>>) attributes {dimension_semantics = [#tpu.dimension_semantics<parallel>], iteration_bounds = array<i64: 2>, scalar_prefetch = 0 : i64, scratch_operands = 0 : i64, tpu.core_type = #tpu.core_type<tc>, window_params = [{transform_indices = @transform_0, window_bounds = array<i64: 1, 16, 16, 4>}, {pipeline_mode = #tpu.pipeline_mode<synchronous>, transform_indices = @transform_1, window_bounds = array<i64: 36, 16>}, {pipeline_mode = #tpu.pipeline_mode<synchronous>, transform_indices = @transform_2, window_bounds = array<i64: 1, 16>}, {pipeline_mode = #tpu.pipeline_mode<synchronous>, transform_indices = @transform_3, window_bounds = array<i64: 144, 32>}, {pipeline_mode = #tpu.pipeline_mode<synchronous>, transform_indices = @transform_4, window_bounds = array<i64: 1, 32>}, {pipeline_mode = #tpu.pipeline_mode<synchronous>, transform_indices = @transform_5, window_bounds = array<i64: 288, 64>}, {pipeline_mode = #tpu.pipeline_mode<synchronous>, transform_indices = @transform_6, window_bounds = array<i64: 1, 64>}, {pipeline_mode = #tpu.pipeline_mode<synchronous>, transform_indices = @transform_7, window_bounds = array<i64: 576, 128>}, {pipeline_mode = #tpu.pipeline_mode<synchronous>, transform_indices = @transform_8, window_bounds = array<i64: 1, 128>}, {pipeline_mode = #tpu.pipeline_mode<synchronous>, transform_indices = @transform_9, window_bounds = array<i64: 1152, 1>}, {pipeline_mode = #tpu.pipeline_mode<synchronous>, transform_indices = @transform_10, window_bounds = array<i64: 1, 1>}, {transform_indices = @transform_11, window_bounds = array<i64: 1, 256, 1>}]} {
    %c0 = arith.constant 0 : index
    %c0_0 = arith.constant 0 : index
    %c0_1 = arith.constant 0 : index
    %c0_2 = arith.constant 0 : index
    %0 = vector.load %arg1[%c0, %c0_0, %c0_1, %c0_2] : memref<1x16x16x4xf32, #tpu.memory_space<vmem>>, vector<1x16x16x4xf32>
    %cst = arith.constant 0.000000e+00 : f32
    %1 = vector.broadcast %cst : f32 to vector<1x16x1x4xf32>
    %2 = tpu.concatenate %1, %0, %1 in 2 : vector<1x16x1x4xf32>, vector<1x16x16x4xf32>, vector<1x16x1x4xf32> -> vector<1x16x18x4xf32>
    %cst_3 = arith.constant 0.000000e+00 : f32
    %3 = vector.broadcast %cst_3 : f32 to vector<1x1x18x4xf32>
    %4 = tpu.concatenate %3, %2, %3 in 1 : vector<1x1x18x4xf32>, vector<1x16x18x4xf32>, vector<1x1x18x4xf32> -> vector<1x18x18x4xf32>
    %5 = vector.extract_strided_slice %4 {offsets = [0, 0, 0, 0], sizes = [1, 16, 16, 4], strides = [1, 1, 1, 1]} : vector<1x18x18x4xf32> to vector<1x16x16x4xf32>
    %6 = vector.shape_cast %5 : vector<1x16x16x4xf32> to vector<256x4xf32>
    %7 = vector.extract_strided_slice %4 {offsets = [0, 0, 1, 0], sizes = [1, 16, 16, 4], strides = [1, 1, 1, 1]} : vector<1x18x18x4xf32> to vector<1x16x16x4xf32>
    %8 = vector.shape_cast %7 : vector<1x16x16x4xf32> to vector<256x4xf32>
    %9 = vector.extract_strided_slice %4 {offsets = [0, 0, 2, 0], sizes = [1, 16, 16, 4], strides = [1, 1, 1, 1]} : vector<1x18x18x4xf32> to vector<1x16x16x4xf32>
    %10 = vector.shape_cast %9 : vector<1x16x16x4xf32> to vector<256x4xf32>
    %11 = vector.extract_strided_slice %4 {offsets = [0, 1, 0, 0], sizes = [1, 16, 16, 4], strides = [1, 1, 1, 1]} : vector<1x18x18x4xf32> to vector<1x16x16x4xf32>
    %12 = vector.shape_cast %11 : vector<1x16x16x4xf32> to vector<256x4xf32>
    %13 = vector.extract_strided_slice %4 {offsets = [0, 1, 1, 0], sizes = [1, 16, 16, 4], strides = [1, 1, 1, 1]} : vector<1x18x18x4xf32> to vector<1x16x16x4xf32>
    %14 = vector.shape_cast %13 : vector<1x16x16x4xf32> to vector<256x4xf32>
    %15 = vector.extract_strided_slice %4 {offsets = [0, 1, 2, 0], sizes = [1, 16, 16, 4], strides = [1, 1, 1, 1]} : vector<1x18x18x4xf32> to vector<1x16x16x4xf32>
    %16 = vector.shape_cast %15 : vector<1x16x16x4xf32> to vector<256x4xf32>
    %17 = vector.extract_strided_slice %4 {offsets = [0, 2, 0, 0], sizes = [1, 16, 16, 4], strides = [1, 1, 1, 1]} : vector<1x18x18x4xf32> to vector<1x16x16x4xf32>
    %18 = vector.shape_cast %17 : vector<1x16x16x4xf32> to vector<256x4xf32>
    %19 = vector.extract_strided_slice %4 {offsets = [0, 2, 1, 0], sizes = [1, 16, 16, 4], strides = [1, 1, 1, 1]} : vector<1x18x18x4xf32> to vector<1x16x16x4xf32>
    %20 = vector.shape_cast %19 : vector<1x16x16x4xf32> to vector<256x4xf32>
    %21 = vector.extract_strided_slice %4 {offsets = [0, 2, 2, 0], sizes = [1, 16, 16, 4], strides = [1, 1, 1, 1]} : vector<1x18x18x4xf32> to vector<1x16x16x4xf32>
    %22 = vector.shape_cast %21 : vector<1x16x16x4xf32> to vector<256x4xf32>
    %23 = tpu.concatenate %6, %8, %10, %12, %14, %16, %18, %20, %22 in 1 : vector<256x4xf32>, vector<256x4xf32>, vector<256x4xf32>, vector<256x4xf32>, vector<256x4xf32>, vector<256x4xf32>, vector<256x4xf32>, vector<256x4xf32>, vector<256x4xf32> -> vector<256x36xf32>
    %c0_4 = arith.constant 0 : index
    %c0_5 = arith.constant 0 : index
    %24 = vector.load %arg2[%c0_4, %c0_5] : memref<36x16xf32, #tpu.memory_space<vmem>>, vector<36x16xf32>
    %cst_6 = arith.constant dense<0.000000e+00> : vector<256x16xf32>
    %25 = tpu.matmul %23, %24, %cst_6 {dimension_numbers = #tpu.dot_dimension_numbers<[1], [0], [0], [1], [0, 0, 1, 1], [], []>} : vector<256x36xf32>, vector<36x16xf32>, vector<256x16xf32> -> vector<256x16xf32>
    %c0_7 = arith.constant 0 : index
    %c0_8 = arith.constant 0 : index
    %26 = vector.load %arg3[%c0_7, %c0_8] : memref<1x16xf32, #tpu.memory_space<vmem>>, vector<1x16xf32>
    %27 = vector.broadcast %26 : vector<1x16xf32> to vector<256x16xf32>
    %28 = arith.addf %25, %27 : vector<256x16xf32>
    %cst_9 = arith.constant 0.000000e+00 : f32
    %29 = vector.broadcast %cst_9 : f32 to vector<256x16xf32>
    %30 = arith.maximumf %28, %29 : vector<256x16xf32>
    %31 = vector.shape_cast %30 : vector<256x16xf32> to vector<1x16x16x16xf32>
    %cst_10 = arith.constant 0.000000e+00 : f32
    %32 = vector.broadcast %cst_10 : f32 to vector<1x16x1x16xf32>
    %33 = tpu.concatenate %32, %31, %32 in 2 : vector<1x16x1x16xf32>, vector<1x16x16x16xf32>, vector<1x16x1x16xf32> -> vector<1x16x18x16xf32>
    %cst_11 = arith.constant 0.000000e+00 : f32
    %34 = vector.broadcast %cst_11 : f32 to vector<1x1x18x16xf32>
    %35 = tpu.concatenate %34, %33, %34 in 1 : vector<1x1x18x16xf32>, vector<1x16x18x16xf32>, vector<1x1x18x16xf32> -> vector<1x18x18x16xf32>
    %36 = vector.extract_strided_slice %35 {offsets = [0, 0, 0, 0], sizes = [1, 16, 16, 16], strides = [1, 1, 1, 1]} : vector<1x18x18x16xf32> to vector<1x16x16x16xf32>
    %37 = vector.shape_cast %36 : vector<1x16x16x16xf32> to vector<256x16xf32>
    %38 = vector.extract_strided_slice %35 {offsets = [0, 0, 1, 0], sizes = [1, 16, 16, 16], strides = [1, 1, 1, 1]} : vector<1x18x18x16xf32> to vector<1x16x16x16xf32>
    %39 = vector.shape_cast %38 : vector<1x16x16x16xf32> to vector<256x16xf32>
    %40 = vector.extract_strided_slice %35 {offsets = [0, 0, 2, 0], sizes = [1, 16, 16, 16], strides = [1, 1, 1, 1]} : vector<1x18x18x16xf32> to vector<1x16x16x16xf32>
    %41 = vector.shape_cast %40 : vector<1x16x16x16xf32> to vector<256x16xf32>
    %42 = vector.extract_strided_slice %35 {offsets = [0, 1, 0, 0], sizes = [1, 16, 16, 16], strides = [1, 1, 1, 1]} : vector<1x18x18x16xf32> to vector<1x16x16x16xf32>
    %43 = vector.shape_cast %42 : vector<1x16x16x16xf32> to vector<256x16xf32>
    %44 = vector.extract_strided_slice %35 {offsets = [0, 1, 1, 0], sizes = [1, 16, 16, 16], strides = [1, 1, 1, 1]} : vector<1x18x18x16xf32> to vector<1x16x16x16xf32>
    %45 = vector.shape_cast %44 : vector<1x16x16x16xf32> to vector<256x16xf32>
    %46 = vector.extract_strided_slice %35 {offsets = [0, 1, 2, 0], sizes = [1, 16, 16, 16], strides = [1, 1, 1, 1]} : vector<1x18x18x16xf32> to vector<1x16x16x16xf32>
    %47 = vector.shape_cast %46 : vector<1x16x16x16xf32> to vector<256x16xf32>
    %48 = vector.extract_strided_slice %35 {offsets = [0, 2, 0, 0], sizes = [1, 16, 16, 16], strides = [1, 1, 1, 1]} : vector<1x18x18x16xf32> to vector<1x16x16x16xf32>
    %49 = vector.shape_cast %48 : vector<1x16x16x16xf32> to vector<256x16xf32>
    %50 = vector.extract_strided_slice %35 {offsets = [0, 2, 1, 0], sizes = [1, 16, 16, 16], strides = [1, 1, 1, 1]} : vector<1x18x18x16xf32> to vector<1x16x16x16xf32>
    %51 = vector.shape_cast %50 : vector<1x16x16x16xf32> to vector<256x16xf32>
    %52 = vector.extract_strided_slice %35 {offsets = [0, 2, 2, 0], sizes = [1, 16, 16, 16], strides = [1, 1, 1, 1]} : vector<1x18x18x16xf32> to vector<1x16x16x16xf32>
    %53 = vector.shape_cast %52 : vector<1x16x16x16xf32> to vector<256x16xf32>
    %54 = tpu.concatenate %37, %39, %41, %43, %45, %47, %49, %51, %53 in 1 : vector<256x16xf32>, vector<256x16xf32>, vector<256x16xf32>, vector<256x16xf32>, vector<256x16xf32>, vector<256x16xf32>, vector<256x16xf32>, vector<256x16xf32>, vector<256x16xf32> -> vector<256x144xf32>
    %c0_12 = arith.constant 0 : index
    %c0_13 = arith.constant 0 : index
    %55 = vector.load %arg4[%c0_12, %c0_13] : memref<144x32xf32, #tpu.memory_space<vmem>>, vector<144x32xf32>
    %cst_14 = arith.constant dense<0.000000e+00> : vector<256x32xf32>
    %56 = tpu.matmul %54, %55, %cst_14 {dimension_numbers = #tpu.dot_dimension_numbers<[1], [0], [0], [1], [0, 0, 1, 1], [], []>} : vector<256x144xf32>, vector<144x32xf32>, vector<256x32xf32> -> vector<256x32xf32>
    %c0_15 = arith.constant 0 : index
    %c0_16 = arith.constant 0 : index
    %57 = vector.load %arg5[%c0_15, %c0_16] : memref<1x32xf32, #tpu.memory_space<vmem>>, vector<1x32xf32>
    %58 = vector.broadcast %57 : vector<1x32xf32> to vector<256x32xf32>
    %59 = arith.addf %56, %58 : vector<256x32xf32>
    %cst_17 = arith.constant 0.000000e+00 : f32
    %60 = vector.broadcast %cst_17 : f32 to vector<256x32xf32>
    %61 = arith.maximumf %59, %60 : vector<256x32xf32>
    %62 = vector.shape_cast %61 : vector<256x32xf32> to vector<1x16x16x32xf32>
    %cst_18 = arith.constant 0.000000e+00 : f32
    %63 = vector.broadcast %cst_18 : f32 to vector<1x16x1x32xf32>
    %64 = tpu.concatenate %63, %62, %63 in 2 : vector<1x16x1x32xf32>, vector<1x16x16x32xf32>, vector<1x16x1x32xf32> -> vector<1x16x18x32xf32>
    %cst_19 = arith.constant 0.000000e+00 : f32
    %65 = vector.broadcast %cst_19 : f32 to vector<1x1x18x32xf32>
    %66 = tpu.concatenate %65, %64, %65 in 1 : vector<1x1x18x32xf32>, vector<1x16x18x32xf32>, vector<1x1x18x32xf32> -> vector<1x18x18x32xf32>
    %67 = vector.extract_strided_slice %66 {offsets = [0, 0, 0, 0], sizes = [1, 16, 16, 32], strides = [1, 1, 1, 1]} : vector<1x18x18x32xf32> to vector<1x16x16x32xf32>
    %68 = vector.shape_cast %67 : vector<1x16x16x32xf32> to vector<256x32xf32>
    %69 = vector.extract_strided_slice %66 {offsets = [0, 0, 1, 0], sizes = [1, 16, 16, 32], strides = [1, 1, 1, 1]} : vector<1x18x18x32xf32> to vector<1x16x16x32xf32>
    %70 = vector.shape_cast %69 : vector<1x16x16x32xf32> to vector<256x32xf32>
    %71 = vector.extract_strided_slice %66 {offsets = [0, 0, 2, 0], sizes = [1, 16, 16, 32], strides = [1, 1, 1, 1]} : vector<1x18x18x32xf32> to vector<1x16x16x32xf32>
    %72 = vector.shape_cast %71 : vector<1x16x16x32xf32> to vector<256x32xf32>
    %73 = vector.extract_strided_slice %66 {offsets = [0, 1, 0, 0], sizes = [1, 16, 16, 32], strides = [1, 1, 1, 1]} : vector<1x18x18x32xf32> to vector<1x16x16x32xf32>
    %74 = vector.shape_cast %73 : vector<1x16x16x32xf32> to vector<256x32xf32>
    %75 = vector.extract_strided_slice %66 {offsets = [0, 1, 1, 0], sizes = [1, 16, 16, 32], strides = [1, 1, 1, 1]} : vector<1x18x18x32xf32> to vector<1x16x16x32xf32>
    %76 = vector.shape_cast %75 : vector<1x16x16x32xf32> to vector<256x32xf32>
    %77 = vector.extract_strided_slice %66 {offsets = [0, 1, 2, 0], sizes = [1, 16, 16, 32], strides = [1, 1, 1, 1]} : vector<1x18x18x32xf32> to vector<1x16x16x32xf32>
    %78 = vector.shape_cast %77 : vector<1x16x16x32xf32> to vector<256x32xf32>
    %79 = vector.extract_strided_slice %66 {offsets = [0, 2, 0, 0], sizes = [1, 16, 16, 32], strides = [1, 1, 1, 1]} : vector<1x18x18x32xf32> to vector<1x16x16x32xf32>
    %80 = vector.shape_cast %79 : vector<1x16x16x32xf32> to vector<256x32xf32>
    %81 = vector.extract_strided_slice %66 {offsets = [0, 2, 1, 0], sizes = [1, 16, 16, 32], strides = [1, 1, 1, 1]} : vector<1x18x18x32xf32> to vector<1x16x16x32xf32>
    %82 = vector.shape_cast %81 : vector<1x16x16x32xf32> to vector<256x32xf32>
    %83 = vector.extract_strided_slice %66 {offsets = [0, 2, 2, 0], sizes = [1, 16, 16, 32], strides = [1, 1, 1, 1]} : vector<1x18x18x32xf32> to vector<1x16x16x32xf32>
    %84 = vector.shape_cast %83 : vector<1x16x16x32xf32> to vector<256x32xf32>
    %85 = tpu.concatenate %68, %70, %72, %74, %76, %78, %80, %82, %84 in 1 : vector<256x32xf32>, vector<256x32xf32>, vector<256x32xf32>, vector<256x32xf32>, vector<256x32xf32>, vector<256x32xf32>, vector<256x32xf32>, vector<256x32xf32>, vector<256x32xf32> -> vector<256x288xf32>
    %c0_20 = arith.constant 0 : index
    %c0_21 = arith.constant 0 : index
    %86 = vector.load %arg6[%c0_20, %c0_21] : memref<288x64xf32, #tpu.memory_space<vmem>>, vector<288x64xf32>
    %cst_22 = arith.constant dense<0.000000e+00> : vector<256x64xf32>
    %87 = tpu.matmul %85, %86, %cst_22 {dimension_numbers = #tpu.dot_dimension_numbers<[1], [0], [0], [1], [0, 0, 1, 1], [], []>} : vector<256x288xf32>, vector<288x64xf32>, vector<256x64xf32> -> vector<256x64xf32>
    %c0_23 = arith.constant 0 : index
    %c0_24 = arith.constant 0 : index
    %88 = vector.load %arg7[%c0_23, %c0_24] : memref<1x64xf32, #tpu.memory_space<vmem>>, vector<1x64xf32>
    %89 = vector.broadcast %88 : vector<1x64xf32> to vector<256x64xf32>
    %90 = arith.addf %87, %89 : vector<256x64xf32>
    %cst_25 = arith.constant 0.000000e+00 : f32
    %91 = vector.broadcast %cst_25 : f32 to vector<256x64xf32>
    %92 = arith.maximumf %90, %91 : vector<256x64xf32>
    %93 = vector.shape_cast %92 : vector<256x64xf32> to vector<1x16x16x64xf32>
    %cst_26 = arith.constant 0.000000e+00 : f32
    %94 = vector.broadcast %cst_26 : f32 to vector<1x16x1x64xf32>
    %95 = tpu.concatenate %94, %93, %94 in 2 : vector<1x16x1x64xf32>, vector<1x16x16x64xf32>, vector<1x16x1x64xf32> -> vector<1x16x18x64xf32>
    %cst_27 = arith.constant 0.000000e+00 : f32
    %96 = vector.broadcast %cst_27 : f32 to vector<1x1x18x64xf32>
    %97 = tpu.concatenate %96, %95, %96 in 1 : vector<1x1x18x64xf32>, vector<1x16x18x64xf32>, vector<1x1x18x64xf32> -> vector<1x18x18x64xf32>
    %98 = vector.extract_strided_slice %97 {offsets = [0, 0, 0, 0], sizes = [1, 16, 16, 64], strides = [1, 1, 1, 1]} : vector<1x18x18x64xf32> to vector<1x16x16x64xf32>
    %99 = vector.shape_cast %98 : vector<1x16x16x64xf32> to vector<256x64xf32>
    %100 = vector.extract_strided_slice %97 {offsets = [0, 0, 1, 0], sizes = [1, 16, 16, 64], strides = [1, 1, 1, 1]} : vector<1x18x18x64xf32> to vector<1x16x16x64xf32>
    %101 = vector.shape_cast %100 : vector<1x16x16x64xf32> to vector<256x64xf32>
    %102 = vector.extract_strided_slice %97 {offsets = [0, 0, 2, 0], sizes = [1, 16, 16, 64], strides = [1, 1, 1, 1]} : vector<1x18x18x64xf32> to vector<1x16x16x64xf32>
    %103 = vector.shape_cast %102 : vector<1x16x16x64xf32> to vector<256x64xf32>
    %104 = vector.extract_strided_slice %97 {offsets = [0, 1, 0, 0], sizes = [1, 16, 16, 64], strides = [1, 1, 1, 1]} : vector<1x18x18x64xf32> to vector<1x16x16x64xf32>
    %105 = vector.shape_cast %104 : vector<1x16x16x64xf32> to vector<256x64xf32>
    %106 = vector.extract_strided_slice %97 {offsets = [0, 1, 1, 0], sizes = [1, 16, 16, 64], strides = [1, 1, 1, 1]} : vector<1x18x18x64xf32> to vector<1x16x16x64xf32>
    %107 = vector.shape_cast %106 : vector<1x16x16x64xf32> to vector<256x64xf32>
    %108 = vector.extract_strided_slice %97 {offsets = [0, 1, 2, 0], sizes = [1, 16, 16, 64], strides = [1, 1, 1, 1]} : vector<1x18x18x64xf32> to vector<1x16x16x64xf32>
    %109 = vector.shape_cast %108 : vector<1x16x16x64xf32> to vector<256x64xf32>
    %110 = vector.extract_strided_slice %97 {offsets = [0, 2, 0, 0], sizes = [1, 16, 16, 64], strides = [1, 1, 1, 1]} : vector<1x18x18x64xf32> to vector<1x16x16x64xf32>
    %111 = vector.shape_cast %110 : vector<1x16x16x64xf32> to vector<256x64xf32>
    %112 = vector.extract_strided_slice %97 {offsets = [0, 2, 1, 0], sizes = [1, 16, 16, 64], strides = [1, 1, 1, 1]} : vector<1x18x18x64xf32> to vector<1x16x16x64xf32>
    %113 = vector.shape_cast %112 : vector<1x16x16x64xf32> to vector<256x64xf32>
    %114 = vector.extract_strided_slice %97 {offsets = [0, 2, 2, 0], sizes = [1, 16, 16, 64], strides = [1, 1, 1, 1]} : vector<1x18x18x64xf32> to vector<1x16x16x64xf32>
    %115 = vector.shape_cast %114 : vector<1x16x16x64xf32> to vector<256x64xf32>
    %116 = tpu.concatenate %99, %101, %103, %105, %107, %109, %111, %113, %115 in 1 : vector<256x64xf32>, vector<256x64xf32>, vector<256x64xf32>, vector<256x64xf32>, vector<256x64xf32>, vector<256x64xf32>, vector<256x64xf32>, vector<256x64xf32>, vector<256x64xf32> -> vector<256x576xf32>
    %c0_28 = arith.constant 0 : index
    %c0_29 = arith.constant 0 : index
    %117 = vector.load %arg8[%c0_28, %c0_29] : memref<576x128xf32, #tpu.memory_space<vmem>>, vector<576x128xf32>
    %cst_30 = arith.constant dense<0.000000e+00> : vector<256x128xf32>
    %118 = tpu.matmul %116, %117, %cst_30 {dimension_numbers = #tpu.dot_dimension_numbers<[1], [0], [0], [1], [0, 0, 1, 1], [], []>} : vector<256x576xf32>, vector<576x128xf32>, vector<256x128xf32> -> vector<256x128xf32>
    %c0_31 = arith.constant 0 : index
    %c0_32 = arith.constant 0 : index
    %119 = vector.load %arg9[%c0_31, %c0_32] : memref<1x128xf32, #tpu.memory_space<vmem>>, vector<1x128xf32>
    %120 = vector.broadcast %119 : vector<1x128xf32> to vector<256x128xf32>
    %121 = arith.addf %118, %120 : vector<256x128xf32>
    %cst_33 = arith.constant 0.000000e+00 : f32
    %122 = vector.broadcast %cst_33 : f32 to vector<256x128xf32>
    %123 = arith.maximumf %121, %122 : vector<256x128xf32>
    %124 = vector.shape_cast %123 : vector<256x128xf32> to vector<1x16x16x128xf32>
    %cst_34 = arith.constant 0.000000e+00 : f32
    %125 = vector.broadcast %cst_34 : f32 to vector<1x16x1x128xf32>
    %126 = tpu.concatenate %125, %124, %125 in 2 : vector<1x16x1x128xf32>, vector<1x16x16x128xf32>, vector<1x16x1x128xf32> -> vector<1x16x18x128xf32>
    %cst_35 = arith.constant 0.000000e+00 : f32
    %127 = vector.broadcast %cst_35 : f32 to vector<1x1x18x128xf32>
    %128 = tpu.concatenate %127, %126, %127 in 1 : vector<1x1x18x128xf32>, vector<1x16x18x128xf32>, vector<1x1x18x128xf32> -> vector<1x18x18x128xf32>
    %129 = vector.extract_strided_slice %128 {offsets = [0, 0, 0, 0], sizes = [1, 16, 16, 128], strides = [1, 1, 1, 1]} : vector<1x18x18x128xf32> to vector<1x16x16x128xf32>
    %130 = vector.shape_cast %129 : vector<1x16x16x128xf32> to vector<256x128xf32>
    %131 = vector.extract_strided_slice %128 {offsets = [0, 0, 1, 0], sizes = [1, 16, 16, 128], strides = [1, 1, 1, 1]} : vector<1x18x18x128xf32> to vector<1x16x16x128xf32>
    %132 = vector.shape_cast %131 : vector<1x16x16x128xf32> to vector<256x128xf32>
    %133 = vector.extract_strided_slice %128 {offsets = [0, 0, 2, 0], sizes = [1, 16, 16, 128], strides = [1, 1, 1, 1]} : vector<1x18x18x128xf32> to vector<1x16x16x128xf32>
    %134 = vector.shape_cast %133 : vector<1x16x16x128xf32> to vector<256x128xf32>
    %135 = vector.extract_strided_slice %128 {offsets = [0, 1, 0, 0], sizes = [1, 16, 16, 128], strides = [1, 1, 1, 1]} : vector<1x18x18x128xf32> to vector<1x16x16x128xf32>
    %136 = vector.shape_cast %135 : vector<1x16x16x128xf32> to vector<256x128xf32>
    %137 = vector.extract_strided_slice %128 {offsets = [0, 1, 1, 0], sizes = [1, 16, 16, 128], strides = [1, 1, 1, 1]} : vector<1x18x18x128xf32> to vector<1x16x16x128xf32>
    %138 = vector.shape_cast %137 : vector<1x16x16x128xf32> to vector<256x128xf32>
    %139 = vector.extract_strided_slice %128 {offsets = [0, 1, 2, 0], sizes = [1, 16, 16, 128], strides = [1, 1, 1, 1]} : vector<1x18x18x128xf32> to vector<1x16x16x128xf32>
    %140 = vector.shape_cast %139 : vector<1x16x16x128xf32> to vector<256x128xf32>
    %141 = vector.extract_strided_slice %128 {offsets = [0, 2, 0, 0], sizes = [1, 16, 16, 128], strides = [1, 1, 1, 1]} : vector<1x18x18x128xf32> to vector<1x16x16x128xf32>
    %142 = vector.shape_cast %141 : vector<1x16x16x128xf32> to vector<256x128xf32>
    %143 = vector.extract_strided_slice %128 {offsets = [0, 2, 1, 0], sizes = [1, 16, 16, 128], strides = [1, 1, 1, 1]} : vector<1x18x18x128xf32> to vector<1x16x16x128xf32>
    %144 = vector.shape_cast %143 : vector<1x16x16x128xf32> to vector<256x128xf32>
    %145 = vector.extract_strided_slice %128 {offsets = [0, 2, 2, 0], sizes = [1, 16, 16, 128], strides = [1, 1, 1, 1]} : vector<1x18x18x128xf32> to vector<1x16x16x128xf32>
    %146 = vector.shape_cast %145 : vector<1x16x16x128xf32> to vector<256x128xf32>
    %147 = tpu.concatenate %130, %132, %134, %136, %138, %140, %142, %144, %146 in 1 : vector<256x128xf32>, vector<256x128xf32>, vector<256x128xf32>, vector<256x128xf32>, vector<256x128xf32>, vector<256x128xf32>, vector<256x128xf32>, vector<256x128xf32>, vector<256x128xf32> -> vector<256x1152xf32>
    %c0_36 = arith.constant 0 : index
    %c0_37 = arith.constant 0 : index
    %148 = vector.load %arg10[%c0_36, %c0_37] : memref<1152x1xf32, #tpu.memory_space<vmem>>, vector<1152x1xf32>
    %cst_38 = arith.constant dense<0.000000e+00> : vector<256x1xf32>
    %149 = tpu.matmul %147, %148, %cst_38 {dimension_numbers = #tpu.dot_dimension_numbers<[1], [0], [0], [1], [0, 0, 1, 1], [], []>} : vector<256x1152xf32>, vector<1152x1xf32>, vector<256x1xf32> -> vector<256x1xf32>
    %c0_39 = arith.constant 0 : index
    %c0_40 = arith.constant 0 : index
    %150 = vector.load %arg11[%c0_39, %c0_40] : memref<1x1xf32, #tpu.memory_space<vmem>>, vector<1x1xf32>
    %151 = vector.broadcast %150 : vector<1x1xf32> to vector<256x1xf32>
    %152 = arith.addf %149, %151 : vector<256x1xf32>
    %153 = vector.shape_cast %152 : vector<256x1xf32> to vector<1x256x1xf32>
    %c0_41 = arith.constant 0 : index
    %c0_42 = arith.constant 0 : index
    %c0_43 = arith.constant 0 : index
    %154 = vector.load %arg12[%c0_41, %c0_42, %c0_43] : memref<1x256x1xf32, #tpu.memory_space<vmem>>, vector<1x256x1xf32>
    tpu.vector_store %arg12[%c0_41, %c0_42, %c0_43], %153 {strides = array<i32>} : memref<1x256x1xf32, #tpu.memory_space<vmem>>, vector<1x256x1xf32>,
    return
  }
  func.func @transform_0(%arg0: i32) -> (i32, i32, i32, i32) {
    %c0_i32 = arith.constant 0 : i32
    %c0_i32_0 = arith.constant 0 : i32
    %c0_i32_1 = arith.constant 0 : i32
    %c0_i32_2 = arith.constant 0 : i32
    return %arg0, %c0_i32, %c0_i32_0, %c0_i32_1 : i32, i32, i32, i32
  }
  func.func @transform_1(%arg0: i32) -> (i32, i32) {
    %c0_i32 = arith.constant 0 : i32
    %c0_i32_0 = arith.constant 0 : i32
    %c0_i32_1 = arith.constant 0 : i32
    return %c0_i32, %c0_i32_0 : i32, i32
  }
  func.func @transform_2(%arg0: i32) -> (i32, i32) {
    %c0_i32 = arith.constant 0 : i32
    %c0_i32_0 = arith.constant 0 : i32
    %c0_i32_1 = arith.constant 0 : i32
    return %c0_i32, %c0_i32_0 : i32, i32
  }
  func.func @transform_3(%arg0: i32) -> (i32, i32) {
    %c0_i32 = arith.constant 0 : i32
    %c0_i32_0 = arith.constant 0 : i32
    %c0_i32_1 = arith.constant 0 : i32
    return %c0_i32, %c0_i32_0 : i32, i32
  }
  func.func @transform_4(%arg0: i32) -> (i32, i32) {
    %c0_i32 = arith.constant 0 : i32
    %c0_i32_0 = arith.constant 0 : i32
    %c0_i32_1 = arith.constant 0 : i32
    return %c0_i32, %c0_i32_0 : i32, i32
  }
  func.func @transform_5(%arg0: i32) -> (i32, i32) {
    %c0_i32 = arith.constant 0 : i32
    %c0_i32_0 = arith.constant 0 : i32
    %c0_i32_1 = arith.constant 0 : i32
    return %c0_i32, %c0_i32_0 : i32, i32
  }
  func.func @transform_6(%arg0: i32) -> (i32, i32) {
    %c0_i32 = arith.constant 0 : i32
    %c0_i32_0 = arith.constant 0 : i32
    %c0_i32_1 = arith.constant 0 : i32
    return %c0_i32, %c0_i32_0 : i32, i32
  }
  func.func @transform_7(%arg0: i32) -> (i32, i32) {
    %c0_i32 = arith.constant 0 : i32
    %c0_i32_0 = arith.constant 0 : i32
    %c0_i32_1 = arith.constant 0 : i32
    return %c0_i32, %c0_i32_0 : i32, i32
  }
  func.func @transform_8(%arg0: i32) -> (i32, i32) {
    %c0_i32 = arith.constant 0 : i32
    %c0_i32_0 = arith.constant 0 : i32
    %c0_i32_1 = arith.constant 0 : i32
    return %c0_i32, %c0_i32_0 : i32, i32
  }
  func.func @transform_9(%arg0: i32) -> (i32, i32) {
    %c0_i32 = arith.constant 0 : i32
    %c0_i32_0 = arith.constant 0 : i32
    %c0_i32_1 = arith.constant 0 : i32
    return %c0_i32, %c0_i32_0 : i32, i32
  }
  func.func @transform_10(%arg0: i32) -> (i32, i32) {
    %c0_i32 = arith.constant 0 : i32
    %c0_i32_0 = arith.constant 0 : i32
    %c0_i32_1 = arith.constant 0 : i32
    return %c0_i32, %c0_i32_0 : i32, i32
  }
  func.func @transform_11(%arg0: i32) -> (i32, i32, i32) {
    %c0_i32 = arith.constant 0 : i32
    %c0_i32_0 = arith.constant 0 : i32
    %c0_i32_1 = arith.constant 0 : i32
    return %arg0, %c0_i32, %c0_i32_0 : i32, i32, i32
  }
}

</mosaic_0001>

<llo_original>
// kernel: tpu_custom_call.1
$region0: #{tpu_custom_call.1}
  #allocation0 [shape = 'u32[]', space=smem, size = 0x4, offset = 0x4, fixed_abs, tag = 'smem constant byte address 0x4 - core index']
  #allocation1 [shape = 'u32[72,128]{1,0:T(1,128)}', space=vmem, size = 0x9000, scoped, tag = 'internal scratch']
  #allocation2 [shape = 'f32[1,1]{1,0:T(1,128)S(1)}', space=vmem, size = 0x200, scoped, tag = 'scoped memory for tpu_custom_call.1']
  %s0 = inlined_call_operand.vmem [shape: f32[2,16,16,4], index: 0, kind: input, shape index: {}]
  %s1 = inlined_call_operand.vmem [shape: f32[36,16], index: 1, kind: input, shape index: {}]
  %s2 = inlined_call_operand.vmem [shape: f32[1,16], index: 2, kind: input, shape index: {}]
  %s3 = inlined_call_operand.vmem [shape: f32[144,32], index: 3, kind: input, shape index: {}]
  %s4 = inlined_call_operand.vmem [shape: f32[1,32], index: 4, kind: input, shape index: {}]
  %s5 = inlined_call_operand.vmem [shape: f32[288,64], index: 5, kind: input, shape index: {}]
  %s6 = inlined_call_operand.vmem [shape: f32[1,64], index: 6, kind: input, shape index: {}]
  %s7 = inlined_call_operand.vmem [shape: f32[576,128], index: 7, kind: input, shape index: {}]
  %s8 = inlined_call_operand.vmem [shape: f32[1,128], index: 8, kind: input, shape index: {}]
  %s9 = inlined_call_operand.vmem [shape: f32[1152,1], index: 9, kind: input, shape index: {}]
  %s10 = inlined_call_operand.<no memory space> [shape: f32[1,1], index: 10, kind: input, shape index: {}]
  %s11 = inlined_call_operand.vmem [shape: f32[2,256,1], index: 11, kind: output, shape index: {}]
  %s12 = sld [smem:[#allocation0]]
  $region77: #{tpu_custom_call.1} parent=0
    _
  %s14 = ssub.s32 1, %s12
  %s15 = scalar_select 0, %s14, %s12
  %v16 = vstv %s10
  %17 = vst [vmem:[#allocation2] sm:$0x1] %v16
  loop: start=0, step=1, limit=4
  $region2: #{tpu_custom_call.1} parent=0 // loop_pre_header
    _
  $region3: #{tpu_custom_call.1} parent=0 // loop_header
    %s19 = sphi 0, %s23
    %p20 = scmp.ge.s32.totalorder %s19, 4
    %s29 = sphi 0, %s31
    %s32 = sphi 0, %s29
    %s33 = sphi 0, %s32
    %s49 = sphi 0, %s33
    %s53 = sphi 0, %s53
    %s55 = sphi 0, %s53
    %s56 = sphi 0, %s55
    %s70 = sphi 0, %s56
    %s74 = sphi 0, %s74
    %s76 = sphi 0, %s74
    %s77 = sphi 0, %s76
    %s91 = sphi 0, %s77
    %s95 = sphi 0, %s95
    %s97 = sphi 0, %s95
    %s98 = sphi 0, %s97
    %s112 = sphi 0, %s98
    %s116 = sphi 0, %s116
    %s118 = sphi 0, %s116
    %s119 = sphi 0, %s118
    %s133 = sphi 0, %s119
    %s137 = sphi 0, %s137
    %s139 = sphi 0, %s137
    %s140 = sphi 0, %s139
    %s154 = sphi 0, %s140
    %s158 = sphi 0, %s158
    %s160 = sphi 0, %s158
    %s161 = sphi 0, %s160
    %s175 = sphi 0, %s161
    %s179 = sphi 0, %s179
    %s181 = sphi 0, %s179
    %s182 = sphi 0, %s181
    %s196 = sphi 0, %s182
    %s200 = sphi 0, %s200
    %s202 = sphi 0, %s200
    %s203 = sphi 0, %s202
    %s217 = sphi 0, %s203
    %s221 = sphi 0, %s221
    %s223 = sphi 0, %s221
    %s224 = sphi 0, %s223
    %s238 = sphi 0, %s224
    %s242 = sphi 0, %s242
    %s244 = sphi 0, %s242
    %s245 = sphi 0, %s244
    %s259 = sphi 0, %s245
    %s265 = sphi 0, %s267
    %s268 = sphi 0, %s265
    %s269 = sphi 0, %s268
    %s285 = sphi 0, %s269
  $region4: #{tpu_custom_call.1} parent=0 // loop_header_branch
    %22 = sbr.rel (%p20) target = $region8
  $region5: #{tpu_custom_call.1} parent=0 // loop_body
    %s24 = ssub.s32 %s19, 1
    %s25 = ssub.s32 %s19, 2
    %s26 = sadd.s32 %s19, 1
    %s27 = ssub.s32 %s19, %s26
    %p28 = scmp.eq.s32.totalorder %s27, 0
    %s30 = sadd.s32 %s29, 1
    %s31 = scalar_select %p28, %s29, %s30
    %p34 = pneg %p28
    %p35 = scmp.eq.s32.totalorder %s19, 1
    %p36 = por %p34, %p35
    %p37 = scmp.ne.s32.totalorder %s29, %s32
    %p38 = scmp.eq.s32.totalorder %s19, 0
    %p39 = por %p37, %p38
    %p40 = scmp.ne.s32.totalorder %s29, %s32
    %p41 = scmp.eq.s32.totalorder %s24, 1
    %p42 = por %p40, %p41
    %p43 = scmp.ne.s32.totalorder %s32, %s33
    %p44 = scmp.eq.s32.totalorder %s24, 0
    %p45 = por %p43, %p44
    %p46 = scmp.ne.s32.totalorder %s32, %s33
    %p47 = scmp.eq.s32.totalorder %s25, 1
    %p48 = por %p46, %p47
    %p50 = scmp.ne.s32.totalorder %s33, %s49
    %p51 = scmp.eq.s32.totalorder %s25, 0
    %p52 = por %p50, %p51
    %s54 = sadd.s32 %s53, 1
    %p57 = scmp.eq.s32.totalorder %s19, 1
    %p58 = scmp.ne.s32.totalorder %s53, %s55
    %p59 = scmp.eq.s32.totalorder %s19, 0
    %p60 = por %p58, %p59
    %p61 = scmp.ne.s32.totalorder %s53, %s55
    %p62 = scmp.eq.s32.totalorder %s24, 1
    %p63 = por %p61, %p62
    %p64 = scmp.ne.s32.totalorder %s55, %s56
    %p65 = scmp.eq.s32.totalorder %s24, 0
    %p66 = por %p64, %p65
    %p67 = scmp.ne.s32.totalorder %s55, %s56
    %p68 = scmp.eq.s32.totalorder %s25, 1
    %p69 = por %p67, %p68
    %p71 = scmp.ne.s32.totalorder %s56, %s70
    %p72 = scmp.eq.s32.totalorder %s25, 0
    %p73 = por %p71, %p72
    %s75 = sadd.s32 %s74, 1
    %p78 = scmp.eq.s32.totalorder %s19, 1
    %p79 = scmp.ne.s32.totalorder %s74, %s76
    %p80 = scmp.eq.s32.totalorder %s19, 0
    %p81 = por %p79, %p80
    %p82 = scmp.ne.s32.totalorder %s74, %s76
    %p83 = scmp.eq.s32.totalorder %s24, 1
    %p84 = por %p82, %p83
    %p85 = scmp.ne.s32.totalorder %s76, %s77
    %p86 = scmp.eq.s32.totalorder %s24, 0
    %p87 = por %p85, %p86
    %p88 = scmp.ne.s32.totalorder %s76, %s77
    %p89 = scmp.eq.s32.totalorder %s25, 1
    %p90 = por %p88, %p89
    %p92 = scmp.ne.s32.totalorder %s77, %s91
    %p93 = scmp.eq.s32.totalorder %s25, 0
    %p94 = por %p92, %p93
    %s96 = sadd.s32 %s95, 1
    %p99 = scmp.eq.s32.totalorder %s19, 1
    %p100 = scmp.ne.s32.totalorder %s95, %s97
    %p101 = scmp.eq.s32.totalorder %s19, 0
    %p102 = por %p100, %p101
    %p103 = scmp.ne.s32.totalorder %s95, %s97
    %p104 = scmp.eq.s32.totalorder %s24, 1
    %p105 = por %p103, %p104
    %p106 = scmp.ne.s32.totalorder %s97, %s98
    %p107 = scmp.eq.s32.totalorder %s24, 0
    %p108 = por %p106, %p107
    %p109 = scmp.ne.s32.totalorder %s97, %s98
    %p110 = scmp.eq.s32.totalorder %s25, 1
    %p111 = por %p109, %p110
    %p113 = scmp.ne.s32.totalorder %s98, %s112
    %p114 = scmp.eq.s32.totalorder %s25, 0
    %p115 = por %p113, %p114
    %s117 = sadd.s32 %s116, 1
    %p120 = scmp.eq.s32.totalorder %s19, 1
    %p121 = scmp.ne.s32.totalorder %s116, %s118
    %p122 = scmp.eq.s32.totalorder %s19, 0
    %p123 = por %p121, %p122
    %p124 = scmp.ne.s32.totalorder %s116, %s118
    %p125 = scmp.eq.s32.totalorder %s24, 1
    %p126 = por %p124, %p125
    %p127 = scmp.ne.s32.totalorder %s118, %s119
    %p128 = scmp.eq.s32.totalorder %s24, 0
    %p129 = por %p127, %p128
    %p130 = scmp.ne.s32.totalorder %s118, %s119
    %p131 = scmp.eq.s32.totalorder %s25, 1
    %p132 = por %p130, %p131
    %p134 = scmp.ne.s32.totalorder %s119, %s133
    %p135 = scmp.eq.s32.totalorder %s25, 0
    %p136 = por %p134, %p135
    %s138 = sadd.s32 %s137, 1
    %p141 = scmp.eq.s32.totalorder %s19, 1
    %p142 = scmp.ne.s32.totalorder %s137, %s139
    %p143 = scmp.eq.s32.totalorder %s19, 0
    %p144 = por %p142, %p143
    %p145 = scmp.ne.s32.totalorder %s137, %s139
    %p146 = scmp.eq.s32.totalorder %s24, 1
    %p147 = por %p145, %p146
    %p148 = scmp.ne.s32.totalorder %s139, %s140
    %p149 = scmp.eq.s32.totalorder %s24, 0
    %p150 = por %p148, %p149
    %p151 = scmp.ne.s32.totalorder %s139, %s140
    %p152 = scmp.eq.s32.totalorder %s25, 1
    %p153 = por %p151, %p152
    %p155 = scmp.ne.s32.totalorder %s140, %s154
    %p156 = scmp.eq.s32.totalorder %s25, 0
    %p157 = por %p155, %p156
    %s159 = sadd.s32 %s158, 1
    %p162 = scmp.eq.s32.totalorder %s19, 1
    %p163 = scmp.ne.s32.totalorder %s158, %s160
    %p164 = scmp.eq.s32.totalorder %s19, 0
    %p165 = por %p163, %p164
    %p166 = scmp.ne.s32.totalorder %s158, %s160
    %p167 = scmp.eq.s32.totalorder %s24, 1
    %p168 = por %p166, %p167
    %p169 = scmp.ne.s32.totalorder %s160, %s161
    %p170 = scmp.eq.s32.totalorder %s24, 0
    %p171 = por %p169, %p170
    %p172 = scmp.ne.s32.totalorder %s160, %s161
    %p173 = scmp.eq.s32.totalorder %s25, 1
    %p174 = por %p172, %p173
    %p176 = scmp.ne.s32.totalorder %s161, %s175
    %p177 = scmp.eq.s32.totalorder %s25, 0
    %p178 = por %p176, %p177
    %s180 = sadd.s32 %s179, 1
    %p183 = scmp.eq.s32.totalorder %s19, 1
    %p184 = scmp.ne.s32.totalorder %s179, %s181
    %p185 = scmp.eq.s32.totalorder %s19, 0
    %p186 = por %p184, %p185
    %p187 = scmp.ne.s32.totalorder %s179, %s181
    %p188 = scmp.eq.s32.totalorder %s24, 1
    %p189 = por %p187, %p188
    %p190 = scmp.ne.s32.totalorder %s181, %s182
    %p191 = scmp.eq.s32.totalorder %s24, 0
    %p192 = por %p190, %p191
    %p193 = scmp.ne.s32.totalorder %s181, %s182
    %p194 = scmp.eq.s32.totalorder %s25, 1
    %p195 = por %p193, %p194
    %p197 = scmp.ne.s32.totalorder %s182, %s196
    %p198 = scmp.eq.s32.totalorder %s25, 0
    %p199 = por %p197, %p198
    %s201 = sadd.s32 %s200, 1
    %p204 = scmp.eq.s32.totalorder %s19, 1
    %p205 = scmp.ne.s32.totalorder %s200, %s202
    %p206 = scmp.eq.s32.totalorder %s19, 0
    %p207 = por %p205, %p206
    %p208 = scmp.ne.s32.totalorder %s200, %s202
    %p209 = scmp.eq.s32.totalorder %s24, 1
    %p210 = por %p208, %p209
    %p211 = scmp.ne.s32.totalorder %s202, %s203
    %p212 = scmp.eq.s32.totalorder %s24, 0
    %p213 = por %p211, %p212
    %p214 = scmp.ne.s32.totalorder %s202, %s203
    %p215 = scmp.eq.s32.totalorder %s25, 1
    %p216 = por %p214, %p215
    %p218 = scmp.ne.s32.totalorder %s203, %s217
    %p219 = scmp.eq.s32.totalorder %s25, 0
    %p220 = por %p218, %p219
    %s222 = sadd.s32 %s221, 1
    %p225 = scmp.eq.s32.totalorder %s19, 1
    %p226 = scmp.ne.s32.totalorder %s221, %s223
    %p227 = scmp.eq.s32.totalorder %s19, 0
    %p228 = por %p226, %p227
    %p229 = scmp.ne.s32.totalorder %s221, %s223
    %p230 = scmp.eq.s32.totalorder %s24, 1
    %p231 = por %p229, %p230
    %p232 = scmp.ne.s32.totalorder %s223, %s224
    %p233 = scmp.eq.s32.totalorder %s24, 0
    %p234 = por %p232, %p233
    %p235 = scmp.ne.s32.totalorder %s223, %s224
    %p236 = scmp.eq.s32.totalorder %s25, 1
    %p237 = por %p235, %p236
    %p239 = scmp.ne.s32.totalorder %s224, %s238
    %p240 = scmp.eq.s32.totalorder %s25, 0
    %p241 = por %p239, %p240
    %s243 = sadd.s32 %s242, 1
    %p246 = scmp.eq.s32.totalorder %s19, 1
    %p247 = scmp.ne.s32.totalorder %s242, %s244
    %p248 = scmp.eq.s32.totalorder %s19, 0
    %p249 = por %p247, %p248
    %p250 = scmp.ne.s32.totalorder %s242, %s244
    %p251 = scmp.eq.s32.totalorder %s24, 1
    %p252 = por %p250, %p251
    %p253 = scmp.ne.s32.totalorder %s244, %s245
    %p254 = scmp.eq.s32.totalorder %s24, 0
    %p255 = por %p253, %p254
    %p256 = scmp.ne.s32.totalorder %s244, %s245
    %p257 = scmp.eq.s32.totalorder %s25, 1
    %p258 = por %p256, %p257
    %p260 = scmp.ne.s32.totalorder %s245, %s259
    %p261 = scmp.eq.s32.totalorder %s25, 0
    %p262 = por %p260, %p261
    %s263 = ssub.s32 %s19, %s26
    %p264 = scmp.eq.s32.totalorder %s263, 0
    %s266 = sadd.s32 %s265, 1
    %s267 = scalar_select %p264, %s265, %s266
    %p270 = pneg %p264
    %p271 = scmp.eq.s32.totalorder %s19, 1
    %p272 = por %p270, %p271
    %p273 = scmp.ne.s32.totalorder %s265, %s268
    %p274 = scmp.eq.s32.totalorder %s19, 0
    %p275 = por %p273, %p274
    %p276 = scmp.ne.s32.totalorder %s265, %s268
    %p277 = scmp.eq.s32.totalorder %s24, 1
    %p278 = por %p276, %p277
    %p279 = scmp.ne.s32.totalorder %s268, %s269
    %p280 = scmp.eq.s32.totalorder %s24, 0
    %p281 = por %p279, %p280
    %p282 = scmp.ne.s32.totalorder %s268, %s269
    %p283 = scmp.eq.s32.totalorder %s25, 1
    %p284 = por %p282, %p283
    %p286 = scmp.ne.s32.totalorder %s269, %s285
    %p287 = scmp.eq.s32.totalorder %s25, 0
    %p288 = por %p286, %p287
    %p289 = scmp.le.s32.totalorder 1, %s19
    %p290 = scmp.lt.s32.totalorder %s19, 3
    %p291 = pnand %p289, %p290
    %p292 = pneg %p291
    // Predicated region
    $region9: #{tpu_custom_call.1} parent=5 // pred_check
      _
    $region10: #{tpu_custom_call.1} parent=5 // pred_check_branch
      %294 = sbr.rel (%p291) target = $region12
    $region11: #{tpu_custom_call.1} parent=5 // pred_region
      %s295 = ssub.s32 %s19, 1
      // Predicated region
      $region13: #{tpu_custom_call.1} parent=11 // pred_check
        %p296 = pneg %p66
      $region14: #{tpu_custom_call.1} parent=11 // pred_check_branch
        %298 = sbr.rel (%p296) target = $region16
      $region15: #{tpu_custom_call.1} parent=11 // pred_region
        _
      $region16: #{tpu_custom_call.1} parent=11 // pred_fallthru
        _
      // Predicated region
      $region17: #{tpu_custom_call.1} parent=11 // pred_check
        %p299 = pneg %p87
      $region18: #{tpu_custom_call.1} parent=11 // pred_check_branch
        %301 = sbr.rel (%p299) target = $region20
      $region19: #{tpu_custom_call.1} parent=11 // pred_region
        _
      $region20: #{tpu_custom_call.1} parent=11 // pred_fallthru
        _
      // Predicated region
      $region21: #{tpu_custom_call.1} parent=11 // pred_check
        %p302 = pneg %p108
      $region22: #{tpu_custom_call.1} parent=11 // pred_check_branch
        %304 = sbr.rel (%p302) target = $region24
      $region23: #{tpu_custom_call.1} parent=11 // pred_region
        _
      $region24: #{tpu_custom_call.1} parent=11 // pred_fallthru
        _
      // Predicated region
      $region25: #{tpu_custom_call.1} parent=11 // pred_check
        %p305 = pneg %p129
      $region26: #{tpu_custom_call.1} parent=11 // pred_check_branch
        %307 = sbr.rel (%p305) target = $region28
      $region27: #{tpu_custom_call.1} parent=11 // pred_region
        _
      $region28: #{tpu_custom_call.1} parent=11 // pred_fallthru
        _
      // Predicated region
      $region29: #{tpu_custom_call.1} parent=11 // pred_check
        %p308 = pneg %p150
      $region30: #{tpu_custom_call.1} parent=11 // pred_check_branch
        %310 = sbr.rel (%p308) target = $region32
      $region31: #{tpu_custom_call.1} parent=11 // pred_region
        _
      $region32: #{tpu_custom_call.1} parent=11 // pred_fallthru
        _
      // Predicated region
      $region33: #{tpu_custom_call.1} parent=11 // pred_check
        %p311 = pneg %p171
      $region34: #{tpu_custom_call.1} parent=11 // pred_check_branch
        %313 = sbr.rel (%p311) target = $region36
      $region35: #{tpu_custom_call.1} parent=11 // pred_region
        _
      $region36: #{tpu_custom_call.1} parent=11 // pred_fallthru
        _
      // Predicated region
      $region37: #{tpu_custom_call.1} parent=11 // pred_check
        %p314 = pneg %p192
      $region38: #{tpu_custom_call.1} parent=11 // pred_check_branch
        %316 = sbr.rel (%p314) target = $region40
      $region39: #{tpu_custom_call.1} parent=11 // pred_region
        _
      $region40: #{tpu_custom_call.1} parent=11 // pred_fallthru
        _
      // Predicated region
      $region41: #{tpu_custom_call.1} parent=11 // pred_check
        %p317 = pneg %p213
      $region42: #{tpu_custom_call.1} parent=11 // pred_check_branch
        %319 = sbr.rel (%p317) target = $region44
      $region43: #{tpu_custom_call.1} parent=11 // pred_region
        _
      $region44: #{tpu_custom_call.1} parent=11 // pred_fallthru
        _
      // Predicated region
      $region45: #{tpu_custom_call.1} parent=11 // pred_check
        %p320 = pneg %p234
      $region46: #{tpu_custom_call.1} parent=11 // pred_check_branch
        %322 = sbr.rel (%p320) target = $region48
      $region47: #{tpu_custom_call.1} parent=11 // pred_region
        _
      $region48: #{tpu_custom_call.1} parent=11 // pred_fallthru
        _
      // Predicated region
      $region49: #{tpu_custom_call.1} parent=11 // pred_check
        %p323 = pneg %p255
      $region50: #{tpu_custom_call.1} parent=11 // pred_check_branch
        %325 = sbr.rel (%p323) target = $region52
      $region51: #{tpu_custom_call.1} parent=11 // pred_region
        _
      $region52: #{tpu_custom_call.1} parent=11 // pred_fallthru
        _
    $region12: #{tpu_custom_call.1} parent=5 // pred_fallthru
      _
    %p326 = scmp.lt.s32.totalorder %s19, 2
    // Predicated region
    $region53: #{tpu_custom_call.1} parent=5 // pred_check
      %p327 = pneg %p326
    $region54: #{tpu_custom_call.1} parent=5 // pred_check_branch
      %329 = sbr.rel (%p327) target = $region56
    $region55: #{tpu_custom_call.1} parent=5 // pred_region
      // Predicated region
      $region57: #{tpu_custom_call.1} parent=55 // pred_check
        %p330 = pneg %p39
      $region58: #{tpu_custom_call.1} parent=55 // pred_check_branch
        %332 = sbr.rel (%p330) target = $region60
      $region59: #{tpu_custom_call.1} parent=55 // pred_region
        %p333 = scmp.lt.s32.totalorder %s19, 1
        %s334 = scalar_select %p333, %s19, 1
        %s335 = smul.addr %s334, 32
        %s336 = smul.addr %s335, 8
        %s337 = scalar_lea.vmem %s0, %s336
      $region60: #{tpu_custom_call.1} parent=55 // pred_fallthru
        _
    $region56: #{tpu_custom_call.1} parent=5 // pred_fallthru
      _
    %p338 = scmp.le.s32.totalorder 1, %s19
    %p339 = scmp.lt.s32.totalorder %s19, 3
    %p340 = pnand %p338, %p339
    %p341 = pneg %p340
    // Predicated region
    $region61: #{tpu_custom_call.1} parent=5 // pred_check
      _
    $region62: #{tpu_custom_call.1} parent=5 // pred_check_branch
      %343 = sbr.rel (%p340) target = $region64
    $region63: #{tpu_custom_call.1} parent=5 // pred_region
      %s344 = ssub.s32 %s19, 1
      %p345 = scmp.lt.s32.totalorder %s24, 1
      %s346 = scalar_select %p345, %s24, 1
      %s347 = smul.addr %s346, 32
      %s348 = smul.addr %s347, 8
      %s349 = scalar_lea.vmem %s0, %s348
      %p350 = pneg %p45
      %p351 = pneg %p42
      %p352 = pneg %p66
      %p353 = pneg %p63
      %p354 = pneg %p87
      %p355 = pneg %p84
      %p356 = pneg %p108
      %p357 = pneg %p105
      %p358 = pneg %p129
      %p359 = pneg %p126
      %p360 = pneg %p150
      %p361 = pneg %p147
      %p362 = pneg %p171
      %p363 = pneg %p168
      %p364 = pneg %p192
      %p365 = pneg %p189
      %p366 = pneg %p213
      %p367 = pneg %p210
      %p368 = pneg %p234
      %p369 = pneg %p231
      %p370 = pneg %p255
      %p371 = pneg %p252
      %p372 = pneg %p281
      %p373 = pneg %p278
      %p374 = scmp.lt.s32.totalorder %s24, 1
      %s375 = scalar_select %p374, %s24, 1
      %s376 = smul.addr %s375, 32
      %s377 = smul.addr %s376, 8
      %s378 = scalar_lea.vmem %s11, %s377
      %p379 = scmp.lt.s32.totalorder %s24, 1
      %s380 = scalar_select %p379, %s24, 1
      %s381 = smul.addr %s380, 32
      %s382 = smul.addr %s381, 8
      %s383 = scalar_lea.vmem %s0, %s382
      %p384 = scmp.lt.s32.totalorder %s24, 1
      %s385 = scalar_select %p384, %s24, 1
      %s386 = smul.addr %s385, 32
      %s387 = smul.addr %s386, 8
      %s388 = scalar_lea.vmem %s11, %s387
      %v389 = vld [vmem:[%s383] sm:$0xff]
      %v390 = vld [vmem:[%s383 + $0x8] sm:$0xff]
      %v391 = vld [vmem:[%s383 + $0x10] sm:$0xff]
      %v392 = vld [vmem:[%s383 + $0x18] sm:$0xff]
      %v393 = vld [vmem:[%s383 + $0x20] sm:$0xff]
      %v394 = vld [vmem:[%s383 + $0x28] sm:$0xff]
      %v395 = vld [vmem:[%s383 + $0x30] sm:$0xff]
      %v396 = vld [vmem:[%s383 + $0x38] sm:$0xff]
      %v397 = vld [vmem:[%s383 + $0x40] sm:$0xff]
      %v398 = vld [vmem:[%s383 + $0x48] sm:$0xff]
      %v399 = vld [vmem:[%s383 + $0x50] sm:$0xff]
      %v400 = vld [vmem:[%s383 + $0x58] sm:$0xff]
      %v401 = vld [vmem:[%s383 + $0x60] sm:$0xff]
      %v402 = vld [vmem:[%s383 + $0x68] sm:$0xff]
      %v403 = vld [vmem:[%s383 + $0x70] sm:$0xff]
      %v404 = vld [vmem:[%s383 + $0x78] sm:$0xff]
      %v405 = vld [vmem:[%s383 + $0x80] sm:$0xff]
      %v406 = vld [vmem:[%s383 + $0x88] sm:$0xff]
      %v407 = vld [vmem:[%s383 + $0x90] sm:$0xff]
      %v408 = vld [vmem:[%s383 + $0x98] sm:$0xff]
      %v409 = vld [vmem:[%s383 + $0xa0] sm:$0xff]
      %v410 = vld [vmem:[%s383 + $0xa8] sm:$0xff]
      %v411 = vld [vmem:[%s383 + $0xb0] sm:$0xff]
      %v412 = vld [vmem:[%s383 + $0xb8] sm:$0xff]
      %v413 = vld [vmem:[%s383 + $0xc0] sm:$0xff]
      %v414 = vld [vmem:[%s383 + $0xc8] sm:$0xff]
      %v415 = vld [vmem:[%s383 + $0xd0] sm:$0xff]
      %v416 = vld [vmem:[%s383 + $0xd8] sm:$0xff]
      %v417 = vld [vmem:[%s383 + $0xe0] sm:$0xff]
      %v418 = vld [vmem:[%s383 + $0xe8] sm:$0xff]
      %v419 = vld [vmem:[%s383 + $0xf0] sm:$0xff]
      %v420 = vld [vmem:[%s383 + $0xf8] sm:$0xff]
      %vm453 = vcmask 1040384
      %v454 = vrot.slane %v389, 7
      %v455 = vrot.slane %v390, 7
      %v456 = vsel %vm453, %v454, %v455
      %v457 = vrot.slane %v391, 7
      %v458 = vrot.slane %v392, 7
      %v459 = vsel %vm453, %v457, %v458
      %v460 = vrot.slane %v393, 7
      %v461 = vrot.slane %v394, 7
      %v462 = vsel %vm453, %v460, %v461
      %v463 = vrot.slane %v395, 7
      %v464 = vrot.slane %v396, 7
      %v465 = vsel %vm453, %v463, %v464
      %v466 = vrot.slane %v397, 7
      %v467 = vrot.slane %v398, 7
      %v468 = vsel %vm453, %v466, %v467
      %v469 = vrot.slane %v399, 7
      %v470 = vrot.slane %v400, 7
      %v471 = vsel %vm453, %v469, %v470
      %v472 = vrot.slane %v401, 7
      %v473 = vrot.slane %v402, 7
      %v474 = vsel %vm453, %v472, %v473
      %v475 = vrot.slane %v403, 7
      %v476 = vrot.slane %v404, 7
      %v477 = vsel %vm453, %v475, %v476
      %v478 = vrot.slane %v405, 7
      %v479 = vrot.slane %v406, 7
      %v480 = vsel %vm453, %v478, %v479
      %v481 = vrot.slane %v407, 7
      %v482 = vrot.slane %v408, 7
      %v483 = vsel %vm453, %v481, %v482
      %v484 = vrot.slane %v409, 7
      %v485 = vrot.slane %v410, 7
      %v486 = vsel %vm453, %v484, %v485
      %v487 = vrot.slane %v411, 7
      %v488 = vrot.slane %v412, 7
      %v489 = vsel %vm453, %v487, %v488
      %v490 = vrot.slane %v413, 7
      %v491 = vrot.slane %v414, 7
      %v492 = vsel %vm453, %v490, %v491
      %v493 = vrot.slane %v415, 7
      %v494 = vrot.slane %v416, 7
      %v495 = vsel %vm453, %v493, %v494
      %v496 = vrot.slane %v417, 7
      %v497 = vrot.slane %v418, 7
      %v498 = vsel %vm453, %v496, %v497
      %v499 = vrot.slane %v419, 7
      %v500 = vrot.slane %v420, 7
      %v501 = vsel %vm453, %v499, %v500
      %v549 = vsel %vm453, 0.0, %v454
      %v550 = vsel %vm453, 0.0, %v457
      %v551 = vsel %vm453, 0.0, %v460
      %v552 = vsel %vm453, 0.0, %v463
      %v553 = vsel %vm453, 0.0, %v466
      %v554 = vsel %vm453, 0.0, %v469
      %v555 = vsel %vm453, 0.0, %v472
      %v556 = vsel %vm453, 0.0, %v475
      %v557 = vsel %vm453, 0.0, %v478
      %v558 = vsel %vm453, 0.0, %v481
      %v559 = vsel %vm453, 0.0, %v484
      %v560 = vsel %vm453, 0.0, %v487
      %v561 = vsel %vm453, 0.0, %v490
      %v562 = vsel %vm453, 0.0, %v493
      %v563 = vsel %vm453, 0.0, %v496
      %v564 = vsel %vm453, 0.0, %v499
      %v565 = vsel %vm453, %v455, 0.0
      %v566 = vsel %vm453, %v458, 0.0
      %v567 = vsel %vm453, %v461, 0.0
      %v568 = vsel %vm453, %v464, 0.0
      %v569 = vsel %vm453, %v467, 0.0
      %v570 = vsel %vm453, %v470, 0.0
      %v571 = vsel %vm453, %v473, 0.0
      %v572 = vsel %vm453, %v476, 0.0
      %v573 = vsel %vm453, %v479, 0.0
      %v574 = vsel %vm453, %v482, 0.0
      %v575 = vsel %vm453, %v485, 0.0
      %v576 = vsel %vm453, %v488, 0.0
      %v577 = vsel %vm453, %v491, 0.0
      %v578 = vsel %vm453, %v494, 0.0
      %v579 = vsel %vm453, %v497, 0.0
      %v580 = vsel %vm453, %v500, 0.0
      %vm612 = vcmask 1046528
      %v613 = vrot.slane 0.0, 1
      %v614 = vsel %vm612, %v613, %v613
      %v615 = vrot.slane %v549, 1
      %v616 = vrot.slane %v456, 1
      %v617 = vsel %vm612, %v615, %v616
      %v618 = vrot.slane %v565, 1
      %v619 = vsel %vm612, %v616, %v618
      %v620 = vrot.slane %v550, 1
      %v621 = vrot.slane %v459, 1
      %v622 = vsel %vm612, %v620, %v621
      %v623 = vrot.slane %v566, 1
      %v624 = vsel %vm612, %v621, %v623
      %v625 = vrot.slane %v551, 1
      %v626 = vrot.slane %v462, 1
      %v627 = vsel %vm612, %v625, %v626
      %v628 = vrot.slane %v567, 1
      %v629 = vsel %vm612, %v626, %v628
      %v630 = vrot.slane %v552, 1
      %v631 = vrot.slane %v465, 1
      %v632 = vsel %vm612, %v630, %v631
      %v633 = vrot.slane %v568, 1
      %v634 = vsel %vm612, %v631, %v633
      %v635 = vrot.slane %v553, 1
      %v636 = vrot.slane %v468, 1
      %v637 = vsel %vm612, %v635, %v636
      %v638 = vrot.slane %v569, 1
      %v639 = vsel %vm612, %v636, %v638
      %v640 = vrot.slane %v554, 1
      %v641 = vrot.slane %v471, 1
      %v642 = vsel %vm612, %v640, %v641
      %v643 = vrot.slane %v570, 1
      %v644 = vsel %vm612, %v641, %v643
      %v645 = vrot.slane %v555, 1
      %v646 = vrot.slane %v474, 1
      %v647 = vsel %vm612, %v645, %v646
      %v648 = vrot.slane %v571, 1
      %v649 = vsel %vm612, %v646, %v648
      %v650 = vrot.slane %v556, 1
      %v651 = vrot.slane %v477, 1
      %v652 = vsel %vm612, %v650, %v651
      %v653 = vrot.slane %v572, 1
      %v654 = vsel %vm612, %v651, %v653
      %v655 = vrot.slane %v557, 1
      %v656 = vrot.slane %v480, 1
      %v657 = vsel %vm612, %v655, %v656
      %v658 = vrot.slane %v573, 1
      %v659 = vsel %vm612, %v656, %v658
      %v660 = vrot.slane %v558, 1
      %v661 = vrot.slane %v483, 1
      %v662 = vsel %vm612, %v660, %v661
      %v663 = vrot.slane %v574, 1
      %v664 = vsel %vm612, %v661, %v663
      %v665 = vrot.slane %v559, 1
      %v666 = vrot.slane %v486, 1
      %v667 = vsel %vm612, %v665, %v666
      %v668 = vrot.slane %v575, 1
      %v669 = vsel %vm612, %v666, %v668
      %v670 = vrot.slane %v560, 1
      %v671 = vrot.slane %v489, 1
      %v672 = vsel %vm612, %v670, %v671
      %v673 = vrot.slane %v576, 1
      %v674 = vsel %vm612, %v671, %v673
      %v675 = vrot.slane %v561, 1
      %v676 = vrot.slane %v492, 1
      %v677 = vsel %vm612, %v675, %v676
      %v678 = vrot.slane %v577, 1
      %v679 = vsel %vm612, %v676, %v678
      %v680 = vrot.slane %v562, 1
      %v681 = vrot.slane %v495, 1
      %v682 = vsel %vm612, %v680, %v681
      %v683 = vrot.slane %v578, 1
      %v684 = vsel %vm612, %v681, %v683
      %v685 = vrot.slane %v563, 1
      %v686 = vrot.slane %v498, 1
      %v687 = vsel %vm612, %v685, %v686
      %v688 = vrot.slane %v579, 1
      %v689 = vsel %vm612, %v686, %v688
      %vm690 = vcmask 1045504
      %v691 = vrot.slane 0.0, 2
      %v692 = vsel %vm690, %v691, %v691
      %v693 = vrot.slane %v549, 2
      %v694 = vrot.slane %v456, 2
      %v695 = vsel %vm690, %v693, %v694
      %v696 = vrot.slane %v565, 2
      %v697 = vsel %vm690, %v694, %v696
      %v698 = vrot.slane %v550, 2
      %v699 = vrot.slane %v459, 2
      %v700 = vsel %vm690, %v698, %v699
      %v701 = vrot.slane %v566, 2
      %v702 = vsel %vm690, %v699, %v701
      %v703 = vrot.slane %v551, 2
      %v704 = vrot.slane %v462, 2
      %v705 = vsel %vm690, %v703, %v704
      %v706 = vrot.slane %v567, 2
      %v707 = vsel %vm690, %v704, %v706
      %v708 = vrot.slane %v552, 2
      %v709 = vrot.slane %v465, 2
      %v710 = vsel %vm690, %v708, %v709
      %v711 = vrot.slane %v568, 2
      %v712 = vsel %vm690, %v709, %v711
      %v713 = vrot.slane %v553, 2
      %v714 = vrot.slane %v468, 2
      %v715 = vsel %vm690, %v713, %v714
      %v716 = vrot.slane %v569, 2
      %v717 = vsel %vm690, %v714, %v716
      %v718 = vrot.slane %v554, 2
      %v719 = vrot.slane %v471, 2
      %v720 = vsel %vm690, %v718, %v719
      %v721 = vrot.slane %v570, 2
      %v722 = vsel %vm690, %v719, %v721
      %v723 = vrot.slane %v555, 2
      %v724 = vrot.slane %v474, 2
      %v725 = vsel %vm690, %v723, %v724
      %v726 = vrot.slane %v571, 2
      %v727 = vsel %vm690, %v724, %v726
      %v728 = vrot.slane %v556, 2
      %v729 = vrot.slane %v477, 2
      %v730 = vsel %vm690, %v728, %v729
      %v731 = vrot.slane %v572, 2
      %v732 = vsel %vm690, %v729, %v731
      %v733 = vrot.slane %v557, 2
      %v734 = vrot.slane %v480, 2
      %v735 = vsel %vm690, %v733, %v734
      %v736 = vrot.slane %v573, 2
      %v737 = vsel %vm690, %v734, %v736
      %v738 = vrot.slane %v558, 2
      %v739 = vrot.slane %v483, 2
      %v740 = vsel %vm690, %v738, %v739
      %v741 = vrot.slane %v574, 2
      %v742 = vsel %vm690, %v739, %v741
      %v743 = vrot.slane %v559, 2
      %v744 = vrot.slane %v486, 2
      %v745 = vsel %vm690, %v743, %v744
      %v746 = vrot.slane %v575, 2
      %v747 = vsel %vm690, %v744, %v746
      %v748 = vrot.slane %v560, 2
      %v749 = vrot.slane %v489, 2
      %v750 = vsel %vm690, %v748, %v749
      %v751 = vrot.slane %v576, 2
      %v752 = vsel %vm690, %v749, %v751
      %v753 = vrot.slane %v561, 2
      %v754 = vrot.slane %v492, 2
      %v755 = vsel %vm690, %v753, %v754
      %v756 = vrot.slane %v577, 2
      %v757 = vsel %vm690, %v754, %v756
      %v758 = vrot.slane %v562, 2
      %v759 = vrot.slane %v495, 2
      %v760 = vsel %vm690, %v758, %v759
      %v761 = vrot.slane %v578, 2
      %v762 = vsel %vm690, %v759, %v761
      %v763 = vrot.slane %v563, 2
      %v764 = vrot.slane %v498, 2
      %v765 = vsel %vm690, %v763, %v764
      %v766 = vrot.slane %v579, 2
      %v767 = vsel %vm690, %v764, %v766
      %v770 = vrot.slane %v564, 1
      %v771 = vrot.slane %v501, 1
      %v772 = vsel %vm612, %v770, %v771
      %v773 = vrot.slane %v580, 1
      %v774 = vsel %vm612, %v771, %v773
      %v775 = vrot.slane %v564, 2
      %v776 = vrot.slane %v501, 2
      %v777 = vsel %vm690, %v775, %v776
      %v778 = vrot.slane %v580, 2
      %v779 = vsel %vm690, %v776, %v778
      %780 = vrot.lane.b32.xlu0 %v614, 4
      %v781 = vpop.permute.xlu0 %780
      %782 = vrot.lane.b32.xlu0 %v617, 4
      %v783 = vpop.permute.xlu0 %782
      %784 = vrot.lane.b32.xlu0 %v619, 4
      %v785 = vpop.permute.xlu0 %784
      %786 = vrot.lane.b32.xlu0 %v622, 4
      %v787 = vpop.permute.xlu0 %786
      %788 = vrot.lane.b32.xlu0 %v624, 4
      %v789 = vpop.permute.xlu0 %788
      %790 = vrot.lane.b32.xlu0 %v627, 4
      %v791 = vpop.permute.xlu0 %790
      %792 = vrot.lane.b32.xlu0 %v629, 4
      %v793 = vpop.permute.xlu0 %792
      %794 = vrot.lane.b32.xlu0 %v632, 4
      %v795 = vpop.permute.xlu0 %794
      %796 = vrot.lane.b32.xlu0 %v634, 4
      %v797 = vpop.permute.xlu0 %796
      %798 = vrot.lane.b32.xlu0 %v637, 4
      %v799 = vpop.permute.xlu0 %798
      %800 = vrot.lane.b32.xlu0 %v639, 4
      %v801 = vpop.permute.xlu0 %800
      %802 = vrot.lane.b32.xlu0 %v642, 4
      %v803 = vpop.permute.xlu0 %802
      %804 = vrot.lane.b32.xlu0 %v644, 4
      %v805 = vpop.permute.xlu0 %804
      %806 = vrot.lane.b32.xlu0 %v647, 4
      %v807 = vpop.permute.xlu0 %806
      %808 = vrot.lane.b32.xlu0 %v649, 4
      %v809 = vpop.permute.xlu0 %808
      %810 = vrot.lane.b32.xlu0 %v652, 4
      %v811 = vpop.permute.xlu0 %810
      %812 = vrot.lane.b32.xlu0 %v654, 4
      %v813 = vpop.permute.xlu0 %812
      %814 = vrot.lane.b32.xlu0 %v657, 4
      %v815 = vpop.permute.xlu0 %814
      %816 = vrot.lane.b32.xlu0 %v659, 4
      %v817 = vpop.permute.xlu0 %816
      %818 = vrot.lane.b32.xlu0 %v662, 4
      %v819 = vpop.permute.xlu0 %818
      %820 = vrot.lane.b32.xlu0 %v664, 4
      %v821 = vpop.permute.xlu0 %820
      %822 = vrot.lane.b32.xlu0 %v667, 4
      %v823 = vpop.permute.xlu0 %822
      %824 = vrot.lane.b32.xlu0 %v669, 4
      %v825 = vpop.permute.xlu0 %824
      %826 = vrot.lane.b32.xlu0 %v672, 4
      %v827 = vpop.permute.xlu0 %826
      %828 = vrot.lane.b32.xlu0 %v674, 4
      %v829 = vpop.permute.xlu0 %828
      %830 = vrot.lane.b32.xlu0 %v677, 4
      %v831 = vpop.permute.xlu0 %830
      %832 = vrot.lane.b32.xlu0 %v679, 4
      %v833 = vpop.permute.xlu0 %832
      %834 = vrot.lane.b32.xlu0 %v682, 4
      %v835 = vpop.permute.xlu0 %834
      %836 = vrot.lane.b32.xlu0 %v684, 4
      %v837 = vpop.permute.xlu0 %836
      %838 = vrot.lane.b32.xlu0 %v687, 4
      %v839 = vpop.permute.xlu0 %838
      %840 = vrot.lane.b32.xlu0 %v689, 4
      %v841 = vpop.permute.xlu0 %840
      %873 = vrot.lane.b32.xlu0 %v692, 8
      %v874 = vpop.permute.xlu0 %873
      %875 = vrot.lane.b32.xlu0 %v695, 8
      %v876 = vpop.permute.xlu0 %875
      %877 = vrot.lane.b32.xlu0 %v697, 8
      %v878 = vpop.permute.xlu0 %877
      %879 = vrot.lane.b32.xlu0 %v700, 8
      %v880 = vpop.permute.xlu0 %879
      %881 = vrot.lane.b32.xlu0 %v702, 8
      %v882 = vpop.permute.xlu0 %881
      %883 = vrot.lane.b32.xlu0 %v705, 8
      %v884 = vpop.permute.xlu0 %883
      %885 = vrot.lane.b32.xlu0 %v707, 8
      %v886 = vpop.permute.xlu0 %885
      %887 = vrot.lane.b32.xlu0 %v710, 8
      %v888 = vpop.permute.xlu0 %887
      %889 = vrot.lane.b32.xlu0 %v712, 8
      %v890 = vpop.permute.xlu0 %889
      %891 = vrot.lane.b32.xlu0 %v715, 8
      %v892 = vpop.permute.xlu0 %891
      %893 = vrot.lane.b32.xlu0 %v717, 8
      %v894 = vpop.permute.xlu0 %893
      %895 = vrot.lane.b32.xlu0 %v720, 8
      %v896 = vpop.permute.xlu0 %895
      %897 = vrot.lane.b32.xlu0 %v722, 8
      %v898 = vpop.permute.xlu0 %897
      %899 = vrot.lane.b32.xlu0 %v725, 8
      %v900 = vpop.permute.xlu0 %899
      %901 = vrot.lane.b32.xlu0 %v727, 8
      %v902 = vpop.permute.xlu0 %901
      %903 = vrot.lane.b32.xlu0 %v730, 8
      %v904 = vpop.permute.xlu0 %903
      %905 = vrot.lane.b32.xlu0 %v732, 8
      %v906 = vpop.permute.xlu0 %905
      %907 = vrot.lane.b32.xlu0 %v735, 8
      %v908 = vpop.permute.xlu0 %907
      %909 = vrot.lane.b32.xlu0 %v737, 8
      %v910 = vpop.permute.xlu0 %909
      %911 = vrot.lane.b32.xlu0 %v740, 8
      %v912 = vpop.permute.xlu0 %911
      %913 = vrot.lane.b32.xlu0 %v742, 8
      %v914 = vpop.permute.xlu0 %913
      %915 = vrot.lane.b32.xlu0 %v745, 8
      %v916 = vpop.permute.xlu0 %915
      %917 = vrot.lane.b32.xlu0 %v747, 8
      %v918 = vpop.permute.xlu0 %917
      %919 = vrot.lane.b32.xlu0 %v750, 8
      %v920 = vpop.permute.xlu0 %919
      %921 = vrot.lane.b32.xlu0 %v752, 8
      %v922 = vpop.permute.xlu0 %921
      %923 = vrot.lane.b32.xlu0 %v755, 8
      %v924 = vpop.permute.xlu0 %923
      %925 = vrot.lane.b32.xlu0 %v757, 8
      %v926 = vpop.permute.xlu0 %925
      %927 = vrot.lane.b32.xlu0 %v760, 8
      %v928 = vpop.permute.xlu0 %927
      %929 = vrot.lane.b32.xlu0 %v762, 8
      %v930 = vpop.permute.xlu0 %929
      %931 = vrot.lane.b32.xlu0 %v765, 8
      %v932 = vpop.permute.xlu0 %931
      %933 = vrot.lane.b32.xlu0 %v767, 8
      %v934 = vpop.permute.xlu0 %933
      %966 = vrot.lane.b32.xlu0 %v549, 12
      %v967 = vpop.permute.xlu0 %966
      %968 = vrot.lane.b32.xlu0 %v456, 12
      %v969 = vpop.permute.xlu0 %968
      %970 = vrot.lane.b32.xlu0 %v550, 12
      %v971 = vpop.permute.xlu0 %970
      %972 = vrot.lane.b32.xlu0 %v459, 12
      %v973 = vpop.permute.xlu0 %972
      %974 = vrot.lane.b32.xlu0 %v551, 12
      %v975 = vpop.permute.xlu0 %974
      %976 = vrot.lane.b32.xlu0 %v462, 12
      %v977 = vpop.permute.xlu0 %976
      %978 = vrot.lane.b32.xlu0 %v552, 12
      %v979 = vpop.permute.xlu0 %978
      %980 = vrot.lane.b32.xlu0 %v465, 12
      %v981 = vpop.permute.xlu0 %980
      %982 = vrot.lane.b32.xlu0 %v553, 12
      %v983 = vpop.permute.xlu0 %982
      %984 = vrot.lane.b32.xlu0 %v468, 12
      %v985 = vpop.permute.xlu0 %984
      %986 = vrot.lane.b32.xlu0 %v554, 12
      %v987 = vpop.permute.xlu0 %986
      %988 = vrot.lane.b32.xlu0 %v471, 12
      %v989 = vpop.permute.xlu0 %988
      %990 = vrot.lane.b32.xlu0 %v555, 12
      %v991 = vpop.permute.xlu0 %990
      %992 = vrot.lane.b32.xlu0 %v474, 12
      %v993 = vpop.permute.xlu0 %992
      %994 = vrot.lane.b32.xlu0 %v556, 12
      %v995 = vpop.permute.xlu0 %994
      %996 = vrot.lane.b32.xlu0 %v477, 12
      %v997 = vpop.permute.xlu0 %996
      %998 = vrot.lane.b32.xlu0 %v557, 12
      %v999 = vpop.permute.xlu0 %998
      %1000 = vrot.lane.b32.xlu0 %v480, 12
      %v1001 = vpop.permute.xlu0 %1000
      %1002 = vrot.lane.b32.xlu0 %v558, 12
      %v1003 = vpop.permute.xlu0 %1002
      %1004 = vrot.lane.b32.xlu0 %v483, 12
      %v1005 = vpop.permute.xlu0 %1004
      %1006 = vrot.lane.b32.xlu0 %v559, 12
      %v1007 = vpop.permute.xlu0 %1006
      %1008 = vrot.lane.b32.xlu0 %v486, 12
      %v1009 = vpop.permute.xlu0 %1008
      %1010 = vrot.lane.b32.xlu0 %v560, 12
      %v1011 = vpop.permute.xlu0 %1010
      %1012 = vrot.lane.b32.xlu0 %v489, 12
      %v1013 = vpop.permute.xlu0 %1012
      %1014 = vrot.lane.b32.xlu0 %v561, 12
      %v1015 = vpop.permute.xlu0 %1014
      %1016 = vrot.lane.b32.xlu0 %v492, 12
      %v1017 = vpop.permute.xlu0 %1016
      %1018 = vrot.lane.b32.xlu0 %v562, 12
      %v1019 = vpop.permute.xlu0 %1018
      %1020 = vrot.lane.b32.xlu0 %v495, 12
      %v1021 = vpop.permute.xlu0 %1020
      %1022 = vrot.lane.b32.xlu0 %v563, 12
      %v1023 = vpop.permute.xlu0 %1022
      %1024 = vrot.lane.b32.xlu0 %v498, 12
      %v1025 = vpop.permute.xlu0 %1024
      %1026 = vrot.lane.b32.xlu0 %v564, 12
      %v1027 = vpop.permute.xlu0 %1026
      %1028 = vrot.lane.b32.xlu0 %v501, 12
      %v1029 = vpop.permute.xlu0 %1028
      %1062 = vrot.lane.b32.xlu0 %v617, 16
      %v1063 = vpop.permute.xlu0 %1062
      %1064 = vrot.lane.b32.xlu0 %v619, 16
      %v1065 = vpop.permute.xlu0 %1064
      %1066 = vrot.lane.b32.xlu0 %v622, 16
      %v1067 = vpop.permute.xlu0 %1066
      %1068 = vrot.lane.b32.xlu0 %v624, 16
      %v1069 = vpop.permute.xlu0 %1068
      %1070 = vrot.lane.b32.xlu0 %v627, 16
      %v1071 = vpop.permute.xlu0 %1070
      %1072 = vrot.lane.b32.xlu0 %v629, 16
      %v1073 = vpop.permute.xlu0 %1072
      %1074 = vrot.lane.b32.xlu0 %v632, 16
      %v1075 = vpop.permute.xlu0 %1074
      %1076 = vrot.lane.b32.xlu0 %v634, 16
      %v1077 = vpop.permute.xlu0 %1076
      %1078 = vrot.lane.b32.xlu0 %v637, 16
      %v1079 = vpop.permute.xlu0 %1078
      %1080 = vrot.lane.b32.xlu0 %v639, 16
      %v1081 = vpop.permute.xlu0 %1080
      %1082 = vrot.lane.b32.xlu0 %v642, 16
      %v1083 = vpop.permute.xlu0 %1082
      %1084 = vrot.lane.b32.xlu0 %v644, 16
      %v1085 = vpop.permute.xlu0 %1084
      %1086 = vrot.lane.b32.xlu0 %v647, 16
      %v1087 = vpop.permute.xlu0 %1086
      %1088 = vrot.lane.b32.xlu0 %v649, 16
      %v1089 = vpop.permute.xlu0 %1088
      %1090 = vrot.lane.b32.xlu0 %v652, 16
      %v1091 = vpop.permute.xlu0 %1090
      %1092 = vrot.lane.b32.xlu0 %v654, 16
      %v1093 = vpop.permute.xlu0 %1092
      %1094 = vrot.lane.b32.xlu0 %v657, 16
      %v1095 = vpop.permute.xlu0 %1094
      %1096 = vrot.lane.b32.xlu0 %v659, 16
      %v1097 = vpop.permute.xlu0 %1096
      %1098 = vrot.lane.b32.xlu0 %v662, 16
      %v1099 = vpop.permute.xlu0 %1098
      %1100 = vrot.lane.b32.xlu0 %v664, 16
      %v1101 = vpop.permute.xlu0 %1100
      %1102 = vrot.lane.b32.xlu0 %v667, 16
      %v1103 = vpop.permute.xlu0 %1102
      %1104 = vrot.lane.b32.xlu0 %v669, 16
      %v1105 = vpop.permute.xlu0 %1104
      %1106 = vrot.lane.b32.xlu0 %v672, 16
      %v1107 = vpop.permute.xlu0 %1106
      %1108 = vrot.lane.b32.xlu0 %v674, 16
      %v1109 = vpop.permute.xlu0 %1108
      %1110 = vrot.lane.b32.xlu0 %v677, 16
      %v1111 = vpop.permute.xlu0 %1110
      %1112 = vrot.lane.b32.xlu0 %v679, 16
      %v1113 = vpop.permute.xlu0 %1112
      %1114 = vrot.lane.b32.xlu0 %v682, 16
      %v1115 = vpop.permute.xlu0 %1114
      %1116 = vrot.lane.b32.xlu0 %v684, 16
      %v1117 = vpop.permute.xlu0 %1116
      %1118 = vrot.lane.b32.xlu0 %v687, 16
      %v1119 = vpop.permute.xlu0 %1118
      %1120 = vrot.lane.b32.xlu0 %v689, 16
      %v1121 = vpop.permute.xlu0 %1120
      %1122 = vrot.lane.b32.xlu0 %v772, 16
      %v1123 = vpop.permute.xlu0 %1122
      %1124 = vrot.lane.b32.xlu0 %v774, 16
      %v1125 = vpop.permute.xlu0 %1124
      %1158 = vrot.lane.b32.xlu0 %v695, 20
      %v1159 = vpop.permute.xlu0 %1158
      %1160 = vrot.lane.b32.xlu0 %v697, 20
      %v1161 = vpop.permute.xlu0 %1160
      %1162 = vrot.lane.b32.xlu0 %v700, 20
      %v1163 = vpop.permute.xlu0 %1162
      %1164 = vrot.lane.b32.xlu0 %v702, 20
      %v1165 = vpop.permute.xlu0 %1164
      %1166 = vrot.lane.b32.xlu0 %v705, 20
      %v1167 = vpop.permute.xlu0 %1166
      %1168 = vrot.lane.b32.xlu0 %v707, 20
      %v1169 = vpop.permute.xlu0 %1168
      %1170 = vrot.lane.b32.xlu0 %v710, 20
      %v1171 = vpop.permute.xlu0 %1170
      %1172 = vrot.lane.b32.xlu0 %v712, 20
      %v1173 = vpop.permute.xlu0 %1172
      %1174 = vrot.lane.b32.xlu0 %v715, 20
      %v1175 = vpop.permute.xlu0 %1174
      %1176 = vrot.lane.b32.xlu0 %v717, 20
      %v1177 = vpop.permute.xlu0 %1176
      %1178 = vrot.lane.b32.xlu0 %v720, 20
      %v1179 = vpop.permute.xlu0 %1178
      %1180 = vrot.lane.b32.xlu0 %v722, 20
      %v1181 = vpop.permute.xlu0 %1180
      %1182 = vrot.lane.b32.xlu0 %v725, 20
      %v1183 = vpop.permute.xlu0 %1182
      %1184 = vrot.lane.b32.xlu0 %v727, 20
      %v1185 = vpop.permute.xlu0 %1184
      %1186 = vrot.lane.b32.xlu0 %v730, 20
      %v1187 = vpop.permute.xlu0 %1186
      %1188 = vrot.lane.b32.xlu0 %v732, 20
      %v1189 = vpop.permute.xlu0 %1188
      %1190 = vrot.lane.b32.xlu0 %v735, 20
      %v1191 = vpop.permute.xlu0 %1190
      %1192 = vrot.lane.b32.xlu0 %v737, 20
      %v1193 = vpop.permute.xlu0 %1192
      %1194 = vrot.lane.b32.xlu0 %v740, 20
      %v1195 = vpop.permute.xlu0 %1194
      %1196 = vrot.lane.b32.xlu0 %v742, 20
      %v1197 = vpop.permute.xlu0 %1196
      %1198 = vrot.lane.b32.xlu0 %v745, 20
      %v1199 = vpop.permute.xlu0 %1198
      %1200 = vrot.lane.b32.xlu0 %v747, 20
      %v1201 = vpop.permute.xlu0 %1200
      %1202 = vrot.lane.b32.xlu0 %v750, 20
      %v1203 = vpop.permute.xlu0 %1202
      %1204 = vrot.lane.b32.xlu0 %v752, 20
      %v1205 = vpop.permute.xlu0 %1204
      %1206 = vrot.lane.b32.xlu0 %v755, 20
      %v1207 = vpop.permute.xlu0 %1206
      %1208 = vrot.lane.b32.xlu0 %v757, 20
      %v1209 = vpop.permute.xlu0 %1208
      %1210 = vrot.lane.b32.xlu0 %v760, 20
      %v1211 = vpop.permute.xlu0 %1210
      %1212 = vrot.lane.b32.xlu0 %v762, 20
      %v1213 = vpop.permute.xlu0 %1212
      %1214 = vrot.lane.b32.xlu0 %v765, 20
      %v1215 = vpop.permute.xlu0 %1214
      %1216 = vrot.lane.b32.xlu0 %v767, 20
      %v1217 = vpop.permute.xlu0 %1216
      %1218 = vrot.lane.b32.xlu0 %v777, 20
      %v1219 = vpop.permute.xlu0 %1218
      %1220 = vrot.lane.b32.xlu0 %v779, 20
      %v1221 = vpop.permute.xlu0 %1220
      %1254 = vrot.lane.b32.xlu0 %v550, 24
      %v1255 = vpop.permute.xlu0 %1254
      %1256 = vrot.lane.b32.xlu0 %v459, 24
      %v1257 = vpop.permute.xlu0 %1256
      %1258 = vrot.lane.b32.xlu0 %v551, 24
      %v1259 = vpop.permute.xlu0 %1258
      %1260 = vrot.lane.b32.xlu0 %v462, 24
      %v1261 = vpop.permute.xlu0 %1260
      %1262 = vrot.lane.b32.xlu0 %v552, 24
      %v1263 = vpop.permute.xlu0 %1262
      %1264 = vrot.lane.b32.xlu0 %v465, 24
      %v1265 = vpop.permute.xlu0 %1264
      %1266 = vrot.lane.b32.xlu0 %v553, 24
      %v1267 = vpop.permute.xlu0 %1266
      %1268 = vrot.lane.b32.xlu0 %v468, 24
      %v1269 = vpop.permute.xlu0 %1268
      %1270 = vrot.lane.b32.xlu0 %v554, 24
      %v1271 = vpop.permute.xlu0 %1270
      %1272 = vrot.lane.b32.xlu0 %v471, 24
      %v1273 = vpop.permute.xlu0 %1272
      %1274 = vrot.lane.b32.xlu0 %v555, 24
      %v1275 = vpop.permute.xlu0 %1274
      %1276 = vrot.lane.b32.xlu0 %v474, 24
      %v1277 = vpop.permute.xlu0 %1276
      %1278 = vrot.lane.b32.xlu0 %v556, 24
      %v1279 = vpop.permute.xlu0 %1278
      %1280 = vrot.lane.b32.xlu0 %v477, 24
      %v1281 = vpop.permute.xlu0 %1280
      %1282 = vrot.lane.b32.xlu0 %v557, 24
      %v1283 = vpop.permute.xlu0 %1282
      %1284 = vrot.lane.b32.xlu0 %v480, 24
      %v1285 = vpop.permute.xlu0 %1284
      %1286 = vrot.lane.b32.xlu0 %v558, 24
      %v1287 = vpop.permute.xlu0 %1286
      %1288 = vrot.lane.b32.xlu0 %v483, 24
      %v1289 = vpop.permute.xlu0 %1288
      %1290 = vrot.lane.b32.xlu0 %v559, 24
      %v1291 = vpop.permute.xlu0 %1290
      %1292 = vrot.lane.b32.xlu0 %v486, 24
      %v1293 = vpop.permute.xlu0 %1292
      %1294 = vrot.lane.b32.xlu0 %v560, 24
      %v1295 = vpop.permute.xlu0 %1294
      %1296 = vrot.lane.b32.xlu0 %v489, 24
      %v1297 = vpop.permute.xlu0 %1296
      %1298 = vrot.lane.b32.xlu0 %v561, 24
      %v1299 = vpop.permute.xlu0 %1298
      %1300 = vrot.lane.b32.xlu0 %v492, 24
      %v1301 = vpop.permute.xlu0 %1300
      %1302 = vrot.lane.b32.xlu0 %v562, 24
      %v1303 = vpop.permute.xlu0 %1302
      %1304 = vrot.lane.b32.xlu0 %v495, 24
      %v1305 = vpop.permute.xlu0 %1304
      %1306 = vrot.lane.b32.xlu0 %v563, 24
      %v1307 = vpop.permute.xlu0 %1306
      %1308 = vrot.lane.b32.xlu0 %v498, 24
      %v1309 = vpop.permute.xlu0 %1308
      %1310 = vrot.lane.b32.xlu0 %v564, 24
      %v1311 = vpop.permute.xlu0 %1310
      %1312 = vrot.lane.b32.xlu0 %v501, 24
      %v1313 = vpop.permute.xlu0 %1312
      %1314 = vrot.lane.b32.xlu0 0.0, 24
      %v1315 = vpop.permute.xlu0 %1314
      %1347 = vrot.lane.b32.xlu0 %v622, 28
      %v1348 = vpop.permute.xlu0 %1347
      %1349 = vrot.lane.b32.xlu0 %v624, 28
      %v1350 = vpop.permute.xlu0 %1349
      %1351 = vrot.lane.b32.xlu0 %v627, 28
      %v1352 = vpop.permute.xlu0 %1351
      %1353 = vrot.lane.b32.xlu0 %v629, 28
      %v1354 = vpop.permute.xlu0 %1353
      %1355 = vrot.lane.b32.xlu0 %v632, 28
      %v1356 = vpop.permute.xlu0 %1355
      %1357 = vrot.lane.b32.xlu0 %v634, 28
      %v1358 = vpop.permute.xlu0 %1357
      %1359 = vrot.lane.b32.xlu0 %v637, 28
      %v1360 = vpop.permute.xlu0 %1359
      %1361 = vrot.lane.b32.xlu0 %v639, 28
      %v1362 = vpop.permute.xlu0 %1361
      %1363 = vrot.lane.b32.xlu0 %v642, 28
      %v1364 = vpop.permute.xlu0 %1363
      %1365 = vrot.lane.b32.xlu0 %v644, 28
      %v1366 = vpop.permute.xlu0 %1365
      %1367 = vrot.lane.b32.xlu0 %v647, 28
      %v1368 = vpop.permute.xlu0 %1367
      %1369 = vrot.lane.b32.xlu0 %v649, 28
      %v1370 = vpop.permute.xlu0 %1369
      %1371 = vrot.lane.b32.xlu0 %v652, 28
      %v1372 = vpop.permute.xlu0 %1371
      %1373 = vrot.lane.b32.xlu0 %v654, 28
      %v1374 = vpop.permute.xlu0 %1373
      %1375 = vrot.lane.b32.xlu0 %v657, 28
      %v1376 = vpop.permute.xlu0 %1375
      %1377 = vrot.lane.b32.xlu0 %v659, 28
      %v1378 = vpop.permute.xlu0 %1377
      %1379 = vrot.lane.b32.xlu0 %v662, 28
      %v1380 = vpop.permute.xlu0 %1379
      %1381 = vrot.lane.b32.xlu0 %v664, 28
      %v1382 = vpop.permute.xlu0 %1381
      %1383 = vrot.lane.b32.xlu0 %v667, 28
      %v1384 = vpop.permute.xlu0 %1383
      %1385 = vrot.lane.b32.xlu0 %v669, 28
      %v1386 = vpop.permute.xlu0 %1385
      %1387 = vrot.lane.b32.xlu0 %v672, 28
      %v1388 = vpop.permute.xlu0 %1387
      %1389 = vrot.lane.b32.xlu0 %v674, 28
      %v1390 = vpop.permute.xlu0 %1389
      %1391 = vrot.lane.b32.xlu0 %v677, 28
      %v1392 = vpop.permute.xlu0 %1391
      %1393 = vrot.lane.b32.xlu0 %v679, 28
      %v1394 = vpop.permute.xlu0 %1393
      %1395 = vrot.lane.b32.xlu0 %v682, 28
      %v1396 = vpop.permute.xlu0 %1395
      %1397 = vrot.lane.b32.xlu0 %v684, 28
      %v1398 = vpop.permute.xlu0 %1397
      %1399 = vrot.lane.b32.xlu0 %v687, 28
      %v1400 = vpop.permute.xlu0 %1399
      %1401 = vrot.lane.b32.xlu0 %v689, 28
      %v1402 = vpop.permute.xlu0 %1401
      %1403 = vrot.lane.b32.xlu0 %v772, 28
      %v1404 = vpop.permute.xlu0 %1403
      %1405 = vrot.lane.b32.xlu0 %v774, 28
      %v1406 = vpop.permute.xlu0 %1405
      %1407 = vrot.lane.b32.xlu0 %v614, 28
      %v1408 = vpop.permute.xlu0 %1407
      %1440 = vrot.lane.b32.xlu0 %v700, 32
      %v1441 = vpop.permute.xlu0 %1440
      %1442 = vrot.lane.b32.xlu0 %v702, 32
      %v1443 = vpop.permute.xlu0 %1442
      %1444 = vrot.lane.b32.xlu0 %v705, 32
      %v1445 = vpop.permute.xlu0 %1444
      %1446 = vrot.lane.b32.xlu0 %v707, 32
      %v1447 = vpop.permute.xlu0 %1446
      %1448 = vrot.lane.b32.xlu0 %v710, 32
      %v1449 = vpop.permute.xlu0 %1448
      %1450 = vrot.lane.b32.xlu0 %v712, 32
      %v1451 = vpop.permute.xlu0 %1450
      %1452 = vrot.lane.b32.xlu0 %v715, 32
      %v1453 = vpop.permute.xlu0 %1452
      %1454 = vrot.lane.b32.xlu0 %v717, 32
      %v1455 = vpop.permute.xlu0 %1454
      %1456 = vrot.lane.b32.xlu0 %v720, 32
      %v1457 = vpop.permute.xlu0 %1456
      %1458 = vrot.lane.b32.xlu0 %v722, 32
      %v1459 = vpop.permute.xlu0 %1458
      %1460 = vrot.lane.b32.xlu0 %v725, 32
      %v1461 = vpop.permute.xlu0 %1460
      %1462 = vrot.lane.b32.xlu0 %v727, 32
      %v1463 = vpop.permute.xlu0 %1462
      %1464 = vrot.lane.b32.xlu0 %v730, 32
      %v1465 = vpop.permute.xlu0 %1464
      %1466 = vrot.lane.b32.xlu0 %v732, 32
      %v1467 = vpop.permute.xlu0 %1466
      %1468 = vrot.lane.b32.xlu0 %v735, 32
      %v1469 = vpop.permute.xlu0 %1468
      %1470 = vrot.lane.b32.xlu0 %v737, 32
      %v1471 = vpop.permute.xlu0 %1470
      %1472 = vrot.lane.b32.xlu0 %v740, 32
      %v1473 = vpop.permute.xlu0 %1472
      %1474 = vrot.lane.b32.xlu0 %v742, 32
      %v1475 = vpop.permute.xlu0 %1474
      %1476 = vrot.lane.b32.xlu0 %v745, 32
      %v1477 = vpop.permute.xlu0 %1476
      %1478 = vrot.lane.b32.xlu0 %v747, 32
      %v1479 = vpop.permute.xlu0 %1478
      %1480 = vrot.lane.b32.xlu0 %v750, 32
      %v1481 = vpop.permute.xlu0 %1480
      %1482 = vrot.lane.b32.xlu0 %v752, 32
      %v1483 = vpop.permute.xlu0 %1482
      %1484 = vrot.lane.b32.xlu0 %v755, 32
      %v1485 = vpop.permute.xlu0 %1484
      %1486 = vrot.lane.b32.xlu0 %v757, 32
      %v1487 = vpop.permute.xlu0 %1486
      %1488 = vrot.lane.b32.xlu0 %v760, 32
      %v1489 = vpop.permute.xlu0 %1488
      %1490 = vrot.lane.b32.xlu0 %v762, 32
      %v1491 = vpop.permute.xlu0 %1490
      %1492 = vrot.lane.b32.xlu0 %v765, 32
      %v1493 = vpop.permute.xlu0 %1492
      %1494 = vrot.lane.b32.xlu0 %v767, 32
      %v1495 = vpop.permute.xlu0 %1494
      %1496 = vrot.lane.b32.xlu0 %v777, 32
      %v1497 = vpop.permute.xlu0 %1496
      %1498 = vrot.lane.b32.xlu0 %v779, 32
      %v1499 = vpop.permute.xlu0 %1498
      %1500 = vrot.lane.b32.xlu0 %v692, 32
      %v1501 = vpop.permute.xlu0 %1500
      %vm1533 = vcmask 31744
      %v1534 = vsel %vm1533, 0.0, %v781
      %v1535 = vsel %vm1533, %v549, %v783
      %v1536 = vsel %vm1533, %v456, %v785
      %v1537 = vsel %vm1533, %v550, %v787
      %v1538 = vsel %vm1533, %v459, %v789
      %v1539 = vsel %vm1533, %v551, %v791
      %v1540 = vsel %vm1533, %v462, %v793
      %v1541 = vsel %vm1533, %v552, %v795
      %v1542 = vsel %vm1533, %v465, %v797
      %v1543 = vsel %vm1533, %v553, %v799
      %v1544 = vsel %vm1533, %v468, %v801
      %v1545 = vsel %vm1533, %v554, %v803
      %v1546 = vsel %vm1533, %v471, %v805
      %v1547 = vsel %vm1533, %v555, %v807
      %v1548 = vsel %vm1533, %v474, %v809
      %v1549 = vsel %vm1533, %v556, %v811
      %v1550 = vsel %vm1533, %v477, %v813
      %v1551 = vsel %vm1533, %v557, %v815
      %v1552 = vsel %vm1533, %v480, %v817
      %v1553 = vsel %vm1533, %v558, %v819
      %v1554 = vsel %vm1533, %v483, %v821
      %v1555 = vsel %vm1533, %v559, %v823
      %v1556 = vsel %vm1533, %v486, %v825
      %v1557 = vsel %vm1533, %v560, %v827
      %v1558 = vsel %vm1533, %v489, %v829
      %v1559 = vsel %vm1533, %v561, %v831
      %v1560 = vsel %vm1533, %v492, %v833
      %v1561 = vsel %vm1533, %v562, %v835
      %v1562 = vsel %vm1533, %v495, %v837
      %v1563 = vsel %vm1533, %v563, %v839
      %v1564 = vsel %vm1533, %v498, %v841
      %vm1565 = vcmask 64512
      %v1566 = vsel %vm1565, %v1534, %v874
      %v1567 = vsel %vm1565, %v1535, %v876
      %v1568 = vsel %vm1565, %v1536, %v878
      %v1569 = vsel %vm1565, %v1537, %v880
      %v1570 = vsel %vm1565, %v1538, %v882
      %v1571 = vsel %vm1565, %v1539, %v884
      %v1572 = vsel %vm1565, %v1540, %v886
      %v1573 = vsel %vm1565, %v1541, %v888
      %v1574 = vsel %vm1565, %v1542, %v890
      %v1575 = vsel %vm1565, %v1543, %v892
      %v1576 = vsel %vm1565, %v1544, %v894
      %v1577 = vsel %vm1565, %v1545, %v896
      %v1578 = vsel %vm1565, %v1546, %v898
      %v1579 = vsel %vm1565, %v1547, %v900
      %v1580 = vsel %vm1565, %v1548, %v902
      %v1581 = vsel %vm1565, %v1549, %v904
      %v1582 = vsel %vm1565, %v1550, %v906
      %v1583 = vsel %vm1565, %v1551, %v908
      %v1584 = vsel %vm1565, %v1552, %v910
      %v1585 = vsel %vm1565, %v1553, %v912
      %v1586 = vsel %vm1565, %v1554, %v914
      %v1587 = vsel %vm1565, %v1555, %v916
      %v1588 = vsel %vm1565, %v1556, %v918
      %v1589 = vsel %vm1565, %v1557, %v920
      %v1590 = vsel %vm1565, %v1558, %v922
      %v1591 = vsel %vm1565, %v1559, %v924
      %v1592 = vsel %vm1565, %v1560, %v926
      %v1593 = vsel %vm1565, %v1561, %v928
      %v1594 = vsel %vm1565, %v1562, %v930
      %v1595 = vsel %vm1565, %v1563, %v932
      %v1596 = vsel %vm1565, %v1564, %v934
      %vm1597 = vcmask 97280
      %v1598 = vsel %vm1597, %v1566, %v967
      %v1599 = vsel %vm1597, %v1566, %v969
      %v1600 = vsel %vm1597, %v1567, %v971
      %v1601 = vsel %vm1597, %v1568, %v973
      %v1602 = vsel %vm1597, %v1569, %v975
      %v1603 = vsel %vm1597, %v1570, %v977
      %v1604 = vsel %vm1597, %v1571, %v979
      %v1605 = vsel %vm1597, %v1572, %v981
      %v1606 = vsel %vm1597, %v1573, %v983
      %v1607 = vsel %vm1597, %v1574, %v985
      %v1608 = vsel %vm1597, %v1575, %v987
      %v1609 = vsel %vm1597, %v1576, %v989
      %v1610 = vsel %vm1597, %v1577, %v991
      %v1611 = vsel %vm1597, %v1578, %v993
      %v1612 = vsel %vm1597, %v1579, %v995
      %v1613 = vsel %vm1597, %v1580, %v997
      %v1614 = vsel %vm1597, %v1581, %v999
      %v1615 = vsel %vm1597, %v1582, %v1001
      %v1616 = vsel %vm1597, %v1583, %v1003
      %v1617 = vsel %vm1597, %v1584, %v1005
      %v1618 = vsel %vm1597, %v1585, %v1007
      %v1619 = vsel %vm1597, %v1586, %v1009
      %v1620 = vsel %vm1597, %v1587, %v1011
      %v1621 = vsel %vm1597, %v1588, %v1013
      %v1622 = vsel %vm1597, %v1589, %v1015
      %v1623 = vsel %vm1597, %v1590, %v1017
      %v1624 = vsel %vm1597, %v1591, %v1019
      %v1625 = vsel %vm1597, %v1592, %v1021
      %v1626 = vsel %vm1597, %v1593, %v1023
      %v1627 = vsel %vm1597, %v1594, %v1025
      %v1628 = vsel %vm1597, %v1595, %v1027
      %v1629 = vsel %vm1597, %v1596, %v1029
      %vm1630 = vcmask 130048
      %v1631 = vsel %vm1630, %v1598, %v1063
      %v1632 = vsel %vm1630, %v1599, %v1065
      %v1633 = vsel %vm1630, %v1600, %v1067
      %v1634 = vsel %vm1630, %v1601, %v1069
      %v1635 = vsel %vm1630, %v1602, %v1071
      %v1636 = vsel %vm1630, %v1603, %v1073
      %v1637 = vsel %vm1630, %v1604, %v1075
      %v1638 = vsel %vm1630, %v1605, %v1077
      %v1639 = vsel %vm1630, %v1606, %v1079
      %v1640 = vsel %vm1630, %v1607, %v1081
      %v1641 = vsel %vm1630, %v1608, %v1083
      %v1642 = vsel %vm1630, %v1609, %v1085
      %v1643 = vsel %vm1630, %v1610, %v1087
      %v1644 = vsel %vm1630, %v1611, %v1089
      %v1645 = vsel %vm1630, %v1612, %v1091
      %v1646 = vsel %vm1630, %v1613, %v1093
      %v1647 = vsel %vm1630, %v1614, %v1095
      %v1648 = vsel %vm1630, %v1615, %v1097
      %v1649 = vsel %vm1630, %v1616, %v1099
      %v1650 = vsel %vm1630, %v1617, %v1101
      %v1651 = vsel %vm1630, %v1618, %v1103
      %v1652 = vsel %vm1630, %v1619, %v1105
      %v1653 = vsel %vm1630, %v1620, %v1107
      %v1654 = vsel %vm1630, %v1621, %v1109
      %v1655 = vsel %vm1630, %v1622, %v1111
      %v1656 = vsel %vm1630, %v1623, %v1113
      %v1657 = vsel %vm1630, %v1624, %v1115
      %v1658 = vsel %vm1630, %v1625, %v1117
      %v1659 = vsel %vm1630, %v1626, %v1119
      %v1660 = vsel %vm1630, %v1627, %v1121
      %v1661 = vsel %vm1630, %v1628, %v1123
      %v1662 = vsel %vm1630, %v1629, %v1125
      %vm1663 = vcmask 162816
      %v1664 = vsel %vm1663, %v1631, %v1159
      %v1665 = vsel %vm1663, %v1632, %v1161
      %v1666 = vsel %vm1663, %v1633, %v1163
      %v1667 = vsel %vm1663, %v1634, %v1165
      %v1668 = vsel %vm1663, %v1635, %v1167
      %v1669 = vsel %vm1663, %v1636, %v1169
      %v1670 = vsel %vm1663, %v1637, %v1171
      %v1671 = vsel %vm1663, %v1638, %v1173
      %v1672 = vsel %vm1663, %v1639, %v1175
      %v1673 = vsel %vm1663, %v1640, %v1177
      %v1674 = vsel %vm1663, %v1641, %v1179
      %v1675 = vsel %vm1663, %v1642, %v1181
      %v1676 = vsel %vm1663, %v1643, %v1183
      %v1677 = vsel %vm1663, %v1644, %v1185
      %v1678 = vsel %vm1663, %v1645, %v1187
      %v1679 = vsel %vm1663, %v1646, %v1189
      %v1680 = vsel %vm1663, %v1647, %v1191
      %v1681 = vsel %vm1663, %v1648, %v1193
      %v1682 = vsel %vm1663, %v1649, %v1195
      %v1683 = vsel %vm1663, %v1650, %v1197
      %v1684 = vsel %vm1663, %v1651, %v1199
      %v1685 = vsel %vm1663, %v1652, %v1201
      %v1686 = vsel %vm1663, %v1653, %v1203
      %v1687 = vsel %vm1663, %v1654, %v1205
      %v1688 = vsel %vm1663, %v1655, %v1207
      %v1689 = vsel %vm1663, %v1656, %v1209
      %v1690 = vsel %vm1663, %v1657, %v1211
      %v1691 = vsel %vm1663, %v1658, %v1213
      %v1692 = vsel %vm1663, %v1659, %v1215
      %v1693 = vsel %vm1663, %v1660, %v1217
      %v1694 = vsel %vm1663, %v1661, %v1219
      %v1695 = vsel %vm1663, %v1662, %v1221
      %vm1696 = vcmask 195584
      %v1697 = vsel %vm1696, %v1664, %v1255
      %v1698 = vsel %vm1696, %v1665, %v1257
      %v1699 = vsel %vm1696, %v1666, %v1259
      %v1700 = vsel %vm1696, %v1667, %v1261
      %v1701 = vsel %vm1696, %v1668, %v1263
      %v1702 = vsel %vm1696, %v1669, %v1265
      %v1703 = vsel %vm1696, %v1670, %v1267
      %v1704 = vsel %vm1696, %v1671, %v1269
      %v1705 = vsel %vm1696, %v1672, %v1271
      %v1706 = vsel %vm1696, %v1673, %v1273
      %v1707 = vsel %vm1696, %v1674, %v1275
      %v1708 = vsel %vm1696, %v1675, %v1277
      %v1709 = vsel %vm1696, %v1676, %v1279
      %v1710 = vsel %vm1696, %v1677, %v1281
      %v1711 = vsel %vm1696, %v1678, %v1283
      %v1712 = vsel %vm1696, %v1679, %v1285
      %v1713 = vsel %vm1696, %v1680, %v1287
      %v1714 = vsel %vm1696, %v1681, %v1289
      %v1715 = vsel %vm1696, %v1682, %v1291
      %v1716 = vsel %vm1696, %v1683, %v1293
      %v1717 = vsel %vm1696, %v1684, %v1295
      %v1718 = vsel %vm1696, %v1685, %v1297
      %v1719 = vsel %vm1696, %v1686, %v1299
      %v1720 = vsel %vm1696, %v1687, %v1301
      %v1721 = vsel %vm1696, %v1688, %v1303
      %v1722 = vsel %vm1696, %v1689, %v1305
      %v1723 = vsel %vm1696, %v1690, %v1307
      %v1724 = vsel %vm1696, %v1691, %v1309
      %v1725 = vsel %vm1696, %v1692, %v1311
      %v1726 = vsel %vm1696, %v1693, %v1313
      %v1727 = vsel %vm1696, %v1694, %v1315
      %v1728 = vsel %vm1696, %v1695, %v1315
      %vm1729 = vcmask 228352
      %v1730 = vsel %vm1729, %v1697, %v1348
      %v1731 = vsel %vm1729, %v1698, %v1350
      %v1732 = vsel %vm1729, %v1699, %v1352
      %v1733 = vsel %vm1729, %v1700, %v1354
      %v1734 = vsel %vm1729, %v1701, %v1356
      %v1735 = vsel %vm1729, %v1702, %v1358
      %v1736 = vsel %vm1729, %v1703, %v1360
      %v1737 = vsel %vm1729, %v1704, %v1362
      %v1738 = vsel %vm1729, %v1705, %v1364
      %v1739 = vsel %vm1729, %v1706, %v1366
      %v1740 = vsel %vm1729, %v1707, %v1368
      %v1741 = vsel %vm1729, %v1708, %v1370
      %v1742 = vsel %vm1729, %v1709, %v1372
      %v1743 = vsel %vm1729, %v1710, %v1374
      %v1744 = vsel %vm1729, %v1711, %v1376
      %v1745 = vsel %vm1729, %v1712, %v1378
      %v1746 = vsel %vm1729, %v1713, %v1380
      %v1747 = vsel %vm1729, %v1714, %v1382
      %v1748 = vsel %vm1729, %v1715, %v1384
      %v1749 = vsel %vm1729, %v1716, %v1386
      %v1750 = vsel %vm1729, %v1717, %v1388
      %v1751 = vsel %vm1729, %v1718, %v1390
      %v1752 = vsel %vm1729, %v1719, %v1392
      %v1753 = vsel %vm1729, %v1720, %v1394
      %v1754 = vsel %vm1729, %v1721, %v1396
      %v1755 = vsel %vm1729, %v1722, %v1398
      %v1756 = vsel %vm1729, %v1723, %v1400
      %v1757 = vsel %vm1729, %v1724, %v1402
      %v1758 = vsel %vm1729, %v1725, %v1404
      %v1759 = vsel %vm1729, %v1726, %v1406
      %v1760 = vsel %vm1729, %v1727, %v1408
      %v1761 = vsel %vm1729, %v1728, %v1408
      %vm1762 = vcmask 261120
      %v1763 = vsel %vm1762, %v1730, %v1441
      %v1764 = vsel %vm1762, %v1731, %v1443
      %v1765 = vsel %vm1762, %v1732, %v1445
      %v1766 = vsel %vm1762, %v1733, %v1447
      %v1767 = vsel %vm1762, %v1734, %v1449
      %v1768 = vsel %vm1762, %v1735, %v1451
      %v1769 = vsel %vm1762, %v1736, %v1453
      %v1770 = vsel %vm1762, %v1737, %v1455
      %v1771 = vsel %vm1762, %v1738, %v1457
      %v1772 = vsel %vm1762, %v1739, %v1459
      %v1773 = vsel %vm1762, %v1740, %v1461
      %v1774 = vsel %vm1762, %v1741, %v1463
      %v1775 = vsel %vm1762, %v1742, %v1465
      %v1776 = vsel %vm1762, %v1743, %v1467
      %v1777 = vsel %vm1762, %v1744, %v1469
      %v1778 = vsel %vm1762, %v1745, %v1471
      %v1779 = vsel %vm1762, %v1746, %v1473
      %v1780 = vsel %vm1762, %v1747, %v1475
      %v1781 = vsel %vm1762, %v1748, %v1477
      %v1782 = vsel %vm1762, %v1749, %v1479
      %v1783 = vsel %vm1762, %v1750, %v1481
      %v1784 = vsel %vm1762, %v1751, %v1483
      %v1785 = vsel %vm1762, %v1752, %v1485
      %v1786 = vsel %vm1762, %v1753, %v1487
      %v1787 = vsel %vm1762, %v1754, %v1489
      %v1788 = vsel %vm1762, %v1755, %v1491
      %v1789 = vsel %vm1762, %v1756, %v1493
      %v1790 = vsel %vm1762, %v1757, %v1495
      %v1791 = vsel %vm1762, %v1758, %v1497
      %v1792 = vsel %vm1762, %v1759, %v1499
      %v1793 = vsel %vm1762, %v1760, %v1501
      %v1794 = vsel %vm1762, %v1761, %v1501
      %v1795 = vld [vmem:[%s1] sm:$0xff]
      %v1796 = vld [vmem:[%s1 + $0x8] sm:$0xff]
      %v1797 = vld [vmem:[%s1 + $0x10] sm:$0xff]
      %v1798 = vld [vmem:[%s1 + $0x18] sm:$0xff]
      %v1799 = vld [vmem:[%s1 + $0x20] sm:$0xf]
      %v1800 = vld [vmem:[%s2] sm:$0x1]
      %v1802 = vperm.slane %v1800, 0
      %vm1804 = vcmask 293888
      %v1806 = vsel %vm1804, %v1763, 0
      %v1809 = vsel %vm1804, %v1764, 0
      %v1812 = vsel %vm1804, %v1765, 0
      %v1815 = vsel %vm1804, %v1766, 0
      %v1818 = vsel %vm1804, %v1767, 0
      %v1821 = vsel %vm1804, %v1768, 0
      %v1824 = vsel %vm1804, %v1769, 0
      %v1827 = vsel %vm1804, %v1770, 0
      %v1830 = vsel %vm1804, %v1771, 0
      %v1833 = vsel %vm1804, %v1772, 0
      %v1836 = vsel %vm1804, %v1773, 0
      %v1839 = vsel %vm1804, %v1774, 0
      %v1842 = vsel %vm1804, %v1775, 0
      %v1845 = vsel %vm1804, %v1776, 0
      %v1848 = vsel %vm1804, %v1777, 0
      %v1851 = vsel %vm1804, %v1778, 0
      %v1854 = vsel %vm1804, %v1779, 0
      %v1857 = vsel %vm1804, %v1780, 0
      %v1860 = vsel %vm1804, %v1781, 0
      %v1863 = vsel %vm1804, %v1782, 0
      %v1866 = vsel %vm1804, %v1783, 0
      %v1869 = vsel %vm1804, %v1784, 0
      %v1872 = vsel %vm1804, %v1785, 0
      %v1875 = vsel %vm1804, %v1786, 0
      %v1878 = vsel %vm1804, %v1787, 0
      %v1881 = vsel %vm1804, %v1788, 0
      %v1884 = vsel %vm1804, %v1789, 0
      %v1887 = vsel %vm1804, %v1790, 0
      %v1890 = vsel %vm1804, %v1791, 0
      %v1893 = vsel %vm1804, %v1792, 0
      %v1896 = vsel %vm1804, %v1793, 0
      %v1899 = vsel %vm1804, %v1794, 0
      %vm1901 = vcmask 1043456
      %v1903 = vsel %vm1901, %v1799, 0
      %1905 = vmatpush.msra.mxu0 0.0
      %1906 = vmatpush.msra.mxu0 0.0
      %1907 = vmatpush.msra.mxu0 0.0
      %1908 = vmatpush.msra.mxu0 0.0
      %1909 = vmatpush.msra.mxu0 0.0
      %1910 = vmatpush.msra.mxu0 0.0
      %1911 = vmatpush.msra.mxu0 0.0
      %1912 = vmatpush.msra.mxu0 0.0
      %1913 = vmatpush.msra.mxu0 0.0
      %1914 = vmatpush.msra.mxu0 0.0
      %1915 = vmatpush.msra.mxu0 0.0
      %1916 = vmatpush.msra.mxu0 %v1903
      %1917 = vmatpush.msra.mxu0 %v1798
      %1918 = vmatpush.msra.mxu0 %v1797
      %1919 = vmatpush.msra.mxu0 %v1796
      %1920 = vmatpush.msra.mxu0 %v1795
      %1921 = vmatmul.f32.gmra.mxu0 %v1806
      %v1922 = vpop.f32.mrf.mxu0
      %v1923 = vadd.f32 %v1802, %v1922
      %1924 = vmatmul.f32.gmra.mxu0 %v1809
      %v1925 = vpop.f32.mrf.mxu0
      %v1926 = vadd.f32 %v1802, %v1925
      %1927 = vmatmul.f32.gmra.mxu0 %v1812
      %v1928 = vpop.f32.mrf.mxu0
      %v1929 = vadd.f32 %v1802, %v1928
      %1930 = vmatmul.f32.gmra.mxu0 %v1815
      %v1931 = vpop.f32.mrf.mxu0
      %v1932 = vadd.f32 %v1802, %v1931
      %1933 = vmatmul.f32.gmra.mxu0 %v1818
      %v1934 = vpop.f32.mrf.mxu0
      %v1935 = vadd.f32 %v1802, %v1934
      %1936 = vmatmul.f32.gmra.mxu0 %v1821
      %v1937 = vpop.f32.mrf.mxu0
      %v1938 = vadd.f32 %v1802, %v1937
      %1939 = vmatmul.f32.gmra.mxu0 %v1824
      %v1940 = vpop.f32.mrf.mxu0
      %v1941 = vadd.f32 %v1802, %v1940
      %1942 = vmatmul.f32.gmra.mxu0 %v1827
      %v1943 = vpop.f32.mrf.mxu0
      %v1944 = vadd.f32 %v1802, %v1943
      %1945 = vmatmul.f32.gmra.mxu0 %v1830
      %v1946 = vpop.f32.mrf.mxu0
      %v1947 = vadd.f32 %v1802, %v1946
      %1948 = vmatmul.f32.gmra.mxu0 %v1833
      %v1949 = vpop.f32.mrf.mxu0
      %v1950 = vadd.f32 %v1802, %v1949
      %1951 = vmatmul.f32.gmra.mxu0 %v1836
      %v1952 = vpop.f32.mrf.mxu0
      %v1953 = vadd.f32 %v1802, %v1952
      %1954 = vmatmul.f32.gmra.mxu0 %v1839
      %v1955 = vpop.f32.mrf.mxu0
      %v1956 = vadd.f32 %v1802, %v1955
      %1957 = vmatmul.f32.gmra.mxu0 %v1842
      %v1958 = vpop.f32.mrf.mxu0
      %v1959 = vadd.f32 %v1802, %v1958
      %1960 = vmatmul.f32.gmra.mxu0 %v1845
      %v1961 = vpop.f32.mrf.mxu0
      %v1962 = vadd.f32 %v1802, %v1961
      %1963 = vmatmul.f32.gmra.mxu0 %v1848
      %v1964 = vpop.f32.mrf.mxu0
      %v1965 = vadd.f32 %v1802, %v1964
      %1966 = vmatmul.f32.gmra.mxu0 %v1851
      %v1967 = vpop.f32.mrf.mxu0
      %v1968 = vadd.f32 %v1802, %v1967
      %1969 = vmatmul.f32.gmra.mxu0 %v1854
      %v1970 = vpop.f32.mrf.mxu0
      %v1971 = vadd.f32 %v1802, %v1970
      %1972 = vmatmul.f32.gmra.mxu0 %v1857
      %v1973 = vpop.f32.mrf.mxu0
      %v1974 = vadd.f32 %v1802, %v1973
      %1975 = vmatmul.f32.gmra.mxu0 %v1860
      %v1976 = vpop.f32.mrf.mxu0
      %v1977 = vadd.f32 %v1802, %v1976
      %1978 = vmatmul.f32.gmra.mxu0 %v1863
      %v1979 = vpop.f32.mrf.mxu0
      %v1980 = vadd.f32 %v1802, %v1979
      %1981 = vmatmul.f32.gmra.mxu0 %v1866
      %v1982 = vpop.f32.mrf.mxu0
      %v1983 = vadd.f32 %v1802, %v1982
      %1984 = vmatmul.f32.gmra.mxu0 %v1869
      %v1985 = vpop.f32.mrf.mxu0
      %v1986 = vadd.f32 %v1802, %v1985
      %1987 = vmatmul.f32.gmra.mxu0 %v1872
      %v1988 = vpop.f32.mrf.mxu0
      %v1989 = vadd.f32 %v1802, %v1988
      %1990 = vmatmul.f32.gmra.mxu0 %v1875
      %v1991 = vpop.f32.mrf.mxu0
      %v1992 = vadd.f32 %v1802, %v1991
      %1993 = vmatmul.f32.gmra.mxu0 %v1878
      %v1994 = vpop.f32.mrf.mxu0
      %v1995 = vadd.f32 %v1802, %v1994
      %1996 = vmatmul.f32.gmra.mxu0 %v1881
      %v1997 = vpop.f32.mrf.mxu0
      %v1998 = vadd.f32 %v1802, %v1997
      %1999 = vmatmul.f32.gmra.mxu0 %v1884
      %v2000 = vpop.f32.mrf.mxu0
      %v2001 = vadd.f32 %v1802, %v2000
      %2002 = vmatmul.f32.gmra.mxu0 %v1887
      %v2003 = vpop.f32.mrf.mxu0
      %v2004 = vadd.f32 %v1802, %v2003
      %2005 = vmatmul.f32.gmra.mxu0 %v1890
      %v2006 = vpop.f32.mrf.mxu0
      %v2007 = vadd.f32 %v1802, %v2006
      %2008 = vmatmul.f32.gmra.mxu0 %v1893
      %v2009 = vpop.f32.mrf.mxu0
      %v2010 = vadd.f32 %v1802, %v2009
      %2011 = vmatmul.f32.gmra.mxu0 %v1896
      %v2012 = vpop.f32.mrf.mxu0
      %v2013 = vadd.f32 %v1802, %v2012
      %2014 = vmatmul.f32.gmra.mxu0 %v1899
      %v2015 = vpop.f32.mrf.mxu0
      %v2016 = vadd.f32 %v1802, %v2015
      %2017 = vdwg.mxu0
      %v2018 = vmax.f32 %v1923, 0.0
      %v2019 = vmax.f32 %v1926, 0.0
      %v2020 = vmax.f32 %v1929, 0.0
      %v2021 = vmax.f32 %v1932, 0.0
      %v2022 = vmax.f32 %v1935, 0.0
      %v2023 = vmax.f32 %v1938, 0.0
      %v2024 = vmax.f32 %v1941, 0.0
      %v2025 = vmax.f32 %v1944, 0.0
      %v2026 = vmax.f32 %v1947, 0.0
      %v2027 = vmax.f32 %v1950, 0.0
      %v2028 = vmax.f32 %v1953, 0.0
      %v2029 = vmax.f32 %v1956, 0.0
      %v2030 = vmax.f32 %v1959, 0.0
      %v2031 = vmax.f32 %v1962, 0.0
      %v2032 = vmax.f32 %v1965, 0.0
      %v2033 = vmax.f32 %v1968, 0.0
      %v2034 = vmax.f32 %v1971, 0.0
      %v2035 = vmax.f32 %v1974, 0.0
      %v2036 = vmax.f32 %v1977, 0.0
      %v2037 = vmax.f32 %v1980, 0.0
      %v2038 = vmax.f32 %v1983, 0.0
      %v2039 = vmax.f32 %v1986, 0.0
      %v2040 = vmax.f32 %v1989, 0.0
      %v2041 = vmax.f32 %v1992, 0.0
      %v2042 = vmax.f32 %v1995, 0.0
      %v2043 = vmax.f32 %v1998, 0.0
      %v2044 = vmax.f32 %v2001, 0.0
      %v2045 = vmax.f32 %v2004, 0.0
      %v2046 = vmax.f32 %v2007, 0.0
      %v2047 = vmax.f32 %v2010, 0.0
      %v2048 = vmax.f32 %v2013, 0.0
      %v2049 = vmax.f32 %v2016, 0.0
      %v2082 = vrot.slane %v2018, 7
      %v2083 = vrot.slane %v2019, 7
      %v2084 = vsel %vm453, %v2082, %v2083
      %v2085 = vrot.slane %v2020, 7
      %v2086 = vrot.slane %v2021, 7
      %v2087 = vsel %vm453, %v2085, %v2086
      %v2088 = vrot.slane %v2022, 7
      %v2089 = vrot.slane %v2023, 7
      %v2090 = vsel %vm453, %v2088, %v2089
      %v2091 = vrot.slane %v2024, 7
      %v2092 = vrot.slane %v2025, 7
      %v2093 = vsel %vm453, %v2091, %v2092
      %v2094 = vrot.slane %v2026, 7
      %v2095 = vrot.slane %v2027, 7
      %v2096 = vsel %vm453, %v2094, %v2095
      %v2097 = vrot.slane %v2028, 7
      %v2098 = vrot.slane %v2029, 7
      %v2099 = vsel %vm453, %v2097, %v2098
      %v2100 = vrot.slane %v2030, 7
      %v2101 = vrot.slane %v2031, 7
      %v2102 = vsel %vm453, %v2100, %v2101
      %v2103 = vrot.slane %v2032, 7
      %v2104 = vrot.slane %v2033, 7
      %v2105 = vsel %vm453, %v2103, %v2104
      %v2106 = vrot.slane %v2034, 7
      %v2107 = vrot.slane %v2035, 7
      %v2108 = vsel %vm453, %v2106, %v2107
      %v2109 = vrot.slane %v2036, 7
      %v2110 = vrot.slane %v2037, 7
      %v2111 = vsel %vm453, %v2109, %v2110
      %v2112 = vrot.slane %v2038, 7
      %v2113 = vrot.slane %v2039, 7
      %v2114 = vsel %vm453, %v2112, %v2113
      %v2115 = vrot.slane %v2040, 7
      %v2116 = vrot.slane %v2041, 7
      %v2117 = vsel %vm453, %v2115, %v2116
      %v2118 = vrot.slane %v2042, 7
      %v2119 = vrot.slane %v2043, 7
      %v2120 = vsel %vm453, %v2118, %v2119
      %v2121 = vrot.slane %v2044, 7
      %v2122 = vrot.slane %v2045, 7
      %v2123 = vsel %vm453, %v2121, %v2122
      %v2124 = vrot.slane %v2046, 7
      %v2125 = vrot.slane %v2047, 7
      %v2126 = vsel %vm453, %v2124, %v2125
      %v2127 = vrot.slane %v2048, 7
      %v2128 = vrot.slane %v2049, 7
      %v2129 = vsel %vm453, %v2127, %v2128
      %v2177 = vsel %vm453, 0.0, %v2082
      %v2178 = vsel %vm453, 0.0, %v2085
      %v2179 = vsel %vm453, 0.0, %v2088
      %v2180 = vsel %vm453, 0.0, %v2091
      %v2181 = vsel %vm453, 0.0, %v2094
      %v2182 = vsel %vm453, 0.0, %v2097
      %v2183 = vsel %vm453, 0.0, %v2100
      %v2184 = vsel %vm453, 0.0, %v2103
      %v2185 = vsel %vm453, 0.0, %v2106
      %v2186 = vsel %vm453, 0.0, %v2109
      %v2187 = vsel %vm453, 0.0, %v2112
      %v2188 = vsel %vm453, 0.0, %v2115
      %v2189 = vsel %vm453, 0.0, %v2118
      %v2190 = vsel %vm453, 0.0, %v2121
      %v2191 = vsel %vm453, 0.0, %v2124
      %v2192 = vsel %vm453, 0.0, %v2127
      %v2193 = vsel %vm453, %v2083, 0.0
      %v2194 = vsel %vm453, %v2086, 0.0
      %v2195 = vsel %vm453, %v2089, 0.0
      %v2196 = vsel %vm453, %v2092, 0.0
      %v2197 = vsel %vm453, %v2095, 0.0
      %v2198 = vsel %vm453, %v2098, 0.0
      %v2199 = vsel %vm453, %v2101, 0.0
      %v2200 = vsel %vm453, %v2104, 0.0
      %v2201 = vsel %vm453, %v2107, 0.0
      %v2202 = vsel %vm453, %v2110, 0.0
      %v2203 = vsel %vm453, %v2113, 0.0
      %v2204 = vsel %vm453, %v2116, 0.0
      %v2205 = vsel %vm453, %v2119, 0.0
      %v2206 = vsel %vm453, %v2122, 0.0
      %v2207 = vsel %vm453, %v2125, 0.0
      %v2208 = vsel %vm453, %v2128, 0.0
      %v2239 = vrot.slane %v2177, 1
      %v2240 = vrot.slane %v2084, 1
      %v2241 = vsel %vm612, %v2239, %v2240
      %v2242 = vrot.slane %v2193, 1
      %v2243 = vsel %vm612, %v2240, %v2242
      %v2244 = vrot.slane %v2178, 1
      %v2245 = vrot.slane %v2087, 1
      %v2246 = vsel %vm612, %v2244, %v2245
      %v2247 = vrot.slane %v2194, 1
      %v2248 = vsel %vm612, %v2245, %v2247
      %v2249 = vrot.slane %v2179, 1
      %v2250 = vrot.slane %v2090, 1
      %v2251 = vsel %vm612, %v2249, %v2250
      %v2252 = vrot.slane %v2195, 1
      %v2253 = vsel %vm612, %v2250, %v2252
      %v2254 = vrot.slane %v2180, 1
      %v2255 = vrot.slane %v2093, 1
      %v2256 = vsel %vm612, %v2254, %v2255
      %v2257 = vrot.slane %v2196, 1
      %v2258 = vsel %vm612, %v2255, %v2257
      %v2259 = vrot.slane %v2181, 1
      %v2260 = vrot.slane %v2096, 1
      %v2261 = vsel %vm612, %v2259, %v2260
      %v2262 = vrot.slane %v2197, 1
      %v2263 = vsel %vm612, %v2260, %v2262
      %v2264 = vrot.slane %v2182, 1
      %v2265 = vrot.slane %v2099, 1
      %v2266 = vsel %vm612, %v2264, %v2265
      %v2267 = vrot.slane %v2198, 1
      %v2268 = vsel %vm612, %v2265, %v2267
      %v2269 = vrot.slane %v2183, 1
      %v2270 = vrot.slane %v2102, 1
      %v2271 = vsel %vm612, %v2269, %v2270
      %v2272 = vrot.slane %v2199, 1
      %v2273 = vsel %vm612, %v2270, %v2272
      %v2274 = vrot.slane %v2184, 1
      %v2275 = vrot.slane %v2105, 1
      %v2276 = vsel %vm612, %v2274, %v2275
      %v2277 = vrot.slane %v2200, 1
      %v2278 = vsel %vm612, %v2275, %v2277
      %v2279 = vrot.slane %v2185, 1
      %v2280 = vrot.slane %v2108, 1
      %v2281 = vsel %vm612, %v2279, %v2280
      %v2282 = vrot.slane %v2201, 1
      %v2283 = vsel %vm612, %v2280, %v2282
      %v2284 = vrot.slane %v2186, 1
      %v2285 = vrot.slane %v2111, 1
      %v2286 = vsel %vm612, %v2284, %v2285
      %v2287 = vrot.slane %v2202, 1
      %v2288 = vsel %vm612, %v2285, %v2287
      %v2289 = vrot.slane %v2187, 1
      %v2290 = vrot.slane %v2114, 1
      %v2291 = vsel %vm612, %v2289, %v2290
      %v2292 = vrot.slane %v2203, 1
      %v2293 = vsel %vm612, %v2290, %v2292
      %v2294 = vrot.slane %v2188, 1
      %v2295 = vrot.slane %v2117, 1
      %v2296 = vsel %vm612, %v2294, %v2295
      %v2297 = vrot.slane %v2204, 1
      %v2298 = vsel %vm612, %v2295, %v2297
      %v2299 = vrot.slane %v2189, 1
      %v2300 = vrot.slane %v2120, 1
      %v2301 = vsel %vm612, %v2299, %v2300
      %v2302 = vrot.slane %v2205, 1
      %v2303 = vsel %vm612, %v2300, %v2302
      %v2304 = vrot.slane %v2190, 1
      %v2305 = vrot.slane %v2123, 1
      %v2306 = vsel %vm612, %v2304, %v2305
      %v2307 = vrot.slane %v2206, 1
      %v2308 = vsel %vm612, %v2305, %v2307
      %v2309 = vrot.slane %v2191, 1
      %v2310 = vrot.slane %v2126, 1
      %v2311 = vsel %vm612, %v2309, %v2310
      %v2312 = vrot.slane %v2207, 1
      %v2313 = vsel %vm612, %v2310, %v2312
      %v2314 = vrot.slane %v2177, 2
      %v2315 = vrot.slane %v2084, 2
      %v2316 = vsel %vm690, %v2314, %v2315
      %v2317 = vrot.slane %v2193, 2
      %v2318 = vsel %vm690, %v2315, %v2317
      %v2319 = vrot.slane %v2178, 2
      %v2320 = vrot.slane %v2087, 2
      %v2321 = vsel %vm690, %v2319, %v2320
      %v2322 = vrot.slane %v2194, 2
      %v2323 = vsel %vm690, %v2320, %v2322
      %v2324 = vrot.slane %v2179, 2
      %v2325 = vrot.slane %v2090, 2
      %v2326 = vsel %vm690, %v2324, %v2325
      %v2327 = vrot.slane %v2195, 2
      %v2328 = vsel %vm690, %v2325, %v2327
      %v2329 = vrot.slane %v2180, 2
      %v2330 = vrot.slane %v2093, 2
      %v2331 = vsel %vm690, %v2329, %v2330
      %v2332 = vrot.slane %v2196, 2
      %v2333 = vsel %vm690, %v2330, %v2332
      %v2334 = vrot.slane %v2181, 2
      %v2335 = vrot.slane %v2096, 2
      %v2336 = vsel %vm690, %v2334, %v2335
      %v2337 = vrot.slane %v2197, 2
      %v2338 = vsel %vm690, %v2335, %v2337
      %v2339 = vrot.slane %v2182, 2
      %v2340 = vrot.slane %v2099, 2
      %v2341 = vsel %vm690, %v2339, %v2340
      %v2342 = vrot.slane %v2198, 2
      %v2343 = vsel %vm690, %v2340, %v2342
      %v2344 = vrot.slane %v2183, 2
      %v2345 = vrot.slane %v2102, 2
      %v2346 = vsel %vm690, %v2344, %v2345
      %v2347 = vrot.slane %v2199, 2
      %v2348 = vsel %vm690, %v2345, %v2347
      %v2349 = vrot.slane %v2184, 2
      %v2350 = vrot.slane %v2105, 2
      %v2351 = vsel %vm690, %v2349, %v2350
      %v2352 = vrot.slane %v2200, 2
      %v2353 = vsel %vm690, %v2350, %v2352
      %v2354 = vrot.slane %v2185, 2
      %v2355 = vrot.slane %v2108, 2
      %v2356 = vsel %vm690, %v2354, %v2355
      %v2357 = vrot.slane %v2201, 2
      %v2358 = vsel %vm690, %v2355, %v2357
      %v2359 = vrot.slane %v2186, 2
      %v2360 = vrot.slane %v2111, 2
      %v2361 = vsel %vm690, %v2359, %v2360
      %v2362 = vrot.slane %v2202, 2
      %v2363 = vsel %vm690, %v2360, %v2362
      %v2364 = vrot.slane %v2187, 2
      %v2365 = vrot.slane %v2114, 2
      %v2366 = vsel %vm690, %v2364, %v2365
      %v2367 = vrot.slane %v2203, 2
      %v2368 = vsel %vm690, %v2365, %v2367
      %v2369 = vrot.slane %v2188, 2
      %v2370 = vrot.slane %v2117, 2
      %v2371 = vsel %vm690, %v2369, %v2370
      %v2372 = vrot.slane %v2204, 2
      %v2373 = vsel %vm690, %v2370, %v2372
      %v2374 = vrot.slane %v2189, 2
      %v2375 = vrot.slane %v2120, 2
      %v2376 = vsel %vm690, %v2374, %v2375
      %v2377 = vrot.slane %v2205, 2
      %v2378 = vsel %vm690, %v2375, %v2377
      %v2379 = vrot.slane %v2190, 2
      %v2380 = vrot.slane %v2123, 2
      %v2381 = vsel %vm690, %v2379, %v2380
      %v2382 = vrot.slane %v2206, 2
      %v2383 = vsel %vm690, %v2380, %v2382
      %v2384 = vrot.slane %v2191, 2
      %v2385 = vrot.slane %v2126, 2
      %v2386 = vsel %vm690, %v2384, %v2385
      %v2387 = vrot.slane %v2207, 2
      %v2388 = vsel %vm690, %v2385, %v2387
      %v2391 = vrot.slane %v2192, 1
      %v2392 = vrot.slane %v2129, 1
      %v2393 = vsel %vm612, %v2391, %v2392
      %v2394 = vrot.slane %v2208, 1
      %v2395 = vsel %vm612, %v2392, %v2394
      %v2396 = vrot.slane %v2192, 2
      %v2397 = vrot.slane %v2129, 2
      %v2398 = vsel %vm690, %v2396, %v2397
      %v2399 = vrot.slane %v2208, 2
      %v2400 = vsel %vm690, %v2397, %v2399
      %2401 = vrot.lane.b32.xlu0 %v614, 16
      %v2402 = vpop.permute.xlu0 %2401
      %2403 = vrot.lane.b32.xlu0 %v2241, 16
      %v2404 = vpop.permute.xlu0 %2403
      %2405 = vrot.lane.b32.xlu0 %v2243, 16
      %v2406 = vpop.permute.xlu0 %2405
      %2407 = vrot.lane.b32.xlu0 %v2246, 16
      %v2408 = vpop.permute.xlu0 %2407
      %2409 = vrot.lane.b32.xlu0 %v2248, 16
      %v2410 = vpop.permute.xlu0 %2409
      %2411 = vrot.lane.b32.xlu0 %v2251, 16
      %v2412 = vpop.permute.xlu0 %2411
      %2413 = vrot.lane.b32.xlu0 %v2253, 16
      %v2414 = vpop.permute.xlu0 %2413
      %2415 = vrot.lane.b32.xlu0 %v2256, 16
      %v2416 = vpop.permute.xlu0 %2415
      %2417 = vrot.lane.b32.xlu0 %v2258, 16
      %v2418 = vpop.permute.xlu0 %2417
      %2419 = vrot.lane.b32.xlu0 %v2261, 16
      %v2420 = vpop.permute.xlu0 %2419
      %2421 = vrot.lane.b32.xlu0 %v2263, 16
      %v2422 = vpop.permute.xlu0 %2421
      %2423 = vrot.lane.b32.xlu0 %v2266, 16
      %v2424 = vpop.permute.xlu0 %2423
      %2425 = vrot.lane.b32.xlu0 %v2268, 16
      %v2426 = vpop.permute.xlu0 %2425
      %2427 = vrot.lane.b32.xlu0 %v2271, 16
      %v2428 = vpop.permute.xlu0 %2427
      %2429 = vrot.lane.b32.xlu0 %v2273, 16
      %v2430 = vpop.permute.xlu0 %2429
      %2431 = vrot.lane.b32.xlu0 %v2276, 16
      %v2432 = vpop.permute.xlu0 %2431
      %2433 = vrot.lane.b32.xlu0 %v2278, 16
      %v2434 = vpop.permute.xlu0 %2433
      %2435 = vrot.lane.b32.xlu0 %v2281, 16
      %v2436 = vpop.permute.xlu0 %2435
      %2437 = vrot.lane.b32.xlu0 %v2283, 16
      %v2438 = vpop.permute.xlu0 %2437
      %2439 = vrot.lane.b32.xlu0 %v2286, 16
      %v2440 = vpop.permute.xlu0 %2439
      %2441 = vrot.lane.b32.xlu0 %v2288, 16
      %v2442 = vpop.permute.xlu0 %2441
      %2443 = vrot.lane.b32.xlu0 %v2291, 16
      %v2444 = vpop.permute.xlu0 %2443
      %2445 = vrot.lane.b32.xlu0 %v2293, 16
      %v2446 = vpop.permute.xlu0 %2445
      %2447 = vrot.lane.b32.xlu0 %v2296, 16
      %v2448 = vpop.permute.xlu0 %2447
      %2449 = vrot.lane.b32.xlu0 %v2298, 16
      %v2450 = vpop.permute.xlu0 %2449
      %2451 = vrot.lane.b32.xlu0 %v2301, 16
      %v2452 = vpop.permute.xlu0 %2451
      %2453 = vrot.lane.b32.xlu0 %v2303, 16
      %v2454 = vpop.permute.xlu0 %2453
      %2455 = vrot.lane.b32.xlu0 %v2306, 16
      %v2456 = vpop.permute.xlu0 %2455
      %2457 = vrot.lane.b32.xlu0 %v2308, 16
      %v2458 = vpop.permute.xlu0 %2457
      %2459 = vrot.lane.b32.xlu0 %v2311, 16
      %v2460 = vpop.permute.xlu0 %2459
      %2461 = vrot.lane.b32.xlu0 %v2313, 16
      %v2462 = vpop.permute.xlu0 %2461
      %2494 = vrot.lane.b32.xlu0 %v2316, 32
      %v2495 = vpop.permute.xlu0 %2494
      %2496 = vrot.lane.b32.xlu0 %v2318, 32
      %v2497 = vpop.permute.xlu0 %2496
      %2498 = vrot.lane.b32.xlu0 %v2321, 32
      %v2499 = vpop.permute.xlu0 %2498
      %2500 = vrot.lane.b32.xlu0 %v2323, 32
      %v2501 = vpop.permute.xlu0 %2500
      %2502 = vrot.lane.b32.xlu0 %v2326, 32
      %v2503 = vpop.permute.xlu0 %2502
      %2504 = vrot.lane.b32.xlu0 %v2328, 32
      %v2505 = vpop.permute.xlu0 %2504
      %2506 = vrot.lane.b32.xlu0 %v2331, 32
      %v2507 = vpop.permute.xlu0 %2506
      %2508 = vrot.lane.b32.xlu0 %v2333, 32
      %v2509 = vpop.permute.xlu0 %2508
      %2510 = vrot.lane.b32.xlu0 %v2336, 32
      %v2511 = vpop.permute.xlu0 %2510
      %2512 = vrot.lane.b32.xlu0 %v2338, 32
      %v2513 = vpop.permute.xlu0 %2512
      %2514 = vrot.lane.b32.xlu0 %v2341, 32
      %v2515 = vpop.permute.xlu0 %2514
      %2516 = vrot.lane.b32.xlu0 %v2343, 32
      %v2517 = vpop.permute.xlu0 %2516
      %2518 = vrot.lane.b32.xlu0 %v2346, 32
      %v2519 = vpop.permute.xlu0 %2518
      %2520 = vrot.lane.b32.xlu0 %v2348, 32
      %v2521 = vpop.permute.xlu0 %2520
      %2522 = vrot.lane.b32.xlu0 %v2351, 32
      %v2523 = vpop.permute.xlu0 %2522
      %2524 = vrot.lane.b32.xlu0 %v2353, 32
      %v2525 = vpop.permute.xlu0 %2524
      %2526 = vrot.lane.b32.xlu0 %v2356, 32
      %v2527 = vpop.permute.xlu0 %2526
      %2528 = vrot.lane.b32.xlu0 %v2358, 32
      %v2529 = vpop.permute.xlu0 %2528
      %2530 = vrot.lane.b32.xlu0 %v2361, 32
      %v2531 = vpop.permute.xlu0 %2530
      %2532 = vrot.lane.b32.xlu0 %v2363, 32
      %v2533 = vpop.permute.xlu0 %2532
      %2534 = vrot.lane.b32.xlu0 %v2366, 32
      %v2535 = vpop.permute.xlu0 %2534
      %2536 = vrot.lane.b32.xlu0 %v2368, 32
      %v2537 = vpop.permute.xlu0 %2536
      %2538 = vrot.lane.b32.xlu0 %v2371, 32
      %v2539 = vpop.permute.xlu0 %2538
      %2540 = vrot.lane.b32.xlu0 %v2373, 32
      %v2541 = vpop.permute.xlu0 %2540
      %2542 = vrot.lane.b32.xlu0 %v2376, 32
      %v2543 = vpop.permute.xlu0 %2542
      %2544 = vrot.lane.b32.xlu0 %v2378, 32
      %v2545 = vpop.permute.xlu0 %2544
      %2546 = vrot.lane.b32.xlu0 %v2381, 32
      %v2547 = vpop.permute.xlu0 %2546
      %2548 = vrot.lane.b32.xlu0 %v2383, 32
      %v2549 = vpop.permute.xlu0 %2548
      %2550 = vrot.lane.b32.xlu0 %v2386, 32
      %v2551 = vpop.permute.xlu0 %2550
      %2552 = vrot.lane.b32.xlu0 %v2388, 32
      %v2553 = vpop.permute.xlu0 %2552
      %2584 = vrot.lane.b32.xlu0 %v2177, 48
      %v2585 = vpop.permute.xlu0 %2584
      %2586 = vrot.lane.b32.xlu0 %v2084, 48
      %v2587 = vpop.permute.xlu0 %2586
      %2588 = vrot.lane.b32.xlu0 %v2178, 48
      %v2589 = vpop.permute.xlu0 %2588
      %2590 = vrot.lane.b32.xlu0 %v2087, 48
      %v2591 = vpop.permute.xlu0 %2590
      %2592 = vrot.lane.b32.xlu0 %v2179, 48
      %v2593 = vpop.permute.xlu0 %2592
      %2594 = vrot.lane.b32.xlu0 %v2090, 48
      %v2595 = vpop.permute.xlu0 %2594
      %2596 = vrot.lane.b32.xlu0 %v2180, 48
      %v2597 = vpop.permute.xlu0 %2596
      %2598 = vrot.lane.b32.xlu0 %v2093, 48
      %v2599 = vpop.permute.xlu0 %2598
      %2600 = vrot.lane.b32.xlu0 %v2181, 48
      %v2601 = vpop.permute.xlu0 %2600
      %2602 = vrot.lane.b32.xlu0 %v2096, 48
      %v2603 = vpop.permute.xlu0 %2602
      %2604 = vrot.lane.b32.xlu0 %v2182, 48
      %v2605 = vpop.permute.xlu0 %2604
      %2606 = vrot.lane.b32.xlu0 %v2099, 48
      %v2607 = vpop.permute.xlu0 %2606
      %2608 = vrot.lane.b32.xlu0 %v2183, 48
      %v2609 = vpop.permute.xlu0 %2608
      %2610 = vrot.lane.b32.xlu0 %v2102, 48
      %v2611 = vpop.permute.xlu0 %2610
      %2612 = vrot.lane.b32.xlu0 %v2184, 48
      %v2613 = vpop.permute.xlu0 %2612
      %2614 = vrot.lane.b32.xlu0 %v2105, 48
      %v2615 = vpop.permute.xlu0 %2614
      %2616 = vrot.lane.b32.xlu0 %v2185, 48
      %v2617 = vpop.permute.xlu0 %2616
      %2618 = vrot.lane.b32.xlu0 %v2108, 48
      %v2619 = vpop.permute.xlu0 %2618
      %2620 = vrot.lane.b32.xlu0 %v2186, 48
      %v2621 = vpop.permute.xlu0 %2620
      %2622 = vrot.lane.b32.xlu0 %v2111, 48
      %v2623 = vpop.permute.xlu0 %2622
      %2624 = vrot.lane.b32.xlu0 %v2187, 48
      %v2625 = vpop.permute.xlu0 %2624
      %2626 = vrot.lane.b32.xlu0 %v2114, 48
      %v2627 = vpop.permute.xlu0 %2626
      %2628 = vrot.lane.b32.xlu0 %v2188, 48
      %v2629 = vpop.permute.xlu0 %2628
      %2630 = vrot.lane.b32.xlu0 %v2117, 48
      %v2631 = vpop.permute.xlu0 %2630
      %2632 = vrot.lane.b32.xlu0 %v2189, 48
      %v2633 = vpop.permute.xlu0 %2632
      %2634 = vrot.lane.b32.xlu0 %v2120, 48
      %v2635 = vpop.permute.xlu0 %2634
      %2636 = vrot.lane.b32.xlu0 %v2190, 48
      %v2637 = vpop.permute.xlu0 %2636
      %2638 = vrot.lane.b32.xlu0 %v2123, 48
      %v2639 = vpop.permute.xlu0 %2638
      %2640 = vrot.lane.b32.xlu0 %v2191, 48
      %v2641 = vpop.permute.xlu0 %2640
      %2642 = vrot.lane.b32.xlu0 %v2126, 48
      %v2643 = vpop.permute.xlu0 %2642
      %2644 = vrot.lane.b32.xlu0 %v2192, 48
      %v2645 = vpop.permute.xlu0 %2644
      %2646 = vrot.lane.b32.xlu0 %v2129, 48
      %v2647 = vpop.permute.xlu0 %2646
      %2680 = vrot.lane.b32.xlu0 %v2241, 64
      %v2681 = vpop.permute.xlu0 %2680
      %2682 = vrot.lane.b32.xlu0 %v2243, 64
      %v2683 = vpop.permute.xlu0 %2682
      %2684 = vrot.lane.b32.xlu0 %v2246, 64
      %v2685 = vpop.permute.xlu0 %2684
      %2686 = vrot.lane.b32.xlu0 %v2248, 64
      %v2687 = vpop.permute.xlu0 %2686
      %2688 = vrot.lane.b32.xlu0 %v2251, 64
      %v2689 = vpop.permute.xlu0 %2688
      %2690 = vrot.lane.b32.xlu0 %v2253, 64
      %v2691 = vpop.permute.xlu0 %2690
      %2692 = vrot.lane.b32.xlu0 %v2256, 64
      %v2693 = vpop.permute.xlu0 %2692
      %2694 = vrot.lane.b32.xlu0 %v2258, 64
      %v2695 = vpop.permute.xlu0 %2694
      %2696 = vrot.lane.b32.xlu0 %v2261, 64
      %v2697 = vpop.permute.xlu0 %2696
      %2698 = vrot.lane.b32.xlu0 %v2263, 64
      %v2699 = vpop.permute.xlu0 %2698
      %2700 = vrot.lane.b32.xlu0 %v2266, 64
      %v2701 = vpop.permute.xlu0 %2700
      %2702 = vrot.lane.b32.xlu0 %v2268, 64
      %v2703 = vpop.permute.xlu0 %2702
      %2704 = vrot.lane.b32.xlu0 %v2271, 64
      %v2705 = vpop.permute.xlu0 %2704
      %2706 = vrot.lane.b32.xlu0 %v2273, 64
      %v2707 = vpop.permute.xlu0 %2706
      %2708 = vrot.lane.b32.xlu0 %v2276, 64
      %v2709 = vpop.permute.xlu0 %2708
      %2710 = vrot.lane.b32.xlu0 %v2278, 64
      %v2711 = vpop.permute.xlu0 %2710
      %2712 = vrot.lane.b32.xlu0 %v2281, 64
      %v2713 = vpop.permute.xlu0 %2712
      %2714 = vrot.lane.b32.xlu0 %v2283, 64
      %v2715 = vpop.permute.xlu0 %2714
      %2716 = vrot.lane.b32.xlu0 %v2286, 64
      %v2717 = vpop.permute.xlu0 %2716
      %2718 = vrot.lane.b32.xlu0 %v2288, 64
      %v2719 = vpop.permute.xlu0 %2718
      %2720 = vrot.lane.b32.xlu0 %v2291, 64
      %v2721 = vpop.permute.xlu0 %2720
      %2722 = vrot.lane.b32.xlu0 %v2293, 64
      %v2723 = vpop.permute.xlu0 %2722
      %2724 = vrot.lane.b32.xlu0 %v2296, 64
      %v2725 = vpop.permute.xlu0 %2724
      %2726 = vrot.lane.b32.xlu0 %v2298, 64
      %v2727 = vpop.permute.xlu0 %2726
      %2728 = vrot.lane.b32.xlu0 %v2301, 64
      %v2729 = vpop.permute.xlu0 %2728
      %2730 = vrot.lane.b32.xlu0 %v2303, 64
      %v2731 = vpop.permute.xlu0 %2730
      %2732 = vrot.lane.b32.xlu0 %v2306, 64
      %v2733 = vpop.permute.xlu0 %2732
      %2734 = vrot.lane.b32.xlu0 %v2308, 64
      %v2735 = vpop.permute.xlu0 %2734
      %2736 = vrot.lane.b32.xlu0 %v2311, 64
      %v2737 = vpop.permute.xlu0 %2736
      %2738 = vrot.lane.b32.xlu0 %v2313, 64
      %v2739 = vpop.permute.xlu0 %2738
      %2740 = vrot.lane.b32.xlu0 %v2393, 64
      %v2741 = vpop.permute.xlu0 %2740
      %2742 = vrot.lane.b32.xlu0 %v2395, 64
      %v2743 = vpop.permute.xlu0 %2742
      %2776 = vrot.lane.b32.xlu0 %v2316, 80
      %v2777 = vpop.permute.xlu0 %2776
      %2778 = vrot.lane.b32.xlu0 %v2318, 80
      %v2779 = vpop.permute.xlu0 %2778
      %2780 = vrot.lane.b32.xlu0 %v2321, 80
      %v2781 = vpop.permute.xlu0 %2780
      %2782 = vrot.lane.b32.xlu0 %v2323, 80
      %v2783 = vpop.permute.xlu0 %2782
      %2784 = vrot.lane.b32.xlu0 %v2326, 80
      %v2785 = vpop.permute.xlu0 %2784
      %2786 = vrot.lane.b32.xlu0 %v2328, 80
      %v2787 = vpop.permute.xlu0 %2786
      %2788 = vrot.lane.b32.xlu0 %v2331, 80
      %v2789 = vpop.permute.xlu0 %2788
      %2790 = vrot.lane.b32.xlu0 %v2333, 80
      %v2791 = vpop.permute.xlu0 %2790
      %2792 = vrot.lane.b32.xlu0 %v2336, 80
      %v2793 = vpop.permute.xlu0 %2792
      %2794 = vrot.lane.b32.xlu0 %v2338, 80
      %v2795 = vpop.permute.xlu0 %2794
      %2796 = vrot.lane.b32.xlu0 %v2341, 80
      %v2797 = vpop.permute.xlu0 %2796
      %2798 = vrot.lane.b32.xlu0 %v2343, 80
      %v2799 = vpop.permute.xlu0 %2798
      %2800 = vrot.lane.b32.xlu0 %v2346, 80
      %v2801 = vpop.permute.xlu0 %2800
      %2802 = vrot.lane.b32.xlu0 %v2348, 80
      %v2803 = vpop.permute.xlu0 %2802
      %2804 = vrot.lane.b32.xlu0 %v2351, 80
      %v2805 = vpop.permute.xlu0 %2804
      %2806 = vrot.lane.b32.xlu0 %v2353, 80
      %v2807 = vpop.permute.xlu0 %2806
      %2808 = vrot.lane.b32.xlu0 %v2356, 80
      %v2809 = vpop.permute.xlu0 %2808
      %2810 = vrot.lane.b32.xlu0 %v2358, 80
      %v2811 = vpop.permute.xlu0 %2810
      %2812 = vrot.lane.b32.xlu0 %v2361, 80
      %v2813 = vpop.permute.xlu0 %2812
      %2814 = vrot.lane.b32.xlu0 %v2363, 80
      %v2815 = vpop.permute.xlu0 %2814
      %2816 = vrot.lane.b32.xlu0 %v2366, 80
      %v2817 = vpop.permute.xlu0 %2816
      %2818 = vrot.lane.b32.xlu0 %v2368, 80
      %v2819 = vpop.permute.xlu0 %2818
      %2820 = vrot.lane.b32.xlu0 %v2371, 80
      %v2821 = vpop.permute.xlu0 %2820
      %2822 = vrot.lane.b32.xlu0 %v2373, 80
      %v2823 = vpop.permute.xlu0 %2822
      %2824 = vrot.lane.b32.xlu0 %v2376, 80
      %v2825 = vpop.permute.xlu0 %2824
      %2826 = vrot.lane.b32.xlu0 %v2378, 80
      %v2827 = vpop.permute.xlu0 %2826
      %2828 = vrot.lane.b32.xlu0 %v2381, 80
      %v2829 = vpop.permute.xlu0 %2828
      %2830 = vrot.lane.b32.xlu0 %v2383, 80
      %v2831 = vpop.permute.xlu0 %2830
      %2832 = vrot.lane.b32.xlu0 %v2386, 80
      %v2833 = vpop.permute.xlu0 %2832
      %2834 = vrot.lane.b32.xlu0 %v2388, 80
      %v2835 = vpop.permute.xlu0 %2834
      %2836 = vrot.lane.b32.xlu0 %v2398, 80
      %v2837 = vpop.permute.xlu0 %2836
      %2838 = vrot.lane.b32.xlu0 %v2400, 80
      %v2839 = vpop.permute.xlu0 %2838
      %2872 = vrot.lane.b32.xlu0 %v2178, 96
      %v2873 = vpop.permute.xlu0 %2872
      %2874 = vrot.lane.b32.xlu0 %v2087, 96
      %v2875 = vpop.permute.xlu0 %2874
      %2876 = vrot.lane.b32.xlu0 %v2179, 96
      %v2877 = vpop.permute.xlu0 %2876
      %2878 = vrot.lane.b32.xlu0 %v2090, 96
      %v2879 = vpop.permute.xlu0 %2878
      %2880 = vrot.lane.b32.xlu0 %v2180, 96
      %v2881 = vpop.permute.xlu0 %2880
      %2882 = vrot.lane.b32.xlu0 %v2093, 96
      %v2883 = vpop.permute.xlu0 %2882
      %2884 = vrot.lane.b32.xlu0 %v2181, 96
      %v2885 = vpop.permute.xlu0 %2884
      %2886 = vrot.lane.b32.xlu0 %v2096, 96
      %v2887 = vpop.permute.xlu0 %2886
      %2888 = vrot.lane.b32.xlu0 %v2182, 96
      %v2889 = vpop.permute.xlu0 %2888
      %2890 = vrot.lane.b32.xlu0 %v2099, 96
      %v2891 = vpop.permute.xlu0 %2890
      %2892 = vrot.lane.b32.xlu0 %v2183, 96
      %v2893 = vpop.permute.xlu0 %2892
      %2894 = vrot.lane.b32.xlu0 %v2102, 96
      %v2895 = vpop.permute.xlu0 %2894
      %2896 = vrot.lane.b32.xlu0 %v2184, 96
      %v2897 = vpop.permute.xlu0 %2896
      %2898 = vrot.lane.b32.xlu0 %v2105, 96
      %v2899 = vpop.permute.xlu0 %2898
      %2900 = vrot.lane.b32.xlu0 %v2185, 96
      %v2901 = vpop.permute.xlu0 %2900
      %2902 = vrot.lane.b32.xlu0 %v2108, 96
      %v2903 = vpop.permute.xlu0 %2902
      %2904 = vrot.lane.b32.xlu0 %v2186, 96
      %v2905 = vpop.permute.xlu0 %2904
      %2906 = vrot.lane.b32.xlu0 %v2111, 96
      %v2907 = vpop.permute.xlu0 %2906
      %2908 = vrot.lane.b32.xlu0 %v2187, 96
      %v2909 = vpop.permute.xlu0 %2908
      %2910 = vrot.lane.b32.xlu0 %v2114, 96
      %v2911 = vpop.permute.xlu0 %2910
      %2912 = vrot.lane.b32.xlu0 %v2188, 96
      %v2913 = vpop.permute.xlu0 %2912
      %2914 = vrot.lane.b32.xlu0 %v2117, 96
      %v2915 = vpop.permute.xlu0 %2914
      %2916 = vrot.lane.b32.xlu0 %v2189, 96
      %v2917 = vpop.permute.xlu0 %2916
      %2918 = vrot.lane.b32.xlu0 %v2120, 96
      %v2919 = vpop.permute.xlu0 %2918
      %2920 = vrot.lane.b32.xlu0 %v2190, 96
      %v2921 = vpop.permute.xlu0 %2920
      %2922 = vrot.lane.b32.xlu0 %v2123, 96
      %v2923 = vpop.permute.xlu0 %2922
      %2924 = vrot.lane.b32.xlu0 %v2191, 96
      %v2925 = vpop.permute.xlu0 %2924
      %2926 = vrot.lane.b32.xlu0 %v2126, 96
      %v2927 = vpop.permute.xlu0 %2926
      %2928 = vrot.lane.b32.xlu0 %v2192, 96
      %v2929 = vpop.permute.xlu0 %2928
      %2930 = vrot.lane.b32.xlu0 %v2129, 96
      %v2931 = vpop.permute.xlu0 %2930
      %2932 = vrot.lane.b32.xlu0 0.0, 96
      %v2933 = vpop.permute.xlu0 %2932
      %2965 = vrot.lane.b32.xlu0 %v2246, 112
      %v2966 = vpop.permute.xlu0 %2965
      %2967 = vrot.lane.b32.xlu0 %v2248, 112
      %v2968 = vpop.permute.xlu0 %2967
      %2969 = vrot.lane.b32.xlu0 %v2251, 112
      %v2970 = vpop.permute.xlu0 %2969
      %2971 = vrot.lane.b32.xlu0 %v2253, 112
      %v2972 = vpop.permute.xlu0 %2971
      %2973 = vrot.lane.b32.xlu0 %v2256, 112
      %v2974 = vpop.permute.xlu0 %2973
      %2975 = vrot.lane.b32.xlu0 %v2258, 112
      %v2976 = vpop.permute.xlu0 %2975
      %2977 = vrot.lane.b32.xlu0 %v2261, 112
      %v2978 = vpop.permute.xlu0 %2977
      %2979 = vrot.lane.b32.xlu0 %v2263, 112
      %v2980 = vpop.permute.xlu0 %2979
      %2981 = vrot.lane.b32.xlu0 %v2266, 112
      %v2982 = vpop.permute.xlu0 %2981
      %2983 = vrot.lane.b32.xlu0 %v2268, 112
      %v2984 = vpop.permute.xlu0 %2983
      %2985 = vrot.lane.b32.xlu0 %v2271, 112
      %v2986 = vpop.permute.xlu0 %2985
      %2987 = vrot.lane.b32.xlu0 %v2273, 112
      %v2988 = vpop.permute.xlu0 %2987
      %2989 = vrot.lane.b32.xlu0 %v2276, 112
      %v2990 = vpop.permute.xlu0 %2989
      %2991 = vrot.lane.b32.xlu0 %v2278, 112
      %v2992 = vpop.permute.xlu0 %2991
      %2993 = vrot.lane.b32.xlu0 %v2281, 112
      %v2994 = vpop.permute.xlu0 %2993
      %2995 = vrot.lane.b32.xlu0 %v2283, 112
      %v2996 = vpop.permute.xlu0 %2995
      %2997 = vrot.lane.b32.xlu0 %v2286, 112
      %v2998 = vpop.permute.xlu0 %2997
      %2999 = vrot.lane.b32.xlu0 %v2288, 112
      %v3000 = vpop.permute.xlu0 %2999
      %3001 = vrot.lane.b32.xlu0 %v2291, 112
      %v3002 = vpop.permute.xlu0 %3001
      %3003 = vrot.lane.b32.xlu0 %v2293, 112
      %v3004 = vpop.permute.xlu0 %3003
      %3005 = vrot.lane.b32.xlu0 %v2296, 112
      %v3006 = vpop.permute.xlu0 %3005
      %3007 = vrot.lane.b32.xlu0 %v2298, 112
      %v3008 = vpop.permute.xlu0 %3007
      %3009 = vrot.lane.b32.xlu0 %v2301, 112
      %v3010 = vpop.permute.xlu0 %3009
      %3011 = vrot.lane.b32.xlu0 %v2303, 112
      %v3012 = vpop.permute.xlu0 %3011
      %3013 = vrot.lane.b32.xlu0 %v2306, 112
      %v3014 = vpop.permute.xlu0 %3013
      %3015 = vrot.lane.b32.xlu0 %v2308, 112
      %v3016 = vpop.permute.xlu0 %3015
      %3017 = vrot.lane.b32.xlu0 %v2311, 112
      %v3018 = vpop.permute.xlu0 %3017
      %3019 = vrot.lane.b32.xlu0 %v2313, 112
      %v3020 = vpop.permute.xlu0 %3019
      %3021 = vrot.lane.b32.xlu0 %v2393, 112
      %v3022 = vpop.permute.xlu0 %3021
      %3023 = vrot.lane.b32.xlu0 %v2395, 112
      %v3024 = vpop.permute.xlu0 %3023
      %3025 = vrot.lane.b32.xlu0 %v614, 112
      %v3026 = vpop.permute.xlu0 %3025
      %v3058 = vsel %vm1630, 0.0, %v2402
      %v3059 = vsel %vm1630, %v2177, %v2404
      %v3060 = vsel %vm1630, %v2084, %v2406
      %v3061 = vsel %vm1630, %v2178, %v2408
      %v3062 = vsel %vm1630, %v2087, %v2410
      %v3063 = vsel %vm1630, %v2179, %v2412
      %v3064 = vsel %vm1630, %v2090, %v2414
      %v3065 = vsel %vm1630, %v2180, %v2416
      %v3066 = vsel %vm1630, %v2093, %v2418
      %v3067 = vsel %vm1630, %v2181, %v2420
      %v3068 = vsel %vm1630, %v2096, %v2422
      %v3069 = vsel %vm1630, %v2182, %v2424
      %v3070 = vsel %vm1630, %v2099, %v2426
      %v3071 = vsel %vm1630, %v2183, %v2428
      %v3072 = vsel %vm1630, %v2102, %v2430
      %v3073 = vsel %vm1630, %v2184, %v2432
      %v3074 = vsel %vm1630, %v2105, %v2434
      %v3075 = vsel %vm1630, %v2185, %v2436
      %v3076 = vsel %vm1630, %v2108, %v2438
      %v3077 = vsel %vm1630, %v2186, %v2440
      %v3078 = vsel %vm1630, %v2111, %v2442
      %v3079 = vsel %vm1630, %v2187, %v2444
      %v3080 = vsel %vm1630, %v2114, %v2446
      %v3081 = vsel %vm1630, %v2188, %v2448
      %v3082 = vsel %vm1630, %v2117, %v2450
      %v3083 = vsel %vm1630, %v2189, %v2452
      %v3084 = vsel %vm1630, %v2120, %v2454
      %v3085 = vsel %vm1630, %v2190, %v2456
      %v3086 = vsel %vm1630, %v2123, %v2458
      %v3087 = vsel %vm1630, %v2191, %v2460
      %v3088 = vsel %vm1630, %v2126, %v2462
      %v3089 = vsel %vm1762, %v3058, %v1501
      %v3090 = vsel %vm1762, %v3059, %v2495
      %v3091 = vsel %vm1762, %v3060, %v2497
      %v3092 = vsel %vm1762, %v3061, %v2499
      %v3093 = vsel %vm1762, %v3062, %v2501
      %v3094 = vsel %vm1762, %v3063, %v2503
      %v3095 = vsel %vm1762, %v3064, %v2505
      %v3096 = vsel %vm1762, %v3065, %v2507
      %v3097 = vsel %vm1762, %v3066, %v2509
      %v3098 = vsel %vm1762, %v3067, %v2511
      %v3099 = vsel %vm1762, %v3068, %v2513
      %v3100 = vsel %vm1762, %v3069, %v2515
      %v3101 = vsel %vm1762, %v3070, %v2517
      %v3102 = vsel %vm1762, %v3071, %v2519
      %v3103 = vsel %vm1762, %v3072, %v2521
      %v3104 = vsel %vm1762, %v3073, %v2523
      %v3105 = vsel %vm1762, %v3074, %v2525
      %v3106 = vsel %vm1762, %v3075, %v2527
      %v3107 = vsel %vm1762, %v3076, %v2529
      %v3108 = vsel %vm1762, %v3077, %v2531
      %v3109 = vsel %vm1762, %v3078, %v2533
      %v3110 = vsel %vm1762, %v3079, %v2535
      %v3111 = vsel %vm1762, %v3080, %v2537
      %v3112 = vsel %vm1762, %v3081, %v2539
      %v3113 = vsel %vm1762, %v3082, %v2541
      %v3114 = vsel %vm1762, %v3083, %v2543
      %v3115 = vsel %vm1762, %v3084, %v2545
      %v3116 = vsel %vm1762, %v3085, %v2547
      %v3117 = vsel %vm1762, %v3086, %v2549
      %v3118 = vsel %vm1762, %v3087, %v2551
      %v3119 = vsel %vm1762, %v3088, %v2553
      %vm3120 = vcmask 392192
      %v3121 = vsel %vm3120, %v3089, %v2585
      %v3122 = vsel %vm3120, %v3089, %v2587
      %v3123 = vsel %vm3120, %v3090, %v2589
      %v3124 = vsel %vm3120, %v3091, %v2591
      %v3125 = vsel %vm3120, %v3092, %v2593
      %v3126 = vsel %vm3120, %v3093, %v2595
      %v3127 = vsel %vm3120, %v3094, %v2597
      %v3128 = vsel %vm3120, %v3095, %v2599
      %v3129 = vsel %vm3120, %v3096, %v2601
      %v3130 = vsel %vm3120, %v3097, %v2603
      %v3131 = vsel %vm3120, %v3098, %v2605
      %v3132 = vsel %vm3120, %v3099, %v2607
      %v3133 = vsel %vm3120, %v3100, %v2609
      %v3134 = vsel %vm3120, %v3101, %v2611
      %v3135 = vsel %vm3120, %v3102, %v2613
      %v3136 = vsel %vm3120, %v3103, %v2615
      %v3137 = vsel %vm3120, %v3104, %v2617
      %v3138 = vsel %vm3120, %v3105, %v2619
      %v3139 = vsel %vm3120, %v3106, %v2621
      %v3140 = vsel %vm3120, %v3107, %v2623
      %v3141 = vsel %vm3120, %v3108, %v2625
      %v3142 = vsel %vm3120, %v3109, %v2627
      %v3143 = vsel %vm3120, %v3110, %v2629
      %v3144 = vsel %vm3120, %v3111, %v2631
      %v3145 = vsel %vm3120, %v3112, %v2633
      %v3146 = vsel %vm3120, %v3113, %v2635
      %v3147 = vsel %vm3120, %v3114, %v2637
      %v3148 = vsel %vm3120, %v3115, %v2639
      %v3149 = vsel %vm3120, %v3116, %v2641
      %v3150 = vsel %vm3120, %v3117, %v2643
      %v3151 = vsel %vm3120, %v3118, %v2645
      %v3152 = vsel %vm3120, %v3119, %v2647
      %vm3153 = vcmask 523264
      %v3154 = vsel %vm3153, %v3121, %v2681
      %v3155 = vsel %vm3153, %v3122, %v2683
      %v3156 = vsel %vm3153, %v3123, %v2685
      %v3157 = vsel %vm3153, %v3124, %v2687
      %v3158 = vsel %vm3153, %v3125, %v2689
      %v3159 = vsel %vm3153, %v3126, %v2691
      %v3160 = vsel %vm3153, %v3127, %v2693
      %v3161 = vsel %vm3153, %v3128, %v2695
      %v3162 = vsel %vm3153, %v3129, %v2697
      %v3163 = vsel %vm3153, %v3130, %v2699
      %v3164 = vsel %vm3153, %v3131, %v2701
      %v3165 = vsel %vm3153, %v3132, %v2703
      %v3166 = vsel %vm3153, %v3133, %v2705
      %v3167 = vsel %vm3153, %v3134, %v2707
      %v3168 = vsel %vm3153, %v3135, %v2709
      %v3169 = vsel %vm3153, %v3136, %v2711
      %v3170 = vsel %vm3153, %v3137, %v2713
      %v3171 = vsel %vm3153, %v3138, %v2715
      %v3172 = vsel %vm3153, %v3139, %v2717
      %v3173 = vsel %vm3153, %v3140, %v2719
      %v3174 = vsel %vm3153, %v3141, %v2721
      %v3175 = vsel %vm3153, %v3142, %v2723
      %v3176 = vsel %vm3153, %v3143, %v2725
      %v3177 = vsel %vm3153, %v3144, %v2727
      %v3178 = vsel %vm3153, %v3145, %v2729
      %v3179 = vsel %vm3153, %v3146, %v2731
      %v3180 = vsel %vm3153, %v3147, %v2733
      %v3181 = vsel %vm3153, %v3148, %v2735
      %v3182 = vsel %vm3153, %v3149, %v2737
      %v3183 = vsel %vm3153, %v3150, %v2739
      %v3184 = vsel %vm3153, %v3151, %v2741
      %v3185 = vsel %vm3153, %v3152, %v2743
      %vm3186 = vcmask 654336
      %v3187 = vsel %vm3186, %v3154, %v2777
      %v3188 = vsel %vm3186, %v3155, %v2779
      %v3189 = vsel %vm3186, %v3156, %v2781
      %v3190 = vsel %vm3186, %v3157, %v2783
      %v3191 = vsel %vm3186, %v3158, %v2785
      %v3192 = vsel %vm3186, %v3159, %v2787
      %v3193 = vsel %vm3186, %v3160, %v2789
      %v3194 = vsel %vm3186, %v3161, %v2791
      %v3195 = vsel %vm3186, %v3162, %v2793
      %v3196 = vsel %vm3186, %v3163, %v2795
      %v3197 = vsel %vm3186, %v3164, %v2797
      %v3198 = vsel %vm3186, %v3165, %v2799
      %v3199 = vsel %vm3186, %v3166, %v2801
      %v3200 = vsel %vm3186, %v3167, %v2803
      %v3201 = vsel %vm3186, %v3168, %v2805
      %v3202 = vsel %vm3186, %v3169, %v2807
      %v3203 = vsel %vm3186, %v3170, %v2809
      %v3204 = vsel %vm3186, %v3171, %v2811
      %v3205 = vsel %vm3186, %v3172, %v2813
      %v3206 = vsel %vm3186, %v3173, %v2815
      %v3207 = vsel %vm3186, %v3174, %v2817
      %v3208 = vsel %vm3186, %v3175, %v2819
      %v3209 = vsel %vm3186, %v3176, %v2821
      %v3210 = vsel %vm3186, %v3177, %v2823
      %v3211 = vsel %vm3186, %v3178, %v2825
      %v3212 = vsel %vm3186, %v3179, %v2827
      %v3213 = vsel %vm3186, %v3180, %v2829
      %v3214 = vsel %vm3186, %v3181, %v2831
      %v3215 = vsel %vm3186, %v3182, %v2833
      %v3216 = vsel %vm3186, %v3183, %v2835
      %v3217 = vsel %vm3186, %v3184, %v2837
      %v3218 = vsel %vm3186, %v3185, %v2839
      %vm3219 = vcmask 785408
      %v3220 = vsel %vm3219, %v3187, %v2873
      %v3221 = vsel %vm3219, %v3188, %v2875
      %v3222 = vsel %vm3219, %v3189, %v2877
      %v3223 = vsel %vm3219, %v3190, %v2879
      %v3224 = vsel %vm3219, %v3191, %v2881
      %v3225 = vsel %vm3219, %v3192, %v2883
      %v3226 = vsel %vm3219, %v3193, %v2885
      %v3227 = vsel %vm3219, %v3194, %v2887
      %v3228 = vsel %vm3219, %v3195, %v2889
      %v3229 = vsel %vm3219, %v3196, %v2891
      %v3230 = vsel %vm3219, %v3197, %v2893
      %v3231 = vsel %vm3219, %v3198, %v2895
      %v3232 = vsel %vm3219, %v3199, %v2897
      %v3233 = vsel %vm3219, %v3200, %v2899
      %v3234 = vsel %vm3219, %v3201, %v2901
      %v3235 = vsel %vm3219, %v3202, %v2903
      %v3236 = vsel %vm3219, %v3203, %v2905
      %v3237 = vsel %vm3219, %v3204, %v2907
      %v3238 = vsel %vm3219, %v3205, %v2909
      %v3239 = vsel %vm3219, %v3206, %v2911
      %v3240 = vsel %vm3219, %v3207, %v2913
      %v3241 = vsel %vm3219, %v3208, %v2915
      %v3242 = vsel %vm3219, %v3209, %v2917
      %v3243 = vsel %vm3219, %v3210, %v2919
      %v3244 = vsel %vm3219, %v3211, %v2921
      %v3245 = vsel %vm3219, %v3212, %v2923
      %v3246 = vsel %vm3219, %v3213, %v2925
      %v3247 = vsel %vm3219, %v3214, %v2927
      %v3248 = vsel %vm3219, %v3215, %v2929
      %v3249 = vsel %vm3219, %v3216, %v2931
      %v3250 = vsel %vm3219, %v3217, %v2933
      %v3251 = vsel %vm3219, %v3218, %v2933
      %vm3252 = vcmask 916480
      %v3253 = vsel %vm3252, %v3220, %v2966
      %v3254 = vsel %vm3252, %v3221, %v2968
      %v3255 = vsel %vm3252, %v3222, %v2970
      %v3256 = vsel %vm3252, %v3223, %v2972
      %v3257 = vsel %vm3252, %v3224, %v2974
      %v3258 = vsel %vm3252, %v3225, %v2976
      %v3259 = vsel %vm3252, %v3226, %v2978
      %v3260 = vsel %vm3252, %v3227, %v2980
      %v3261 = vsel %vm3252, %v3228, %v2982
      %v3262 = vsel %vm3252, %v3229, %v2984
      %v3263 = vsel %vm3252, %v3230, %v2986
      %v3264 = vsel %vm3252, %v3231, %v2988
      %v3265 = vsel %vm3252, %v3232, %v2990
      %v3266 = vsel %vm3252, %v3233, %v2992
      %v3267 = vsel %vm3252, %v3234, %v2994
      %v3268 = vsel %vm3252, %v3235, %v2996
      %v3269 = vsel %vm3252, %v3236, %v2998
      %v3270 = vsel %vm3252, %v3237, %v3000
      %v3271 = vsel %vm3252, %v3238, %v3002
      %v3272 = vsel %vm3252, %v3239, %v3004
      %v3273 = vsel %vm3252, %v3240, %v3006
      %v3274 = vsel %vm3252, %v3241, %v3008
      %v3275 = vsel %vm3252, %v3242, %v3010
      %v3276 = vsel %vm3252, %v3243, %v3012
      %v3277 = vsel %vm3252, %v3244, %v3014
      %v3278 = vsel %vm3252, %v3245, %v3016
      %v3279 = vsel %vm3252, %v3246, %v3018
      %v3280 = vsel %vm3252, %v3247, %v3020
      %v3281 = vsel %vm3252, %v3248, %v3022
      %v3282 = vsel %vm3252, %v3249, %v3024
      %v3283 = vsel %vm3252, %v3250, %v3026
      %v3284 = vsel %vm3252, %v3251, %v3026
      %v3285 = vld [vmem:[%s3] sm:$0xff]
      %v3286 = vld [vmem:[%s3 + $0x8] sm:$0xff]
      %v3287 = vld [vmem:[%s3 + $0x10] sm:$0xff]
      %v3288 = vld [vmem:[%s3 + $0x18] sm:$0xff]
      %v3289 = vld [vmem:[%s3 + $0x20] sm:$0xff]
      %v3290 = vld [vmem:[%s3 + $0x28] sm:$0xff]
      %v3291 = vld [vmem:[%s3 + $0x30] sm:$0xff]
      %v3292 = vld [vmem:[%s3 + $0x38] sm:$0xff]
      %v3293 = vld [vmem:[%s3 + $0x40] sm:$0xff]
      %v3294 = vld [vmem:[%s3 + $0x48] sm:$0xff]
      %v3295 = vld [vmem:[%s3 + $0x50] sm:$0xff]
      %v3296 = vld [vmem:[%s3 + $0x58] sm:$0xff]
      %v3297 = vld [vmem:[%s3 + $0x60] sm:$0xff]
      %v3298 = vld [vmem:[%s3 + $0x68] sm:$0xff]
      %v3299 = vld [vmem:[%s3 + $0x70] sm:$0xff]
      %v3300 = vld [vmem:[%s3 + $0x78] sm:$0xff]
      %v3301 = vld [vmem:[%s3 + $0x80] sm:$0xff]
      %v3302 = vld [vmem:[%s3 + $0x88] sm:$0xff]
      %v3303 = vld [vmem:[%s4] sm:$0x1]
      %v3305 = vperm.slane %v3303, 0
      %v3307 = vsel %vm1630, %v2321, 0
      %v3309 = vsel %vm1630, %v2323, 0
      %v3311 = vsel %vm1630, %v2326, 0
      %v3313 = vsel %vm1630, %v2328, 0
      %v3315 = vsel %vm1630, %v2331, 0
      %v3317 = vsel %vm1630, %v2333, 0
      %v3319 = vsel %vm1630, %v2336, 0
      %v3321 = vsel %vm1630, %v2338, 0
      %v3323 = vsel %vm1630, %v2341, 0
      %v3325 = vsel %vm1630, %v2343, 0
      %v3327 = vsel %vm1630, %v2346, 0
      %v3329 = vsel %vm1630, %v2348, 0
      %v3331 = vsel %vm1630, %v2351, 0
      %v3333 = vsel %vm1630, %v2353, 0
      %v3335 = vsel %vm1630, %v2356, 0
      %v3337 = vsel %vm1630, %v2358, 0
      %v3339 = vsel %vm1630, %v2361, 0
      %v3341 = vsel %vm1630, %v2363, 0
      %v3343 = vsel %vm1630, %v2366, 0
      %v3345 = vsel %vm1630, %v2368, 0
      %v3347 = vsel %vm1630, %v2371, 0
      %v3349 = vsel %vm1630, %v2373, 0
      %v3351 = vsel %vm1630, %v2376, 0
      %v3353 = vsel %vm1630, %v2378, 0
      %v3355 = vsel %vm1630, %v2381, 0
      %v3357 = vsel %vm1630, %v2383, 0
      %v3359 = vsel %vm1630, %v2386, 0
      %v3361 = vsel %vm1630, %v2388, 0
      %v3363 = vsel %vm1630, %v2398, 0
      %v3365 = vsel %vm1630, %v2400, 0
      %v3367 = vsel %vm1630, %v692, 0
      %3369 = vmatpush.msra.mxu0 %v3300
      %3370 = vmatpush.msra.mxu0 %v3299
      %3371 = vmatpush.msra.mxu0 %v3298
      %3372 = vmatpush.msra.mxu0 %v3297
      %3373 = vmatpush.msra.mxu0 %v3296
      %3374 = vmatpush.msra.mxu0 %v3295
      %3375 = vmatpush.msra.mxu0 %v3294
      %3376 = vmatpush.msra.mxu0 %v3293
      %3377 = vmatpush.msra.mxu0 %v3292
      %3378 = vmatpush.msra.mxu0 %v3291
      %3379 = vmatpush.msra.mxu0 %v3290
      %3380 = vmatpush.msra.mxu0 %v3289
      %3381 = vmatpush.msra.mxu0 %v3288
      %3382 = vmatpush.msra.mxu0 %v3287
      %3383 = vmatpush.msra.mxu0 %v3286
      %3384 = vmatpush.msra.mxu0 %v3285
      %3385 = vmatmul.f32.gmra.mxu0 %v3253
      %v3386 = vpop.f32.mrf.mxu0
      %v3387 = vadd.f32 %v3305, %v3386
      %3388 = vmatmul.f32.gmra.mxu0 %v3254
      %v3389 = vpop.f32.mrf.mxu0
      %v3390 = vadd.f32 %v3305, %v3389
      %3391 = vmatmul.f32.gmra.mxu0 %v3255
      %v3392 = vpop.f32.mrf.mxu0
      %v3393 = vadd.f32 %v3305, %v3392
      %3394 = vmatmul.f32.gmra.mxu0 %v3256
      %v3395 = vpop.f32.mrf.mxu0
      %v3396 = vadd.f32 %v3305, %v3395
      %3397 = vmatmul.f32.gmra.mxu0 %v3257
      %v3398 = vpop.f32.mrf.mxu0
      %v3399 = vadd.f32 %v3305, %v3398
      %3400 = vmatmul.f32.gmra.mxu0 %v3258
      %v3401 = vpop.f32.mrf.mxu0
      %v3402 = vadd.f32 %v3305, %v3401
      %3403 = vmatmul.f32.gmra.mxu0 %v3259
      %v3404 = vpop.f32.mrf.mxu0
      %v3405 = vadd.f32 %v3305, %v3404
      %3406 = vmatmul.f32.gmra.mxu0 %v3260
      %v3407 = vpop.f32.mrf.mxu0
      %v3408 = vadd.f32 %v3305, %v3407
      %3409 = vmatmul.f32.gmra.mxu0 %v3261
      %v3410 = vpop.f32.mrf.mxu0
      %v3411 = vadd.f32 %v3305, %v3410
      %3412 = vmatmul.f32.gmra.mxu0 %v3262
      %v3413 = vpop.f32.mrf.mxu0
      %v3414 = vadd.f32 %v3305, %v3413
      %3415 = vmatmul.f32.gmra.mxu0 %v3263
      %v3416 = vpop.f32.mrf.mxu0
      %v3417 = vadd.f32 %v3305, %v3416
      %3418 = vmatmul.f32.gmra.mxu0 %v3264
      %v3419 = vpop.f32.mrf.mxu0
      %v3420 = vadd.f32 %v3305, %v3419
      %3421 = vmatmul.f32.gmra.mxu0 %v3265
      %v3422 = vpop.f32.mrf.mxu0
      %v3423 = vadd.f32 %v3305, %v3422
      %3424 = vmatmul.f32.gmra.mxu0 %v3266
      %v3425 = vpop.f32.mrf.mxu0
      %v3426 = vadd.f32 %v3305, %v3425
      %3427 = vmatmul.f32.gmra.mxu0 %v3267
      %v3428 = vpop.f32.mrf.mxu0
      %v3429 = vadd.f32 %v3305, %v3428
      %3430 = vmatmul.f32.gmra.mxu0 %v3268
      %v3431 = vpop.f32.mrf.mxu0
      %v3432 = vadd.f32 %v3305, %v3431
      %3433 = vmatmul.f32.gmra.mxu0 %v3269
      %v3434 = vpop.f32.mrf.mxu0
      %v3435 = vadd.f32 %v3305, %v3434
      %3436 = vmatmul.f32.gmra.mxu0 %v3270
      %v3437 = vpop.f32.mrf.mxu0
      %v3438 = vadd.f32 %v3305, %v3437
      %3439 = vmatmul.f32.gmra.mxu0 %v3271
      %v3440 = vpop.f32.mrf.mxu0
      %v3441 = vadd.f32 %v3305, %v3440
      %3442 = vmatmul.f32.gmra.mxu0 %v3272
      %v3443 = vpop.f32.mrf.mxu0
      %v3444 = vadd.f32 %v3305, %v3443
      %3445 = vmatmul.f32.gmra.mxu0 %v3273
      %v3446 = vpop.f32.mrf.mxu0
      %v3447 = vadd.f32 %v3305, %v3446
      %3448 = vmatmul.f32.gmra.mxu0 %v3274
      %v3449 = vpop.f32.mrf.mxu0
      %v3450 = vadd.f32 %v3305, %v3449
      %3451 = vmatmul.f32.gmra.mxu0 %v3275
      %v3452 = vpop.f32.mrf.mxu0
      %v3453 = vadd.f32 %v3305, %v3452
      %3454 = vmatmul.f32.gmra.mxu0 %v3276
      %v3455 = vpop.f32.mrf.mxu0
      %v3456 = vadd.f32 %v3305, %v3455
      %3457 = vmatmul.f32.gmra.mxu0 %v3277
      %v3458 = vpop.f32.mrf.mxu0
      %v3459 = vadd.f32 %v3305, %v3458
      %3460 = vmatmul.f32.gmra.mxu0 %v3278
      %v3461 = vpop.f32.mrf.mxu0
      %v3462 = vadd.f32 %v3305, %v3461
      %3463 = vmatmul.f32.gmra.mxu0 %v3279
      %v3464 = vpop.f32.mrf.mxu0
      %v3465 = vadd.f32 %v3305, %v3464
      %3466 = vmatmul.f32.gmra.mxu0 %v3280
      %v3467 = vpop.f32.mrf.mxu0
      %v3468 = vadd.f32 %v3305, %v3467
      %3469 = vmatmul.f32.gmra.mxu0 %v3281
      %v3470 = vpop.f32.mrf.mxu0
      %v3471 = vadd.f32 %v3305, %v3470
      %3472 = vmatmul.f32.gmra.mxu0 %v3282
      %v3473 = vpop.f32.mrf.mxu0
      %v3474 = vadd.f32 %v3305, %v3473
      %3475 = vmatmul.f32.gmra.mxu0 %v3283
      %v3476 = vpop.f32.mrf.mxu0
      %v3477 = vadd.f32 %v3305, %v3476
      %3478 = vmatmul.f32.gmra.mxu0 %v3284
      %v3479 = vpop.f32.mrf.mxu0
      %v3480 = vadd.f32 %v3305, %v3479
      %3481 = vdwg.mxu0
      %3482 = vmatpush.msra.mxu0 0.0
      %3483 = vmatpush.msra.mxu0 0.0
      %3484 = vmatpush.msra.mxu0 0.0
      %3485 = vmatpush.msra.mxu0 0.0
      %3486 = vmatpush.msra.mxu0 0.0
      %3487 = vmatpush.msra.mxu0 0.0
      %3488 = vmatpush.msra.mxu0 0.0
      %3489 = vmatpush.msra.mxu0 0.0
      %3490 = vmatpush.msra.mxu0 0.0
      %3491 = vmatpush.msra.mxu0 0.0
      %3492 = vmatpush.msra.mxu0 0.0
      %3493 = vmatpush.msra.mxu0 0.0
      %3494 = vmatpush.msra.mxu0 0.0
      %3495 = vmatpush.msra.mxu0 0.0
      %3496 = vmatpush.msra.mxu0 %v3302
      %3497 = vmatpush.msra.mxu0 %v3301
      %3498 = vmatmul.f32.gmra.mxu0 %v3307
      %v3499 = vpop.f32.mrf.mxu0
      %v3500 = vadd.f32 %v3387, %v3499
      %3501 = vmatmul.f32.gmra.mxu0 %v3309
      %v3502 = vpop.f32.mrf.mxu0
      %v3503 = vadd.f32 %v3390, %v3502
      %3504 = vmatmul.f32.gmra.mxu0 %v3311
      %v3505 = vpop.f32.mrf.mxu0
      %v3506 = vadd.f32 %v3393, %v3505
      %3507 = vmatmul.f32.gmra.mxu0 %v3313
      %v3508 = vpop.f32.mrf.mxu0
      %v3509 = vadd.f32 %v3396, %v3508
      %3510 = vmatmul.f32.gmra.mxu0 %v3315
      %v3511 = vpop.f32.mrf.mxu0
      %v3512 = vadd.f32 %v3399, %v3511
      %3513 = vmatmul.f32.gmra.mxu0 %v3317
      %v3514 = vpop.f32.mrf.mxu0
      %v3515 = vadd.f32 %v3402, %v3514
      %3516 = vmatmul.f32.gmra.mxu0 %v3319
      %v3517 = vpop.f32.mrf.mxu0
      %v3518 = vadd.f32 %v3405, %v3517
      %3519 = vmatmul.f32.gmra.mxu0 %v3321
      %v3520 = vpop.f32.mrf.mxu0
      %v3521 = vadd.f32 %v3408, %v3520
      %3522 = vmatmul.f32.gmra.mxu0 %v3323
      %v3523 = vpop.f32.mrf.mxu0
      %v3524 = vadd.f32 %v3411, %v3523
      %3525 = vmatmul.f32.gmra.mxu0 %v3325
      %v3526 = vpop.f32.mrf.mxu0
      %v3527 = vadd.f32 %v3414, %v3526
      %3528 = vmatmul.f32.gmra.mxu0 %v3327
      %v3529 = vpop.f32.mrf.mxu0
      %v3530 = vadd.f32 %v3417, %v3529
      %3531 = vmatmul.f32.gmra.mxu0 %v3329
      %v3532 = vpop.f32.mrf.mxu0
      %v3533 = vadd.f32 %v3420, %v3532
      %3534 = vmatmul.f32.gmra.mxu0 %v3331
      %v3535 = vpop.f32.mrf.mxu0
      %v3536 = vadd.f32 %v3423, %v3535
      %3537 = vmatmul.f32.gmra.mxu0 %v3333
      %v3538 = vpop.f32.mrf.mxu0
      %v3539 = vadd.f32 %v3426, %v3538
      %3540 = vmatmul.f32.gmra.mxu0 %v3335
      %v3541 = vpop.f32.mrf.mxu0
      %v3542 = vadd.f32 %v3429, %v3541
      %3543 = vmatmul.f32.gmra.mxu0 %v3337
      %v3544 = vpop.f32.mrf.mxu0
      %v3545 = vadd.f32 %v3432, %v3544
      %3546 = vmatmul.f32.gmra.mxu0 %v3339
      %v3547 = vpop.f32.mrf.mxu0
      %v3548 = vadd.f32 %v3435, %v3547
      %3549 = vmatmul.f32.gmra.mxu0 %v3341
      %v3550 = vpop.f32.mrf.mxu0
      %v3551 = vadd.f32 %v3438, %v3550
      %3552 = vmatmul.f32.gmra.mxu0 %v3343
      %v3553 = vpop.f32.mrf.mxu0
      %v3554 = vadd.f32 %v3441, %v3553
      %3555 = vmatmul.f32.gmra.mxu0 %v3345
      %v3556 = vpop.f32.mrf.mxu0
      %v3557 = vadd.f32 %v3444, %v3556
      %3558 = vmatmul.f32.gmra.mxu0 %v3347
      %v3559 = vpop.f32.mrf.mxu0
      %v3560 = vadd.f32 %v3447, %v3559
      %3561 = vmatmul.f32.gmra.mxu0 %v3349
      %v3562 = vpop.f32.mrf.mxu0
      %v3563 = vadd.f32 %v3450, %v3562
      %3564 = vmatmul.f32.gmra.mxu0 %v3351
      %v3565 = vpop.f32.mrf.mxu0
      %v3566 = vadd.f32 %v3453, %v3565
      %3567 = vmatmul.f32.gmra.mxu0 %v3353
      %v3568 = vpop.f32.mrf.mxu0
      %v3569 = vadd.f32 %v3456, %v3568
      %3570 = vmatmul.f32.gmra.mxu0 %v3355
      %v3571 = vpop.f32.mrf.mxu0
      %v3572 = vadd.f32 %v3459, %v3571
      %3573 = vmatmul.f32.gmra.mxu0 %v3357
      %v3574 = vpop.f32.mrf.mxu0
      %v3575 = vadd.f32 %v3462, %v3574
      %3576 = vmatmul.f32.gmra.mxu0 %v3359
      %v3577 = vpop.f32.mrf.mxu0
      %v3578 = vadd.f32 %v3465, %v3577
      %3579 = vmatmul.f32.gmra.mxu0 %v3361
      %v3580 = vpop.f32.mrf.mxu0
      %v3581 = vadd.f32 %v3468, %v3580
      %3582 = vmatmul.f32.gmra.mxu0 %v3363
      %v3583 = vpop.f32.mrf.mxu0
      %v3584 = vadd.f32 %v3471, %v3583
      %3585 = vmatmul.f32.gmra.mxu0 %v3365
      %v3586 = vpop.f32.mrf.mxu0
      %v3587 = vadd.f32 %v3474, %v3586
      %3588 = vmatmul.f32.gmra.mxu0 %v3367
      %v3589 = vpop.f32.mrf.mxu0
      %v3590 = vadd.f32 %v3477, %v3589
      %3591 = vmatmul.f32.gmra.mxu0 %v3367
      %v3592 = vpop.f32.mrf.mxu0
      %v3593 = vadd.f32 %v3480, %v3592
      %3594 = vdwg.mxu0
      %v3595 = vmax.f32 %v3500, 0.0
      %v3596 = vmax.f32 %v3503, 0.0
      %v3597 = vmax.f32 %v3506, 0.0
      %v3598 = vmax.f32 %v3509, 0.0
      %v3599 = vmax.f32 %v3512, 0.0
      %v3600 = vmax.f32 %v3515, 0.0
      %v3601 = vmax.f32 %v3518, 0.0
      %v3602 = vmax.f32 %v3521, 0.0
      %v3603 = vmax.f32 %v3524, 0.0
      %v3604 = vmax.f32 %v3527, 0.0
      %v3605 = vmax.f32 %v3530, 0.0
      %v3606 = vmax.f32 %v3533, 0.0
      %v3607 = vmax.f32 %v3536, 0.0
      %v3608 = vmax.f32 %v3539, 0.0
      %v3609 = vmax.f32 %v3542, 0.0
      %v3610 = vmax.f32 %v3545, 0.0
      %v3611 = vmax.f32 %v3548, 0.0
      %v3612 = vmax.f32 %v3551, 0.0
      %v3613 = vmax.f32 %v3554, 0.0
      %v3614 = vmax.f32 %v3557, 0.0
      %v3615 = vmax.f32 %v3560, 0.0
      %v3616 = vmax.f32 %v3563, 0.0
      %v3617 = vmax.f32 %v3566, 0.0
      %v3618 = vmax.f32 %v3569, 0.0
      %v3619 = vmax.f32 %v3572, 0.0
      %v3620 = vmax.f32 %v3575, 0.0
      %v3621 = vmax.f32 %v3578, 0.0
      %v3622 = vmax.f32 %v3581, 0.0
      %v3623 = vmax.f32 %v3584, 0.0
      %v3624 = vmax.f32 %v3587, 0.0
      %v3625 = vmax.f32 %v3590, 0.0
      %v3626 = vmax.f32 %v3593, 0.0
      %v3659 = vrot.slane %v3595, 7
      %v3660 = vrot.slane %v3596, 7
      %v3661 = vsel %vm453, %v3659, %v3660
      %v3662 = vrot.slane %v3597, 7
      %v3663 = vrot.slane %v3598, 7
      %v3664 = vsel %vm453, %v3662, %v3663
      %v3665 = vrot.slane %v3599, 7
      %v3666 = vrot.slane %v3600, 7
      %v3667 = vsel %vm453, %v3665, %v3666
      %v3668 = vrot.slane %v3601, 7
      %v3669 = vrot.slane %v3602, 7
      %v3670 = vsel %vm453, %v3668, %v3669
      %v3671 = vrot.slane %v3603, 7
      %v3672 = vrot.slane %v3604, 7
      %v3673 = vsel %vm453, %v3671, %v3672
      %v3674 = vrot.slane %v3605, 7
      %v3675 = vrot.slane %v3606, 7
      %v3676 = vsel %vm453, %v3674, %v3675
      %v3677 = vrot.slane %v3607, 7
      %v3678 = vrot.slane %v3608, 7
      %v3679 = vsel %vm453, %v3677, %v3678
      %v3680 = vrot.slane %v3609, 7
      %v3681 = vrot.slane %v3610, 7
      %v3682 = vsel %vm453, %v3680, %v3681
      %v3683 = vrot.slane %v3611, 7
      %v3684 = vrot.slane %v3612, 7
      %v3685 = vsel %vm453, %v3683, %v3684
      %v3686 = vrot.slane %v3613, 7
      %v3687 = vrot.slane %v3614, 7
      %v3688 = vsel %vm453, %v3686, %v3687
      %v3689 = vrot.slane %v3615, 7
      %v3690 = vrot.slane %v3616, 7
      %v3691 = vsel %vm453, %v3689, %v3690
      %v3692 = vrot.slane %v3617, 7
      %v3693 = vrot.slane %v3618, 7
      %v3694 = vsel %vm453, %v3692, %v3693
      %v3695 = vrot.slane %v3619, 7
      %v3696 = vrot.slane %v3620, 7
      %v3697 = vsel %vm453, %v3695, %v3696
      %v3698 = vrot.slane %v3621, 7
      %v3699 = vrot.slane %v3622, 7
      %v3700 = vsel %vm453, %v3698, %v3699
      %v3701 = vrot.slane %v3623, 7
      %v3702 = vrot.slane %v3624, 7
      %v3703 = vsel %vm453, %v3701, %v3702
      %v3704 = vrot.slane %v3625, 7
      %v3705 = vrot.slane %v3626, 7
      %v3706 = vsel %vm453, %v3704, %v3705
      %v3754 = vsel %vm453, 0.0, %v3659
      %v3755 = vsel %vm453, 0.0, %v3662
      %v3756 = vsel %vm453, 0.0, %v3665
      %v3757 = vsel %vm453, 0.0, %v3668
      %v3758 = vsel %vm453, 0.0, %v3671
      %v3759 = vsel %vm453, 0.0, %v3674
      %v3760 = vsel %vm453, 0.0, %v3677
      %v3761 = vsel %vm453, 0.0, %v3680
      %v3762 = vsel %vm453, 0.0, %v3683
      %v3763 = vsel %vm453, 0.0, %v3686
      %v3764 = vsel %vm453, 0.0, %v3689
      %v3765 = vsel %vm453, 0.0, %v3692
      %v3766 = vsel %vm453, 0.0, %v3695
      %v3767 = vsel %vm453, 0.0, %v3698
      %v3768 = vsel %vm453, 0.0, %v3701
      %v3769 = vsel %vm453, 0.0, %v3704
      %v3770 = vsel %vm453, %v3660, 0.0
      %v3771 = vsel %vm453, %v3663, 0.0
      %v3772 = vsel %vm453, %v3666, 0.0
      %v3773 = vsel %vm453, %v3669, 0.0
      %v3774 = vsel %vm453, %v3672, 0.0
      %v3775 = vsel %vm453, %v3675, 0.0
      %v3776 = vsel %vm453, %v3678, 0.0
      %v3777 = vsel %vm453, %v3681, 0.0
      %v3778 = vsel %vm453, %v3684, 0.0
      %v3779 = vsel %vm453, %v3687, 0.0
      %v3780 = vsel %vm453, %v3690, 0.0
      %v3781 = vsel %vm453, %v3693, 0.0
      %v3782 = vsel %vm453, %v3696, 0.0
      %v3783 = vsel %vm453, %v3699, 0.0
      %v3784 = vsel %vm453, %v3702, 0.0
      %v3785 = vsel %vm453, %v3705, 0.0
      %v3816 = vrot.slane %v3754, 1
      %v3817 = vrot.slane %v3661, 1
      %v3818 = vsel %vm612, %v3816, %v3817
      %v3819 = vrot.slane %v3770, 1
      %v3820 = vsel %vm612, %v3817, %v3819
      %v3821 = vrot.slane %v3755, 1
      %v3822 = vrot.slane %v3664, 1
      %v3823 = vsel %vm612, %v3821, %v3822
      %v3824 = vrot.slane %v3771, 1
      %v3825 = vsel %vm612, %v3822, %v3824
      %v3826 = vrot.slane %v3756, 1
      %v3827 = vrot.slane %v3667, 1
      %v3828 = vsel %vm612, %v3826, %v3827
      %v3829 = vrot.slane %v3772, 1
      %v3830 = vsel %vm612, %v3827, %v3829
      %v3831 = vrot.slane %v3757, 1
      %v3832 = vrot.slane %v3670, 1
      %v3833 = vsel %vm612, %v3831, %v3832
      %v3834 = vrot.slane %v3773, 1
      %v3835 = vsel %vm612, %v3832, %v3834
      %v3836 = vrot.slane %v3758, 1
      %v3837 = vrot.slane %v3673, 1
      %v3838 = vsel %vm612, %v3836, %v3837
      %v3839 = vrot.slane %v3774, 1
      %v3840 = vsel %vm612, %v3837, %v3839
      %v3841 = vrot.slane %v3759, 1
      %v3842 = vrot.slane %v3676, 1
      %v3843 = vsel %vm612, %v3841, %v3842
      %v3844 = vrot.slane %v3775, 1
      %v3845 = vsel %vm612, %v3842, %v3844
      %v3846 = vrot.slane %v3760, 1
      %v3847 = vrot.slane %v3679, 1
      %v3848 = vsel %vm612, %v3846, %v3847
      %v3849 = vrot.slane %v3776, 1
      %v3850 = vsel %vm612, %v3847, %v3849
      %v3851 = vrot.slane %v3761, 1
      %v3852 = vrot.slane %v3682, 1
      %v3853 = vsel %vm612, %v3851, %v3852
      %v3854 = vrot.slane %v3777, 1
      %v3855 = vsel %vm612, %v3852, %v3854
      %v3856 = vrot.slane %v3762, 1
      %v3857 = vrot.slane %v3685, 1
      %v3858 = vsel %vm612, %v3856, %v3857
      %v3859 = vrot.slane %v3778, 1
      %v3860 = vsel %vm612, %v3857, %v3859
      %v3861 = vrot.slane %v3763, 1
      %v3862 = vrot.slane %v3688, 1
      %v3863 = vsel %vm612, %v3861, %v3862
      %v3864 = vrot.slane %v3779, 1
      %v3865 = vsel %vm612, %v3862, %v3864
      %v3866 = vrot.slane %v3764, 1
      %v3867 = vrot.slane %v3691, 1
      %v3868 = vsel %vm612, %v3866, %v3867
      %v3869 = vrot.slane %v3780, 1
      %v3870 = vsel %vm612, %v3867, %v3869
      %v3871 = vrot.slane %v3765, 1
      %v3872 = vrot.slane %v3694, 1
      %v3873 = vsel %vm612, %v3871, %v3872
      %v3874 = vrot.slane %v3781, 1
      %v3875 = vsel %vm612, %v3872, %v3874
      %v3876 = vrot.slane %v3766, 1
      %v3877 = vrot.slane %v3697, 1
      %v3878 = vsel %vm612, %v3876, %v3877
      %v3879 = vrot.slane %v3782, 1
      %v3880 = vsel %vm612, %v3877, %v3879
      %v3881 = vrot.slane %v3767, 1
      %v3882 = vrot.slane %v3700, 1
      %v3883 = vsel %vm612, %v3881, %v3882
      %v3884 = vrot.slane %v3783, 1
      %v3885 = vsel %vm612, %v3882, %v3884
      %v3886 = vrot.slane %v3768, 1
      %v3887 = vrot.slane %v3703, 1
      %v3888 = vsel %vm612, %v3886, %v3887
      %v3889 = vrot.slane %v3784, 1
      %v3890 = vsel %vm612, %v3887, %v3889
      %v3891 = vrot.slane %v3754, 2
      %v3892 = vrot.slane %v3661, 2
      %v3893 = vsel %vm690, %v3891, %v3892
      %v3894 = vrot.slane %v3770, 2
      %v3895 = vsel %vm690, %v3892, %v3894
      %v3896 = vrot.slane %v3755, 2
      %v3897 = vrot.slane %v3664, 2
      %v3898 = vsel %vm690, %v3896, %v3897
      %v3899 = vrot.slane %v3771, 2
      %v3900 = vsel %vm690, %v3897, %v3899
      %v3901 = vrot.slane %v3756, 2
      %v3902 = vrot.slane %v3667, 2
      %v3903 = vsel %vm690, %v3901, %v3902
      %v3904 = vrot.slane %v3772, 2
      %v3905 = vsel %vm690, %v3902, %v3904
      %v3906 = vrot.slane %v3757, 2
      %v3907 = vrot.slane %v3670, 2
      %v3908 = vsel %vm690, %v3906, %v3907
      %v3909 = vrot.slane %v3773, 2
      %v3910 = vsel %vm690, %v3907, %v3909
      %v3911 = vrot.slane %v3758, 2
      %v3912 = vrot.slane %v3673, 2
      %v3913 = vsel %vm690, %v3911, %v3912
      %v3914 = vrot.slane %v3774, 2
      %v3915 = vsel %vm690, %v3912, %v3914
      %v3916 = vrot.slane %v3759, 2
      %v3917 = vrot.slane %v3676, 2
      %v3918 = vsel %vm690, %v3916, %v3917
      %v3919 = vrot.slane %v3775, 2
      %v3920 = vsel %vm690, %v3917, %v3919
      %v3921 = vrot.slane %v3760, 2
      %v3922 = vrot.slane %v3679, 2
      %v3923 = vsel %vm690, %v3921, %v3922
      %v3924 = vrot.slane %v3776, 2
      %v3925 = vsel %vm690, %v3922, %v3924
      %v3926 = vrot.slane %v3761, 2
      %v3927 = vrot.slane %v3682, 2
      %v3928 = vsel %vm690, %v3926, %v3927
      %v3929 = vrot.slane %v3777, 2
      %v3930 = vsel %vm690, %v3927, %v3929
      %v3931 = vrot.slane %v3762, 2
      %v3932 = vrot.slane %v3685, 2
      %v3933 = vsel %vm690, %v3931, %v3932
      %v3934 = vrot.slane %v3778, 2
      %v3935 = vsel %vm690, %v3932, %v3934
      %v3936 = vrot.slane %v3763, 2
      %v3937 = vrot.slane %v3688, 2
      %v3938 = vsel %vm690, %v3936, %v3937
      %v3939 = vrot.slane %v3779, 2
      %v3940 = vsel %vm690, %v3937, %v3939
      %v3941 = vrot.slane %v3764, 2
      %v3942 = vrot.slane %v3691, 2
      %v3943 = vsel %vm690, %v3941, %v3942
      %v3944 = vrot.slane %v3780, 2
      %v3945 = vsel %vm690, %v3942, %v3944
      %v3946 = vrot.slane %v3765, 2
      %v3947 = vrot.slane %v3694, 2
      %v3948 = vsel %vm690, %v3946, %v3947
      %v3949 = vrot.slane %v3781, 2
      %v3950 = vsel %vm690, %v3947, %v3949
      %v3951 = vrot.slane %v3766, 2
      %v3952 = vrot.slane %v3697, 2
      %v3953 = vsel %vm690, %v3951, %v3952
      %v3954 = vrot.slane %v3782, 2
      %v3955 = vsel %vm690, %v3952, %v3954
      %v3956 = vrot.slane %v3767, 2
      %v3957 = vrot.slane %v3700, 2
      %v3958 = vsel %vm690, %v3956, %v3957
      %v3959 = vrot.slane %v3783, 2
      %v3960 = vsel %vm690, %v3957, %v3959
      %v3961 = vrot.slane %v3768, 2
      %v3962 = vrot.slane %v3703, 2
      %v3963 = vsel %vm690, %v3961, %v3962
      %v3964 = vrot.slane %v3784, 2
      %v3965 = vsel %vm690, %v3962, %v3964
      %v3968 = vrot.slane %v3769, 1
      %v3969 = vrot.slane %v3706, 1
      %v3970 = vsel %vm612, %v3968, %v3969
      %v3971 = vrot.slane %v3785, 1
      %v3972 = vsel %vm612, %v3969, %v3971
      %v4005 = vrot.slane %v3769, 2
      %v4006 = vrot.slane %v3706, 2
      %v4007 = vsel %vm690, %v4005, %v4006
      %v4008 = vrot.slane %v3785, 2
      %v4009 = vsel %vm690, %v4006, %v4008
      %4010 = vrot.lane.b32.xlu0 %v614, 32
      %v4011 = vpop.permute.xlu0 %4010
      %4012 = vrot.lane.b32.xlu0 %v3818, 32
      %v4013 = vpop.permute.xlu0 %4012
      %4014 = vrot.lane.b32.xlu0 %v3820, 32
      %v4015 = vpop.permute.xlu0 %4014
      %4016 = vrot.lane.b32.xlu0 %v3823, 32
      %v4017 = vpop.permute.xlu0 %4016
      %4018 = vrot.lane.b32.xlu0 %v3825, 32
      %v4019 = vpop.permute.xlu0 %4018
      %4020 = vrot.lane.b32.xlu0 %v3828, 32
      %v4021 = vpop.permute.xlu0 %4020
      %4022 = vrot.lane.b32.xlu0 %v3830, 32
      %v4023 = vpop.permute.xlu0 %4022
      %4024 = vrot.lane.b32.xlu0 %v3833, 32
      %v4025 = vpop.permute.xlu0 %4024
      %4026 = vrot.lane.b32.xlu0 %v3835, 32
      %v4027 = vpop.permute.xlu0 %4026
      %4028 = vrot.lane.b32.xlu0 %v3838, 32
      %v4029 = vpop.permute.xlu0 %4028
      %4030 = vrot.lane.b32.xlu0 %v3840, 32
      %v4031 = vpop.permute.xlu0 %4030
      %4032 = vrot.lane.b32.xlu0 %v3843, 32
      %v4033 = vpop.permute.xlu0 %4032
      %4034 = vrot.lane.b32.xlu0 %v3845, 32
      %v4035 = vpop.permute.xlu0 %4034
      %4036 = vrot.lane.b32.xlu0 %v3848, 32
      %v4037 = vpop.permute.xlu0 %4036
      %4038 = vrot.lane.b32.xlu0 %v3850, 32
      %v4039 = vpop.permute.xlu0 %4038
      %4040 = vrot.lane.b32.xlu0 %v3853, 32
      %v4041 = vpop.permute.xlu0 %4040
      %4042 = vrot.lane.b32.xlu0 %v3855, 32
      %v4043 = vpop.permute.xlu0 %4042
      %4044 = vrot.lane.b32.xlu0 %v3858, 32
      %v4045 = vpop.permute.xlu0 %4044
      %4046 = vrot.lane.b32.xlu0 %v3860, 32
      %v4047 = vpop.permute.xlu0 %4046
      %4048 = vrot.lane.b32.xlu0 %v3863, 32
      %v4049 = vpop.permute.xlu0 %4048
      %4050 = vrot.lane.b32.xlu0 %v3865, 32
      %v4051 = vpop.permute.xlu0 %4050
      %4052 = vrot.lane.b32.xlu0 %v3868, 32
      %v4053 = vpop.permute.xlu0 %4052
      %4054 = vrot.lane.b32.xlu0 %v3870, 32
      %v4055 = vpop.permute.xlu0 %4054
      %4056 = vrot.lane.b32.xlu0 %v3873, 32
      %v4057 = vpop.permute.xlu0 %4056
      %4058 = vrot.lane.b32.xlu0 %v3875, 32
      %v4059 = vpop.permute.xlu0 %4058
      %4060 = vrot.lane.b32.xlu0 %v3878, 32
      %v4061 = vpop.permute.xlu0 %4060
      %4062 = vrot.lane.b32.xlu0 %v3880, 32
      %v4063 = vpop.permute.xlu0 %4062
      %4064 = vrot.lane.b32.xlu0 %v3883, 32
      %v4065 = vpop.permute.xlu0 %4064
      %4066 = vrot.lane.b32.xlu0 %v3885, 32
      %v4067 = vpop.permute.xlu0 %4066
      %4068 = vrot.lane.b32.xlu0 %v3888, 32
      %v4069 = vpop.permute.xlu0 %4068
      %4070 = vrot.lane.b32.xlu0 %v3890, 32
      %v4071 = vpop.permute.xlu0 %4070
      %4103 = vrot.lane.b32.xlu0 %v692, 64
      %v4104 = vpop.permute.xlu0 %4103
      %4105 = vrot.lane.b32.xlu0 %v3893, 64
      %v4106 = vpop.permute.xlu0 %4105
      %4107 = vrot.lane.b32.xlu0 %v3895, 64
      %v4108 = vpop.permute.xlu0 %4107
      %4109 = vrot.lane.b32.xlu0 %v3898, 64
      %v4110 = vpop.permute.xlu0 %4109
      %4111 = vrot.lane.b32.xlu0 %v3900, 64
      %v4112 = vpop.permute.xlu0 %4111
      %4113 = vrot.lane.b32.xlu0 %v3903, 64
      %v4114 = vpop.permute.xlu0 %4113
      %4115 = vrot.lane.b32.xlu0 %v3905, 64
      %v4116 = vpop.permute.xlu0 %4115
      %4117 = vrot.lane.b32.xlu0 %v3908, 64
      %v4118 = vpop.permute.xlu0 %4117
      %4119 = vrot.lane.b32.xlu0 %v3910, 64
      %v4120 = vpop.permute.xlu0 %4119
      %4121 = vrot.lane.b32.xlu0 %v3913, 64
      %v4122 = vpop.permute.xlu0 %4121
      %4123 = vrot.lane.b32.xlu0 %v3915, 64
      %v4124 = vpop.permute.xlu0 %4123
      %4125 = vrot.lane.b32.xlu0 %v3918, 64
      %v4126 = vpop.permute.xlu0 %4125
      %4127 = vrot.lane.b32.xlu0 %v3920, 64
      %v4128 = vpop.permute.xlu0 %4127
      %4129 = vrot.lane.b32.xlu0 %v3923, 64
      %v4130 = vpop.permute.xlu0 %4129
      %4131 = vrot.lane.b32.xlu0 %v3925, 64
      %v4132 = vpop.permute.xlu0 %4131
      %4133 = vrot.lane.b32.xlu0 %v3928, 64
      %v4134 = vpop.permute.xlu0 %4133
      %4135 = vrot.lane.b32.xlu0 %v3930, 64
      %v4136 = vpop.permute.xlu0 %4135
      %4137 = vrot.lane.b32.xlu0 %v3933, 64
      %v4138 = vpop.permute.xlu0 %4137
      %4139 = vrot.lane.b32.xlu0 %v3935, 64
      %v4140 = vpop.permute.xlu0 %4139
      %4141 = vrot.lane.b32.xlu0 %v3938, 64
      %v4142 = vpop.permute.xlu0 %4141
      %4143 = vrot.lane.b32.xlu0 %v3940, 64
      %v4144 = vpop.permute.xlu0 %4143
      %4145 = vrot.lane.b32.xlu0 %v3943, 64
      %v4146 = vpop.permute.xlu0 %4145
      %4147 = vrot.lane.b32.xlu0 %v3945, 64
      %v4148 = vpop.permute.xlu0 %4147
      %4149 = vrot.lane.b32.xlu0 %v3948, 64
      %v4150 = vpop.permute.xlu0 %4149
      %4151 = vrot.lane.b32.xlu0 %v3950, 64
      %v4152 = vpop.permute.xlu0 %4151
      %4153 = vrot.lane.b32.xlu0 %v3953, 64
      %v4154 = vpop.permute.xlu0 %4153
      %4155 = vrot.lane.b32.xlu0 %v3955, 64
      %v4156 = vpop.permute.xlu0 %4155
      %4157 = vrot.lane.b32.xlu0 %v3958, 64
      %v4158 = vpop.permute.xlu0 %4157
      %4159 = vrot.lane.b32.xlu0 %v3960, 64
      %v4160 = vpop.permute.xlu0 %4159
      %4161 = vrot.lane.b32.xlu0 %v3963, 64
      %v4162 = vpop.permute.xlu0 %4161
      %4163 = vrot.lane.b32.xlu0 %v3965, 64
      %v4164 = vpop.permute.xlu0 %4163
      %4196 = vrot.lane.b32.xlu0 %v3754, 96
      %v4197 = vpop.permute.xlu0 %4196
      %4198 = vrot.lane.b32.xlu0 %v3661, 96
      %v4199 = vpop.permute.xlu0 %4198
      %4200 = vrot.lane.b32.xlu0 %v3755, 96
      %v4201 = vpop.permute.xlu0 %4200
      %4202 = vrot.lane.b32.xlu0 %v3664, 96
      %v4203 = vpop.permute.xlu0 %4202
      %4204 = vrot.lane.b32.xlu0 %v3756, 96
      %v4205 = vpop.permute.xlu0 %4204
      %4206 = vrot.lane.b32.xlu0 %v3667, 96
      %v4207 = vpop.permute.xlu0 %4206
      %4208 = vrot.lane.b32.xlu0 %v3757, 96
      %v4209 = vpop.permute.xlu0 %4208
      %4210 = vrot.lane.b32.xlu0 %v3670, 96
      %v4211 = vpop.permute.xlu0 %4210
      %4212 = vrot.lane.b32.xlu0 %v3758, 96
      %v4213 = vpop.permute.xlu0 %4212
      %4214 = vrot.lane.b32.xlu0 %v3673, 96
      %v4215 = vpop.permute.xlu0 %4214
      %4216 = vrot.lane.b32.xlu0 %v3759, 96
      %v4217 = vpop.permute.xlu0 %4216
      %4218 = vrot.lane.b32.xlu0 %v3676, 96
      %v4219 = vpop.permute.xlu0 %4218
      %4220 = vrot.lane.b32.xlu0 %v3760, 96
      %v4221 = vpop.permute.xlu0 %4220
      %4222 = vrot.lane.b32.xlu0 %v3679, 96
      %v4223 = vpop.permute.xlu0 %4222
      %4224 = vrot.lane.b32.xlu0 %v3761, 96
      %v4225 = vpop.permute.xlu0 %4224
      %4226 = vrot.lane.b32.xlu0 %v3682, 96
      %v4227 = vpop.permute.xlu0 %4226
      %4228 = vrot.lane.b32.xlu0 %v3762, 96
      %v4229 = vpop.permute.xlu0 %4228
      %4230 = vrot.lane.b32.xlu0 %v3685, 96
      %v4231 = vpop.permute.xlu0 %4230
      %4232 = vrot.lane.b32.xlu0 %v3763, 96
      %v4233 = vpop.permute.xlu0 %4232
      %4234 = vrot.lane.b32.xlu0 %v3688, 96
      %v4235 = vpop.permute.xlu0 %4234
      %4236 = vrot.lane.b32.xlu0 %v3764, 96
      %v4237 = vpop.permute.xlu0 %4236
      %4238 = vrot.lane.b32.xlu0 %v3691, 96
      %v4239 = vpop.permute.xlu0 %4238
      %4240 = vrot.lane.b32.xlu0 %v3765, 96
      %v4241 = vpop.permute.xlu0 %4240
      %4242 = vrot.lane.b32.xlu0 %v3694, 96
      %v4243 = vpop.permute.xlu0 %4242
      %4244 = vrot.lane.b32.xlu0 %v3766, 96
      %v4245 = vpop.permute.xlu0 %4244
      %4246 = vrot.lane.b32.xlu0 %v3697, 96
      %v4247 = vpop.permute.xlu0 %4246
      %4248 = vrot.lane.b32.xlu0 %v3767, 96
      %v4249 = vpop.permute.xlu0 %4248
      %4250 = vrot.lane.b32.xlu0 %v3700, 96
      %v4251 = vpop.permute.xlu0 %4250
      %4252 = vrot.lane.b32.xlu0 %v3768, 96
      %v4253 = vpop.permute.xlu0 %4252
      %4254 = vrot.lane.b32.xlu0 %v3703, 96
      %v4255 = vpop.permute.xlu0 %4254
      %4256 = vrot.lane.b32.xlu0 %v3769, 96
      %v4257 = vpop.permute.xlu0 %4256
      %4258 = vrot.lane.b32.xlu0 %v3706, 96
      %v4259 = vpop.permute.xlu0 %4258
      %4292 = vrot.lane.b32.xlu0 %v3893, 32
      %v4293 = vpop.permute.xlu0 %4292
      %4294 = vrot.lane.b32.xlu0 %v3895, 32
      %v4295 = vpop.permute.xlu0 %4294
      %4296 = vrot.lane.b32.xlu0 %v3898, 32
      %v4297 = vpop.permute.xlu0 %4296
      %4298 = vrot.lane.b32.xlu0 %v3900, 32
      %v4299 = vpop.permute.xlu0 %4298
      %4300 = vrot.lane.b32.xlu0 %v3903, 32
      %v4301 = vpop.permute.xlu0 %4300
      %4302 = vrot.lane.b32.xlu0 %v3905, 32
      %v4303 = vpop.permute.xlu0 %4302
      %4304 = vrot.lane.b32.xlu0 %v3908, 32
      %v4305 = vpop.permute.xlu0 %4304
      %4306 = vrot.lane.b32.xlu0 %v3910, 32
      %v4307 = vpop.permute.xlu0 %4306
      %4308 = vrot.lane.b32.xlu0 %v3913, 32
      %v4309 = vpop.permute.xlu0 %4308
      %4310 = vrot.lane.b32.xlu0 %v3915, 32
      %v4311 = vpop.permute.xlu0 %4310
      %4312 = vrot.lane.b32.xlu0 %v3918, 32
      %v4313 = vpop.permute.xlu0 %4312
      %4314 = vrot.lane.b32.xlu0 %v3920, 32
      %v4315 = vpop.permute.xlu0 %4314
      %4316 = vrot.lane.b32.xlu0 %v3923, 32
      %v4317 = vpop.permute.xlu0 %4316
      %4318 = vrot.lane.b32.xlu0 %v3925, 32
      %v4319 = vpop.permute.xlu0 %4318
      %4320 = vrot.lane.b32.xlu0 %v3928, 32
      %v4321 = vpop.permute.xlu0 %4320
      %4322 = vrot.lane.b32.xlu0 %v3930, 32
      %v4323 = vpop.permute.xlu0 %4322
      %4324 = vrot.lane.b32.xlu0 %v3933, 32
      %v4325 = vpop.permute.xlu0 %4324
      %4326 = vrot.lane.b32.xlu0 %v3935, 32
      %v4327 = vpop.permute.xlu0 %4326
      %4328 = vrot.lane.b32.xlu0 %v3938, 32
      %v4329 = vpop.permute.xlu0 %4328
      %4330 = vrot.lane.b32.xlu0 %v3940, 32
      %v4331 = vpop.permute.xlu0 %4330
      %4332 = vrot.lane.b32.xlu0 %v3943, 32
      %v4333 = vpop.permute.xlu0 %4332
      %4334 = vrot.lane.b32.xlu0 %v3945, 32
      %v4335 = vpop.permute.xlu0 %4334
      %4336 = vrot.lane.b32.xlu0 %v3948, 32
      %v4337 = vpop.permute.xlu0 %4336
      %4338 = vrot.lane.b32.xlu0 %v3950, 32
      %v4339 = vpop.permute.xlu0 %4338
      %4340 = vrot.lane.b32.xlu0 %v3953, 32
      %v4341 = vpop.permute.xlu0 %4340
      %4342 = vrot.lane.b32.xlu0 %v3955, 32
      %v4343 = vpop.permute.xlu0 %4342
      %4344 = vrot.lane.b32.xlu0 %v3958, 32
      %v4345 = vpop.permute.xlu0 %4344
      %4346 = vrot.lane.b32.xlu0 %v3960, 32
      %v4347 = vpop.permute.xlu0 %4346
      %4348 = vrot.lane.b32.xlu0 %v3963, 32
      %v4349 = vpop.permute.xlu0 %4348
      %4350 = vrot.lane.b32.xlu0 %v3965, 32
      %v4351 = vpop.permute.xlu0 %4350
      %4352 = vrot.lane.b32.xlu0 %v4007, 32
      %v4353 = vpop.permute.xlu0 %4352
      %4354 = vrot.lane.b32.xlu0 %v4009, 32
      %v4355 = vpop.permute.xlu0 %4354
      %4388 = vrot.lane.b32.xlu0 %v3755, 64
      %v4389 = vpop.permute.xlu0 %4388
      %4390 = vrot.lane.b32.xlu0 %v3664, 64
      %v4391 = vpop.permute.xlu0 %4390
      %4392 = vrot.lane.b32.xlu0 %v3756, 64
      %v4393 = vpop.permute.xlu0 %4392
      %4394 = vrot.lane.b32.xlu0 %v3667, 64
      %v4395 = vpop.permute.xlu0 %4394
      %4396 = vrot.lane.b32.xlu0 %v3757, 64
      %v4397 = vpop.permute.xlu0 %4396
      %4398 = vrot.lane.b32.xlu0 %v3670, 64
      %v4399 = vpop.permute.xlu0 %4398
      %4400 = vrot.lane.b32.xlu0 %v3758, 64
      %v4401 = vpop.permute.xlu0 %4400
      %4402 = vrot.lane.b32.xlu0 %v3673, 64
      %v4403 = vpop.permute.xlu0 %4402
      %4404 = vrot.lane.b32.xlu0 %v3759, 64
      %v4405 = vpop.permute.xlu0 %4404
      %4406 = vrot.lane.b32.xlu0 %v3676, 64
      %v4407 = vpop.permute.xlu0 %4406
      %4408 = vrot.lane.b32.xlu0 %v3760, 64
      %v4409 = vpop.permute.xlu0 %4408
      %4410 = vrot.lane.b32.xlu0 %v3679, 64
      %v4411 = vpop.permute.xlu0 %4410
      %4412 = vrot.lane.b32.xlu0 %v3761, 64
      %v4413 = vpop.permute.xlu0 %4412
      %4414 = vrot.lane.b32.xlu0 %v3682, 64
      %v4415 = vpop.permute.xlu0 %4414
      %4416 = vrot.lane.b32.xlu0 %v3762, 64
      %v4417 = vpop.permute.xlu0 %4416
      %4418 = vrot.lane.b32.xlu0 %v3685, 64
      %v4419 = vpop.permute.xlu0 %4418
      %4420 = vrot.lane.b32.xlu0 %v3763, 64
      %v4421 = vpop.permute.xlu0 %4420
      %4422 = vrot.lane.b32.xlu0 %v3688, 64
      %v4423 = vpop.permute.xlu0 %4422
      %4424 = vrot.lane.b32.xlu0 %v3764, 64
      %v4425 = vpop.permute.xlu0 %4424
      %4426 = vrot.lane.b32.xlu0 %v3691, 64
      %v4427 = vpop.permute.xlu0 %4426
      %4428 = vrot.lane.b32.xlu0 %v3765, 64
      %v4429 = vpop.permute.xlu0 %4428
      %4430 = vrot.lane.b32.xlu0 %v3694, 64
      %v4431 = vpop.permute.xlu0 %4430
      %4432 = vrot.lane.b32.xlu0 %v3766, 64
      %v4433 = vpop.permute.xlu0 %4432
      %4434 = vrot.lane.b32.xlu0 %v3697, 64
      %v4435 = vpop.permute.xlu0 %4434
      %4436 = vrot.lane.b32.xlu0 %v3767, 64
      %v4437 = vpop.permute.xlu0 %4436
      %4438 = vrot.lane.b32.xlu0 %v3700, 64
      %v4439 = vpop.permute.xlu0 %4438
      %4440 = vrot.lane.b32.xlu0 %v3768, 64
      %v4441 = vpop.permute.xlu0 %4440
      %4442 = vrot.lane.b32.xlu0 %v3703, 64
      %v4443 = vpop.permute.xlu0 %4442
      %4444 = vrot.lane.b32.xlu0 %v3769, 64
      %v4445 = vpop.permute.xlu0 %4444
      %4446 = vrot.lane.b32.xlu0 %v3706, 64
      %v4447 = vpop.permute.xlu0 %4446
      %4448 = vrot.lane.b32.xlu0 0.0, 64
      %v4449 = vpop.permute.xlu0 %4448
      %4481 = vrot.lane.b32.xlu0 %v3823, 96
      %v4482 = vpop.permute.xlu0 %4481
      %4483 = vrot.lane.b32.xlu0 %v3825, 96
      %v4484 = vpop.permute.xlu0 %4483
      %4485 = vrot.lane.b32.xlu0 %v3828, 96
      %v4486 = vpop.permute.xlu0 %4485
      %4487 = vrot.lane.b32.xlu0 %v3830, 96
      %v4488 = vpop.permute.xlu0 %4487
      %4489 = vrot.lane.b32.xlu0 %v3833, 96
      %v4490 = vpop.permute.xlu0 %4489
      %4491 = vrot.lane.b32.xlu0 %v3835, 96
      %v4492 = vpop.permute.xlu0 %4491
      %4493 = vrot.lane.b32.xlu0 %v3838, 96
      %v4494 = vpop.permute.xlu0 %4493
      %4495 = vrot.lane.b32.xlu0 %v3840, 96
      %v4496 = vpop.permute.xlu0 %4495
      %4497 = vrot.lane.b32.xlu0 %v3843, 96
      %v4498 = vpop.permute.xlu0 %4497
      %4499 = vrot.lane.b32.xlu0 %v3845, 96
      %v4500 = vpop.permute.xlu0 %4499
      %4501 = vrot.lane.b32.xlu0 %v3848, 96
      %v4502 = vpop.permute.xlu0 %4501
      %4503 = vrot.lane.b32.xlu0 %v3850, 96
      %v4504 = vpop.permute.xlu0 %4503
      %4505 = vrot.lane.b32.xlu0 %v3853, 96
      %v4506 = vpop.permute.xlu0 %4505
      %4507 = vrot.lane.b32.xlu0 %v3855, 96
      %v4508 = vpop.permute.xlu0 %4507
      %4509 = vrot.lane.b32.xlu0 %v3858, 96
      %v4510 = vpop.permute.xlu0 %4509
      %4511 = vrot.lane.b32.xlu0 %v3860, 96
      %v4512 = vpop.permute.xlu0 %4511
      %4513 = vrot.lane.b32.xlu0 %v3863, 96
      %v4514 = vpop.permute.xlu0 %4513
      %4515 = vrot.lane.b32.xlu0 %v3865, 96
      %v4516 = vpop.permute.xlu0 %4515
      %4517 = vrot.lane.b32.xlu0 %v3868, 96
      %v4518 = vpop.permute.xlu0 %4517
      %4519 = vrot.lane.b32.xlu0 %v3870, 96
      %v4520 = vpop.permute.xlu0 %4519
      %4521 = vrot.lane.b32.xlu0 %v3873, 96
      %v4522 = vpop.permute.xlu0 %4521
      %4523 = vrot.lane.b32.xlu0 %v3875, 96
      %v4524 = vpop.permute.xlu0 %4523
      %4525 = vrot.lane.b32.xlu0 %v3878, 96
      %v4526 = vpop.permute.xlu0 %4525
      %4527 = vrot.lane.b32.xlu0 %v3880, 96
      %v4528 = vpop.permute.xlu0 %4527
      %4529 = vrot.lane.b32.xlu0 %v3883, 96
      %v4530 = vpop.permute.xlu0 %4529
      %4531 = vrot.lane.b32.xlu0 %v3885, 96
      %v4532 = vpop.permute.xlu0 %4531
      %4533 = vrot.lane.b32.xlu0 %v3888, 96
      %v4534 = vpop.permute.xlu0 %4533
      %4535 = vrot.lane.b32.xlu0 %v3890, 96
      %v4536 = vpop.permute.xlu0 %4535
      %4537 = vrot.lane.b32.xlu0 %v3970, 96
      %v4538 = vpop.permute.xlu0 %4537
      %4539 = vrot.lane.b32.xlu0 %v3972, 96
      %v4540 = vpop.permute.xlu0 %4539
      %4541 = vrot.lane.b32.xlu0 %v614, 96
      %v4542 = vpop.permute.xlu0 %4541
      %v4574 = vsel %vm1762, 0.0, %v4011
      %v4575 = vsel %vm1762, %v3754, %v4013
      %v4576 = vsel %vm1762, %v3661, %v4015
      %v4577 = vsel %vm1762, %v3755, %v4017
      %v4578 = vsel %vm1762, %v3664, %v4019
      %v4579 = vsel %vm1762, %v3756, %v4021
      %v4580 = vsel %vm1762, %v3667, %v4023
      %v4581 = vsel %vm1762, %v3757, %v4025
      %v4582 = vsel %vm1762, %v3670, %v4027
      %v4583 = vsel %vm1762, %v3758, %v4029
      %v4584 = vsel %vm1762, %v3673, %v4031
      %v4585 = vsel %vm1762, %v3759, %v4033
      %v4586 = vsel %vm1762, %v3676, %v4035
      %v4587 = vsel %vm1762, %v3760, %v4037
      %v4588 = vsel %vm1762, %v3679, %v4039
      %v4589 = vsel %vm1762, %v3761, %v4041
      %v4590 = vsel %vm1762, %v3682, %v4043
      %v4591 = vsel %vm1762, %v3762, %v4045
      %v4592 = vsel %vm1762, %v3685, %v4047
      %v4593 = vsel %vm1762, %v3763, %v4049
      %v4594 = vsel %vm1762, %v3688, %v4051
      %v4595 = vsel %vm1762, %v3764, %v4053
      %v4596 = vsel %vm1762, %v3691, %v4055
      %v4597 = vsel %vm1762, %v3765, %v4057
      %v4598 = vsel %vm1762, %v3694, %v4059
      %v4599 = vsel %vm1762, %v3766, %v4061
      %v4600 = vsel %vm1762, %v3697, %v4063
      %v4601 = vsel %vm1762, %v3767, %v4065
      %v4602 = vsel %vm1762, %v3700, %v4067
      %v4603 = vsel %vm1762, %v3768, %v4069
      %v4604 = vsel %vm1762, %v3703, %v4071
      %v4605 = vsel %vm3153, %v4574, %v4104
      %v4606 = vsel %vm3153, %v4575, %v4106
      %v4607 = vsel %vm3153, %v4576, %v4108
      %v4608 = vsel %vm3153, %v4577, %v4110
      %v4609 = vsel %vm3153, %v4578, %v4112
      %v4610 = vsel %vm3153, %v4579, %v4114
      %v4611 = vsel %vm3153, %v4580, %v4116
      %v4612 = vsel %vm3153, %v4581, %v4118
      %v4613 = vsel %vm3153, %v4582, %v4120
      %v4614 = vsel %vm3153, %v4583, %v4122
      %v4615 = vsel %vm3153, %v4584, %v4124
      %v4616 = vsel %vm3153, %v4585, %v4126
      %v4617 = vsel %vm3153, %v4586, %v4128
      %v4618 = vsel %vm3153, %v4587, %v4130
      %v4619 = vsel %vm3153, %v4588, %v4132
      %v4620 = vsel %vm3153, %v4589, %v4134
      %v4621 = vsel %vm3153, %v4590, %v4136
      %v4622 = vsel %vm3153, %v4591, %v4138
      %v4623 = vsel %vm3153, %v4592, %v4140
      %v4624 = vsel %vm3153, %v4593, %v4142
      %v4625 = vsel %vm3153, %v4594, %v4144
      %v4626 = vsel %vm3153, %v4595, %v4146
      %v4627 = vsel %vm3153, %v4596, %v4148
      %v4628 = vsel %vm3153, %v4597, %v4150
      %v4629 = vsel %vm3153, %v4598, %v4152
      %v4630 = vsel %vm3153, %v4599, %v4154
      %v4631 = vsel %vm3153, %v4600, %v4156
      %v4632 = vsel %vm3153, %v4601, %v4158
      %v4633 = vsel %vm3153, %v4602, %v4160
      %v4634 = vsel %vm3153, %v4603, %v4162
      %v4635 = vsel %vm3153, %v4604, %v4164
      %v4636 = vsel %vm3219, %v4605, %v4197
      %v4637 = vsel %vm3219, %v4605, %v4199
      %v4638 = vsel %vm3219, %v4606, %v4201
      %v4639 = vsel %vm3219, %v4607, %v4203
      %v4640 = vsel %vm3219, %v4608, %v4205
      %v4641 = vsel %vm3219, %v4609, %v4207
      %v4642 = vsel %vm3219, %v4610, %v4209
      %v4643 = vsel %vm3219, %v4611, %v4211
      %v4644 = vsel %vm3219, %v4612, %v4213
      %v4645 = vsel %vm3219, %v4613, %v4215
      %v4646 = vsel %vm3219, %v4614, %v4217
      %v4647 = vsel %vm3219, %v4615, %v4219
      %v4648 = vsel %vm3219, %v4616, %v4221
      %v4649 = vsel %vm3219, %v4617, %v4223
      %v4650 = vsel %vm3219, %v4618, %v4225
      %v4651 = vsel %vm3219, %v4619, %v4227
      %v4652 = vsel %vm3219, %v4620, %v4229
      %v4653 = vsel %vm3219, %v4621, %v4231
      %v4654 = vsel %vm3219, %v4622, %v4233
      %v4655 = vsel %vm3219, %v4623, %v4235
      %v4656 = vsel %vm3219, %v4624, %v4237
      %v4657 = vsel %vm3219, %v4625, %v4239
      %v4658 = vsel %vm3219, %v4626, %v4241
      %v4659 = vsel %vm3219, %v4627, %v4243
      %v4660 = vsel %vm3219, %v4628, %v4245
      %v4661 = vsel %vm3219, %v4629, %v4247
      %v4662 = vsel %vm3219, %v4630, %v4249
      %v4663 = vsel %vm3219, %v4631, %v4251
      %v4664 = vsel %vm3219, %v4632, %v4253
      %v4665 = vsel %vm3219, %v4633, %v4255
      %v4666 = vsel %vm3219, %v4634, %v4257
      %v4667 = vsel %vm3219, %v4635, %v4259
      %v4668 = vsel %vm1762, %v3818, %v4293
      %v4669 = vsel %vm1762, %v3820, %v4295
      %v4670 = vsel %vm1762, %v3823, %v4297
      %v4671 = vsel %vm1762, %v3825, %v4299
      %v4672 = vsel %vm1762, %v3828, %v4301
      %v4673 = vsel %vm1762, %v3830, %v4303
      %v4674 = vsel %vm1762, %v3833, %v4305
      %v4675 = vsel %vm1762, %v3835, %v4307
      %v4676 = vsel %vm1762, %v3838, %v4309
      %v4677 = vsel %vm1762, %v3840, %v4311
      %v4678 = vsel %vm1762, %v3843, %v4313
      %v4679 = vsel %vm1762, %v3845, %v4315
      %v4680 = vsel %vm1762, %v3848, %v4317
      %v4681 = vsel %vm1762, %v3850, %v4319
      %v4682 = vsel %vm1762, %v3853, %v4321
      %v4683 = vsel %vm1762, %v3855, %v4323
      %v4684 = vsel %vm1762, %v3858, %v4325
      %v4685 = vsel %vm1762, %v3860, %v4327
      %v4686 = vsel %vm1762, %v3863, %v4329
      %v4687 = vsel %vm1762, %v3865, %v4331
      %v4688 = vsel %vm1762, %v3868, %v4333
      %v4689 = vsel %vm1762, %v3870, %v4335
      %v4690 = vsel %vm1762, %v3873, %v4337
      %v4691 = vsel %vm1762, %v3875, %v4339
      %v4692 = vsel %vm1762, %v3878, %v4341
      %v4693 = vsel %vm1762, %v3880, %v4343
      %v4694 = vsel %vm1762, %v3883, %v4345
      %v4695 = vsel %vm1762, %v3885, %v4347
      %v4696 = vsel %vm1762, %v3888, %v4349
      %v4697 = vsel %vm1762, %v3890, %v4351
      %v4698 = vsel %vm1762, %v3970, %v4353
      %v4699 = vsel %vm1762, %v3972, %v4355
      %v4700 = vsel %vm3153, %v4668, %v4389
      %v4701 = vsel %vm3153, %v4669, %v4391
      %v4702 = vsel %vm3153, %v4670, %v4393
      %v4703 = vsel %vm3153, %v4671, %v4395
      %v4704 = vsel %vm3153, %v4672, %v4397
      %v4705 = vsel %vm3153, %v4673, %v4399
      %v4706 = vsel %vm3153, %v4674, %v4401
      %v4707 = vsel %vm3153, %v4675, %v4403
      %v4708 = vsel %vm3153, %v4676, %v4405
      %v4709 = vsel %vm3153, %v4677, %v4407
      %v4710 = vsel %vm3153, %v4678, %v4409
      %v4711 = vsel %vm3153, %v4679, %v4411
      %v4712 = vsel %vm3153, %v4680, %v4413
      %v4713 = vsel %vm3153, %v4681, %v4415
      %v4714 = vsel %vm3153, %v4682, %v4417
      %v4715 = vsel %vm3153, %v4683, %v4419
      %v4716 = vsel %vm3153, %v4684, %v4421
      %v4717 = vsel %vm3153, %v4685, %v4423
      %v4718 = vsel %vm3153, %v4686, %v4425
      %v4719 = vsel %vm3153, %v4687, %v4427
      %v4720 = vsel %vm3153, %v4688, %v4429
      %v4721 = vsel %vm3153, %v4689, %v4431
      %v4722 = vsel %vm3153, %v4690, %v4433
      %v4723 = vsel %vm3153, %v4691, %v4435
      %v4724 = vsel %vm3153, %v4692, %v4437
      %v4725 = vsel %vm3153, %v4693, %v4439
      %v4726 = vsel %vm3153, %v4694, %v4441
      %v4727 = vsel %vm3153, %v4695, %v4443
      %v4728 = vsel %vm3153, %v4696, %v4445
      %v4729 = vsel %vm3153, %v4697, %v4447
      %v4730 = vsel %vm3153, %v4698, %v4449
      %v4731 = vsel %vm3153, %v4699, %v4449
      %v4732 = vsel %vm3219, %v4700, %v4482
      %v4733 = vsel %vm3219, %v4701, %v4484
      %v4734 = vsel %vm3219, %v4702, %v4486
      %v4735 = vsel %vm3219, %v4703, %v4488
      %v4736 = vsel %vm3219, %v4704, %v4490
      %v4737 = vsel %vm3219, %v4705, %v4492
      %v4738 = vsel %vm3219, %v4706, %v4494
      %v4739 = vsel %vm3219, %v4707, %v4496
      %v4740 = vsel %vm3219, %v4708, %v4498
      %v4741 = vsel %vm3219, %v4709, %v4500
      %v4742 = vsel %vm3219, %v4710, %v4502
      %v4743 = vsel %vm3219, %v4711, %v4504
      %v4744 = vsel %vm3219, %v4712, %v4506
      %v4745 = vsel %vm3219, %v4713, %v4508
      %v4746 = vsel %vm3219, %v4714, %v4510
      %v4747 = vsel %vm3219, %v4715, %v4512
      %v4748 = vsel %vm3219, %v4716, %v4514
      %v4749 = vsel %vm3219, %v4717, %v4516
      %v4750 = vsel %vm3219, %v4718, %v4518
      %v4751 = vsel %vm3219, %v4719, %v4520
      %v4752 = vsel %vm3219, %v4720, %v4522
      %v4753 = vsel %vm3219, %v4721, %v4524
      %v4754 = vsel %vm3219, %v4722, %v4526
      %v4755 = vsel %vm3219, %v4723, %v4528
      %v4756 = vsel %vm3219, %v4724, %v4530
      %v4757 = vsel %vm3219, %v4725, %v4532
      %v4758 = vsel %vm3219, %v4726, %v4534
      %v4759 = vsel %vm3219, %v4727, %v4536
      %v4760 = vsel %vm3219, %v4728, %v4538
      %v4761 = vsel %vm3219, %v4729, %v4540
      %v4762 = vsel %vm3219, %v4730, %v4542
      %v4763 = vsel %vm3219, %v4731, %v4542
      %v4764 = vld [vmem:[%s5] sm:$0xff]
      %v4765 = vld [vmem:[%s5 + $0x8] sm:$0xff]
      %v4766 = vld [vmem:[%s5 + $0x10] sm:$0xff]
      %v4767 = vld [vmem:[%s5 + $0x18] sm:$0xff]
      %v4768 = vld [vmem:[%s5 + $0x20] sm:$0xff]
      %v4769 = vld [vmem:[%s5 + $0x28] sm:$0xff]
      %v4770 = vld [vmem:[%s5 + $0x30] sm:$0xff]
      %v4771 = vld [vmem:[%s5 + $0x38] sm:$0xff]
      %v4772 = vld [vmem:[%s5 + $0x40] sm:$0xff]
      %v4773 = vld [vmem:[%s5 + $0x48] sm:$0xff]
      %v4774 = vld [vmem:[%s5 + $0x50] sm:$0xff]
      %v4775 = vld [vmem:[%s5 + $0x58] sm:$0xff]
      %v4776 = vld [vmem:[%s5 + $0x60] sm:$0xff]
      %v4777 = vld [vmem:[%s5 + $0x68] sm:$0xff]
      %v4778 = vld [vmem:[%s5 + $0x70] sm:$0xff]
      %v4779 = vld [vmem:[%s5 + $0x78] sm:$0xff]
      %v4780 = vld [vmem:[%s5 + $0x80] sm:$0xff]
      %v4781 = vld [vmem:[%s5 + $0x88] sm:$0xff]
      %v4782 = vld [vmem:[%s5 + $0x90] sm:$0xff]
      %v4783 = vld [vmem:[%s5 + $0x98] sm:$0xff]
      %v4784 = vld [vmem:[%s5 + $0xa0] sm:$0xff]
      %v4785 = vld [vmem:[%s5 + $0xa8] sm:$0xff]
      %v4786 = vld [vmem:[%s5 + $0xb0] sm:$0xff]
      %v4787 = vld [vmem:[%s5 + $0xb8] sm:$0xff]
      %v4788 = vld [vmem:[%s5 + $0xc0] sm:$0xff]
      %v4789 = vld [vmem:[%s5 + $0xc8] sm:$0xff]
      %v4790 = vld [vmem:[%s5 + $0xd0] sm:$0xff]
      %v4791 = vld [vmem:[%s5 + $0xd8] sm:$0xff]
      %v4792 = vld [vmem:[%s5 + $0xe0] sm:$0xff]
      %v4793 = vld [vmem:[%s5 + $0xe8] sm:$0xff]
      %v4794 = vld [vmem:[%s5 + $0xf0] sm:$0xff]
      %v4795 = vld [vmem:[%s5 + $0xf8] sm:$0xff]
      %v4796 = vld [vmem:[%s5 + $0x100] sm:$0xff]
      %v4797 = vld [vmem:[%s5 + $0x108] sm:$0xff]
      %v4798 = vld [vmem:[%s5 + $0x110] sm:$0xff]
      %v4799 = vld [vmem:[%s5 + $0x118] sm:$0xff]
      %v4800 = vld [vmem:[%s6] sm:$0x1]
      %v4802 = vperm.slane %v4800, 0
      %v4804 = vsel %vm1762, %v3898, 0
      %v4806 = vsel %vm1762, %v3900, 0
      %v4808 = vsel %vm1762, %v3903, 0
      %v4810 = vsel %vm1762, %v3905, 0
      %v4812 = vsel %vm1762, %v3908, 0
      %v4814 = vsel %vm1762, %v3910, 0
      %v4816 = vsel %vm1762, %v3913, 0
      %v4818 = vsel %vm1762, %v3915, 0
      %v4820 = vsel %vm1762, %v3918, 0
      %v4822 = vsel %vm1762, %v3920, 0
      %v4824 = vsel %vm1762, %v3923, 0
      %v4826 = vsel %vm1762, %v3925, 0
      %v4828 = vsel %vm1762, %v3928, 0
      %v4830 = vsel %vm1762, %v3930, 0
      %v4832 = vsel %vm1762, %v3933, 0
      %v4834 = vsel %vm1762, %v3935, 0
      %v4836 = vsel %vm1762, %v3938, 0
      %v4838 = vsel %vm1762, %v3940, 0
      %v4840 = vsel %vm1762, %v3943, 0
      %v4842 = vsel %vm1762, %v3945, 0
      %v4844 = vsel %vm1762, %v3948, 0
      %v4846 = vsel %vm1762, %v3950, 0
      %v4848 = vsel %vm1762, %v3953, 0
      %v4850 = vsel %vm1762, %v3955, 0
      %v4852 = vsel %vm1762, %v3958, 0
      %v4854 = vsel %vm1762, %v3960, 0
      %v4856 = vsel %vm1762, %v3963, 0
      %v4858 = vsel %vm1762, %v3965, 0
      %v4860 = vsel %vm1762, %v4007, 0
      %v4862 = vsel %vm1762, %v4009, 0
      %v4864 = vsel %vm1762, %v692, 0
      %4866 = vmatpush.msra.mxu0 %v4779
      %4867 = vmatpush.msra.mxu0 %v4778
      %4868 = vmatpush.msra.mxu0 %v4777
      %4869 = vmatpush.msra.mxu0 %v4776
      %4870 = vmatpush.msra.mxu0 %v4775
      %4871 = vmatpush.msra.mxu0 %v4774
      %4872 = vmatpush.msra.mxu0 %v4773
      %4873 = vmatpush.msra.mxu0 %v4772
      %4874 = vmatpush.msra.mxu0 %v4771
      %4875 = vmatpush.msra.mxu0 %v4770
      %4876 = vmatpush.msra.mxu0 %v4769
      %4877 = vmatpush.msra.mxu0 %v4768
      %4878 = vmatpush.msra.mxu0 %v4767
      %4879 = vmatpush.msra.mxu0 %v4766
      %4880 = vmatpush.msra.mxu0 %v4765
      %4881 = vmatpush.msra.mxu0 %v4764
      %4882 = vmatmul.f32.gmra.mxu0 %v4636
      %v4883 = vpop.f32.mrf.mxu0
      %v4884 = vadd.f32 %v4802, %v4883
      %4885 = vmatmul.f32.gmra.mxu0 %v4637
      %v4886 = vpop.f32.mrf.mxu0
      %v4887 = vadd.f32 %v4802, %v4886
      %4888 = vmatmul.f32.gmra.mxu0 %v4638
      %v4889 = vpop.f32.mrf.mxu0
      %v4890 = vadd.f32 %v4802, %v4889
      %4891 = vmatmul.f32.gmra.mxu0 %v4639
      %v4892 = vpop.f32.mrf.mxu0
      %v4893 = vadd.f32 %v4802, %v4892
      %4894 = vmatmul.f32.gmra.mxu0 %v4640
      %v4895 = vpop.f32.mrf.mxu0
      %v4896 = vadd.f32 %v4802, %v4895
      %4897 = vmatmul.f32.gmra.mxu0 %v4641
      %v4898 = vpop.f32.mrf.mxu0
      %v4899 = vadd.f32 %v4802, %v4898
      %4900 = vmatmul.f32.gmra.mxu0 %v4642
      %v4901 = vpop.f32.mrf.mxu0
      %v4902 = vadd.f32 %v4802, %v4901
      %4903 = vmatmul.f32.gmra.mxu0 %v4643
      %v4904 = vpop.f32.mrf.mxu0
      %v4905 = vadd.f32 %v4802, %v4904
      %4906 = vmatmul.f32.gmra.mxu0 %v4644
      %v4907 = vpop.f32.mrf.mxu0
      %v4908 = vadd.f32 %v4802, %v4907
      %4909 = vmatmul.f32.gmra.mxu0 %v4645
      %v4910 = vpop.f32.mrf.mxu0
      %v4911 = vadd.f32 %v4802, %v4910
      %4912 = vmatmul.f32.gmra.mxu0 %v4646
      %v4913 = vpop.f32.mrf.mxu0
      %v4914 = vadd.f32 %v4802, %v4913
      %4915 = vmatmul.f32.gmra.mxu0 %v4647
      %v4916 = vpop.f32.mrf.mxu0
      %v4917 = vadd.f32 %v4802, %v4916
      %4918 = vmatmul.f32.gmra.mxu0 %v4648
      %v4919 = vpop.f32.mrf.mxu0
      %v4920 = vadd.f32 %v4802, %v4919
      %4921 = vmatmul.f32.gmra.mxu0 %v4649
      %v4922 = vpop.f32.mrf.mxu0
      %v4923 = vadd.f32 %v4802, %v4922
      %4924 = vmatmul.f32.gmra.mxu0 %v4650
      %v4925 = vpop.f32.mrf.mxu0
      %v4926 = vadd.f32 %v4802, %v4925
      %4927 = vmatmul.f32.gmra.mxu0 %v4651
      %v4928 = vpop.f32.mrf.mxu0
      %v4929 = vadd.f32 %v4802, %v4928
      %4930 = vmatmul.f32.gmra.mxu0 %v4652
      %v4931 = vpop.f32.mrf.mxu0
      %v4932 = vadd.f32 %v4802, %v4931
      %4933 = vmatmul.f32.gmra.mxu0 %v4653
      %v4934 = vpop.f32.mrf.mxu0
      %v4935 = vadd.f32 %v4802, %v4934
      %4936 = vmatmul.f32.gmra.mxu0 %v4654
      %v4937 = vpop.f32.mrf.mxu0
      %v4938 = vadd.f32 %v4802, %v4937
      %4939 = vmatmul.f32.gmra.mxu0 %v4655
      %v4940 = vpop.f32.mrf.mxu0
      %v4941 = vadd.f32 %v4802, %v4940
      %4942 = vmatmul.f32.gmra.mxu0 %v4656
      %v4943 = vpop.f32.mrf.mxu0
      %v4944 = vadd.f32 %v4802, %v4943
      %4945 = vmatmul.f32.gmra.mxu0 %v4657
      %v4946 = vpop.f32.mrf.mxu0
      %v4947 = vadd.f32 %v4802, %v4946
      %4948 = vmatmul.f32.gmra.mxu0 %v4658
      %v4949 = vpop.f32.mrf.mxu0
      %v4950 = vadd.f32 %v4802, %v4949
      %4951 = vmatmul.f32.gmra.mxu0 %v4659
      %v4952 = vpop.f32.mrf.mxu0
      %v4953 = vadd.f32 %v4802, %v4952
      %4954 = vmatmul.f32.gmra.mxu0 %v4660
      %v4955 = vpop.f32.mrf.mxu0
      %v4956 = vadd.f32 %v4802, %v4955
      %4957 = vmatmul.f32.gmra.mxu0 %v4661
      %v4958 = vpop.f32.mrf.mxu0
      %v4959 = vadd.f32 %v4802, %v4958
      %4960 = vmatmul.f32.gmra.mxu0 %v4662
      %v4961 = vpop.f32.mrf.mxu0
      %v4962 = vadd.f32 %v4802, %v4961
      %4963 = vmatmul.f32.gmra.mxu0 %v4663
      %v4964 = vpop.f32.mrf.mxu0
      %v4965 = vadd.f32 %v4802, %v4964
      %4966 = vmatmul.f32.gmra.mxu0 %v4664
      %v4967 = vpop.f32.mrf.mxu0
      %v4968 = vadd.f32 %v4802, %v4967
      %4969 = vmatmul.f32.gmra.mxu0 %v4665
      %v4970 = vpop.f32.mrf.mxu0
      %v4971 = vadd.f32 %v4802, %v4970
      %4972 = vmatmul.f32.gmra.mxu0 %v4666
      %v4973 = vpop.f32.mrf.mxu0
      %v4974 = vadd.f32 %v4802, %v4973
      %4975 = vmatmul.f32.gmra.mxu0 %v4667
      %v4976 = vpop.f32.mrf.mxu0
      %v4977 = vadd.f32 %v4802, %v4976
      %4978 = vdwg.mxu0
      %4979 = vmatpush.msra.mxu0 %v4795
      %4980 = vmatpush.msra.mxu0 %v4794
      %4981 = vmatpush.msra.mxu0 %v4793
      %4982 = vmatpush.msra.mxu0 %v4792
      %4983 = vmatpush.msra.mxu0 %v4791
      %4984 = vmatpush.msra.mxu0 %v4790
      %4985 = vmatpush.msra.mxu0 %v4789
      %4986 = vmatpush.msra.mxu0 %v4788
      %4987 = vmatpush.msra.mxu0 %v4787
      %4988 = vmatpush.msra.mxu0 %v4786
      %4989 = vmatpush.msra.mxu0 %v4785
      %4990 = vmatpush.msra.mxu0 %v4784
      %4991 = vmatpush.msra.mxu0 %v4783
      %4992 = vmatpush.msra.mxu0 %v4782
      %4993 = vmatpush.msra.mxu0 %v4781
      %4994 = vmatpush.msra.mxu0 %v4780
      %4995 = vmatmul.f32.gmra.mxu0 %v4732
      %v4996 = vpop.f32.mrf.mxu0
      %v4997 = vadd.f32 %v4884, %v4996
      %4998 = vmatmul.f32.gmra.mxu0 %v4733
      %v4999 = vpop.f32.mrf.mxu0
      %v5000 = vadd.f32 %v4887, %v4999
      %5001 = vmatmul.f32.gmra.mxu0 %v4734
      %v5002 = vpop.f32.mrf.mxu0
      %v5003 = vadd.f32 %v4890, %v5002
      %5004 = vmatmul.f32.gmra.mxu0 %v4735
      %v5005 = vpop.f32.mrf.mxu0
      %v5006 = vadd.f32 %v4893, %v5005
      %5007 = vmatmul.f32.gmra.mxu0 %v4736
      %v5008 = vpop.f32.mrf.mxu0
      %v5009 = vadd.f32 %v4896, %v5008
      %5010 = vmatmul.f32.gmra.mxu0 %v4737
      %v5011 = vpop.f32.mrf.mxu0
      %v5012 = vadd.f32 %v4899, %v5011
      %5013 = vmatmul.f32.gmra.mxu0 %v4738
      %v5014 = vpop.f32.mrf.mxu0
      %v5015 = vadd.f32 %v4902, %v5014
      %5016 = vmatmul.f32.gmra.mxu0 %v4739
      %v5017 = vpop.f32.mrf.mxu0
      %v5018 = vadd.f32 %v4905, %v5017
      %5019 = vmatmul.f32.gmra.mxu0 %v4740
      %v5020 = vpop.f32.mrf.mxu0
      %v5021 = vadd.f32 %v4908, %v5020
      %5022 = vmatmul.f32.gmra.mxu0 %v4741
      %v5023 = vpop.f32.mrf.mxu0
      %v5024 = vadd.f32 %v4911, %v5023
      %5025 = vmatmul.f32.gmra.mxu0 %v4742
      %v5026 = vpop.f32.mrf.mxu0
      %v5027 = vadd.f32 %v4914, %v5026
      %5028 = vmatmul.f32.gmra.mxu0 %v4743
      %v5029 = vpop.f32.mrf.mxu0
      %v5030 = vadd.f32 %v4917, %v5029
      %5031 = vmatmul.f32.gmra.mxu0 %v4744
      %v5032 = vpop.f32.mrf.mxu0
      %v5033 = vadd.f32 %v4920, %v5032
      %5034 = vmatmul.f32.gmra.mxu0 %v4745
      %v5035 = vpop.f32.mrf.mxu0
      %v5036 = vadd.f32 %v4923, %v5035
      %5037 = vmatmul.f32.gmra.mxu0 %v4746
      %v5038 = vpop.f32.mrf.mxu0
      %v5039 = vadd.f32 %v4926, %v5038
      %5040 = vmatmul.f32.gmra.mxu0 %v4747
      %v5041 = vpop.f32.mrf.mxu0
      %v5042 = vadd.f32 %v4929, %v5041
      %5043 = vmatmul.f32.gmra.mxu0 %v4748
      %v5044 = vpop.f32.mrf.mxu0
      %v5045 = vadd.f32 %v4932, %v5044
      %5046 = vmatmul.f32.gmra.mxu0 %v4749
      %v5047 = vpop.f32.mrf.mxu0
      %v5048 = vadd.f32 %v4935, %v5047
      %5049 = vmatmul.f32.gmra.mxu0 %v4750
      %v5050 = vpop.f32.mrf.mxu0
      %v5051 = vadd.f32 %v4938, %v5050
      %5052 = vmatmul.f32.gmra.mxu0 %v4751
      %v5053 = vpop.f32.mrf.mxu0
      %v5054 = vadd.f32 %v4941, %v5053
      %5055 = vmatmul.f32.gmra.mxu0 %v4752
      %v5056 = vpop.f32.mrf.mxu0
      %v5057 = vadd.f32 %v4944, %v5056
      %5058 = vmatmul.f32.gmra.mxu0 %v4753
      %v5059 = vpop.f32.mrf.mxu0
      %v5060 = vadd.f32 %v4947, %v5059
      %5061 = vmatmul.f32.gmra.mxu0 %v4754
      %v5062 = vpop.f32.mrf.mxu0
      %v5063 = vadd.f32 %v4950, %v5062
      %5064 = vmatmul.f32.gmra.mxu0 %v4755
      %v5065 = vpop.f32.mrf.mxu0
      %v5066 = vadd.f32 %v4953, %v5065
      %5067 = vmatmul.f32.gmra.mxu0 %v4756
      %v5068 = vpop.f32.mrf.mxu0
      %v5069 = vadd.f32 %v4956, %v5068
      %5070 = vmatmul.f32.gmra.mxu0 %v4757
      %v5071 = vpop.f32.mrf.mxu0
      %v5072 = vadd.f32 %v4959, %v5071
      %5073 = vmatmul.f32.gmra.mxu0 %v4758
      %v5074 = vpop.f32.mrf.mxu0
      %v5075 = vadd.f32 %v4962, %v5074
      %5076 = vmatmul.f32.gmra.mxu0 %v4759
      %v5077 = vpop.f32.mrf.mxu0
      %v5078 = vadd.f32 %v4965, %v5077
      %5079 = vmatmul.f32.gmra.mxu0 %v4760
      %v5080 = vpop.f32.mrf.mxu0
      %v5081 = vadd.f32 %v4968, %v5080
      %5082 = vmatmul.f32.gmra.mxu0 %v4761
      %v5083 = vpop.f32.mrf.mxu0
      %v5084 = vadd.f32 %v4971, %v5083
      %5085 = vmatmul.f32.gmra.mxu0 %v4762
      %v5086 = vpop.f32.mrf.mxu0
      %v5087 = vadd.f32 %v4974, %v5086
      %5088 = vmatmul.f32.gmra.mxu0 %v4763
      %v5089 = vpop.f32.mrf.mxu0
      %v5090 = vadd.f32 %v4977, %v5089
      %5091 = vdwg.mxu0
      %5092 = vmatpush.msra.mxu0 0.0
      %5093 = vmatpush.msra.mxu0 0.0
      %5094 = vmatpush.msra.mxu0 0.0
      %5095 = vmatpush.msra.mxu0 0.0
      %5096 = vmatpush.msra.mxu0 0.0
      %5097 = vmatpush.msra.mxu0 0.0
      %5098 = vmatpush.msra.mxu0 0.0
      %5099 = vmatpush.msra.mxu0 0.0
      %5100 = vmatpush.msra.mxu0 0.0
      %5101 = vmatpush.msra.mxu0 0.0
      %5102 = vmatpush.msra.mxu0 0.0
      %5103 = vmatpush.msra.mxu0 0.0
      %5104 = vmatpush.msra.mxu0 %v4799
      %5105 = vmatpush.msra.mxu0 %v4798
      %5106 = vmatpush.msra.mxu0 %v4797
      %5107 = vmatpush.msra.mxu0 %v4796
      %5108 = vmatmul.f32.gmra.mxu0 %v4804
      %v5109 = vpop.f32.mrf.mxu0
      %v5110 = vadd.f32 %v4997, %v5109
      %5111 = vmatmul.f32.gmra.mxu0 %v4806
      %v5112 = vpop.f32.mrf.mxu0
      %v5113 = vadd.f32 %v5000, %v5112
      %5114 = vmatmul.f32.gmra.mxu0 %v4808
      %v5115 = vpop.f32.mrf.mxu0
      %v5116 = vadd.f32 %v5003, %v5115
      %5117 = vmatmul.f32.gmra.mxu0 %v4810
      %v5118 = vpop.f32.mrf.mxu0
      %v5119 = vadd.f32 %v5006, %v5118
      %5120 = vmatmul.f32.gmra.mxu0 %v4812
      %v5121 = vpop.f32.mrf.mxu0
      %v5122 = vadd.f32 %v5009, %v5121
      %5123 = vmatmul.f32.gmra.mxu0 %v4814
      %v5124 = vpop.f32.mrf.mxu0
      %v5125 = vadd.f32 %v5012, %v5124
      %5126 = vmatmul.f32.gmra.mxu0 %v4816
      %v5127 = vpop.f32.mrf.mxu0
      %v5128 = vadd.f32 %v5015, %v5127
      %5129 = vmatmul.f32.gmra.mxu0 %v4818
      %v5130 = vpop.f32.mrf.mxu0
      %v5131 = vadd.f32 %v5018, %v5130
      %5132 = vmatmul.f32.gmra.mxu0 %v4820
      %v5133 = vpop.f32.mrf.mxu0
      %v5134 = vadd.f32 %v5021, %v5133
      %5135 = vmatmul.f32.gmra.mxu0 %v4822
      %v5136 = vpop.f32.mrf.mxu0
      %v5137 = vadd.f32 %v5024, %v5136
      %5138 = vmatmul.f32.gmra.mxu0 %v4824
      %v5139 = vpop.f32.mrf.mxu0
      %v5140 = vadd.f32 %v5027, %v5139
      %5141 = vmatmul.f32.gmra.mxu0 %v4826
      %v5142 = vpop.f32.mrf.mxu0
      %v5143 = vadd.f32 %v5030, %v5142
      %5144 = vmatmul.f32.gmra.mxu0 %v4828
      %v5145 = vpop.f32.mrf.mxu0
      %v5146 = vadd.f32 %v5033, %v5145
      %5147 = vmatmul.f32.gmra.mxu0 %v4830
      %v5148 = vpop.f32.mrf.mxu0
      %v5149 = vadd.f32 %v5036, %v5148
      %5150 = vmatmul.f32.gmra.mxu0 %v4832
      %v5151 = vpop.f32.mrf.mxu0
      %v5152 = vadd.f32 %v5039, %v5151
      %5153 = vmatmul.f32.gmra.mxu0 %v4834
      %v5154 = vpop.f32.mrf.mxu0
      %v5155 = vadd.f32 %v5042, %v5154
      %5156 = vmatmul.f32.gmra.mxu0 %v4836
      %v5157 = vpop.f32.mrf.mxu0
      %v5158 = vadd.f32 %v5045, %v5157
      %5159 = vmatmul.f32.gmra.mxu0 %v4838
      %v5160 = vpop.f32.mrf.mxu0
      %v5161 = vadd.f32 %v5048, %v5160
      %5162 = vmatmul.f32.gmra.mxu0 %v4840
      %v5163 = vpop.f32.mrf.mxu0
      %v5164 = vadd.f32 %v5051, %v5163
      %5165 = vmatmul.f32.gmra.mxu0 %v4842
      %v5166 = vpop.f32.mrf.mxu0
      %v5167 = vadd.f32 %v5054, %v5166
      %5168 = vmatmul.f32.gmra.mxu0 %v4844
      %v5169 = vpop.f32.mrf.mxu0
      %v5170 = vadd.f32 %v5057, %v5169
      %5171 = vmatmul.f32.gmra.mxu0 %v4846
      %v5172 = vpop.f32.mrf.mxu0
      %v5173 = vadd.f32 %v5060, %v5172
      %5174 = vmatmul.f32.gmra.mxu0 %v4848
      %v5175 = vpop.f32.mrf.mxu0
      %v5176 = vadd.f32 %v5063, %v5175
      %5177 = vmatmul.f32.gmra.mxu0 %v4850
      %v5178 = vpop.f32.mrf.mxu0
      %v5179 = vadd.f32 %v5066, %v5178
      %5180 = vmatmul.f32.gmra.mxu0 %v4852
      %v5181 = vpop.f32.mrf.mxu0
      %v5182 = vadd.f32 %v5069, %v5181
      %5183 = vmatmul.f32.gmra.mxu0 %v4854
      %v5184 = vpop.f32.mrf.mxu0
      %v5185 = vadd.f32 %v5072, %v5184
      %5186 = vmatmul.f32.gmra.mxu0 %v4856
      %v5187 = vpop.f32.mrf.mxu0
      %v5188 = vadd.f32 %v5075, %v5187
      %5189 = vmatmul.f32.gmra.mxu0 %v4858
      %v5190 = vpop.f32.mrf.mxu0
      %v5191 = vadd.f32 %v5078, %v5190
      %5192 = vmatmul.f32.gmra.mxu0 %v4860
      %v5193 = vpop.f32.mrf.mxu0
      %v5194 = vadd.f32 %v5081, %v5193
      %5195 = vmatmul.f32.gmra.mxu0 %v4862
      %v5196 = vpop.f32.mrf.mxu0
      %v5197 = vadd.f32 %v5084, %v5196
      %5198 = vmatmul.f32.gmra.mxu0 %v4864
      %v5199 = vpop.f32.mrf.mxu0
      %v5200 = vadd.f32 %v5087, %v5199
      %5201 = vmatmul.f32.gmra.mxu0 %v4864
      %v5202 = vpop.f32.mrf.mxu0
      %v5203 = vadd.f32 %v5090, %v5202
      %5204 = vdwg.mxu0
      %v5205 = vmax.f32 %v5110, 0.0
      %v5206 = vmax.f32 %v5113, 0.0
      %v5207 = vmax.f32 %v5116, 0.0
      %v5208 = vmax.f32 %v5119, 0.0
      %v5209 = vmax.f32 %v5122, 0.0
      %v5210 = vmax.f32 %v5125, 0.0
      %v5211 = vmax.f32 %v5128, 0.0
      %v5212 = vmax.f32 %v5131, 0.0
      %v5213 = vmax.f32 %v5134, 0.0
      %v5214 = vmax.f32 %v5137, 0.0
      %v5215 = vmax.f32 %v5140, 0.0
      %v5216 = vmax.f32 %v5143, 0.0
      %v5217 = vmax.f32 %v5146, 0.0
      %v5218 = vmax.f32 %v5149, 0.0
      %v5219 = vmax.f32 %v5152, 0.0
      %v5220 = vmax.f32 %v5155, 0.0
      %v5221 = vmax.f32 %v5158, 0.0
      %v5222 = vmax.f32 %v5161, 0.0
      %v5223 = vmax.f32 %v5164, 0.0
      %v5224 = vmax.f32 %v5167, 0.0
      %v5225 = vmax.f32 %v5170, 0.0
      %v5226 = vmax.f32 %v5173, 0.0
      %v5227 = vmax.f32 %v5176, 0.0
      %v5228 = vmax.f32 %v5179, 0.0
      %v5229 = vmax.f32 %v5182, 0.0
      %v5230 = vmax.f32 %v5185, 0.0
      %v5231 = vmax.f32 %v5188, 0.0
      %v5232 = vmax.f32 %v5191, 0.0
      %v5233 = vmax.f32 %v5194, 0.0
      %v5234 = vmax.f32 %v5197, 0.0
      %v5235 = vmax.f32 %v5200, 0.0
      %v5236 = vmax.f32 %v5203, 0.0
      %v5269 = vrot.slane %v5205, 7
      %v5270 = vrot.slane %v5206, 7
      %v5271 = vsel %vm453, %v5269, %v5270
      %v5272 = vrot.slane %v5207, 7
      %v5273 = vrot.slane %v5208, 7
      %v5274 = vsel %vm453, %v5272, %v5273
      %v5275 = vrot.slane %v5209, 7
      %v5276 = vrot.slane %v5210, 7
      %v5277 = vsel %vm453, %v5275, %v5276
      %v5278 = vrot.slane %v5211, 7
      %v5279 = vrot.slane %v5212, 7
      %v5280 = vsel %vm453, %v5278, %v5279
      %v5281 = vrot.slane %v5213, 7
      %v5282 = vrot.slane %v5214, 7
      %v5283 = vsel %vm453, %v5281, %v5282
      %v5284 = vrot.slane %v5215, 7
      %v5285 = vrot.slane %v5216, 7
      %v5286 = vsel %vm453, %v5284, %v5285
      %v5287 = vrot.slane %v5217, 7
      %v5288 = vrot.slane %v5218, 7
      %v5289 = vsel %vm453, %v5287, %v5288
      %v5290 = vrot.slane %v5219, 7
      %v5291 = vrot.slane %v5220, 7
      %v5292 = vsel %vm453, %v5290, %v5291
      %v5293 = vrot.slane %v5221, 7
      %v5294 = vrot.slane %v5222, 7
      %v5295 = vsel %vm453, %v5293, %v5294
      %v5296 = vrot.slane %v5223, 7
      %v5297 = vrot.slane %v5224, 7
      %v5298 = vsel %vm453, %v5296, %v5297
      %v5299 = vrot.slane %v5225, 7
      %v5300 = vrot.slane %v5226, 7
      %v5301 = vsel %vm453, %v5299, %v5300
      %v5302 = vrot.slane %v5227, 7
      %v5303 = vrot.slane %v5228, 7
      %v5304 = vsel %vm453, %v5302, %v5303
      %v5305 = vrot.slane %v5229, 7
      %v5306 = vrot.slane %v5230, 7
      %v5307 = vsel %vm453, %v5305, %v5306
      %v5308 = vrot.slane %v5231, 7
      %v5309 = vrot.slane %v5232, 7
      %v5310 = vsel %vm453, %v5308, %v5309
      %v5311 = vrot.slane %v5233, 7
      %v5312 = vrot.slane %v5234, 7
      %v5313 = vsel %vm453, %v5311, %v5312
      %v5314 = vrot.slane %v5235, 7
      %v5315 = vrot.slane %v5236, 7
      %v5316 = vsel %vm453, %v5314, %v5315
      %v5365 = vsel %vm453, 0.0, %v5269
      %v5366 = vsel %vm453, 0.0, %v5272
      %v5367 = vsel %vm453, 0.0, %v5275
      %v5368 = vsel %vm453, 0.0, %v5278
      %v5369 = vsel %vm453, 0.0, %v5281
      %v5370 = vsel %vm453, 0.0, %v5284
      %v5371 = vsel %vm453, 0.0, %v5287
      %v5372 = vsel %vm453, 0.0, %v5290
      %v5373 = vsel %vm453, 0.0, %v5293
      %v5374 = vsel %vm453, 0.0, %v5296
      %v5375 = vsel %vm453, 0.0, %v5299
      %v5376 = vsel %vm453, 0.0, %v5302
      %v5377 = vsel %vm453, 0.0, %v5305
      %v5378 = vsel %vm453, 0.0, %v5308
      %v5379 = vsel %vm453, 0.0, %v5311
      %v5380 = vsel %vm453, 0.0, %v5314
      %v5381 = vsel %vm453, %v5270, 0.0
      %v5382 = vsel %vm453, %v5273, 0.0
      %v5383 = vsel %vm453, %v5276, 0.0
      %v5384 = vsel %vm453, %v5279, 0.0
      %v5385 = vsel %vm453, %v5282, 0.0
      %v5386 = vsel %vm453, %v5285, 0.0
      %v5387 = vsel %vm453, %v5288, 0.0
      %v5388 = vsel %vm453, %v5291, 0.0
      %v5389 = vsel %vm453, %v5294, 0.0
      %v5390 = vsel %vm453, %v5297, 0.0
      %v5391 = vsel %vm453, %v5300, 0.0
      %v5392 = vsel %vm453, %v5303, 0.0
      %v5393 = vsel %vm453, %v5306, 0.0
      %v5394 = vsel %vm453, %v5309, 0.0
      %v5395 = vsel %vm453, %v5312, 0.0
      %v5396 = vsel %vm453, %v5315, 0.0
      %v5427 = vrot.slane %v5365, 1
      %v5428 = vrot.slane %v5271, 1
      %v5429 = vsel %vm612, %v5427, %v5428
      %v5430 = vrot.slane %v5381, 1
      %v5431 = vsel %vm612, %v5428, %v5430
      %v5432 = vrot.slane %v5366, 1
      %v5433 = vrot.slane %v5274, 1
      %v5434 = vsel %vm612, %v5432, %v5433
      %v5435 = vrot.slane %v5382, 1
      %v5436 = vsel %vm612, %v5433, %v5435
      %v5437 = vrot.slane %v5367, 1
      %v5438 = vrot.slane %v5277, 1
      %v5439 = vsel %vm612, %v5437, %v5438
      %v5440 = vrot.slane %v5383, 1
      %v5441 = vsel %vm612, %v5438, %v5440
      %v5442 = vrot.slane %v5368, 1
      %v5443 = vrot.slane %v5280, 1
      %v5444 = vsel %vm612, %v5442, %v5443
      %v5445 = vrot.slane %v5384, 1
      %v5446 = vsel %vm612, %v5443, %v5445
      %v5447 = vrot.slane %v5369, 1
      %v5448 = vrot.slane %v5283, 1
      %v5449 = vsel %vm612, %v5447, %v5448
      %v5450 = vrot.slane %v5385, 1
      %v5451 = vsel %vm612, %v5448, %v5450
      %v5452 = vrot.slane %v5370, 1
      %v5453 = vrot.slane %v5286, 1
      %v5454 = vsel %vm612, %v5452, %v5453
      %v5455 = vrot.slane %v5386, 1
      %v5456 = vsel %vm612, %v5453, %v5455
      %v5457 = vrot.slane %v5371, 1
      %v5458 = vrot.slane %v5289, 1
      %v5459 = vsel %vm612, %v5457, %v5458
      %v5460 = vrot.slane %v5387, 1
      %v5461 = vsel %vm612, %v5458, %v5460
      %v5462 = vrot.slane %v5372, 1
      %v5463 = vrot.slane %v5292, 1
      %v5464 = vsel %vm612, %v5462, %v5463
      %v5465 = vrot.slane %v5388, 1
      %v5466 = vsel %vm612, %v5463, %v5465
      %v5467 = vrot.slane %v5373, 1
      %v5468 = vrot.slane %v5295, 1
      %v5469 = vsel %vm612, %v5467, %v5468
      %v5470 = vrot.slane %v5389, 1
      %v5471 = vsel %vm612, %v5468, %v5470
      %v5472 = vrot.slane %v5374, 1
      %v5473 = vrot.slane %v5298, 1
      %v5474 = vsel %vm612, %v5472, %v5473
      %v5475 = vrot.slane %v5390, 1
      %v5476 = vsel %vm612, %v5473, %v5475
      %v5477 = vrot.slane %v5375, 1
      %v5478 = vrot.slane %v5301, 1
      %v5479 = vsel %vm612, %v5477, %v5478
      %v5480 = vrot.slane %v5391, 1
      %v5481 = vsel %vm612, %v5478, %v5480
      %v5482 = vrot.slane %v5376, 1
      %v5483 = vrot.slane %v5304, 1
      %v5484 = vsel %vm612, %v5482, %v5483
      %v5485 = vrot.slane %v5392, 1
      %v5486 = vsel %vm612, %v5483, %v5485
      %v5487 = vrot.slane %v5377, 1
      %v5488 = vrot.slane %v5307, 1
      %v5489 = vsel %vm612, %v5487, %v5488
      %v5490 = vrot.slane %v5393, 1
      %v5491 = vsel %vm612, %v5488, %v5490
      %v5492 = vrot.slane %v5378, 1
      %v5493 = vrot.slane %v5310, 1
      %v5494 = vsel %vm612, %v5492, %v5493
      %v5495 = vrot.slane %v5394, 1
      %v5496 = vsel %vm612, %v5493, %v5495
      %v5497 = vrot.slane %v5379, 1
      %v5498 = vrot.slane %v5313, 1
      %v5499 = vsel %vm612, %v5497, %v5498
      %v5500 = vrot.slane %v5395, 1
      %v5501 = vsel %vm612, %v5498, %v5500
      %v5502 = vrot.slane %v5365, 2
      %v5503 = vrot.slane %v5271, 2
      %v5504 = vsel %vm690, %v5502, %v5503
      %v5505 = vrot.slane %v5381, 2
      %v5506 = vsel %vm690, %v5503, %v5505
      %v5507 = vrot.slane %v5366, 2
      %v5508 = vrot.slane %v5274, 2
      %v5509 = vsel %vm690, %v5507, %v5508
      %v5510 = vrot.slane %v5382, 2
      %v5511 = vsel %vm690, %v5508, %v5510
      %v5512 = vrot.slane %v5367, 2
      %v5513 = vrot.slane %v5277, 2
      %v5514 = vsel %vm690, %v5512, %v5513
      %v5515 = vrot.slane %v5383, 2
      %v5516 = vsel %vm690, %v5513, %v5515
      %v5517 = vrot.slane %v5368, 2
      %v5518 = vrot.slane %v5280, 2
      %v5519 = vsel %vm690, %v5517, %v5518
      %v5520 = vrot.slane %v5384, 2
      %v5521 = vsel %vm690, %v5518, %v5520
      %v5522 = vrot.slane %v5369, 2
      %v5523 = vrot.slane %v5283, 2
      %v5524 = vsel %vm690, %v5522, %v5523
      %v5525 = vrot.slane %v5385, 2
      %v5526 = vsel %vm690, %v5523, %v5525
      %v5527 = vrot.slane %v5370, 2
      %v5528 = vrot.slane %v5286, 2
      %v5529 = vsel %vm690, %v5527, %v5528
      %v5530 = vrot.slane %v5386, 2
      %v5531 = vsel %vm690, %v5528, %v5530
      %v5532 = vrot.slane %v5371, 2
      %v5533 = vrot.slane %v5289, 2
      %v5534 = vsel %vm690, %v5532, %v5533
      %v5535 = vrot.slane %v5387, 2
      %v5536 = vsel %vm690, %v5533, %v5535
      %v5537 = vrot.slane %v5372, 2
      %v5538 = vrot.slane %v5292, 2
      %v5539 = vsel %vm690, %v5537, %v5538
      %v5540 = vrot.slane %v5388, 2
      %v5541 = vsel %vm690, %v5538, %v5540
      %v5542 = vrot.slane %v5373, 2
      %v5543 = vrot.slane %v5295, 2
      %v5544 = vsel %vm690, %v5542, %v5543
      %v5545 = vrot.slane %v5389, 2
      %v5546 = vsel %vm690, %v5543, %v5545
      %v5547 = vrot.slane %v5374, 2
      %v5548 = vrot.slane %v5298, 2
      %v5549 = vsel %vm690, %v5547, %v5548
      %v5550 = vrot.slane %v5390, 2
      %v5551 = vsel %vm690, %v5548, %v5550
      %v5552 = vrot.slane %v5375, 2
      %v5553 = vrot.slane %v5301, 2
      %v5554 = vsel %vm690, %v5552, %v5553
      %v5555 = vrot.slane %v5391, 2
      %v5556 = vsel %vm690, %v5553, %v5555
      %v5557 = vrot.slane %v5376, 2
      %v5558 = vrot.slane %v5304, 2
      %v5559 = vsel %vm690, %v5557, %v5558
      %v5560 = vrot.slane %v5392, 2
      %v5561 = vsel %vm690, %v5558, %v5560
      %v5562 = vrot.slane %v5377, 2
      %v5563 = vrot.slane %v5307, 2
      %v5564 = vsel %vm690, %v5562, %v5563
      %v5565 = vrot.slane %v5393, 2
      %v5566 = vsel %vm690, %v5563, %v5565
      %v5567 = vrot.slane %v5378, 2
      %v5568 = vrot.slane %v5310, 2
      %v5569 = vsel %vm690, %v5567, %v5568
      %v5570 = vrot.slane %v5394, 2
      %v5571 = vsel %vm690, %v5568, %v5570
      %v5572 = vrot.slane %v5379, 2
      %v5573 = vrot.slane %v5313, 2
      %v5574 = vsel %vm690, %v5572, %v5573
      %v5575 = vrot.slane %v5395, 2
      %v5576 = vsel %vm690, %v5573, %v5575
      %v5610 = vrot.slane %v5380, 1
      %v5611 = vrot.slane %v5316, 1
      %v5612 = vsel %vm612, %v5610, %v5611
      %v5613 = vrot.slane %v5396, 1
      %v5614 = vsel %vm612, %v5611, %v5613
      %v5647 = vrot.slane %v5380, 2
      %v5648 = vrot.slane %v5316, 2
      %v5649 = vsel %vm690, %v5647, %v5648
      %v5650 = vrot.slane %v5396, 2
      %v5651 = vsel %vm690, %v5648, %v5650
      %5652 = vrot.lane.b32.xlu0 %v614, 64
      %v5653 = vpop.permute.xlu0 %5652
      %5654 = vrot.lane.b32.xlu0 %v5429, 64
      %v5655 = vpop.permute.xlu0 %5654
      %5656 = vrot.lane.b32.xlu0 %v5431, 64
      %v5657 = vpop.permute.xlu0 %5656
      %5658 = vrot.lane.b32.xlu0 %v5434, 64
      %v5659 = vpop.permute.xlu0 %5658
      %5660 = vrot.lane.b32.xlu0 %v5436, 64
      %v5661 = vpop.permute.xlu0 %5660
      %5662 = vrot.lane.b32.xlu0 %v5439, 64
      %v5663 = vpop.permute.xlu0 %5662
      %5664 = vrot.lane.b32.xlu0 %v5441, 64
      %v5665 = vpop.permute.xlu0 %5664
      %5666 = vrot.lane.b32.xlu0 %v5444, 64
      %v5667 = vpop.permute.xlu0 %5666
      %5668 = vrot.lane.b32.xlu0 %v5446, 64
      %v5669 = vpop.permute.xlu0 %5668
      %5670 = vrot.lane.b32.xlu0 %v5449, 64
      %v5671 = vpop.permute.xlu0 %5670
      %5672 = vrot.lane.b32.xlu0 %v5451, 64
      %v5673 = vpop.permute.xlu0 %5672
      %5674 = vrot.lane.b32.xlu0 %v5454, 64
      %v5675 = vpop.permute.xlu0 %5674
      %5676 = vrot.lane.b32.xlu0 %v5456, 64
      %v5677 = vpop.permute.xlu0 %5676
      %5678 = vrot.lane.b32.xlu0 %v5459, 64
      %v5679 = vpop.permute.xlu0 %5678
      %5680 = vrot.lane.b32.xlu0 %v5461, 64
      %v5681 = vpop.permute.xlu0 %5680
      %5682 = vrot.lane.b32.xlu0 %v5464, 64
      %v5683 = vpop.permute.xlu0 %5682
      %5684 = vrot.lane.b32.xlu0 %v5466, 64
      %v5685 = vpop.permute.xlu0 %5684
      %5686 = vrot.lane.b32.xlu0 %v5469, 64
      %v5687 = vpop.permute.xlu0 %5686
      %5688 = vrot.lane.b32.xlu0 %v5471, 64
      %v5689 = vpop.permute.xlu0 %5688
      %5690 = vrot.lane.b32.xlu0 %v5474, 64
      %v5691 = vpop.permute.xlu0 %5690
      %5692 = vrot.lane.b32.xlu0 %v5476, 64
      %v5693 = vpop.permute.xlu0 %5692
      %5694 = vrot.lane.b32.xlu0 %v5479, 64
      %v5695 = vpop.permute.xlu0 %5694
      %5696 = vrot.lane.b32.xlu0 %v5481, 64
      %v5697 = vpop.permute.xlu0 %5696
      %5698 = vrot.lane.b32.xlu0 %v5484, 64
      %v5699 = vpop.permute.xlu0 %5698
      %5700 = vrot.lane.b32.xlu0 %v5486, 64
      %v5701 = vpop.permute.xlu0 %5700
      %5702 = vrot.lane.b32.xlu0 %v5489, 64
      %v5703 = vpop.permute.xlu0 %5702
      %5704 = vrot.lane.b32.xlu0 %v5491, 64
      %v5705 = vpop.permute.xlu0 %5704
      %5706 = vrot.lane.b32.xlu0 %v5494, 64
      %v5707 = vpop.permute.xlu0 %5706
      %5708 = vrot.lane.b32.xlu0 %v5496, 64
      %v5709 = vpop.permute.xlu0 %5708
      %5710 = vrot.lane.b32.xlu0 %v5499, 64
      %v5711 = vpop.permute.xlu0 %5710
      %5712 = vrot.lane.b32.xlu0 %v5501, 64
      %v5713 = vpop.permute.xlu0 %5712
      %5745 = vrot.lane.b32.xlu0 %v5365, 64
      %v5746 = vpop.permute.xlu0 %5745
      %5747 = vrot.lane.b32.xlu0 %v5271, 64
      %v5748 = vpop.permute.xlu0 %5747
      %5749 = vrot.lane.b32.xlu0 %v5366, 64
      %v5750 = vpop.permute.xlu0 %5749
      %5751 = vrot.lane.b32.xlu0 %v5274, 64
      %v5752 = vpop.permute.xlu0 %5751
      %5753 = vrot.lane.b32.xlu0 %v5367, 64
      %v5754 = vpop.permute.xlu0 %5753
      %5755 = vrot.lane.b32.xlu0 %v5277, 64
      %v5756 = vpop.permute.xlu0 %5755
      %5757 = vrot.lane.b32.xlu0 %v5368, 64
      %v5758 = vpop.permute.xlu0 %5757
      %5759 = vrot.lane.b32.xlu0 %v5280, 64
      %v5760 = vpop.permute.xlu0 %5759
      %5761 = vrot.lane.b32.xlu0 %v5369, 64
      %v5762 = vpop.permute.xlu0 %5761
      %5763 = vrot.lane.b32.xlu0 %v5283, 64
      %v5764 = vpop.permute.xlu0 %5763
      %5765 = vrot.lane.b32.xlu0 %v5370, 64
      %v5766 = vpop.permute.xlu0 %5765
      %5767 = vrot.lane.b32.xlu0 %v5286, 64
      %v5768 = vpop.permute.xlu0 %5767
      %5769 = vrot.lane.b32.xlu0 %v5371, 64
      %v5770 = vpop.permute.xlu0 %5769
      %5771 = vrot.lane.b32.xlu0 %v5289, 64
      %v5772 = vpop.permute.xlu0 %5771
      %5773 = vrot.lane.b32.xlu0 %v5372, 64
      %v5774 = vpop.permute.xlu0 %5773
      %5775 = vrot.lane.b32.xlu0 %v5292, 64
      %v5776 = vpop.permute.xlu0 %5775
      %5777 = vrot.lane.b32.xlu0 %v5373, 64
      %v5778 = vpop.permute.xlu0 %5777
      %5779 = vrot.lane.b32.xlu0 %v5295, 64
      %v5780 = vpop.permute.xlu0 %5779
      %5781 = vrot.lane.b32.xlu0 %v5374, 64
      %v5782 = vpop.permute.xlu0 %5781
      %5783 = vrot.lane.b32.xlu0 %v5298, 64
      %v5784 = vpop.permute.xlu0 %5783
      %5785 = vrot.lane.b32.xlu0 %v5375, 64
      %v5786 = vpop.permute.xlu0 %5785
      %5787 = vrot.lane.b32.xlu0 %v5301, 64
      %v5788 = vpop.permute.xlu0 %5787
      %5789 = vrot.lane.b32.xlu0 %v5376, 64
      %v5790 = vpop.permute.xlu0 %5789
      %5791 = vrot.lane.b32.xlu0 %v5304, 64
      %v5792 = vpop.permute.xlu0 %5791
      %5793 = vrot.lane.b32.xlu0 %v5377, 64
      %v5794 = vpop.permute.xlu0 %5793
      %5795 = vrot.lane.b32.xlu0 %v5307, 64
      %v5796 = vpop.permute.xlu0 %5795
      %5797 = vrot.lane.b32.xlu0 %v5378, 64
      %v5798 = vpop.permute.xlu0 %5797
      %5799 = vrot.lane.b32.xlu0 %v5310, 64
      %v5800 = vpop.permute.xlu0 %5799
      %5801 = vrot.lane.b32.xlu0 %v5379, 64
      %v5802 = vpop.permute.xlu0 %5801
      %5803 = vrot.lane.b32.xlu0 %v5313, 64
      %v5804 = vpop.permute.xlu0 %5803
      %5805 = vrot.lane.b32.xlu0 %v5380, 64
      %v5806 = vpop.permute.xlu0 %5805
      %5807 = vrot.lane.b32.xlu0 %v5316, 64
      %v5808 = vpop.permute.xlu0 %5807
      %5841 = vrot.lane.b32.xlu0 %v5504, 64
      %v5842 = vpop.permute.xlu0 %5841
      %5843 = vrot.lane.b32.xlu0 %v5506, 64
      %v5844 = vpop.permute.xlu0 %5843
      %5845 = vrot.lane.b32.xlu0 %v5509, 64
      %v5846 = vpop.permute.xlu0 %5845
      %5847 = vrot.lane.b32.xlu0 %v5511, 64
      %v5848 = vpop.permute.xlu0 %5847
      %5849 = vrot.lane.b32.xlu0 %v5514, 64
      %v5850 = vpop.permute.xlu0 %5849
      %5851 = vrot.lane.b32.xlu0 %v5516, 64
      %v5852 = vpop.permute.xlu0 %5851
      %5853 = vrot.lane.b32.xlu0 %v5519, 64
      %v5854 = vpop.permute.xlu0 %5853
      %5855 = vrot.lane.b32.xlu0 %v5521, 64
      %v5856 = vpop.permute.xlu0 %5855
      %5857 = vrot.lane.b32.xlu0 %v5524, 64
      %v5858 = vpop.permute.xlu0 %5857
      %5859 = vrot.lane.b32.xlu0 %v5526, 64
      %v5860 = vpop.permute.xlu0 %5859
      %5861 = vrot.lane.b32.xlu0 %v5529, 64
      %v5862 = vpop.permute.xlu0 %5861
      %5863 = vrot.lane.b32.xlu0 %v5531, 64
      %v5864 = vpop.permute.xlu0 %5863
      %5865 = vrot.lane.b32.xlu0 %v5534, 64
      %v5866 = vpop.permute.xlu0 %5865
      %5867 = vrot.lane.b32.xlu0 %v5536, 64
      %v5868 = vpop.permute.xlu0 %5867
      %5869 = vrot.lane.b32.xlu0 %v5539, 64
      %v5870 = vpop.permute.xlu0 %5869
      %5871 = vrot.lane.b32.xlu0 %v5541, 64
      %v5872 = vpop.permute.xlu0 %5871
      %5873 = vrot.lane.b32.xlu0 %v5544, 64
      %v5874 = vpop.permute.xlu0 %5873
      %5875 = vrot.lane.b32.xlu0 %v5546, 64
      %v5876 = vpop.permute.xlu0 %5875
      %5877 = vrot.lane.b32.xlu0 %v5549, 64
      %v5878 = vpop.permute.xlu0 %5877
      %5879 = vrot.lane.b32.xlu0 %v5551, 64
      %v5880 = vpop.permute.xlu0 %5879
      %5881 = vrot.lane.b32.xlu0 %v5554, 64
      %v5882 = vpop.permute.xlu0 %5881
      %5883 = vrot.lane.b32.xlu0 %v5556, 64
      %v5884 = vpop.permute.xlu0 %5883
      %5885 = vrot.lane.b32.xlu0 %v5559, 64
      %v5886 = vpop.permute.xlu0 %5885
      %5887 = vrot.lane.b32.xlu0 %v5561, 64
      %v5888 = vpop.permute.xlu0 %5887
      %5889 = vrot.lane.b32.xlu0 %v5564, 64
      %v5890 = vpop.permute.xlu0 %5889
      %5891 = vrot.lane.b32.xlu0 %v5566, 64
      %v5892 = vpop.permute.xlu0 %5891
      %5893 = vrot.lane.b32.xlu0 %v5569, 64
      %v5894 = vpop.permute.xlu0 %5893
      %5895 = vrot.lane.b32.xlu0 %v5571, 64
      %v5896 = vpop.permute.xlu0 %5895
      %5897 = vrot.lane.b32.xlu0 %v5574, 64
      %v5898 = vpop.permute.xlu0 %5897
      %5899 = vrot.lane.b32.xlu0 %v5576, 64
      %v5900 = vpop.permute.xlu0 %5899
      %5901 = vrot.lane.b32.xlu0 %v5649, 64
      %v5902 = vpop.permute.xlu0 %5901
      %5903 = vrot.lane.b32.xlu0 %v5651, 64
      %v5904 = vpop.permute.xlu0 %5903
      %5937 = vrot.lane.b32.xlu0 %v5612, 64
      %v5938 = vpop.permute.xlu0 %5937
      %5939 = vrot.lane.b32.xlu0 %v5614, 64
      %v5940 = vpop.permute.xlu0 %5939
      %v5943 = vsel %vm3153, 0.0, %v5653
      %v5944 = vsel %vm3153, %v5365, %v5655
      %v5945 = vsel %vm3153, %v5271, %v5657
      %v5946 = vsel %vm3153, %v5366, %v5659
      %v5947 = vsel %vm3153, %v5274, %v5661
      %v5948 = vsel %vm3153, %v5367, %v5663
      %v5949 = vsel %vm3153, %v5277, %v5665
      %v5950 = vsel %vm3153, %v5368, %v5667
      %v5951 = vsel %vm3153, %v5280, %v5669
      %v5952 = vsel %vm3153, %v5369, %v5671
      %v5953 = vsel %vm3153, %v5283, %v5673
      %v5954 = vsel %vm3153, %v5370, %v5675
      %v5955 = vsel %vm3153, %v5286, %v5677
      %v5956 = vsel %vm3153, %v5371, %v5679
      %v5957 = vsel %vm3153, %v5289, %v5681
      %v5958 = vsel %vm3153, %v5372, %v5683
      %v5959 = vsel %vm3153, %v5292, %v5685
      %v5960 = vsel %vm3153, %v5373, %v5687
      %v5961 = vsel %vm3153, %v5295, %v5689
      %v5962 = vsel %vm3153, %v5374, %v5691
      %v5963 = vsel %vm3153, %v5298, %v5693
      %v5964 = vsel %vm3153, %v5375, %v5695
      %v5965 = vsel %vm3153, %v5301, %v5697
      %v5966 = vsel %vm3153, %v5376, %v5699
      %v5967 = vsel %vm3153, %v5304, %v5701
      %v5968 = vsel %vm3153, %v5377, %v5703
      %v5969 = vsel %vm3153, %v5307, %v5705
      %v5970 = vsel %vm3153, %v5378, %v5707
      %v5971 = vsel %vm3153, %v5310, %v5709
      %v5972 = vsel %vm3153, %v5379, %v5711
      %v5973 = vsel %vm3153, %v5313, %v5713
      %v5974 = vsel %vm3153, %v692, %v5746
      %v5975 = vsel %vm3153, %v692, %v5748
      %v5976 = vsel %vm3153, %v5504, %v5750
      %v5977 = vsel %vm3153, %v5506, %v5752
      %v5978 = vsel %vm3153, %v5509, %v5754
      %v5979 = vsel %vm3153, %v5511, %v5756
      %v5980 = vsel %vm3153, %v5514, %v5758
      %v5981 = vsel %vm3153, %v5516, %v5760
      %v5982 = vsel %vm3153, %v5519, %v5762
      %v5983 = vsel %vm3153, %v5521, %v5764
      %v5984 = vsel %vm3153, %v5524, %v5766
      %v5985 = vsel %vm3153, %v5526, %v5768
      %v5986 = vsel %vm3153, %v5529, %v5770
      %v5987 = vsel %vm3153, %v5531, %v5772
      %v5988 = vsel %vm3153, %v5534, %v5774
      %v5989 = vsel %vm3153, %v5536, %v5776
      %v5990 = vsel %vm3153, %v5539, %v5778
      %v5991 = vsel %vm3153, %v5541, %v5780
      %v5992 = vsel %vm3153, %v5544, %v5782
      %v5993 = vsel %vm3153, %v5546, %v5784
      %v5994 = vsel %vm3153, %v5549, %v5786
      %v5995 = vsel %vm3153, %v5551, %v5788
      %v5996 = vsel %vm3153, %v5554, %v5790
      %v5997 = vsel %vm3153, %v5556, %v5792
      %v5998 = vsel %vm3153, %v5559, %v5794
      %v5999 = vsel %vm3153, %v5561, %v5796
      %v6000 = vsel %vm3153, %v5564, %v5798
      %v6001 = vsel %vm3153, %v5566, %v5800
      %v6002 = vsel %vm3153, %v5569, %v5802
      %v6003 = vsel %vm3153, %v5571, %v5804
      %v6004 = vsel %vm3153, %v5574, %v5806
      %v6005 = vsel %vm3153, %v5576, %v5808
      %v6006 = vsel %vm3153, %v5429, %v5842
      %v6007 = vsel %vm3153, %v5431, %v5844
      %v6008 = vsel %vm3153, %v5434, %v5846
      %v6009 = vsel %vm3153, %v5436, %v5848
      %v6010 = vsel %vm3153, %v5439, %v5850
      %v6011 = vsel %vm3153, %v5441, %v5852
      %v6012 = vsel %vm3153, %v5444, %v5854
      %v6013 = vsel %vm3153, %v5446, %v5856
      %v6014 = vsel %vm3153, %v5449, %v5858
      %v6015 = vsel %vm3153, %v5451, %v5860
      %v6016 = vsel %vm3153, %v5454, %v5862
      %v6017 = vsel %vm3153, %v5456, %v5864
      %v6018 = vsel %vm3153, %v5459, %v5866
      %v6019 = vsel %vm3153, %v5461, %v5868
      %v6020 = vsel %vm3153, %v5464, %v5870
      %v6021 = vsel %vm3153, %v5466, %v5872
      %v6022 = vsel %vm3153, %v5469, %v5874
      %v6023 = vsel %vm3153, %v5471, %v5876
      %v6024 = vsel %vm3153, %v5474, %v5878
      %v6025 = vsel %vm3153, %v5476, %v5880
      %v6026 = vsel %vm3153, %v5479, %v5882
      %v6027 = vsel %vm3153, %v5481, %v5884
      %v6028 = vsel %vm3153, %v5484, %v5886
      %v6029 = vsel %vm3153, %v5486, %v5888
      %v6030 = vsel %vm3153, %v5489, %v5890
      %v6031 = vsel %vm3153, %v5491, %v5892
      %v6032 = vsel %vm3153, %v5494, %v5894
      %v6033 = vsel %vm3153, %v5496, %v5896
      %v6034 = vsel %vm3153, %v5499, %v5898
      %v6035 = vsel %vm3153, %v5501, %v5900
      %v6036 = vsel %vm3153, %v5612, %v5902
      %v6037 = vsel %vm3153, %v5614, %v5904
      %v6038 = vsel %vm3153, %v5380, %v5938
      %v6039 = vsel %vm3153, %v5316, %v5940
      %v6040 = vld [vmem:[%s7] sm:$0xff]
      %v6041 = vld [vmem:[%s7 + $0x8] sm:$0xff]
      %v6042 = vld [vmem:[%s7 + $0x10] sm:$0xff]
      %v6043 = vld [vmem:[%s7 + $0x18] sm:$0xff]
      %v6044 = vld [vmem:[%s7 + $0x20] sm:$0xff]
      %v6045 = vld [vmem:[%s7 + $0x28] sm:$0xff]
      %v6046 = vld [vmem:[%s7 + $0x30] sm:$0xff]
      %v6047 = vld [vmem:[%s7 + $0x38] sm:$0xff]
      %v6048 = vld [vmem:[%s7 + $0x40] sm:$0xff]
      %v6049 = vld [vmem:[%s7 + $0x48] sm:$0xff]
      %v6050 = vld [vmem:[%s7 + $0x50] sm:$0xff]
      %v6051 = vld [vmem:[%s7 + $0x58] sm:$0xff]
      %v6052 = vld [vmem:[%s7 + $0x60] sm:$0xff]
      %v6053 = vld [vmem:[%s7 + $0x68] sm:$0xff]
      %v6054 = vld [vmem:[%s7 + $0x70] sm:$0xff]
      %v6055 = vld [vmem:[%s7 + $0x78] sm:$0xff]
      %v6056 = vld [vmem:[%s7 + $0x80] sm:$0xff]
      %v6057 = vld [vmem:[%s7 + $0x88] sm:$0xff]
      %v6058 = vld [vmem:[%s7 + $0x90] sm:$0xff]
      %v6059 = vld [vmem:[%s7 + $0x98] sm:$0xff]
      %v6060 = vld [vmem:[%s7 + $0xa0] sm:$0xff]
      %v6061 = vld [vmem:[%s7 + $0xa8] sm:$0xff]
      %v6062 = vld [vmem:[%s7 + $0xb0] sm:$0xff]
      %v6063 = vld [vmem:[%s7 + $0xb8] sm:$0xff]
      %v6064 = vld [vmem:[%s7 + $0xc0] sm:$0xff]
      %v6065 = vld [vmem:[%s7 + $0xc8] sm:$0xff]
      %v6066 = vld [vmem:[%s7 + $0xd0] sm:$0xff]
      %v6067 = vld [vmem:[%s7 + $0xd8] sm:$0xff]
      %v6068 = vld [vmem:[%s7 + $0xe0] sm:$0xff]
      %v6069 = vld [vmem:[%s7 + $0xe8] sm:$0xff]
      %v6070 = vld [vmem:[%s7 + $0xf0] sm:$0xff]
      %v6071 = vld [vmem:[%s7 + $0xf8] sm:$0xff]
      %v6072 = vld [vmem:[%s7 + $0x100] sm:$0xff]
      %v6073 = vld [vmem:[%s7 + $0x108] sm:$0xff]
      %v6074 = vld [vmem:[%s7 + $0x110] sm:$0xff]
      %v6075 = vld [vmem:[%s7 + $0x118] sm:$0xff]
      %v6076 = vld [vmem:[%s7 + $0x120] sm:$0xff]
      %v6077 = vld [vmem:[%s7 + $0x128] sm:$0xff]
      %v6078 = vld [vmem:[%s7 + $0x130] sm:$0xff]
      %v6079 = vld [vmem:[%s7 + $0x138] sm:$0xff]
      %v6080 = vld [vmem:[%s7 + $0x140] sm:$0xff]
      %v6081 = vld [vmem:[%s7 + $0x148] sm:$0xff]
      %v6082 = vld [vmem:[%s7 + $0x150] sm:$0xff]
      %v6083 = vld [vmem:[%s7 + $0x158] sm:$0xff]
      %v6084 = vld [vmem:[%s7 + $0x160] sm:$0xff]
      %v6085 = vld [vmem:[%s7 + $0x168] sm:$0xff]
      %v6086 = vld [vmem:[%s7 + $0x170] sm:$0xff]
      %v6087 = vld [vmem:[%s7 + $0x178] sm:$0xff]
      %v6088 = vld [vmem:[%s7 + $0x180] sm:$0xff]
      %v6089 = vld [vmem:[%s7 + $0x188] sm:$0xff]
      %v6090 = vld [vmem:[%s7 + $0x190] sm:$0xff]
      %v6091 = vld [vmem:[%s7 + $0x198] sm:$0xff]
      %v6092 = vld [vmem:[%s7 + $0x1a0] sm:$0xff]
      %v6093 = vld [vmem:[%s7 + $0x1a8] sm:$0xff]
      %v6094 = vld [vmem:[%s7 + $0x1b0] sm:$0xff]
      %v6095 = vld [vmem:[%s7 + $0x1b8] sm:$0xff]
      %v6096 = vld [vmem:[%s7 + $0x1c0] sm:$0xff]
      %v6097 = vld [vmem:[%s7 + $0x1c8] sm:$0xff]
      %v6098 = vld [vmem:[%s7 + $0x1d0] sm:$0xff]
      %v6099 = vld [vmem:[%s7 + $0x1d8] sm:$0xff]
      %v6100 = vld [vmem:[%s7 + $0x1e0] sm:$0xff]
      %v6101 = vld [vmem:[%s7 + $0x1e8] sm:$0xff]
      %v6102 = vld [vmem:[%s7 + $0x1f0] sm:$0xff]
      %v6103 = vld [vmem:[%s7 + $0x1f8] sm:$0xff]
      %v6104 = vld [vmem:[%s7 + $0x200] sm:$0xff]
      %v6105 = vld [vmem:[%s7 + $0x208] sm:$0xff]
      %v6106 = vld [vmem:[%s7 + $0x210] sm:$0xff]
      %v6107 = vld [vmem:[%s7 + $0x218] sm:$0xff]
      %v6108 = vld [vmem:[%s7 + $0x220] sm:$0xff]
      %v6109 = vld [vmem:[%s7 + $0x228] sm:$0xff]
      %v6110 = vld [vmem:[%s7 + $0x230] sm:$0xff]
      %v6111 = vld [vmem:[%s7 + $0x238] sm:$0xff]
      %v6112 = vld [vmem:[%s8] sm:$0x1]
      %v6114 = vperm.slane %v6112, 0
      %v6116 = vsel %vm3153, %v5509, 0
      %v6118 = vsel %vm3153, %v5511, 0
      %v6120 = vsel %vm3153, %v5514, 0
      %v6122 = vsel %vm3153, %v5516, 0
      %v6124 = vsel %vm3153, %v5519, 0
      %v6126 = vsel %vm3153, %v5521, 0
      %v6128 = vsel %vm3153, %v5524, 0
      %v6130 = vsel %vm3153, %v5526, 0
      %v6132 = vsel %vm3153, %v5529, 0
      %v6134 = vsel %vm3153, %v5531, 0
      %v6136 = vsel %vm3153, %v5534, 0
      %v6138 = vsel %vm3153, %v5536, 0
      %v6140 = vsel %vm3153, %v5539, 0
      %v6142 = vsel %vm3153, %v5541, 0
      %v6144 = vsel %vm3153, %v5544, 0
      %v6146 = vsel %vm3153, %v5546, 0
      %v6148 = vsel %vm3153, %v5549, 0
      %v6150 = vsel %vm3153, %v5551, 0
      %v6152 = vsel %vm3153, %v5554, 0
      %v6154 = vsel %vm3153, %v5556, 0
      %v6156 = vsel %vm3153, %v5559, 0
      %v6158 = vsel %vm3153, %v5561, 0
      %v6160 = vsel %vm3153, %v5564, 0
      %v6162 = vsel %vm3153, %v5566, 0
      %v6164 = vsel %vm3153, %v5569, 0
      %v6166 = vsel %vm3153, %v5571, 0
      %v6168 = vsel %vm3153, %v5574, 0
      %v6170 = vsel %vm3153, %v5576, 0
      %v6172 = vsel %vm3153, %v5649, 0
      %v6174 = vsel %vm3153, %v5651, 0
      %v6176 = vsel %vm3153, %v692, 0
      %6178 = vmatpush.msra.mxu0 %v6055
      %6179 = vmatpush.msra.mxu0 %v6054
      %6180 = vmatpush.msra.mxu0 %v6053
      %6181 = vmatpush.msra.mxu0 %v6052
      %6182 = vmatpush.msra.mxu0 %v6051
      %6183 = vmatpush.msra.mxu0 %v6050
      %6184 = vmatpush.msra.mxu0 %v6049
      %6185 = vmatpush.msra.mxu0 %v6048
      %6186 = vmatpush.msra.mxu0 %v6047
      %6187 = vmatpush.msra.mxu0 %v6046
      %6188 = vmatpush.msra.mxu0 %v6045
      %6189 = vmatpush.msra.mxu0 %v6044
      %6190 = vmatpush.msra.mxu0 %v6043
      %6191 = vmatpush.msra.mxu0 %v6042
      %6192 = vmatpush.msra.mxu0 %v6041
      %6193 = vmatpush.msra.mxu0 %v6040
      %6194 = vmatmul.f32.gmra.mxu0 %v5943
      %v6195 = vpop.f32.mrf.mxu0
      %v6196 = vadd.f32 %v6114, %v6195
      %6197 = vmatmul.f32.gmra.mxu0 %v5943
      %v6198 = vpop.f32.mrf.mxu0
      %v6199 = vadd.f32 %v6114, %v6198
      %6200 = vmatmul.f32.gmra.mxu0 %v5944
      %v6201 = vpop.f32.mrf.mxu0
      %v6202 = vadd.f32 %v6114, %v6201
      %6203 = vmatmul.f32.gmra.mxu0 %v5945
      %v6204 = vpop.f32.mrf.mxu0
      %v6205 = vadd.f32 %v6114, %v6204
      %6206 = vmatmul.f32.gmra.mxu0 %v5946
      %v6207 = vpop.f32.mrf.mxu0
      %v6208 = vadd.f32 %v6114, %v6207
      %6209 = vmatmul.f32.gmra.mxu0 %v5947
      %v6210 = vpop.f32.mrf.mxu0
      %v6211 = vadd.f32 %v6114, %v6210
      %6212 = vmatmul.f32.gmra.mxu0 %v5948
      %v6213 = vpop.f32.mrf.mxu0
      %v6214 = vadd.f32 %v6114, %v6213
      %6215 = vmatmul.f32.gmra.mxu0 %v5949
      %v6216 = vpop.f32.mrf.mxu0
      %v6217 = vadd.f32 %v6114, %v6216
      %6218 = vmatmul.f32.gmra.mxu0 %v5950
      %v6219 = vpop.f32.mrf.mxu0
      %v6220 = vadd.f32 %v6114, %v6219
      %6221 = vmatmul.f32.gmra.mxu0 %v5951
      %v6222 = vpop.f32.mrf.mxu0
      %v6223 = vadd.f32 %v6114, %v6222
      %6224 = vmatmul.f32.gmra.mxu0 %v5952
      %v6225 = vpop.f32.mrf.mxu0
      %v6226 = vadd.f32 %v6114, %v6225
      %6227 = vmatmul.f32.gmra.mxu0 %v5953
      %v6228 = vpop.f32.mrf.mxu0
      %v6229 = vadd.f32 %v6114, %v6228
      %6230 = vmatmul.f32.gmra.mxu0 %v5954
      %v6231 = vpop.f32.mrf.mxu0
      %v6232 = vadd.f32 %v6114, %v6231
      %6233 = vmatmul.f32.gmra.mxu0 %v5955
      %v6234 = vpop.f32.mrf.mxu0
      %v6235 = vadd.f32 %v6114, %v6234
      %6236 = vmatmul.f32.gmra.mxu0 %v5956
      %v6237 = vpop.f32.mrf.mxu0
      %v6238 = vadd.f32 %v6114, %v6237
      %6239 = vmatmul.f32.gmra.mxu0 %v5957
      %v6240 = vpop.f32.mrf.mxu0
      %v6241 = vadd.f32 %v6114, %v6240
      %6242 = vmatmul.f32.gmra.mxu0 %v5958
      %v6243 = vpop.f32.mrf.mxu0
      %v6244 = vadd.f32 %v6114, %v6243
      %6245 = vmatmul.f32.gmra.mxu0 %v5959
      %v6246 = vpop.f32.mrf.mxu0
      %v6247 = vadd.f32 %v6114, %v6246
      %6248 = vmatmul.f32.gmra.mxu0 %v5960
      %v6249 = vpop.f32.mrf.mxu0
      %v6250 = vadd.f32 %v6114, %v6249
      %6251 = vmatmul.f32.gmra.mxu0 %v5961
      %v6252 = vpop.f32.mrf.mxu0
      %v6253 = vadd.f32 %v6114, %v6252
      %6254 = vmatmul.f32.gmra.mxu0 %v5962
      %v6255 = vpop.f32.mrf.mxu0
      %v6256 = vadd.f32 %v6114, %v6255
      %6257 = vmatmul.f32.gmra.mxu0 %v5963
      %v6258 = vpop.f32.mrf.mxu0
      %v6259 = vadd.f32 %v6114, %v6258
      %6260 = vmatmul.f32.gmra.mxu0 %v5964
      %v6261 = vpop.f32.mrf.mxu0
      %v6262 = vadd.f32 %v6114, %v6261
      %6263 = vmatmul.f32.gmra.mxu0 %v5965
      %v6264 = vpop.f32.mrf.mxu0
      %v6265 = vadd.f32 %v6114, %v6264
      %6266 = vmatmul.f32.gmra.mxu0 %v5966
      %v6267 = vpop.f32.mrf.mxu0
      %v6268 = vadd.f32 %v6114, %v6267
      %6269 = vmatmul.f32.gmra.mxu0 %v5967
      %v6270 = vpop.f32.mrf.mxu0
      %v6271 = vadd.f32 %v6114, %v6270
      %6272 = vmatmul.f32.gmra.mxu0 %v5968
      %v6273 = vpop.f32.mrf.mxu0
      %v6274 = vadd.f32 %v6114, %v6273
      %6275 = vmatmul.f32.gmra.mxu0 %v5969
      %v6276 = vpop.f32.mrf.mxu0
      %v6277 = vadd.f32 %v6114, %v6276
      %6278 = vmatmul.f32.gmra.mxu0 %v5970
      %v6279 = vpop.f32.mrf.mxu0
      %v6280 = vadd.f32 %v6114, %v6279
      %6281 = vmatmul.f32.gmra.mxu0 %v5971
      %v6282 = vpop.f32.mrf.mxu0
      %v6283 = vadd.f32 %v6114, %v6282
      %6284 = vmatmul.f32.gmra.mxu0 %v5972
      %v6285 = vpop.f32.mrf.mxu0
      %v6286 = vadd.f32 %v6114, %v6285
      %6287 = vmatmul.f32.gmra.mxu0 %v5973
      %v6288 = vpop.f32.mrf.mxu0
      %v6289 = vadd.f32 %v6114, %v6288
      %6290 = vdwg.mxu0
      %6291 = vmatpush.msra.mxu0 %v6071
      %6292 = vmatpush.msra.mxu0 %v6070
      %6293 = vmatpush.msra.mxu0 %v6069
      %6294 = vmatpush.msra.mxu0 %v6068
      %6295 = vmatpush.msra.mxu0 %v6067
      %6296 = vmatpush.msra.mxu0 %v6066
      %6297 = vmatpush.msra.mxu0 %v6065
      %6298 = vmatpush.msra.mxu0 %v6064
      %6299 = vmatpush.msra.mxu0 %v6063
      %6300 = vmatpush.msra.mxu0 %v6062
      %6301 = vmatpush.msra.mxu0 %v6061
      %6302 = vmatpush.msra.mxu0 %v6060
      %6303 = vmatpush.msra.mxu0 %v6059
      %6304 = vmatpush.msra.mxu0 %v6058
      %6305 = vmatpush.msra.mxu0 %v6057
      %6306 = vmatpush.msra.mxu0 %v6056
      %6307 = vmatmul.f32.gmra.mxu0 %v5974
      %v6308 = vpop.f32.mrf.mxu0
      %v6309 = vadd.f32 %v6196, %v6308
      %6310 = vmatmul.f32.gmra.mxu0 %v5975
      %v6311 = vpop.f32.mrf.mxu0
      %v6312 = vadd.f32 %v6199, %v6311
      %6313 = vmatmul.f32.gmra.mxu0 %v5976
      %v6314 = vpop.f32.mrf.mxu0
      %v6315 = vadd.f32 %v6202, %v6314
      %6316 = vmatmul.f32.gmra.mxu0 %v5977
      %v6317 = vpop.f32.mrf.mxu0
      %v6318 = vadd.f32 %v6205, %v6317
      %6319 = vmatmul.f32.gmra.mxu0 %v5978
      %v6320 = vpop.f32.mrf.mxu0
      %v6321 = vadd.f32 %v6208, %v6320
      %6322 = vmatmul.f32.gmra.mxu0 %v5979
      %v6323 = vpop.f32.mrf.mxu0
      %v6324 = vadd.f32 %v6211, %v6323
      %6325 = vmatmul.f32.gmra.mxu0 %v5980
      %v6326 = vpop.f32.mrf.mxu0
      %v6327 = vadd.f32 %v6214, %v6326
      %6328 = vmatmul.f32.gmra.mxu0 %v5981
      %v6329 = vpop.f32.mrf.mxu0
      %v6330 = vadd.f32 %v6217, %v6329
      %6331 = vmatmul.f32.gmra.mxu0 %v5982
      %v6332 = vpop.f32.mrf.mxu0
      %v6333 = vadd.f32 %v6220, %v6332
      %6334 = vmatmul.f32.gmra.mxu0 %v5983
      %v6335 = vpop.f32.mrf.mxu0
      %v6336 = vadd.f32 %v6223, %v6335
      %6337 = vmatmul.f32.gmra.mxu0 %v5984
      %v6338 = vpop.f32.mrf.mxu0
      %v6339 = vadd.f32 %v6226, %v6338
      %6340 = vmatmul.f32.gmra.mxu0 %v5985
      %v6341 = vpop.f32.mrf.mxu0
      %v6342 = vadd.f32 %v6229, %v6341
      %6343 = vmatmul.f32.gmra.mxu0 %v5986
      %v6344 = vpop.f32.mrf.mxu0
      %v6345 = vadd.f32 %v6232, %v6344
      %6346 = vmatmul.f32.gmra.mxu0 %v5987
      %v6347 = vpop.f32.mrf.mxu0
      %v6348 = vadd.f32 %v6235, %v6347
      %6349 = vmatmul.f32.gmra.mxu0 %v5988
      %v6350 = vpop.f32.mrf.mxu0
      %v6351 = vadd.f32 %v6238, %v6350
      %6352 = vmatmul.f32.gmra.mxu0 %v5989
      %v6353 = vpop.f32.mrf.mxu0
      %v6354 = vadd.f32 %v6241, %v6353
      %6355 = vmatmul.f32.gmra.mxu0 %v5990
      %v6356 = vpop.f32.mrf.mxu0
      %v6357 = vadd.f32 %v6244, %v6356
      %6358 = vmatmul.f32.gmra.mxu0 %v5991
      %v6359 = vpop.f32.mrf.mxu0
      %v6360 = vadd.f32 %v6247, %v6359
      %6361 = vmatmul.f32.gmra.mxu0 %v5992
      %v6362 = vpop.f32.mrf.mxu0
      %v6363 = vadd.f32 %v6250, %v6362
      %6364 = vmatmul.f32.gmra.mxu0 %v5993
      %v6365 = vpop.f32.mrf.mxu0
      %v6366 = vadd.f32 %v6253, %v6365
      %6367 = vmatmul.f32.gmra.mxu0 %v5994
      %v6368 = vpop.f32.mrf.mxu0
      %v6369 = vadd.f32 %v6256, %v6368
      %6370 = vmatmul.f32.gmra.mxu0 %v5995
      %v6371 = vpop.f32.mrf.mxu0
      %v6372 = vadd.f32 %v6259, %v6371
      %6373 = vmatmul.f32.gmra.mxu0 %v5996
      %v6374 = vpop.f32.mrf.mxu0
      %v6375 = vadd.f32 %v6262, %v6374
      %6376 = vmatmul.f32.gmra.mxu0 %v5997
      %v6377 = vpop.f32.mrf.mxu0
      %v6378 = vadd.f32 %v6265, %v6377
      %6379 = vmatmul.f32.gmra.mxu0 %v5998
      %v6380 = vpop.f32.mrf.mxu0
      %v6381 = vadd.f32 %v6268, %v6380
      %6382 = vmatmul.f32.gmra.mxu0 %v5999
      %v6383 = vpop.f32.mrf.mxu0
      %v6384 = vadd.f32 %v6271, %v6383
      %6385 = vmatmul.f32.gmra.mxu0 %v6000
      %v6386 = vpop.f32.mrf.mxu0
      %v6387 = vadd.f32 %v6274, %v6386
      %6388 = vmatmul.f32.gmra.mxu0 %v6001
      %v6389 = vpop.f32.mrf.mxu0
      %v6390 = vadd.f32 %v6277, %v6389
      %6391 = vmatmul.f32.gmra.mxu0 %v6002
      %v6392 = vpop.f32.mrf.mxu0
      %v6393 = vadd.f32 %v6280, %v6392
      %6394 = vmatmul.f32.gmra.mxu0 %v6003
      %v6395 = vpop.f32.mrf.mxu0
      %v6396 = vadd.f32 %v6283, %v6395
      %6397 = vmatmul.f32.gmra.mxu0 %v6004
      %v6398 = vpop.f32.mrf.mxu0
      %v6399 = vadd.f32 %v6286, %v6398
      %6400 = vmatmul.f32.gmra.mxu0 %v6005
      %v6401 = vpop.f32.mrf.mxu0
      %v6402 = vadd.f32 %v6289, %v6401
      %6403 = vdwg.mxu0
      %6404 = vmatpush.msra.mxu0 %v6087
      %6405 = vmatpush.msra.mxu0 %v6086
      %6406 = vmatpush.msra.mxu0 %v6085
      %6407 = vmatpush.msra.mxu0 %v6084
      %6408 = vmatpush.msra.mxu0 %v6083
      %6409 = vmatpush.msra.mxu0 %v6082
      %6410 = vmatpush.msra.mxu0 %v6081
      %6411 = vmatpush.msra.mxu0 %v6080
      %6412 = vmatpush.msra.mxu0 %v6079
      %6413 = vmatpush.msra.mxu0 %v6078
      %6414 = vmatpush.msra.mxu0 %v6077
      %6415 = vmatpush.msra.mxu0 %v6076
      %6416 = vmatpush.msra.mxu0 %v6075
      %6417 = vmatpush.msra.mxu0 %v6074
      %6418 = vmatpush.msra.mxu0 %v6073
      %6419 = vmatpush.msra.mxu0 %v6072
      %6420 = vmatmul.f32.gmra.mxu0 %v6006
      %v6421 = vpop.f32.mrf.mxu0
      %v6422 = vadd.f32 %v6309, %v6421
      %6423 = vmatmul.f32.gmra.mxu0 %v6007
      %v6424 = vpop.f32.mrf.mxu0
      %v6425 = vadd.f32 %v6312, %v6424
      %6426 = vmatmul.f32.gmra.mxu0 %v6008
      %v6427 = vpop.f32.mrf.mxu0
      %v6428 = vadd.f32 %v6315, %v6427
      %6429 = vmatmul.f32.gmra.mxu0 %v6009
      %v6430 = vpop.f32.mrf.mxu0
      %v6431 = vadd.f32 %v6318, %v6430
      %6432 = vmatmul.f32.gmra.mxu0 %v6010
      %v6433 = vpop.f32.mrf.mxu0
      %v6434 = vadd.f32 %v6321, %v6433
      %6435 = vmatmul.f32.gmra.mxu0 %v6011
      %v6436 = vpop.f32.mrf.mxu0
      %v6437 = vadd.f32 %v6324, %v6436
      %6438 = vmatmul.f32.gmra.mxu0 %v6012
      %v6439 = vpop.f32.mrf.mxu0
      %v6440 = vadd.f32 %v6327, %v6439
      %6441 = vmatmul.f32.gmra.mxu0 %v6013
      %v6442 = vpop.f32.mrf.mxu0
      %v6443 = vadd.f32 %v6330, %v6442
      %6444 = vmatmul.f32.gmra.mxu0 %v6014
      %v6445 = vpop.f32.mrf.mxu0
      %v6446 = vadd.f32 %v6333, %v6445
      %6447 = vmatmul.f32.gmra.mxu0 %v6015
      %v6448 = vpop.f32.mrf.mxu0
      %v6449 = vadd.f32 %v6336, %v6448
      %6450 = vmatmul.f32.gmra.mxu0 %v6016
      %v6451 = vpop.f32.mrf.mxu0
      %v6452 = vadd.f32 %v6339, %v6451
      %6453 = vmatmul.f32.gmra.mxu0 %v6017
      %v6454 = vpop.f32.mrf.mxu0
      %v6455 = vadd.f32 %v6342, %v6454
      %6456 = vmatmul.f32.gmra.mxu0 %v6018
      %v6457 = vpop.f32.mrf.mxu0
      %v6458 = vadd.f32 %v6345, %v6457
      %6459 = vmatmul.f32.gmra.mxu0 %v6019
      %v6460 = vpop.f32.mrf.mxu0
      %v6461 = vadd.f32 %v6348, %v6460
      %6462 = vmatmul.f32.gmra.mxu0 %v6020
      %v6463 = vpop.f32.mrf.mxu0
      %v6464 = vadd.f32 %v6351, %v6463
      %6465 = vmatmul.f32.gmra.mxu0 %v6021
      %v6466 = vpop.f32.mrf.mxu0
      %v6467 = vadd.f32 %v6354, %v6466
      %6468 = vmatmul.f32.gmra.mxu0 %v6022
      %v6469 = vpop.f32.mrf.mxu0
      %v6470 = vadd.f32 %v6357, %v6469
      %6471 = vmatmul.f32.gmra.mxu0 %v6023
      %v6472 = vpop.f32.mrf.mxu0
      %v6473 = vadd.f32 %v6360, %v6472
      %6474 = vmatmul.f32.gmra.mxu0 %v6024
      %v6475 = vpop.f32.mrf.mxu0
      %v6476 = vadd.f32 %v6363, %v6475
      %6477 = vmatmul.f32.gmra.mxu0 %v6025
      %v6478 = vpop.f32.mrf.mxu0
      %v6479 = vadd.f32 %v6366, %v6478
      %6480 = vmatmul.f32.gmra.mxu0 %v6026
      %v6481 = vpop.f32.mrf.mxu0
      %v6482 = vadd.f32 %v6369, %v6481
      %6483 = vmatmul.f32.gmra.mxu0 %v6027
      %v6484 = vpop.f32.mrf.mxu0
      %v6485 = vadd.f32 %v6372, %v6484
      %6486 = vmatmul.f32.gmra.mxu0 %v6028
      %v6487 = vpop.f32.mrf.mxu0
      %v6488 = vadd.f32 %v6375, %v6487
      %6489 = vmatmul.f32.gmra.mxu0 %v6029
      %v6490 = vpop.f32.mrf.mxu0
      %v6491 = vadd.f32 %v6378, %v6490
      %6492 = vmatmul.f32.gmra.mxu0 %v6030
      %v6493 = vpop.f32.mrf.mxu0
      %v6494 = vadd.f32 %v6381, %v6493
      %6495 = vmatmul.f32.gmra.mxu0 %v6031
      %v6496 = vpop.f32.mrf.mxu0
      %v6497 = vadd.f32 %v6384, %v6496
      %6498 = vmatmul.f32.gmra.mxu0 %v6032
      %v6499 = vpop.f32.mrf.mxu0
      %v6500 = vadd.f32 %v6387, %v6499
      %6501 = vmatmul.f32.gmra.mxu0 %v6033
      %v6502 = vpop.f32.mrf.mxu0
      %v6503 = vadd.f32 %v6390, %v6502
      %6504 = vmatmul.f32.gmra.mxu0 %v6034
      %v6505 = vpop.f32.mrf.mxu0
      %v6506 = vadd.f32 %v6393, %v6505
      %6507 = vmatmul.f32.gmra.mxu0 %v6035
      %v6508 = vpop.f32.mrf.mxu0
      %v6509 = vadd.f32 %v6396, %v6508
      %6510 = vmatmul.f32.gmra.mxu0 %v6036
      %v6511 = vpop.f32.mrf.mxu0
      %v6512 = vadd.f32 %v6399, %v6511
      %6513 = vmatmul.f32.gmra.mxu0 %v6037
      %v6514 = vpop.f32.mrf.mxu0
      %v6515 = vadd.f32 %v6402, %v6514
      %6516 = vdwg.mxu0
      %6517 = vmatpush.msra.mxu0 %v6103
      %6518 = vmatpush.msra.mxu0 %v6102
      %6519 = vmatpush.msra.mxu0 %v6101
      %6520 = vmatpush.msra.mxu0 %v6100
      %6521 = vmatpush.msra.mxu0 %v6099
      %6522 = vmatpush.msra.mxu0 %v6098
      %6523 = vmatpush.msra.mxu0 %v6097
      %6524 = vmatpush.msra.mxu0 %v6096
      %6525 = vmatpush.msra.mxu0 %v6095
      %6526 = vmatpush.msra.mxu0 %v6094
      %6527 = vmatpush.msra.mxu0 %v6093
      %6528 = vmatpush.msra.mxu0 %v6092
      %6529 = vmatpush.msra.mxu0 %v6091
      %6530 = vmatpush.msra.mxu0 %v6090
      %6531 = vmatpush.msra.mxu0 %v6089
      %6532 = vmatpush.msra.mxu0 %v6088
      %6533 = vmatmul.f32.gmra.mxu0 %v5946
      %v6534 = vpop.f32.mrf.mxu0
      %v6535 = vadd.f32 %v6422, %v6534
      %6536 = vmatmul.f32.gmra.mxu0 %v5947
      %v6537 = vpop.f32.mrf.mxu0
      %v6538 = vadd.f32 %v6425, %v6537
      %6539 = vmatmul.f32.gmra.mxu0 %v5948
      %v6540 = vpop.f32.mrf.mxu0
      %v6541 = vadd.f32 %v6428, %v6540
      %6542 = vmatmul.f32.gmra.mxu0 %v5949
      %v6543 = vpop.f32.mrf.mxu0
      %v6544 = vadd.f32 %v6431, %v6543
      %6545 = vmatmul.f32.gmra.mxu0 %v5950
      %v6546 = vpop.f32.mrf.mxu0
      %v6547 = vadd.f32 %v6434, %v6546
      %6548 = vmatmul.f32.gmra.mxu0 %v5951
      %v6549 = vpop.f32.mrf.mxu0
      %v6550 = vadd.f32 %v6437, %v6549
      %6551 = vmatmul.f32.gmra.mxu0 %v5952
      %v6552 = vpop.f32.mrf.mxu0
      %v6553 = vadd.f32 %v6440, %v6552
      %6554 = vmatmul.f32.gmra.mxu0 %v5953
      %v6555 = vpop.f32.mrf.mxu0
      %v6556 = vadd.f32 %v6443, %v6555
      %6557 = vmatmul.f32.gmra.mxu0 %v5954
      %v6558 = vpop.f32.mrf.mxu0
      %v6559 = vadd.f32 %v6446, %v6558
      %6560 = vmatmul.f32.gmra.mxu0 %v5955
      %v6561 = vpop.f32.mrf.mxu0
      %v6562 = vadd.f32 %v6449, %v6561
      %6563 = vmatmul.f32.gmra.mxu0 %v5956
      %v6564 = vpop.f32.mrf.mxu0
      %v6565 = vadd.f32 %v6452, %v6564
      %6566 = vmatmul.f32.gmra.mxu0 %v5957
      %v6567 = vpop.f32.mrf.mxu0
      %v6568 = vadd.f32 %v6455, %v6567
      %6569 = vmatmul.f32.gmra.mxu0 %v5958
      %v6570 = vpop.f32.mrf.mxu0
      %v6571 = vadd.f32 %v6458, %v6570
      %6572 = vmatmul.f32.gmra.mxu0 %v5959
      %v6573 = vpop.f32.mrf.mxu0
      %v6574 = vadd.f32 %v6461, %v6573
      %6575 = vmatmul.f32.gmra.mxu0 %v5960
      %v6576 = vpop.f32.mrf.mxu0
      %v6577 = vadd.f32 %v6464, %v6576
      %6578 = vmatmul.f32.gmra.mxu0 %v5961
      %v6579 = vpop.f32.mrf.mxu0
      %v6580 = vadd.f32 %v6467, %v6579
      %6581 = vmatmul.f32.gmra.mxu0 %v5962
      %v6582 = vpop.f32.mrf.mxu0
      %v6583 = vadd.f32 %v6470, %v6582
      %6584 = vmatmul.f32.gmra.mxu0 %v5963
      %v6585 = vpop.f32.mrf.mxu0
      %v6586 = vadd.f32 %v6473, %v6585
      %6587 = vmatmul.f32.gmra.mxu0 %v5964
      %v6588 = vpop.f32.mrf.mxu0
      %v6589 = vadd.f32 %v6476, %v6588
      %6590 = vmatmul.f32.gmra.mxu0 %v5965
      %v6591 = vpop.f32.mrf.mxu0
      %v6592 = vadd.f32 %v6479, %v6591
      %6593 = vmatmul.f32.gmra.mxu0 %v5966
      %v6594 = vpop.f32.mrf.mxu0
      %v6595 = vadd.f32 %v6482, %v6594
      %6596 = vmatmul.f32.gmra.mxu0 %v5967
      %v6597 = vpop.f32.mrf.mxu0
      %v6598 = vadd.f32 %v6485, %v6597
      %6599 = vmatmul.f32.gmra.mxu0 %v5968
      %v6600 = vpop.f32.mrf.mxu0
      %v6601 = vadd.f32 %v6488, %v6600
      %6602 = vmatmul.f32.gmra.mxu0 %v5969
      %v6603 = vpop.f32.mrf.mxu0
      %v6604 = vadd.f32 %v6491, %v6603
      %6605 = vmatmul.f32.gmra.mxu0 %v5970
      %v6606 = vpop.f32.mrf.mxu0
      %v6607 = vadd.f32 %v6494, %v6606
      %6608 = vmatmul.f32.gmra.mxu0 %v5971
      %v6609 = vpop.f32.mrf.mxu0
      %v6610 = vadd.f32 %v6497, %v6609
      %6611 = vmatmul.f32.gmra.mxu0 %v5972
      %v6612 = vpop.f32.mrf.mxu0
      %v6613 = vadd.f32 %v6500, %v6612
      %6614 = vmatmul.f32.gmra.mxu0 %v5973
      %v6615 = vpop.f32.mrf.mxu0
      %v6616 = vadd.f32 %v6503, %v6615
      %6617 = vmatmul.f32.gmra.mxu0 %v6038
      %v6618 = vpop.f32.mrf.mxu0
      %v6619 = vadd.f32 %v6506, %v6618
      %6620 = vmatmul.f32.gmra.mxu0 %v6039
      %v6621 = vpop.f32.mrf.mxu0
      %v6622 = vadd.f32 %v6509, %v6621
      %6623 = vmatmul.f32.gmra.mxu0 %v5943
      %v6624 = vpop.f32.mrf.mxu0
      %v6625 = vadd.f32 %v6512, %v6624
      %6626 = vmatmul.f32.gmra.mxu0 %v5943
      %v6627 = vpop.f32.mrf.mxu0
      %v6628 = vadd.f32 %v6515, %v6627
      %6629 = vdwg.mxu0
      %6630 = vmatpush.msra.mxu0 0.0
      %6631 = vmatpush.msra.mxu0 0.0
      %6632 = vmatpush.msra.mxu0 0.0
      %6633 = vmatpush.msra.mxu0 0.0
      %6634 = vmatpush.msra.mxu0 0.0
      %6635 = vmatpush.msra.mxu0 0.0
      %6636 = vmatpush.msra.mxu0 0.0
      %6637 = vmatpush.msra.mxu0 0.0
      %6638 = vmatpush.msra.mxu0 %v6111
      %6639 = vmatpush.msra.mxu0 %v6110
      %6640 = vmatpush.msra.mxu0 %v6109
      %6641 = vmatpush.msra.mxu0 %v6108
      %6642 = vmatpush.msra.mxu0 %v6107
      %6643 = vmatpush.msra.mxu0 %v6106
      %6644 = vmatpush.msra.mxu0 %v6105
      %6645 = vmatpush.msra.mxu0 %v6104
      %6646 = vmatmul.f32.gmra.mxu0 %v6116
      %v6647 = vpop.f32.mrf.mxu0
      %v6648 = vadd.f32 %v6535, %v6647
      %6649 = vmatmul.f32.gmra.mxu0 %v6118
      %v6650 = vpop.f32.mrf.mxu0
      %v6651 = vadd.f32 %v6538, %v6650
      %6652 = vmatmul.f32.gmra.mxu0 %v6120
      %v6653 = vpop.f32.mrf.mxu0
      %v6654 = vadd.f32 %v6541, %v6653
      %6655 = vmatmul.f32.gmra.mxu0 %v6122
      %v6656 = vpop.f32.mrf.mxu0
      %v6657 = vadd.f32 %v6544, %v6656
      %6658 = vmatmul.f32.gmra.mxu0 %v6124
      %v6659 = vpop.f32.mrf.mxu0
      %v6660 = vadd.f32 %v6547, %v6659
      %6661 = vmatmul.f32.gmra.mxu0 %v6126
      %v6662 = vpop.f32.mrf.mxu0
      %v6663 = vadd.f32 %v6550, %v6662
      %6664 = vmatmul.f32.gmra.mxu0 %v6128
      %v6665 = vpop.f32.mrf.mxu0
      %v6666 = vadd.f32 %v6553, %v6665
      %6667 = vmatmul.f32.gmra.mxu0 %v6130
      %v6668 = vpop.f32.mrf.mxu0
      %v6669 = vadd.f32 %v6556, %v6668
      %6670 = vmatmul.f32.gmra.mxu0 %v6132
      %v6671 = vpop.f32.mrf.mxu0
      %v6672 = vadd.f32 %v6559, %v6671
      %6673 = vmatmul.f32.gmra.mxu0 %v6134
      %v6674 = vpop.f32.mrf.mxu0
      %v6675 = vadd.f32 %v6562, %v6674
      %6676 = vmatmul.f32.gmra.mxu0 %v6136
      %v6677 = vpop.f32.mrf.mxu0
      %v6678 = vadd.f32 %v6565, %v6677
      %6679 = vmatmul.f32.gmra.mxu0 %v6138
      %v6680 = vpop.f32.mrf.mxu0
      %v6681 = vadd.f32 %v6568, %v6680
      %6682 = vmatmul.f32.gmra.mxu0 %v6140
      %v6683 = vpop.f32.mrf.mxu0
      %v6684 = vadd.f32 %v6571, %v6683
      %6685 = vmatmul.f32.gmra.mxu0 %v6142
      %v6686 = vpop.f32.mrf.mxu0
      %v6687 = vadd.f32 %v6574, %v6686
      %6688 = vmatmul.f32.gmra.mxu0 %v6144
      %v6689 = vpop.f32.mrf.mxu0
      %v6690 = vadd.f32 %v6577, %v6689
      %6691 = vmatmul.f32.gmra.mxu0 %v6146
      %v6692 = vpop.f32.mrf.mxu0
      %v6693 = vadd.f32 %v6580, %v6692
      %6694 = vmatmul.f32.gmra.mxu0 %v6148
      %v6695 = vpop.f32.mrf.mxu0
      %v6696 = vadd.f32 %v6583, %v6695
      %6697 = vmatmul.f32.gmra.mxu0 %v6150
      %v6698 = vpop.f32.mrf.mxu0
      %v6699 = vadd.f32 %v6586, %v6698
      %6700 = vmatmul.f32.gmra.mxu0 %v6152
      %v6701 = vpop.f32.mrf.mxu0
      %v6702 = vadd.f32 %v6589, %v6701
      %6703 = vmatmul.f32.gmra.mxu0 %v6154
      %v6704 = vpop.f32.mrf.mxu0
      %v6705 = vadd.f32 %v6592, %v6704
      %6706 = vmatmul.f32.gmra.mxu0 %v6156
      %v6707 = vpop.f32.mrf.mxu0
      %v6708 = vadd.f32 %v6595, %v6707
      %6709 = vmatmul.f32.gmra.mxu0 %v6158
      %v6710 = vpop.f32.mrf.mxu0
      %v6711 = vadd.f32 %v6598, %v6710
      %6712 = vmatmul.f32.gmra.mxu0 %v6160
      %v6713 = vpop.f32.mrf.mxu0
      %v6714 = vadd.f32 %v6601, %v6713
      %6715 = vmatmul.f32.gmra.mxu0 %v6162
      %v6716 = vpop.f32.mrf.mxu0
      %v6717 = vadd.f32 %v6604, %v6716
      %6718 = vmatmul.f32.gmra.mxu0 %v6164
      %v6719 = vpop.f32.mrf.mxu0
      %v6720 = vadd.f32 %v6607, %v6719
      %6721 = vmatmul.f32.gmra.mxu0 %v6166
      %v6722 = vpop.f32.mrf.mxu0
      %v6723 = vadd.f32 %v6610, %v6722
      %6724 = vmatmul.f32.gmra.mxu0 %v6168
      %v6725 = vpop.f32.mrf.mxu0
      %v6726 = vadd.f32 %v6613, %v6725
      %6727 = vmatmul.f32.gmra.mxu0 %v6170
      %v6728 = vpop.f32.mrf.mxu0
      %v6729 = vadd.f32 %v6616, %v6728
      %6730 = vmatmul.f32.gmra.mxu0 %v6172
      %v6731 = vpop.f32.mrf.mxu0
      %v6732 = vadd.f32 %v6619, %v6731
      %6733 = vmatmul.f32.gmra.mxu0 %v6174
      %v6734 = vpop.f32.mrf.mxu0
      %v6735 = vadd.f32 %v6622, %v6734
      %6736 = vmatmul.f32.gmra.mxu0 %v6176
      %v6737 = vpop.f32.mrf.mxu0
      %v6738 = vadd.f32 %v6625, %v6737
      %6739 = vmatmul.f32.gmra.mxu0 %v6176
      %v6740 = vpop.f32.mrf.mxu0
      %v6741 = vadd.f32 %v6628, %v6740
      %6742 = vdwg.mxu0
      %v6743 = vmax.f32 %v6648, 0.0
      %v6744 = vmax.f32 %v6651, 0.0
      %v6745 = vmax.f32 %v6654, 0.0
      %v6746 = vmax.f32 %v6657, 0.0
      %v6747 = vmax.f32 %v6660, 0.0
      %v6748 = vmax.f32 %v6663, 0.0
      %v6749 = vmax.f32 %v6666, 0.0
      %v6750 = vmax.f32 %v6669, 0.0
      %v6751 = vmax.f32 %v6672, 0.0
      %v6752 = vmax.f32 %v6675, 0.0
      %v6753 = vmax.f32 %v6678, 0.0
      %v6754 = vmax.f32 %v6681, 0.0
      %v6755 = vmax.f32 %v6684, 0.0
      %v6756 = vmax.f32 %v6687, 0.0
      %v6757 = vmax.f32 %v6690, 0.0
      %v6758 = vmax.f32 %v6693, 0.0
      %v6759 = vmax.f32 %v6696, 0.0
      %v6760 = vmax.f32 %v6699, 0.0
      %v6761 = vmax.f32 %v6702, 0.0
      %v6762 = vmax.f32 %v6705, 0.0
      %v6763 = vmax.f32 %v6708, 0.0
      %v6764 = vmax.f32 %v6711, 0.0
      %v6765 = vmax.f32 %v6714, 0.0
      %v6766 = vmax.f32 %v6717, 0.0
      %v6767 = vmax.f32 %v6720, 0.0
      %v6768 = vmax.f32 %v6723, 0.0
      %v6769 = vmax.f32 %v6726, 0.0
      %v6770 = vmax.f32 %v6729, 0.0
      %v6771 = vmax.f32 %v6732, 0.0
      %v6772 = vmax.f32 %v6735, 0.0
      %v6773 = vmax.f32 %v6738, 0.0
      %v6774 = vmax.f32 %v6741, 0.0
      %v6807 = vrot.slane %v6743, 7
      %v6808 = vrot.slane %v6744, 7
      %v6809 = vsel %vm453, %v6807, %v6808
      %v6810 = vrot.slane %v6745, 7
      %v6811 = vrot.slane %v6746, 7
      %v6812 = vsel %vm453, %v6810, %v6811
      %v6813 = vrot.slane %v6747, 7
      %v6814 = vrot.slane %v6748, 7
      %v6815 = vsel %vm453, %v6813, %v6814
      %v6816 = vrot.slane %v6749, 7
      %v6817 = vrot.slane %v6750, 7
      %v6818 = vsel %vm453, %v6816, %v6817
      %v6819 = vrot.slane %v6751, 7
      %v6820 = vrot.slane %v6752, 7
      %v6821 = vsel %vm453, %v6819, %v6820
      %v6822 = vrot.slane %v6753, 7
      %v6823 = vrot.slane %v6754, 7
      %v6824 = vsel %vm453, %v6822, %v6823
      %v6825 = vrot.slane %v6755, 7
      %v6826 = vrot.slane %v6756, 7
      %v6827 = vsel %vm453, %v6825, %v6826
      %v6828 = vrot.slane %v6757, 7
      %v6829 = vrot.slane %v6758, 7
      %v6830 = vsel %vm453, %v6828, %v6829
      %v6831 = vrot.slane %v6759, 7
      %v6832 = vrot.slane %v6760, 7
      %v6833 = vsel %vm453, %v6831, %v6832
      %v6834 = vrot.slane %v6761, 7
      %v6835 = vrot.slane %v6762, 7
      %v6836 = vsel %vm453, %v6834, %v6835
      %v6837 = vrot.slane %v6763, 7
      %v6838 = vrot.slane %v6764, 7
      %v6839 = vsel %vm453, %v6837, %v6838
      %v6840 = vrot.slane %v6765, 7
      %v6841 = vrot.slane %v6766, 7
      %v6842 = vsel %vm453, %v6840, %v6841
      %v6843 = vrot.slane %v6767, 7
      %v6844 = vrot.slane %v6768, 7
      %v6845 = vsel %vm453, %v6843, %v6844
      %v6846 = vrot.slane %v6769, 7
      %v6847 = vrot.slane %v6770, 7
      %v6848 = vsel %vm453, %v6846, %v6847
      %v6849 = vrot.slane %v6771, 7
      %v6850 = vrot.slane %v6772, 7
      %v6851 = vsel %vm453, %v6849, %v6850
      %v6852 = vrot.slane %v6773, 7
      %v6853 = vrot.slane %v6774, 7
      %v6854 = vsel %vm453, %v6852, %v6853
      %v6903 = vsel %vm453, 0.0, %v6807
      %v6904 = vsel %vm453, 0.0, %v6810
      %v6905 = vsel %vm453, 0.0, %v6813
      %v6906 = vsel %vm453, 0.0, %v6816
      %v6907 = vsel %vm453, 0.0, %v6819
      %v6908 = vsel %vm453, 0.0, %v6822
      %v6909 = vsel %vm453, 0.0, %v6825
      %v6910 = vsel %vm453, 0.0, %v6828
      %v6911 = vsel %vm453, 0.0, %v6831
      %v6912 = vsel %vm453, 0.0, %v6834
      %v6913 = vsel %vm453, 0.0, %v6837
      %v6914 = vsel %vm453, 0.0, %v6840
      %v6915 = vsel %vm453, 0.0, %v6843
      %v6916 = vsel %vm453, 0.0, %v6846
      %v6917 = vsel %vm453, 0.0, %v6849
      %v6918 = vsel %vm453, 0.0, %v6852
      %v6919 = vsel %vm453, %v6808, 0.0
      %v6920 = vsel %vm453, %v6811, 0.0
      %v6921 = vsel %vm453, %v6814, 0.0
      %v6922 = vsel %vm453, %v6817, 0.0
      %v6923 = vsel %vm453, %v6820, 0.0
      %v6924 = vsel %vm453, %v6823, 0.0
      %v6925 = vsel %vm453, %v6826, 0.0
      %v6926 = vsel %vm453, %v6829, 0.0
      %v6927 = vsel %vm453, %v6832, 0.0
      %v6928 = vsel %vm453, %v6835, 0.0
      %v6929 = vsel %vm453, %v6838, 0.0
      %v6930 = vsel %vm453, %v6841, 0.0
      %v6931 = vsel %vm453, %v6844, 0.0
      %v6932 = vsel %vm453, %v6847, 0.0
      %v6933 = vsel %vm453, %v6850, 0.0
      %v6934 = vsel %vm453, %v6853, 0.0
      %v6965 = vrot.slane %v6903, 1
      %v6966 = vrot.slane %v6809, 1
      %v6967 = vsel %vm612, %v6965, %v6966
      %v6968 = vrot.slane %v6919, 1
      %v6969 = vsel %vm612, %v6966, %v6968
      %v6970 = vrot.slane %v6904, 1
      %v6971 = vrot.slane %v6812, 1
      %v6972 = vsel %vm612, %v6970, %v6971
      %v6973 = vrot.slane %v6920, 1
      %v6974 = vsel %vm612, %v6971, %v6973
      %v6975 = vrot.slane %v6905, 1
      %v6976 = vrot.slane %v6815, 1
      %v6977 = vsel %vm612, %v6975, %v6976
      %v6978 = vrot.slane %v6921, 1
      %v6979 = vsel %vm612, %v6976, %v6978
      %v6980 = vrot.slane %v6906, 1
      %v6981 = vrot.slane %v6818, 1
      %v6982 = vsel %vm612, %v6980, %v6981
      %v6983 = vrot.slane %v6922, 1
      %v6984 = vsel %vm612, %v6981, %v6983
      %v6985 = vrot.slane %v6907, 1
      %v6986 = vrot.slane %v6821, 1
      %v6987 = vsel %vm612, %v6985, %v6986
      %v6988 = vrot.slane %v6923, 1
      %v6989 = vsel %vm612, %v6986, %v6988
      %v6990 = vrot.slane %v6908, 1
      %v6991 = vrot.slane %v6824, 1
      %v6992 = vsel %vm612, %v6990, %v6991
      %v6993 = vrot.slane %v6924, 1
      %v6994 = vsel %vm612, %v6991, %v6993
      %v6995 = vrot.slane %v6909, 1
      %v6996 = vrot.slane %v6827, 1
      %v6997 = vsel %vm612, %v6995, %v6996
      %v6998 = vrot.slane %v6925, 1
      %v6999 = vsel %vm612, %v6996, %v6998
      %v7000 = vrot.slane %v6910, 1
      %v7001 = vrot.slane %v6830, 1
      %v7002 = vsel %vm612, %v7000, %v7001
      %v7003 = vrot.slane %v6926, 1
      %v7004 = vsel %vm612, %v7001, %v7003
      %v7005 = vrot.slane %v6911, 1
      %v7006 = vrot.slane %v6833, 1
      %v7007 = vsel %vm612, %v7005, %v7006
      %v7008 = vrot.slane %v6927, 1
      %v7009 = vsel %vm612, %v7006, %v7008
      %v7010 = vrot.slane %v6912, 1
      %v7011 = vrot.slane %v6836, 1
      %v7012 = vsel %vm612, %v7010, %v7011
      %v7013 = vrot.slane %v6928, 1
      %v7014 = vsel %vm612, %v7011, %v7013
      %v7015 = vrot.slane %v6913, 1
      %v7016 = vrot.slane %v6839, 1
      %v7017 = vsel %vm612, %v7015, %v7016
      %v7018 = vrot.slane %v6929, 1
      %v7019 = vsel %vm612, %v7016, %v7018
      %v7020 = vrot.slane %v6914, 1
      %v7021 = vrot.slane %v6842, 1
      %v7022 = vsel %vm612, %v7020, %v7021
      %v7023 = vrot.slane %v6930, 1
      %v7024 = vsel %vm612, %v7021, %v7023
      %v7025 = vrot.slane %v6915, 1
      %v7026 = vrot.slane %v6845, 1
      %v7027 = vsel %vm612, %v7025, %v7026
      %v7028 = vrot.slane %v6931, 1
      %v7029 = vsel %vm612, %v7026, %v7028
      %v7030 = vrot.slane %v6916, 1
      %v7031 = vrot.slane %v6848, 1
      %v7032 = vsel %vm612, %v7030, %v7031
      %v7033 = vrot.slane %v6932, 1
      %v7034 = vsel %vm612, %v7031, %v7033
      %v7035 = vrot.slane %v6917, 1
      %v7036 = vrot.slane %v6851, 1
      %v7037 = vsel %vm612, %v7035, %v7036
      %v7038 = vrot.slane %v6933, 1
      %v7039 = vsel %vm612, %v7036, %v7038
      %v7071 = vrot.slane %v6903, 2
      %v7072 = vrot.slane %v6809, 2
      %v7073 = vsel %vm690, %v7071, %v7072
      %v7074 = vrot.slane %v6919, 2
      %v7075 = vsel %vm690, %v7072, %v7074
      %v7076 = vrot.slane %v6904, 2
      %v7077 = vrot.slane %v6812, 2
      %v7078 = vsel %vm690, %v7076, %v7077
      %v7079 = vrot.slane %v6920, 2
      %v7080 = vsel %vm690, %v7077, %v7079
      %v7081 = vrot.slane %v6905, 2
      %v7082 = vrot.slane %v6815, 2
      %v7083 = vsel %vm690, %v7081, %v7082
      %v7084 = vrot.slane %v6921, 2
      %v7085 = vsel %vm690, %v7082, %v7084
      %v7086 = vrot.slane %v6906, 2
      %v7087 = vrot.slane %v6818, 2
      %v7088 = vsel %vm690, %v7086, %v7087
      %v7089 = vrot.slane %v6922, 2
      %v7090 = vsel %vm690, %v7087, %v7089
      %v7091 = vrot.slane %v6907, 2
      %v7092 = vrot.slane %v6821, 2
      %v7093 = vsel %vm690, %v7091, %v7092
      %v7094 = vrot.slane %v6923, 2
      %v7095 = vsel %vm690, %v7092, %v7094
      %v7096 = vrot.slane %v6908, 2
      %v7097 = vrot.slane %v6824, 2
      %v7098 = vsel %vm690, %v7096, %v7097
      %v7099 = vrot.slane %v6924, 2
      %v7100 = vsel %vm690, %v7097, %v7099
      %v7101 = vrot.slane %v6909, 2
      %v7102 = vrot.slane %v6827, 2
      %v7103 = vsel %vm690, %v7101, %v7102
      %v7104 = vrot.slane %v6925, 2
      %v7105 = vsel %vm690, %v7102, %v7104
      %v7106 = vrot.slane %v6910, 2
      %v7107 = vrot.slane %v6830, 2
      %v7108 = vsel %vm690, %v7106, %v7107
      %v7109 = vrot.slane %v6926, 2
      %v7110 = vsel %vm690, %v7107, %v7109
      %v7111 = vrot.slane %v6911, 2
      %v7112 = vrot.slane %v6833, 2
      %v7113 = vsel %vm690, %v7111, %v7112
      %v7114 = vrot.slane %v6927, 2
      %v7115 = vsel %vm690, %v7112, %v7114
      %v7116 = vrot.slane %v6912, 2
      %v7117 = vrot.slane %v6836, 2
      %v7118 = vsel %vm690, %v7116, %v7117
      %v7119 = vrot.slane %v6928, 2
      %v7120 = vsel %vm690, %v7117, %v7119
      %v7121 = vrot.slane %v6913, 2
      %v7122 = vrot.slane %v6839, 2
      %v7123 = vsel %vm690, %v7121, %v7122
      %v7124 = vrot.slane %v6929, 2
      %v7125 = vsel %vm690, %v7122, %v7124
      %v7126 = vrot.slane %v6914, 2
      %v7127 = vrot.slane %v6842, 2
      %v7128 = vsel %vm690, %v7126, %v7127
      %v7129 = vrot.slane %v6930, 2
      %v7130 = vsel %vm690, %v7127, %v7129
      %v7131 = vrot.slane %v6915, 2
      %v7132 = vrot.slane %v6845, 2
      %v7133 = vsel %vm690, %v7131, %v7132
      %v7134 = vrot.slane %v6931, 2
      %v7135 = vsel %vm690, %v7132, %v7134
      %v7136 = vrot.slane %v6916, 2
      %v7137 = vrot.slane %v6848, 2
      %v7138 = vsel %vm690, %v7136, %v7137
      %v7139 = vrot.slane %v6932, 2
      %v7140 = vsel %vm690, %v7137, %v7139
      %v7141 = vrot.slane %v6917, 2
      %v7142 = vrot.slane %v6851, 2
      %v7143 = vsel %vm690, %v7141, %v7142
      %v7144 = vrot.slane %v6933, 2
      %v7145 = vsel %vm690, %v7142, %v7144
      %v7178 = vrot.slane %v6918, 1
      %v7179 = vrot.slane %v6854, 1
      %v7180 = vsel %vm612, %v7178, %v7179
      %v7181 = vrot.slane %v6934, 1
      %v7182 = vsel %vm612, %v7179, %v7181
      %v7185 = vrot.slane %v6918, 2
      %v7186 = vrot.slane %v6854, 2
      %v7187 = vsel %vm690, %v7185, %v7186
      %v7188 = vrot.slane %v6934, 2
      %v7189 = vsel %vm690, %v7186, %v7188
      %v7192 = vld [vmem:[%s9] sm:$0xff]
      %v7193 = vld [vmem:[%s9 + $0x8] sm:$0xff]
      %v7194 = vld [vmem:[%s9 + $0x10] sm:$0xff]
      %v7195 = vld [vmem:[%s9 + $0x18] sm:$0xff]
      %v7196 = vld [vmem:[%s9 + $0x20] sm:$0xff]
      %v7197 = vld [vmem:[%s9 + $0x28] sm:$0xff]
      %v7198 = vld [vmem:[%s9 + $0x30] sm:$0xff]
      %v7199 = vld [vmem:[%s9 + $0x38] sm:$0xff]
      %v7200 = vld [vmem:[%s9 + $0x40] sm:$0xff]
      %v7201 = vld [vmem:[%s9 + $0x48] sm:$0xff]
      %v7202 = vld [vmem:[%s9 + $0x50] sm:$0xff]
      %v7203 = vld [vmem:[%s9 + $0x58] sm:$0xff]
      %v7204 = vld [vmem:[%s9 + $0x60] sm:$0xff]
      %v7205 = vld [vmem:[%s9 + $0x68] sm:$0xff]
      %v7206 = vld [vmem:[%s9 + $0x70] sm:$0xff]
      %v7207 = vld [vmem:[%s9 + $0x78] sm:$0xff]
      %v7208 = vld [vmem:[%s9 + $0x80] sm:$0xff]
      %v7209 = vld [vmem:[%s9 + $0x88] sm:$0xff]
      %v7210 = vld [vmem:[%s9 + $0x90] sm:$0xff]
      %v7211 = vld [vmem:[%s9 + $0x98] sm:$0xff]
      %v7212 = vld [vmem:[%s9 + $0xa0] sm:$0xff]
      %v7213 = vld [vmem:[%s9 + $0xa8] sm:$0xff]
      %v7214 = vld [vmem:[%s9 + $0xb0] sm:$0xff]
      %v7215 = vld [vmem:[%s9 + $0xb8] sm:$0xff]
      %v7216 = vld [vmem:[%s9 + $0xc0] sm:$0xff]
      %v7217 = vld [vmem:[%s9 + $0xc8] sm:$0xff]
      %v7218 = vld [vmem:[%s9 + $0xd0] sm:$0xff]
      %v7219 = vld [vmem:[%s9 + $0xd8] sm:$0xff]
      %v7220 = vld [vmem:[%s9 + $0xe0] sm:$0xff]
      %v7221 = vld [vmem:[%s9 + $0xe8] sm:$0xff]
      %v7222 = vld [vmem:[%s9 + $0xf0] sm:$0xff]
      %v7223 = vld [vmem:[%s9 + $0xf8] sm:$0xff]
      %v7224 = vld [vmem:[%s9 + $0x100] sm:$0xff]
      %v7225 = vld [vmem:[%s9 + $0x108] sm:$0xff]
      %v7226 = vld [vmem:[%s9 + $0x110] sm:$0xff]
      %v7227 = vld [vmem:[%s9 + $0x118] sm:$0xff]
      %v7228 = vld [vmem:[%s9 + $0x120] sm:$0xff]
      %v7229 = vld [vmem:[%s9 + $0x128] sm:$0xff]
      %v7230 = vld [vmem:[%s9 + $0x130] sm:$0xff]
      %v7231 = vld [vmem:[%s9 + $0x138] sm:$0xff]
      %v7232 = vld [vmem:[%s9 + $0x140] sm:$0xff]
      %v7233 = vld [vmem:[%s9 + $0x148] sm:$0xff]
      %v7234 = vld [vmem:[%s9 + $0x150] sm:$0xff]
      %v7235 = vld [vmem:[%s9 + $0x158] sm:$0xff]
      %v7236 = vld [vmem:[%s9 + $0x160] sm:$0xff]
      %v7237 = vld [vmem:[%s9 + $0x168] sm:$0xff]
      %v7238 = vld [vmem:[%s9 + $0x170] sm:$0xff]
      %v7239 = vld [vmem:[%s9 + $0x178] sm:$0xff]
      %v7240 = vld [vmem:[%s9 + $0x180] sm:$0xff]
      %v7241 = vld [vmem:[%s9 + $0x188] sm:$0xff]
      %v7242 = vld [vmem:[%s9 + $0x190] sm:$0xff]
      %v7243 = vld [vmem:[%s9 + $0x198] sm:$0xff]
      %v7244 = vld [vmem:[%s9 + $0x1a0] sm:$0xff]
      %v7245 = vld [vmem:[%s9 + $0x1a8] sm:$0xff]
      %v7246 = vld [vmem:[%s9 + $0x1b0] sm:$0xff]
      %v7247 = vld [vmem:[%s9 + $0x1b8] sm:$0xff]
      %v7248 = vld [vmem:[%s9 + $0x1c0] sm:$0xff]
      %v7249 = vld [vmem:[%s9 + $0x1c8] sm:$0xff]
      %v7250 = vld [vmem:[%s9 + $0x1d0] sm:$0xff]
      %v7251 = vld [vmem:[%s9 + $0x1d8] sm:$0xff]
      %v7252 = vld [vmem:[%s9 + $0x1e0] sm:$0xff]
      %v7253 = vld [vmem:[%s9 + $0x1e8] sm:$0xff]
      %v7254 = vld [vmem:[%s9 + $0x1f0] sm:$0xff]
      %v7255 = vld [vmem:[%s9 + $0x1f8] sm:$0xff]
      %v7256 = vld [vmem:[%s9 + $0x200] sm:$0xff]
      %v7257 = vld [vmem:[%s9 + $0x208] sm:$0xff]
      %v7258 = vld [vmem:[%s9 + $0x210] sm:$0xff]
      %v7259 = vld [vmem:[%s9 + $0x218] sm:$0xff]
      %v7260 = vld [vmem:[%s9 + $0x220] sm:$0xff]
      %v7261 = vld [vmem:[%s9 + $0x228] sm:$0xff]
      %v7262 = vld [vmem:[%s9 + $0x230] sm:$0xff]
      %v7263 = vld [vmem:[%s9 + $0x238] sm:$0xff]
      %v7264 = vld [vmem:[%s9 + $0x240] sm:$0xff]
      %v7265 = vld [vmem:[%s9 + $0x248] sm:$0xff]
      %v7266 = vld [vmem:[%s9 + $0x250] sm:$0xff]
      %v7267 = vld [vmem:[%s9 + $0x258] sm:$0xff]
      %v7268 = vld [vmem:[%s9 + $0x260] sm:$0xff]
      %v7269 = vld [vmem:[%s9 + $0x268] sm:$0xff]
      %v7270 = vld [vmem:[%s9 + $0x270] sm:$0xff]
      %v7271 = vld [vmem:[%s9 + $0x278] sm:$0xff]
      %v7272 = vld [vmem:[%s9 + $0x280] sm:$0xff]
      %v7273 = vld [vmem:[%s9 + $0x288] sm:$0xff]
      %v7274 = vld [vmem:[%s9 + $0x290] sm:$0xff]
      %v7275 = vld [vmem:[%s9 + $0x298] sm:$0xff]
      %v7276 = vld [vmem:[%s9 + $0x2a0] sm:$0xff]
      %v7277 = vld [vmem:[%s9 + $0x2a8] sm:$0xff]
      %v7278 = vld [vmem:[%s9 + $0x2b0] sm:$0xff]
      %v7279 = vld [vmem:[%s9 + $0x2b8] sm:$0xff]
      %v7280 = vld [vmem:[%s9 + $0x2c0] sm:$0xff]
      %v7281 = vld [vmem:[%s9 + $0x2c8] sm:$0xff]
      %v7282 = vld [vmem:[%s9 + $0x2d0] sm:$0xff]
      %v7283 = vld [vmem:[%s9 + $0x2d8] sm:$0xff]
      %v7284 = vld [vmem:[%s9 + $0x2e0] sm:$0xff]
      %v7285 = vld [vmem:[%s9 + $0x2e8] sm:$0xff]
      %v7286 = vld [vmem:[%s9 + $0x2f0] sm:$0xff]
      %v7287 = vld [vmem:[%s9 + $0x2f8] sm:$0xff]
      %v7288 = vld [vmem:[%s9 + $0x300] sm:$0xff]
      %v7289 = vld [vmem:[%s9 + $0x308] sm:$0xff]
      %v7290 = vld [vmem:[%s9 + $0x310] sm:$0xff]
      %v7291 = vld [vmem:[%s9 + $0x318] sm:$0xff]
      %v7292 = vld [vmem:[%s9 + $0x320] sm:$0xff]
      %v7293 = vld [vmem:[%s9 + $0x328] sm:$0xff]
      %v7294 = vld [vmem:[%s9 + $0x330] sm:$0xff]
      %v7295 = vld [vmem:[%s9 + $0x338] sm:$0xff]
      %v7296 = vld [vmem:[%s9 + $0x340] sm:$0xff]
      %v7297 = vld [vmem:[%s9 + $0x348] sm:$0xff]
      %v7298 = vld [vmem:[%s9 + $0x350] sm:$0xff]
      %v7299 = vld [vmem:[%s9 + $0x358] sm:$0xff]
      %v7300 = vld [vmem:[%s9 + $0x360] sm:$0xff]
      %v7301 = vld [vmem:[%s9 + $0x368] sm:$0xff]
      %v7302 = vld [vmem:[%s9 + $0x370] sm:$0xff]
      %v7303 = vld [vmem:[%s9 + $0x378] sm:$0xff]
      %v7304 = vld [vmem:[%s9 + $0x380] sm:$0xff]
      %v7305 = vld [vmem:[%s9 + $0x388] sm:$0xff]
      %v7306 = vld [vmem:[%s9 + $0x390] sm:$0xff]
      %v7307 = vld [vmem:[%s9 + $0x398] sm:$0xff]
      %v7308 = vld [vmem:[%s9 + $0x3a0] sm:$0xff]
      %v7309 = vld [vmem:[%s9 + $0x3a8] sm:$0xff]
      %v7310 = vld [vmem:[%s9 + $0x3b0] sm:$0xff]
      %v7311 = vld [vmem:[%s9 + $0x3b8] sm:$0xff]
      %v7312 = vld [vmem:[%s9 + $0x3c0] sm:$0xff]
      %v7313 = vld [vmem:[%s9 + $0x3c8] sm:$0xff]
      %v7314 = vld [vmem:[%s9 + $0x3d0] sm:$0xff]
      %v7315 = vld [vmem:[%s9 + $0x3d8] sm:$0xff]
      %v7316 = vld [vmem:[%s9 + $0x3e0] sm:$0xff]
      %v7317 = vld [vmem:[%s9 + $0x3e8] sm:$0xff]
      %v7318 = vld [vmem:[%s9 + $0x3f0] sm:$0xff]
      %v7319 = vld [vmem:[%s9 + $0x3f8] sm:$0xff]
      %v7320 = vld [vmem:[%s9 + $0x400] sm:$0xff]
      %v7321 = vld [vmem:[%s9 + $0x408] sm:$0xff]
      %v7322 = vld [vmem:[%s9 + $0x410] sm:$0xff]
      %v7323 = vld [vmem:[%s9 + $0x418] sm:$0xff]
      %v7324 = vld [vmem:[%s9 + $0x420] sm:$0xff]
      %v7325 = vld [vmem:[%s9 + $0x428] sm:$0xff]
      %v7326 = vld [vmem:[%s9 + $0x430] sm:$0xff]
      %v7327 = vld [vmem:[%s9 + $0x438] sm:$0xff]
      %v7328 = vld [vmem:[%s9 + $0x440] sm:$0xff]
      %v7329 = vld [vmem:[%s9 + $0x448] sm:$0xff]
      %v7330 = vld [vmem:[%s9 + $0x450] sm:$0xff]
      %v7331 = vld [vmem:[%s9 + $0x458] sm:$0xff]
      %v7332 = vld [vmem:[%s9 + $0x460] sm:$0xff]
      %v7333 = vld [vmem:[%s9 + $0x468] sm:$0xff]
      %v7334 = vld [vmem:[%s9 + $0x470] sm:$0xff]
      %v7335 = vld [vmem:[%s9 + $0x478] sm:$0xff]
      %v7336 = vld [vmem:[#allocation2] sm:$0x1]
      %v7338 = vperm.slane %v7336, 0
      %7340 = vmatpush.msra.mxu0 %v7207
      %7341 = vmatpush.msra.mxu0 %v7206
      %7342 = vmatpush.msra.mxu0 %v7205
      %7343 = vmatpush.msra.mxu0 %v7204
      %7344 = vmatpush.msra.mxu0 %v7203
      %7345 = vmatpush.msra.mxu0 %v7202
      %7346 = vmatpush.msra.mxu0 %v7201
      %7347 = vmatpush.msra.mxu0 %v7200
      %7348 = vmatpush.msra.mxu0 %v7199
      %7349 = vmatpush.msra.mxu0 %v7198
      %7350 = vmatpush.msra.mxu0 %v7197
      %7351 = vmatpush.msra.mxu0 %v7196
      %7352 = vmatpush.msra.mxu0 %v7195
      %7353 = vmatpush.msra.mxu0 %v7194
      %7354 = vmatpush.msra.mxu0 %v7193
      %7355 = vmatpush.msra.mxu0 %v7192
      %7356 = vmatmul.f32.gmra.mxu0 0.0
      %v7357 = vpop.f32.mrf.mxu0
      %v7358 = vadd.f32 %v7338, %v7357
      %7359 = vmatmul.f32.gmra.mxu0 0.0
      %v7360 = vpop.f32.mrf.mxu0
      %v7361 = vadd.f32 %v7338, %v7360
      %7362 = vmatmul.f32.gmra.mxu0 %v6903
      %v7363 = vpop.f32.mrf.mxu0
      %v7364 = vadd.f32 %v7338, %v7363
      %7365 = vmatmul.f32.gmra.mxu0 %v6809
      %v7366 = vpop.f32.mrf.mxu0
      %v7367 = vadd.f32 %v7338, %v7366
      %7368 = vmatmul.f32.gmra.mxu0 %v6904
      %v7369 = vpop.f32.mrf.mxu0
      %v7370 = vadd.f32 %v7338, %v7369
      %7371 = vmatmul.f32.gmra.mxu0 %v6812
      %v7372 = vpop.f32.mrf.mxu0
      %v7373 = vadd.f32 %v7338, %v7372
      %7374 = vmatmul.f32.gmra.mxu0 %v6905
      %v7375 = vpop.f32.mrf.mxu0
      %v7376 = vadd.f32 %v7338, %v7375
      %7377 = vmatmul.f32.gmra.mxu0 %v6815
      %v7378 = vpop.f32.mrf.mxu0
      %v7379 = vadd.f32 %v7338, %v7378
      %7380 = vmatmul.f32.gmra.mxu0 %v6906
      %v7381 = vpop.f32.mrf.mxu0
      %v7382 = vadd.f32 %v7338, %v7381
      %7383 = vmatmul.f32.gmra.mxu0 %v6818
      %v7384 = vpop.f32.mrf.mxu0
      %v7385 = vadd.f32 %v7338, %v7384
      %7386 = vmatmul.f32.gmra.mxu0 %v6907
      %v7387 = vpop.f32.mrf.mxu0
      %v7388 = vadd.f32 %v7338, %v7387
      %7389 = vmatmul.f32.gmra.mxu0 %v6821
      %v7390 = vpop.f32.mrf.mxu0
      %v7391 = vadd.f32 %v7338, %v7390
      %7392 = vmatmul.f32.gmra.mxu0 %v6908
      %v7393 = vpop.f32.mrf.mxu0
      %v7394 = vadd.f32 %v7338, %v7393
      %7395 = vmatmul.f32.gmra.mxu0 %v6824
      %v7396 = vpop.f32.mrf.mxu0
      %v7397 = vadd.f32 %v7338, %v7396
      %7398 = vmatmul.f32.gmra.mxu0 %v6909
      %v7399 = vpop.f32.mrf.mxu0
      %v7400 = vadd.f32 %v7338, %v7399
      %7401 = vmatmul.f32.gmra.mxu0 %v6827
      %v7402 = vpop.f32.mrf.mxu0
      %v7403 = vadd.f32 %v7338, %v7402
      %7404 = vmatmul.f32.gmra.mxu0 %v6910
      %v7405 = vpop.f32.mrf.mxu0
      %v7406 = vadd.f32 %v7338, %v7405
      %7407 = vmatmul.f32.gmra.mxu0 %v6830
      %v7408 = vpop.f32.mrf.mxu0
      %v7409 = vadd.f32 %v7338, %v7408
      %7410 = vmatmul.f32.gmra.mxu0 %v6911
      %v7411 = vpop.f32.mrf.mxu0
      %v7412 = vadd.f32 %v7338, %v7411
      %7413 = vmatmul.f32.gmra.mxu0 %v6833
      %v7414 = vpop.f32.mrf.mxu0
      %v7415 = vadd.f32 %v7338, %v7414
      %7416 = vmatmul.f32.gmra.mxu0 %v6912
      %v7417 = vpop.f32.mrf.mxu0
      %v7418 = vadd.f32 %v7338, %v7417
      %7419 = vmatmul.f32.gmra.mxu0 %v6836
      %v7420 = vpop.f32.mrf.mxu0
      %v7421 = vadd.f32 %v7338, %v7420
      %7422 = vmatmul.f32.gmra.mxu0 %v6913
      %v7423 = vpop.f32.mrf.mxu0
      %v7424 = vadd.f32 %v7338, %v7423
      %7425 = vmatmul.f32.gmra.mxu0 %v6839
      %v7426 = vpop.f32.mrf.mxu0
      %v7427 = vadd.f32 %v7338, %v7426
      %7428 = vmatmul.f32.gmra.mxu0 %v6914
      %v7429 = vpop.f32.mrf.mxu0
      %v7430 = vadd.f32 %v7338, %v7429
      %7431 = vmatmul.f32.gmra.mxu0 %v6842
      %v7432 = vpop.f32.mrf.mxu0
      %v7433 = vadd.f32 %v7338, %v7432
      %7434 = vmatmul.f32.gmra.mxu0 %v6915
      %v7435 = vpop.f32.mrf.mxu0
      %v7436 = vadd.f32 %v7338, %v7435
      %7437 = vmatmul.f32.gmra.mxu0 %v6845
      %v7438 = vpop.f32.mrf.mxu0
      %v7439 = vadd.f32 %v7338, %v7438
      %7440 = vmatmul.f32.gmra.mxu0 %v6916
      %v7441 = vpop.f32.mrf.mxu0
      %v7442 = vadd.f32 %v7338, %v7441
      %7443 = vmatmul.f32.gmra.mxu0 %v6848
      %v7444 = vpop.f32.mrf.mxu0
      %v7445 = vadd.f32 %v7338, %v7444
      %7446 = vmatmul.f32.gmra.mxu0 %v6917
      %v7447 = vpop.f32.mrf.mxu0
      %v7448 = vadd.f32 %v7338, %v7447
      %7449 = vmatmul.f32.gmra.mxu0 %v6851
      %v7450 = vpop.f32.mrf.mxu0
      %v7451 = vadd.f32 %v7338, %v7450
      %7452 = vdwg.mxu0
      %7453 = vmatpush.msra.mxu0 %v7223
      %7454 = vmatpush.msra.mxu0 %v7222
      %7455 = vmatpush.msra.mxu0 %v7221
      %7456 = vmatpush.msra.mxu0 %v7220
      %7457 = vmatpush.msra.mxu0 %v7219
      %7458 = vmatpush.msra.mxu0 %v7218
      %7459 = vmatpush.msra.mxu0 %v7217
      %7460 = vmatpush.msra.mxu0 %v7216
      %7461 = vmatpush.msra.mxu0 %v7215
      %7462 = vmatpush.msra.mxu0 %v7214
      %7463 = vmatpush.msra.mxu0 %v7213
      %7464 = vmatpush.msra.mxu0 %v7212
      %7465 = vmatpush.msra.mxu0 %v7211
      %7466 = vmatpush.msra.mxu0 %v7210
      %7467 = vmatpush.msra.mxu0 %v7209
      %7468 = vmatpush.msra.mxu0 %v7208
      %7469 = vmatmul.f32.gmra.mxu0 %v614
      %v7470 = vpop.f32.mrf.mxu0
      %v7471 = vadd.f32 %v7358, %v7470
      %7472 = vmatmul.f32.gmra.mxu0 %v614
      %v7473 = vpop.f32.mrf.mxu0
      %v7474 = vadd.f32 %v7361, %v7473
      %7475 = vmatmul.f32.gmra.mxu0 %v6967
      %v7476 = vpop.f32.mrf.mxu0
      %v7477 = vadd.f32 %v7364, %v7476
      %7478 = vmatmul.f32.gmra.mxu0 %v6969
      %v7479 = vpop.f32.mrf.mxu0
      %v7480 = vadd.f32 %v7367, %v7479
      %7481 = vmatmul.f32.gmra.mxu0 %v6972
      %v7482 = vpop.f32.mrf.mxu0
      %v7483 = vadd.f32 %v7370, %v7482
      %7484 = vmatmul.f32.gmra.mxu0 %v6974
      %v7485 = vpop.f32.mrf.mxu0
      %v7486 = vadd.f32 %v7373, %v7485
      %7487 = vmatmul.f32.gmra.mxu0 %v6977
      %v7488 = vpop.f32.mrf.mxu0
      %v7489 = vadd.f32 %v7376, %v7488
      %7490 = vmatmul.f32.gmra.mxu0 %v6979
      %v7491 = vpop.f32.mrf.mxu0
      %v7492 = vadd.f32 %v7379, %v7491
      %7493 = vmatmul.f32.gmra.mxu0 %v6982
      %v7494 = vpop.f32.mrf.mxu0
      %v7495 = vadd.f32 %v7382, %v7494
      %7496 = vmatmul.f32.gmra.mxu0 %v6984
      %v7497 = vpop.f32.mrf.mxu0
      %v7498 = vadd.f32 %v7385, %v7497
      %7499 = vmatmul.f32.gmra.mxu0 %v6987
      %v7500 = vpop.f32.mrf.mxu0
      %v7501 = vadd.f32 %v7388, %v7500
      %7502 = vmatmul.f32.gmra.mxu0 %v6989
      %v7503 = vpop.f32.mrf.mxu0
      %v7504 = vadd.f32 %v7391, %v7503
      %7505 = vmatmul.f32.gmra.mxu0 %v6992
      %v7506 = vpop.f32.mrf.mxu0
      %v7507 = vadd.f32 %v7394, %v7506
      %7508 = vmatmul.f32.gmra.mxu0 %v6994
      %v7509 = vpop.f32.mrf.mxu0
      %v7510 = vadd.f32 %v7397, %v7509
      %7511 = vmatmul.f32.gmra.mxu0 %v6997
      %v7512 = vpop.f32.mrf.mxu0
      %v7513 = vadd.f32 %v7400, %v7512
      %7514 = vmatmul.f32.gmra.mxu0 %v6999
      %v7515 = vpop.f32.mrf.mxu0
      %v7516 = vadd.f32 %v7403, %v7515
      %7517 = vmatmul.f32.gmra.mxu0 %v7002
      %v7518 = vpop.f32.mrf.mxu0
      %v7519 = vadd.f32 %v7406, %v7518
      %7520 = vmatmul.f32.gmra.mxu0 %v7004
      %v7521 = vpop.f32.mrf.mxu0
      %v7522 = vadd.f32 %v7409, %v7521
      %7523 = vmatmul.f32.gmra.mxu0 %v7007
      %v7524 = vpop.f32.mrf.mxu0
      %v7525 = vadd.f32 %v7412, %v7524
      %7526 = vmatmul.f32.gmra.mxu0 %v7009
      %v7527 = vpop.f32.mrf.mxu0
      %v7528 = vadd.f32 %v7415, %v7527
      %7529 = vmatmul.f32.gmra.mxu0 %v7012
      %v7530 = vpop.f32.mrf.mxu0
      %v7531 = vadd.f32 %v7418, %v7530
      %7532 = vmatmul.f32.gmra.mxu0 %v7014
      %v7533 = vpop.f32.mrf.mxu0
      %v7534 = vadd.f32 %v7421, %v7533
      %7535 = vmatmul.f32.gmra.mxu0 %v7017
      %v7536 = vpop.f32.mrf.mxu0
      %v7537 = vadd.f32 %v7424, %v7536
      %7538 = vmatmul.f32.gmra.mxu0 %v7019
      %v7539 = vpop.f32.mrf.mxu0
      %v7540 = vadd.f32 %v7427, %v7539
      %7541 = vmatmul.f32.gmra.mxu0 %v7022
      %v7542 = vpop.f32.mrf.mxu0
      %v7543 = vadd.f32 %v7430, %v7542
      %7544 = vmatmul.f32.gmra.mxu0 %v7024
      %v7545 = vpop.f32.mrf.mxu0
      %v7546 = vadd.f32 %v7433, %v7545
      %7547 = vmatmul.f32.gmra.mxu0 %v7027
      %v7548 = vpop.f32.mrf.mxu0
      %v7549 = vadd.f32 %v7436, %v7548
      %7550 = vmatmul.f32.gmra.mxu0 %v7029
      %v7551 = vpop.f32.mrf.mxu0
      %v7552 = vadd.f32 %v7439, %v7551
      %7553 = vmatmul.f32.gmra.mxu0 %v7032
      %v7554 = vpop.f32.mrf.mxu0
      %v7555 = vadd.f32 %v7442, %v7554
      %7556 = vmatmul.f32.gmra.mxu0 %v7034
      %v7557 = vpop.f32.mrf.mxu0
      %v7558 = vadd.f32 %v7445, %v7557
      %7559 = vmatmul.f32.gmra.mxu0 %v7037
      %v7560 = vpop.f32.mrf.mxu0
      %v7561 = vadd.f32 %v7448, %v7560
      %7562 = vmatmul.f32.gmra.mxu0 %v7039
      %v7563 = vpop.f32.mrf.mxu0
      %v7564 = vadd.f32 %v7451, %v7563
      %7565 = vdwg.mxu0
      %7566 = vmatpush.msra.mxu0 %v7239
      %7567 = vmatpush.msra.mxu0 %v7238
      %7568 = vmatpush.msra.mxu0 %v7237
      %7569 = vmatpush.msra.mxu0 %v7236
      %7570 = vmatpush.msra.mxu0 %v7235
      %7571 = vmatpush.msra.mxu0 %v7234
      %7572 = vmatpush.msra.mxu0 %v7233
      %7573 = vmatpush.msra.mxu0 %v7232
      %7574 = vmatpush.msra.mxu0 %v7231
      %7575 = vmatpush.msra.mxu0 %v7230
      %7576 = vmatpush.msra.mxu0 %v7229
      %7577 = vmatpush.msra.mxu0 %v7228
      %7578 = vmatpush.msra.mxu0 %v7227
      %7579 = vmatpush.msra.mxu0 %v7226
      %7580 = vmatpush.msra.mxu0 %v7225
      %7581 = vmatpush.msra.mxu0 %v7224
      %7582 = vmatmul.f32.gmra.mxu0 %v692
      %v7583 = vpop.f32.mrf.mxu0
      %v7584 = vadd.f32 %v7471, %v7583
      %7585 = vmatmul.f32.gmra.mxu0 %v692
      %v7586 = vpop.f32.mrf.mxu0
      %v7587 = vadd.f32 %v7474, %v7586
      %7588 = vmatmul.f32.gmra.mxu0 %v7073
      %v7589 = vpop.f32.mrf.mxu0
      %v7590 = vadd.f32 %v7477, %v7589
      %7591 = vmatmul.f32.gmra.mxu0 %v7075
      %v7592 = vpop.f32.mrf.mxu0
      %v7593 = vadd.f32 %v7480, %v7592
      %7594 = vmatmul.f32.gmra.mxu0 %v7078
      %v7595 = vpop.f32.mrf.mxu0
      %v7596 = vadd.f32 %v7483, %v7595
      %7597 = vmatmul.f32.gmra.mxu0 %v7080
      %v7598 = vpop.f32.mrf.mxu0
      %v7599 = vadd.f32 %v7486, %v7598
      %7600 = vmatmul.f32.gmra.mxu0 %v7083
      %v7601 = vpop.f32.mrf.mxu0
      %v7602 = vadd.f32 %v7489, %v7601
      %7603 = vmatmul.f32.gmra.mxu0 %v7085
      %v7604 = vpop.f32.mrf.mxu0
      %v7605 = vadd.f32 %v7492, %v7604
      %7606 = vmatmul.f32.gmra.mxu0 %v7088
      %v7607 = vpop.f32.mrf.mxu0
      %v7608 = vadd.f32 %v7495, %v7607
      %7609 = vmatmul.f32.gmra.mxu0 %v7090
      %v7610 = vpop.f32.mrf.mxu0
      %v7611 = vadd.f32 %v7498, %v7610
      %7612 = vmatmul.f32.gmra.mxu0 %v7093
      %v7613 = vpop.f32.mrf.mxu0
      %v7614 = vadd.f32 %v7501, %v7613
      %7615 = vmatmul.f32.gmra.mxu0 %v7095
      %v7616 = vpop.f32.mrf.mxu0
      %v7617 = vadd.f32 %v7504, %v7616
      %7618 = vmatmul.f32.gmra.mxu0 %v7098
      %v7619 = vpop.f32.mrf.mxu0
      %v7620 = vadd.f32 %v7507, %v7619
      %7621 = vmatmul.f32.gmra.mxu0 %v7100
      %v7622 = vpop.f32.mrf.mxu0
      %v7623 = vadd.f32 %v7510, %v7622
      %7624 = vmatmul.f32.gmra.mxu0 %v7103
      %v7625 = vpop.f32.mrf.mxu0
      %v7626 = vadd.f32 %v7513, %v7625
      %7627 = vmatmul.f32.gmra.mxu0 %v7105
      %v7628 = vpop.f32.mrf.mxu0
      %v7629 = vadd.f32 %v7516, %v7628
      %7630 = vmatmul.f32.gmra.mxu0 %v7108
      %v7631 = vpop.f32.mrf.mxu0
      %v7632 = vadd.f32 %v7519, %v7631
      %7633 = vmatmul.f32.gmra.mxu0 %v7110
      %v7634 = vpop.f32.mrf.mxu0
      %v7635 = vadd.f32 %v7522, %v7634
      %7636 = vmatmul.f32.gmra.mxu0 %v7113
      %v7637 = vpop.f32.mrf.mxu0
      %v7638 = vadd.f32 %v7525, %v7637
      %7639 = vmatmul.f32.gmra.mxu0 %v7115
      %v7640 = vpop.f32.mrf.mxu0
      %v7641 = vadd.f32 %v7528, %v7640
      %7642 = vmatmul.f32.gmra.mxu0 %v7118
      %v7643 = vpop.f32.mrf.mxu0
      %v7644 = vadd.f32 %v7531, %v7643
      %7645 = vmatmul.f32.gmra.mxu0 %v7120
      %v7646 = vpop.f32.mrf.mxu0
      %v7647 = vadd.f32 %v7534, %v7646
      %7648 = vmatmul.f32.gmra.mxu0 %v7123
      %v7649 = vpop.f32.mrf.mxu0
      %v7650 = vadd.f32 %v7537, %v7649
      %7651 = vmatmul.f32.gmra.mxu0 %v7125
      %v7652 = vpop.f32.mrf.mxu0
      %v7653 = vadd.f32 %v7540, %v7652
      %7654 = vmatmul.f32.gmra.mxu0 %v7128
      %v7655 = vpop.f32.mrf.mxu0
      %v7656 = vadd.f32 %v7543, %v7655
      %7657 = vmatmul.f32.gmra.mxu0 %v7130
      %v7658 = vpop.f32.mrf.mxu0
      %v7659 = vadd.f32 %v7546, %v7658
      %7660 = vmatmul.f32.gmra.mxu0 %v7133
      %v7661 = vpop.f32.mrf.mxu0
      %v7662 = vadd.f32 %v7549, %v7661
      %7663 = vmatmul.f32.gmra.mxu0 %v7135
      %v7664 = vpop.f32.mrf.mxu0
      %v7665 = vadd.f32 %v7552, %v7664
      %7666 = vmatmul.f32.gmra.mxu0 %v7138
      %v7667 = vpop.f32.mrf.mxu0
      %v7668 = vadd.f32 %v7555, %v7667
      %7669 = vmatmul.f32.gmra.mxu0 %v7140
      %v7670 = vpop.f32.mrf.mxu0
      %v7671 = vadd.f32 %v7558, %v7670
      %7672 = vmatmul.f32.gmra.mxu0 %v7143
      %v7673 = vpop.f32.mrf.mxu0
      %v7674 = vadd.f32 %v7561, %v7673
      %7675 = vmatmul.f32.gmra.mxu0 %v7145
      %v7676 = vpop.f32.mrf.mxu0
      %v7677 = vadd.f32 %v7564, %v7676
      %7678 = vdwg.mxu0
      %7679 = vmatpush.msra.mxu0 %v7255
      %7680 = vmatpush.msra.mxu0 %v7254
      %7681 = vmatpush.msra.mxu0 %v7253
      %7682 = vmatpush.msra.mxu0 %v7252
      %7683 = vmatpush.msra.mxu0 %v7251
      %7684 = vmatpush.msra.mxu0 %v7250
      %7685 = vmatpush.msra.mxu0 %v7249
      %7686 = vmatpush.msra.mxu0 %v7248
      %7687 = vmatpush.msra.mxu0 %v7247
      %7688 = vmatpush.msra.mxu0 %v7246
      %7689 = vmatpush.msra.mxu0 %v7245
      %7690 = vmatpush.msra.mxu0 %v7244
      %7691 = vmatpush.msra.mxu0 %v7243
      %7692 = vmatpush.msra.mxu0 %v7242
      %7693 = vmatpush.msra.mxu0 %v7241
      %7694 = vmatpush.msra.mxu0 %v7240
      %7695 = vmatmul.f32.gmra.mxu0 %v6903
      %v7696 = vpop.f32.mrf.mxu0
      %v7697 = vadd.f32 %v7584, %v7696
      %7698 = vmatmul.f32.gmra.mxu0 %v6809
      %v7699 = vpop.f32.mrf.mxu0
      %v7700 = vadd.f32 %v7587, %v7699
      %7701 = vmatmul.f32.gmra.mxu0 %v6904
      %v7702 = vpop.f32.mrf.mxu0
      %v7703 = vadd.f32 %v7590, %v7702
      %7704 = vmatmul.f32.gmra.mxu0 %v6812
      %v7705 = vpop.f32.mrf.mxu0
      %v7706 = vadd.f32 %v7593, %v7705
      %7707 = vmatmul.f32.gmra.mxu0 %v6905
      %v7708 = vpop.f32.mrf.mxu0
      %v7709 = vadd.f32 %v7596, %v7708
      %7710 = vmatmul.f32.gmra.mxu0 %v6815
      %v7711 = vpop.f32.mrf.mxu0
      %v7712 = vadd.f32 %v7599, %v7711
      %7713 = vmatmul.f32.gmra.mxu0 %v6906
      %v7714 = vpop.f32.mrf.mxu0
      %v7715 = vadd.f32 %v7602, %v7714
      %7716 = vmatmul.f32.gmra.mxu0 %v6818
      %v7717 = vpop.f32.mrf.mxu0
      %v7718 = vadd.f32 %v7605, %v7717
      %7719 = vmatmul.f32.gmra.mxu0 %v6907
      %v7720 = vpop.f32.mrf.mxu0
      %v7721 = vadd.f32 %v7608, %v7720
      %7722 = vmatmul.f32.gmra.mxu0 %v6821
      %v7723 = vpop.f32.mrf.mxu0
      %v7724 = vadd.f32 %v7611, %v7723
      %7725 = vmatmul.f32.gmra.mxu0 %v6908
      %v7726 = vpop.f32.mrf.mxu0
      %v7727 = vadd.f32 %v7614, %v7726
      %7728 = vmatmul.f32.gmra.mxu0 %v6824
      %v7729 = vpop.f32.mrf.mxu0
      %v7730 = vadd.f32 %v7617, %v7729
      %7731 = vmatmul.f32.gmra.mxu0 %v6909
      %v7732 = vpop.f32.mrf.mxu0
      %v7733 = vadd.f32 %v7620, %v7732
      %7734 = vmatmul.f32.gmra.mxu0 %v6827
      %v7735 = vpop.f32.mrf.mxu0
      %v7736 = vadd.f32 %v7623, %v7735
      %7737 = vmatmul.f32.gmra.mxu0 %v6910
      %v7738 = vpop.f32.mrf.mxu0
      %v7739 = vadd.f32 %v7626, %v7738
      %7740 = vmatmul.f32.gmra.mxu0 %v6830
      %v7741 = vpop.f32.mrf.mxu0
      %v7742 = vadd.f32 %v7629, %v7741
      %7743 = vmatmul.f32.gmra.mxu0 %v6911
      %v7744 = vpop.f32.mrf.mxu0
      %v7745 = vadd.f32 %v7632, %v7744
      %7746 = vmatmul.f32.gmra.mxu0 %v6833
      %v7747 = vpop.f32.mrf.mxu0
      %v7748 = vadd.f32 %v7635, %v7747
      %7749 = vmatmul.f32.gmra.mxu0 %v6912
      %v7750 = vpop.f32.mrf.mxu0
      %v7751 = vadd.f32 %v7638, %v7750
      %7752 = vmatmul.f32.gmra.mxu0 %v6836
      %v7753 = vpop.f32.mrf.mxu0
      %v7754 = vadd.f32 %v7641, %v7753
      %7755 = vmatmul.f32.gmra.mxu0 %v6913
      %v7756 = vpop.f32.mrf.mxu0
      %v7757 = vadd.f32 %v7644, %v7756
      %7758 = vmatmul.f32.gmra.mxu0 %v6839
      %v7759 = vpop.f32.mrf.mxu0
      %v7760 = vadd.f32 %v7647, %v7759
      %7761 = vmatmul.f32.gmra.mxu0 %v6914
      %v7762 = vpop.f32.mrf.mxu0
      %v7763 = vadd.f32 %v7650, %v7762
      %7764 = vmatmul.f32.gmra.mxu0 %v6842
      %v7765 = vpop.f32.mrf.mxu0
      %v7766 = vadd.f32 %v7653, %v7765
      %7767 = vmatmul.f32.gmra.mxu0 %v6915
      %v7768 = vpop.f32.mrf.mxu0
      %v7769 = vadd.f32 %v7656, %v7768
      %7770 = vmatmul.f32.gmra.mxu0 %v6845
      %v7771 = vpop.f32.mrf.mxu0
      %v7772 = vadd.f32 %v7659, %v7771
      %7773 = vmatmul.f32.gmra.mxu0 %v6916
      %v7774 = vpop.f32.mrf.mxu0
      %v7775 = vadd.f32 %v7662, %v7774
      %7776 = vmatmul.f32.gmra.mxu0 %v6848
      %v7777 = vpop.f32.mrf.mxu0
      %v7778 = vadd.f32 %v7665, %v7777
      %7779 = vmatmul.f32.gmra.mxu0 %v6917
      %v7780 = vpop.f32.mrf.mxu0
      %v7781 = vadd.f32 %v7668, %v7780
      %7782 = vmatmul.f32.gmra.mxu0 %v6851
      %v7783 = vpop.f32.mrf.mxu0
      %v7784 = vadd.f32 %v7671, %v7783
      %7785 = vmatmul.f32.gmra.mxu0 %v6918
      %v7786 = vpop.f32.mrf.mxu0
      %v7787 = vadd.f32 %v7674, %v7786
      %7788 = vmatmul.f32.gmra.mxu0 %v6854
      %v7789 = vpop.f32.mrf.mxu0
      %v7790 = vadd.f32 %v7677, %v7789
      %7791 = vdwg.mxu0
      %7792 = vmatpush.msra.mxu0 %v7271
      %7793 = vmatpush.msra.mxu0 %v7270
      %7794 = vmatpush.msra.mxu0 %v7269
      %7795 = vmatpush.msra.mxu0 %v7268
      %7796 = vmatpush.msra.mxu0 %v7267
      %7797 = vmatpush.msra.mxu0 %v7266
      %7798 = vmatpush.msra.mxu0 %v7265
      %7799 = vmatpush.msra.mxu0 %v7264
      %7800 = vmatpush.msra.mxu0 %v7263
      %7801 = vmatpush.msra.mxu0 %v7262
      %7802 = vmatpush.msra.mxu0 %v7261
      %7803 = vmatpush.msra.mxu0 %v7260
      %7804 = vmatpush.msra.mxu0 %v7259
      %7805 = vmatpush.msra.mxu0 %v7258
      %7806 = vmatpush.msra.mxu0 %v7257
      %7807 = vmatpush.msra.mxu0 %v7256
      %7808 = vmatmul.f32.gmra.mxu0 %v6967
      %v7809 = vpop.f32.mrf.mxu0
      %v7810 = vadd.f32 %v7697, %v7809
      %7811 = vmatmul.f32.gmra.mxu0 %v6969
      %v7812 = vpop.f32.mrf.mxu0
      %v7813 = vadd.f32 %v7700, %v7812
      %7814 = vmatmul.f32.gmra.mxu0 %v6972
      %v7815 = vpop.f32.mrf.mxu0
      %v7816 = vadd.f32 %v7703, %v7815
      %7817 = vmatmul.f32.gmra.mxu0 %v6974
      %v7818 = vpop.f32.mrf.mxu0
      %v7819 = vadd.f32 %v7706, %v7818
      %7820 = vmatmul.f32.gmra.mxu0 %v6977
      %v7821 = vpop.f32.mrf.mxu0
      %v7822 = vadd.f32 %v7709, %v7821
      %7823 = vmatmul.f32.gmra.mxu0 %v6979
      %v7824 = vpop.f32.mrf.mxu0
      %v7825 = vadd.f32 %v7712, %v7824
      %7826 = vmatmul.f32.gmra.mxu0 %v6982
      %v7827 = vpop.f32.mrf.mxu0
      %v7828 = vadd.f32 %v7715, %v7827
      %7829 = vmatmul.f32.gmra.mxu0 %v6984
      %v7830 = vpop.f32.mrf.mxu0
      %v7831 = vadd.f32 %v7718, %v7830
      %7832 = vmatmul.f32.gmra.mxu0 %v6987
      %v7833 = vpop.f32.mrf.mxu0
      %v7834 = vadd.f32 %v7721, %v7833
      %7835 = vmatmul.f32.gmra.mxu0 %v6989
      %v7836 = vpop.f32.mrf.mxu0
      %v7837 = vadd.f32 %v7724, %v7836
      %7838 = vmatmul.f32.gmra.mxu0 %v6992
      %v7839 = vpop.f32.mrf.mxu0
      %v7840 = vadd.f32 %v7727, %v7839
      %7841 = vmatmul.f32.gmra.mxu0 %v6994
      %v7842 = vpop.f32.mrf.mxu0
      %v7843 = vadd.f32 %v7730, %v7842
      %7844 = vmatmul.f32.gmra.mxu0 %v6997
      %v7845 = vpop.f32.mrf.mxu0
      %v7846 = vadd.f32 %v7733, %v7845
      %7847 = vmatmul.f32.gmra.mxu0 %v6999
      %v7848 = vpop.f32.mrf.mxu0
      %v7849 = vadd.f32 %v7736, %v7848
      %7850 = vmatmul.f32.gmra.mxu0 %v7002
      %v7851 = vpop.f32.mrf.mxu0
      %v7852 = vadd.f32 %v7739, %v7851
      %7853 = vmatmul.f32.gmra.mxu0 %v7004
      %v7854 = vpop.f32.mrf.mxu0
      %v7855 = vadd.f32 %v7742, %v7854
      %7856 = vmatmul.f32.gmra.mxu0 %v7007
      %v7857 = vpop.f32.mrf.mxu0
      %v7858 = vadd.f32 %v7745, %v7857
      %7859 = vmatmul.f32.gmra.mxu0 %v7009
      %v7860 = vpop.f32.mrf.mxu0
      %v7861 = vadd.f32 %v7748, %v7860
      %7862 = vmatmul.f32.gmra.mxu0 %v7012
      %v7863 = vpop.f32.mrf.mxu0
      %v7864 = vadd.f32 %v7751, %v7863
      %7865 = vmatmul.f32.gmra.mxu0 %v7014
      %v7866 = vpop.f32.mrf.mxu0
      %v7867 = vadd.f32 %v7754, %v7866
      %7868 = vmatmul.f32.gmra.mxu0 %v7017
      %v7869 = vpop.f32.mrf.mxu0
      %v7870 = vadd.f32 %v7757, %v7869
      %7871 = vmatmul.f32.gmra.mxu0 %v7019
      %v7872 = vpop.f32.mrf.mxu0
      %v7873 = vadd.f32 %v7760, %v7872
      %7874 = vmatmul.f32.gmra.mxu0 %v7022
      %v7875 = vpop.f32.mrf.mxu0
      %v7876 = vadd.f32 %v7763, %v7875
      %7877 = vmatmul.f32.gmra.mxu0 %v7024
      %v7878 = vpop.f32.mrf.mxu0
      %v7879 = vadd.f32 %v7766, %v7878
      %7880 = vmatmul.f32.gmra.mxu0 %v7027
      %v7881 = vpop.f32.mrf.mxu0
      %v7882 = vadd.f32 %v7769, %v7881
      %7883 = vmatmul.f32.gmra.mxu0 %v7029
      %v7884 = vpop.f32.mrf.mxu0
      %v7885 = vadd.f32 %v7772, %v7884
      %7886 = vmatmul.f32.gmra.mxu0 %v7032
      %v7887 = vpop.f32.mrf.mxu0
      %v7888 = vadd.f32 %v7775, %v7887
      %7889 = vmatmul.f32.gmra.mxu0 %v7034
      %v7890 = vpop.f32.mrf.mxu0
      %v7891 = vadd.f32 %v7778, %v7890
      %7892 = vmatmul.f32.gmra.mxu0 %v7037
      %v7893 = vpop.f32.mrf.mxu0
      %v7894 = vadd.f32 %v7781, %v7893
      %7895 = vmatmul.f32.gmra.mxu0 %v7039
      %v7896 = vpop.f32.mrf.mxu0
      %v7897 = vadd.f32 %v7784, %v7896
      %7898 = vmatmul.f32.gmra.mxu0 %v7180
      %v7899 = vpop.f32.mrf.mxu0
      %v7900 = vadd.f32 %v7787, %v7899
      %7901 = vmatmul.f32.gmra.mxu0 %v7182
      %v7902 = vpop.f32.mrf.mxu0
      %v7903 = vadd.f32 %v7790, %v7902
      %7904 = vdwg.mxu0
      %7905 = vmatpush.msra.mxu0 %v7287
      %7906 = vmatpush.msra.mxu0 %v7286
      %7907 = vmatpush.msra.mxu0 %v7285
      %7908 = vmatpush.msra.mxu0 %v7284
      %7909 = vmatpush.msra.mxu0 %v7283
      %7910 = vmatpush.msra.mxu0 %v7282
      %7911 = vmatpush.msra.mxu0 %v7281
      %7912 = vmatpush.msra.mxu0 %v7280
      %7913 = vmatpush.msra.mxu0 %v7279
      %7914 = vmatpush.msra.mxu0 %v7278
      %7915 = vmatpush.msra.mxu0 %v7277
      %7916 = vmatpush.msra.mxu0 %v7276
      %7917 = vmatpush.msra.mxu0 %v7275
      %7918 = vmatpush.msra.mxu0 %v7274
      %7919 = vmatpush.msra.mxu0 %v7273
      %7920 = vmatpush.msra.mxu0 %v7272
      %7921 = vmatmul.f32.gmra.mxu0 %v7073
      %v7922 = vpop.f32.mrf.mxu0
      %v7923 = vadd.f32 %v7810, %v7922
      %7924 = vmatmul.f32.gmra.mxu0 %v7075
      %v7925 = vpop.f32.mrf.mxu0
      %v7926 = vadd.f32 %v7813, %v7925
      %7927 = vmatmul.f32.gmra.mxu0 %v7078
      %v7928 = vpop.f32.mrf.mxu0
      %v7929 = vadd.f32 %v7816, %v7928
      %7930 = vmatmul.f32.gmra.mxu0 %v7080
      %v7931 = vpop.f32.mrf.mxu0
      %v7932 = vadd.f32 %v7819, %v7931
      %7933 = vmatmul.f32.gmra.mxu0 %v7083
      %v7934 = vpop.f32.mrf.mxu0
      %v7935 = vadd.f32 %v7822, %v7934
      %7936 = vmatmul.f32.gmra.mxu0 %v7085
      %v7937 = vpop.f32.mrf.mxu0
      %v7938 = vadd.f32 %v7825, %v7937
      %7939 = vmatmul.f32.gmra.mxu0 %v7088
      %v7940 = vpop.f32.mrf.mxu0
      %v7941 = vadd.f32 %v7828, %v7940
      %7942 = vmatmul.f32.gmra.mxu0 %v7090
      %v7943 = vpop.f32.mrf.mxu0
      %v7944 = vadd.f32 %v7831, %v7943
      %7945 = vmatmul.f32.gmra.mxu0 %v7093
      %v7946 = vpop.f32.mrf.mxu0
      %v7947 = vadd.f32 %v7834, %v7946
      %7948 = vmatmul.f32.gmra.mxu0 %v7095
      %v7949 = vpop.f32.mrf.mxu0
      %v7950 = vadd.f32 %v7837, %v7949
      %7951 = vmatmul.f32.gmra.mxu0 %v7098
      %v7952 = vpop.f32.mrf.mxu0
      %v7953 = vadd.f32 %v7840, %v7952
      %7954 = vmatmul.f32.gmra.mxu0 %v7100
      %v7955 = vpop.f32.mrf.mxu0
      %v7956 = vadd.f32 %v7843, %v7955
      %7957 = vmatmul.f32.gmra.mxu0 %v7103
      %v7958 = vpop.f32.mrf.mxu0
      %v7959 = vadd.f32 %v7846, %v7958
      %7960 = vmatmul.f32.gmra.mxu0 %v7105
      %v7961 = vpop.f32.mrf.mxu0
      %v7962 = vadd.f32 %v7849, %v7961
      %7963 = vmatmul.f32.gmra.mxu0 %v7108
      %v7964 = vpop.f32.mrf.mxu0
      %v7965 = vadd.f32 %v7852, %v7964
      %7966 = vmatmul.f32.gmra.mxu0 %v7110
      %v7967 = vpop.f32.mrf.mxu0
      %v7968 = vadd.f32 %v7855, %v7967
      %7969 = vmatmul.f32.gmra.mxu0 %v7113
      %v7970 = vpop.f32.mrf.mxu0
      %v7971 = vadd.f32 %v7858, %v7970
      %7972 = vmatmul.f32.gmra.mxu0 %v7115
      %v7973 = vpop.f32.mrf.mxu0
      %v7974 = vadd.f32 %v7861, %v7973
      %7975 = vmatmul.f32.gmra.mxu0 %v7118
      %v7976 = vpop.f32.mrf.mxu0
      %v7977 = vadd.f32 %v7864, %v7976
      %7978 = vmatmul.f32.gmra.mxu0 %v7120
      %v7979 = vpop.f32.mrf.mxu0
      %v7980 = vadd.f32 %v7867, %v7979
      %7981 = vmatmul.f32.gmra.mxu0 %v7123
      %v7982 = vpop.f32.mrf.mxu0
      %v7983 = vadd.f32 %v7870, %v7982
      %7984 = vmatmul.f32.gmra.mxu0 %v7125
      %v7985 = vpop.f32.mrf.mxu0
      %v7986 = vadd.f32 %v7873, %v7985
      %7987 = vmatmul.f32.gmra.mxu0 %v7128
      %v7988 = vpop.f32.mrf.mxu0
      %v7989 = vadd.f32 %v7876, %v7988
      %7990 = vmatmul.f32.gmra.mxu0 %v7130
      %v7991 = vpop.f32.mrf.mxu0
      %v7992 = vadd.f32 %v7879, %v7991
      %7993 = vmatmul.f32.gmra.mxu0 %v7133
      %v7994 = vpop.f32.mrf.mxu0
      %v7995 = vadd.f32 %v7882, %v7994
      %7996 = vmatmul.f32.gmra.mxu0 %v7135
      %v7997 = vpop.f32.mrf.mxu0
      %v7998 = vadd.f32 %v7885, %v7997
      %7999 = vmatmul.f32.gmra.mxu0 %v7138
      %v8000 = vpop.f32.mrf.mxu0
      %v8001 = vadd.f32 %v7888, %v8000
      %8002 = vmatmul.f32.gmra.mxu0 %v7140
      %v8003 = vpop.f32.mrf.mxu0
      %v8004 = vadd.f32 %v7891, %v8003
      %8005 = vmatmul.f32.gmra.mxu0 %v7143
      %v8006 = vpop.f32.mrf.mxu0
      %v8007 = vadd.f32 %v7894, %v8006
      %8008 = vmatmul.f32.gmra.mxu0 %v7145
      %v8009 = vpop.f32.mrf.mxu0
      %v8010 = vadd.f32 %v7897, %v8009
      %8011 = vmatmul.f32.gmra.mxu0 %v7187
      %v8012 = vpop.f32.mrf.mxu0
      %v8013 = vadd.f32 %v7900, %v8012
      %8014 = vmatmul.f32.gmra.mxu0 %v7189
      %v8015 = vpop.f32.mrf.mxu0
      %v8016 = vadd.f32 %v7903, %v8015
      %8017 = vdwg.mxu0
      %8018 = vmatpush.msra.mxu0 %v7303
      %8019 = vmatpush.msra.mxu0 %v7302
      %8020 = vmatpush.msra.mxu0 %v7301
      %8021 = vmatpush.msra.mxu0 %v7300
      %8022 = vmatpush.msra.mxu0 %v7299
      %8023 = vmatpush.msra.mxu0 %v7298
      %8024 = vmatpush.msra.mxu0 %v7297
      %8025 = vmatpush.msra.mxu0 %v7296
      %8026 = vmatpush.msra.mxu0 %v7295
      %8027 = vmatpush.msra.mxu0 %v7294
      %8028 = vmatpush.msra.mxu0 %v7293
      %8029 = vmatpush.msra.mxu0 %v7292
      %8030 = vmatpush.msra.mxu0 %v7291
      %8031 = vmatpush.msra.mxu0 %v7290
      %8032 = vmatpush.msra.mxu0 %v7289
      %8033 = vmatpush.msra.mxu0 %v7288
      %8034 = vmatmul.f32.gmra.mxu0 %v6904
      %v8035 = vpop.f32.mrf.mxu0
      %v8036 = vadd.f32 %v7923, %v8035
      %8037 = vmatmul.f32.gmra.mxu0 %v6812
      %v8038 = vpop.f32.mrf.mxu0
      %v8039 = vadd.f32 %v7926, %v8038
      %8040 = vmatmul.f32.gmra.mxu0 %v6905
      %v8041 = vpop.f32.mrf.mxu0
      %v8042 = vadd.f32 %v7929, %v8041
      %8043 = vmatmul.f32.gmra.mxu0 %v6815
      %v8044 = vpop.f32.mrf.mxu0
      %v8045 = vadd.f32 %v7932, %v8044
      %8046 = vmatmul.f32.gmra.mxu0 %v6906
      %v8047 = vpop.f32.mrf.mxu0
      %v8048 = vadd.f32 %v7935, %v8047
      %8049 = vmatmul.f32.gmra.mxu0 %v6818
      %v8050 = vpop.f32.mrf.mxu0
      %v8051 = vadd.f32 %v7938, %v8050
      %8052 = vmatmul.f32.gmra.mxu0 %v6907
      %v8053 = vpop.f32.mrf.mxu0
      %v8054 = vadd.f32 %v7941, %v8053
      %8055 = vmatmul.f32.gmra.mxu0 %v6821
      %v8056 = vpop.f32.mrf.mxu0
      %v8057 = vadd.f32 %v7944, %v8056
      %8058 = vmatmul.f32.gmra.mxu0 %v6908
      %v8059 = vpop.f32.mrf.mxu0
      %v8060 = vadd.f32 %v7947, %v8059
      %8061 = vmatmul.f32.gmra.mxu0 %v6824
      %v8062 = vpop.f32.mrf.mxu0
      %v8063 = vadd.f32 %v7950, %v8062
      %8064 = vmatmul.f32.gmra.mxu0 %v6909
      %v8065 = vpop.f32.mrf.mxu0
      %v8066 = vadd.f32 %v7953, %v8065
      %8067 = vmatmul.f32.gmra.mxu0 %v6827
      %v8068 = vpop.f32.mrf.mxu0
      %v8069 = vadd.f32 %v7956, %v8068
      %8070 = vmatmul.f32.gmra.mxu0 %v6910
      %v8071 = vpop.f32.mrf.mxu0
      %v8072 = vadd.f32 %v7959, %v8071
      %8073 = vmatmul.f32.gmra.mxu0 %v6830
      %v8074 = vpop.f32.mrf.mxu0
      %v8075 = vadd.f32 %v7962, %v8074
      %8076 = vmatmul.f32.gmra.mxu0 %v6911
      %v8077 = vpop.f32.mrf.mxu0
      %v8078 = vadd.f32 %v7965, %v8077
      %8079 = vmatmul.f32.gmra.mxu0 %v6833
      %v8080 = vpop.f32.mrf.mxu0
      %v8081 = vadd.f32 %v7968, %v8080
      %8082 = vmatmul.f32.gmra.mxu0 %v6912
      %v8083 = vpop.f32.mrf.mxu0
      %v8084 = vadd.f32 %v7971, %v8083
      %8085 = vmatmul.f32.gmra.mxu0 %v6836
      %v8086 = vpop.f32.mrf.mxu0
      %v8087 = vadd.f32 %v7974, %v8086
      %8088 = vmatmul.f32.gmra.mxu0 %v6913
      %v8089 = vpop.f32.mrf.mxu0
      %v8090 = vadd.f32 %v7977, %v8089
      %8091 = vmatmul.f32.gmra.mxu0 %v6839
      %v8092 = vpop.f32.mrf.mxu0
      %v8093 = vadd.f32 %v7980, %v8092
      %8094 = vmatmul.f32.gmra.mxu0 %v6914
      %v8095 = vpop.f32.mrf.mxu0
      %v8096 = vadd.f32 %v7983, %v8095
      %8097 = vmatmul.f32.gmra.mxu0 %v6842
      %v8098 = vpop.f32.mrf.mxu0
      %v8099 = vadd.f32 %v7986, %v8098
      %8100 = vmatmul.f32.gmra.mxu0 %v6915
      %v8101 = vpop.f32.mrf.mxu0
      %v8102 = vadd.f32 %v7989, %v8101
      %8103 = vmatmul.f32.gmra.mxu0 %v6845
      %v8104 = vpop.f32.mrf.mxu0
      %v8105 = vadd.f32 %v7992, %v8104
      %8106 = vmatmul.f32.gmra.mxu0 %v6916
      %v8107 = vpop.f32.mrf.mxu0
      %v8108 = vadd.f32 %v7995, %v8107
      %8109 = vmatmul.f32.gmra.mxu0 %v6848
      %v8110 = vpop.f32.mrf.mxu0
      %v8111 = vadd.f32 %v7998, %v8110
      %8112 = vmatmul.f32.gmra.mxu0 %v6917
      %v8113 = vpop.f32.mrf.mxu0
      %v8114 = vadd.f32 %v8001, %v8113
      %8115 = vmatmul.f32.gmra.mxu0 %v6851
      %v8116 = vpop.f32.mrf.mxu0
      %v8117 = vadd.f32 %v8004, %v8116
      %8118 = vmatmul.f32.gmra.mxu0 %v6918
      %v8119 = vpop.f32.mrf.mxu0
      %v8120 = vadd.f32 %v8007, %v8119
      %8121 = vmatmul.f32.gmra.mxu0 %v6854
      %v8122 = vpop.f32.mrf.mxu0
      %v8123 = vadd.f32 %v8010, %v8122
      %8124 = vmatmul.f32.gmra.mxu0 0.0
      %v8125 = vpop.f32.mrf.mxu0
      %v8126 = vadd.f32 %v8013, %v8125
      %8127 = vmatmul.f32.gmra.mxu0 0.0
      %v8128 = vpop.f32.mrf.mxu0
      %v8129 = vadd.f32 %v8016, %v8128
      %8130 = vdwg.mxu0
      %8131 = vmatpush.msra.mxu0 %v7319
      %8132 = vmatpush.msra.mxu0 %v7318
      %8133 = vmatpush.msra.mxu0 %v7317
      %8134 = vmatpush.msra.mxu0 %v7316
      %8135 = vmatpush.msra.mxu0 %v7315
      %8136 = vmatpush.msra.mxu0 %v7314
      %8137 = vmatpush.msra.mxu0 %v7313
      %8138 = vmatpush.msra.mxu0 %v7312
      %8139 = vmatpush.msra.mxu0 %v7311
      %8140 = vmatpush.msra.mxu0 %v7310
      %8141 = vmatpush.msra.mxu0 %v7309
      %8142 = vmatpush.msra.mxu0 %v7308
      %8143 = vmatpush.msra.mxu0 %v7307
      %8144 = vmatpush.msra.mxu0 %v7306
      %8145 = vmatpush.msra.mxu0 %v7305
      %8146 = vmatpush.msra.mxu0 %v7304
      %8147 = vmatmul.f32.gmra.mxu0 %v6972
      %v8148 = vpop.f32.mrf.mxu0
      %v8149 = vadd.f32 %v8036, %v8148
      %8150 = vmatmul.f32.gmra.mxu0 %v6974
      %v8151 = vpop.f32.mrf.mxu0
      %v8152 = vadd.f32 %v8039, %v8151
      %8153 = vmatmul.f32.gmra.mxu0 %v6977
      %v8154 = vpop.f32.mrf.mxu0
      %v8155 = vadd.f32 %v8042, %v8154
      %8156 = vmatmul.f32.gmra.mxu0 %v6979
      %v8157 = vpop.f32.mrf.mxu0
      %v8158 = vadd.f32 %v8045, %v8157
      %8159 = vmatmul.f32.gmra.mxu0 %v6982
      %v8160 = vpop.f32.mrf.mxu0
      %v8161 = vadd.f32 %v8048, %v8160
      %8162 = vmatmul.f32.gmra.mxu0 %v6984
      %v8163 = vpop.f32.mrf.mxu0
      %v8164 = vadd.f32 %v8051, %v8163
      %8165 = vmatmul.f32.gmra.mxu0 %v6987
      %v8166 = vpop.f32.mrf.mxu0
      %v8167 = vadd.f32 %v8054, %v8166
      %8168 = vmatmul.f32.gmra.mxu0 %v6989
      %v8169 = vpop.f32.mrf.mxu0
      %v8170 = vadd.f32 %v8057, %v8169
      %8171 = vmatmul.f32.gmra.mxu0 %v6992
      %v8172 = vpop.f32.mrf.mxu0
      %v8173 = vadd.f32 %v8060, %v8172
      %8174 = vmatmul.f32.gmra.mxu0 %v6994
      %v8175 = vpop.f32.mrf.mxu0
      %v8176 = vadd.f32 %v8063, %v8175
      %8177 = vmatmul.f32.gmra.mxu0 %v6997
      %v8178 = vpop.f32.mrf.mxu0
      %v8179 = vadd.f32 %v8066, %v8178
      %8180 = vmatmul.f32.gmra.mxu0 %v6999
      %v8181 = vpop.f32.mrf.mxu0
      %v8182 = vadd.f32 %v8069, %v8181
      %8183 = vmatmul.f32.gmra.mxu0 %v7002
      %v8184 = vpop.f32.mrf.mxu0
      %v8185 = vadd.f32 %v8072, %v8184
      %8186 = vmatmul.f32.gmra.mxu0 %v7004
      %v8187 = vpop.f32.mrf.mxu0
      %v8188 = vadd.f32 %v8075, %v8187
      %8189 = vmatmul.f32.gmra.mxu0 %v7007
      %v8190 = vpop.f32.mrf.mxu0
      %v8191 = vadd.f32 %v8078, %v8190
      %8192 = vmatmul.f32.gmra.mxu0 %v7009
      %v8193 = vpop.f32.mrf.mxu0
      %v8194 = vadd.f32 %v8081, %v8193
      %8195 = vmatmul.f32.gmra.mxu0 %v7012
      %v8196 = vpop.f32.mrf.mxu0
      %v8197 = vadd.f32 %v8084, %v8196
      %8198 = vmatmul.f32.gmra.mxu0 %v7014
      %v8199 = vpop.f32.mrf.mxu0
      %v8200 = vadd.f32 %v8087, %v8199
      %8201 = vmatmul.f32.gmra.mxu0 %v7017
      %v8202 = vpop.f32.mrf.mxu0
      %v8203 = vadd.f32 %v8090, %v8202
      %8204 = vmatmul.f32.gmra.mxu0 %v7019
      %v8205 = vpop.f32.mrf.mxu0
      %v8206 = vadd.f32 %v8093, %v8205
      %8207 = vmatmul.f32.gmra.mxu0 %v7022
      %v8208 = vpop.f32.mrf.mxu0
      %v8209 = vadd.f32 %v8096, %v8208
      %8210 = vmatmul.f32.gmra.mxu0 %v7024
      %v8211 = vpop.f32.mrf.mxu0
      %v8212 = vadd.f32 %v8099, %v8211
      %8213 = vmatmul.f32.gmra.mxu0 %v7027
      %v8214 = vpop.f32.mrf.mxu0
      %v8215 = vadd.f32 %v8102, %v8214
      %8216 = vmatmul.f32.gmra.mxu0 %v7029
      %v8217 = vpop.f32.mrf.mxu0
      %v8218 = vadd.f32 %v8105, %v8217
      %8219 = vmatmul.f32.gmra.mxu0 %v7032
      %v8220 = vpop.f32.mrf.mxu0
      %v8221 = vadd.f32 %v8108, %v8220
      %8222 = vmatmul.f32.gmra.mxu0 %v7034
      %v8223 = vpop.f32.mrf.mxu0
      %v8224 = vadd.f32 %v8111, %v8223
      %8225 = vmatmul.f32.gmra.mxu0 %v7037
      %v8226 = vpop.f32.mrf.mxu0
      %v8227 = vadd.f32 %v8114, %v8226
      %8228 = vmatmul.f32.gmra.mxu0 %v7039
      %v8229 = vpop.f32.mrf.mxu0
      %v8230 = vadd.f32 %v8117, %v8229
      %8231 = vmatmul.f32.gmra.mxu0 %v7180
      %v8232 = vpop.f32.mrf.mxu0
      %v8233 = vadd.f32 %v8120, %v8232
      %8234 = vmatmul.f32.gmra.mxu0 %v7182
      %v8235 = vpop.f32.mrf.mxu0
      %v8236 = vadd.f32 %v8123, %v8235
      %8237 = vmatmul.f32.gmra.mxu0 %v614
      %v8238 = vpop.f32.mrf.mxu0
      %v8239 = vadd.f32 %v8126, %v8238
      %8240 = vmatmul.f32.gmra.mxu0 %v614
      %v8241 = vpop.f32.mrf.mxu0
      %v8242 = vadd.f32 %v8129, %v8241
      %8243 = vdwg.mxu0
      %8244 = vmatpush.msra.mxu0 %v7335
      %8245 = vmatpush.msra.mxu0 %v7334
      %8246 = vmatpush.msra.mxu0 %v7333
      %8247 = vmatpush.msra.mxu0 %v7332
      %8248 = vmatpush.msra.mxu0 %v7331
      %8249 = vmatpush.msra.mxu0 %v7330
      %8250 = vmatpush.msra.mxu0 %v7329
      %8251 = vmatpush.msra.mxu0 %v7328
      %8252 = vmatpush.msra.mxu0 %v7327
      %8253 = vmatpush.msra.mxu0 %v7326
      %8254 = vmatpush.msra.mxu0 %v7325
      %8255 = vmatpush.msra.mxu0 %v7324
      %8256 = vmatpush.msra.mxu0 %v7323
      %8257 = vmatpush.msra.mxu0 %v7322
      %8258 = vmatpush.msra.mxu0 %v7321
      %8259 = vmatpush.msra.mxu0 %v7320
      %8260 = vmatmul.f32.gmra.mxu0 %v7078
      %v8261 = vpop.f32.mrf.mxu0
      %v8262 = vadd.f32 %v8149, %v8261
      %8263 = vmatmul.f32.gmra.mxu0 %v7080
      %v8264 = vpop.f32.mrf.mxu0
      %v8265 = vadd.f32 %v8152, %v8264
      %8266 = vmatmul.f32.gmra.mxu0 %v7083
      %v8267 = vpop.f32.mrf.mxu0
      %v8268 = vadd.f32 %v8155, %v8267
      %8269 = vmatmul.f32.gmra.mxu0 %v7085
      %v8270 = vpop.f32.mrf.mxu0
      %v8271 = vadd.f32 %v8158, %v8270
      %8272 = vmatmul.f32.gmra.mxu0 %v7088
      %v8273 = vpop.f32.mrf.mxu0
      %v8274 = vadd.f32 %v8161, %v8273
      %8275 = vmatmul.f32.gmra.mxu0 %v7090
      %v8276 = vpop.f32.mrf.mxu0
      %v8277 = vadd.f32 %v8164, %v8276
      %8278 = vmatmul.f32.gmra.mxu0 %v7093
      %v8279 = vpop.f32.mrf.mxu0
      %v8280 = vadd.f32 %v8167, %v8279
      %8281 = vmatmul.f32.gmra.mxu0 %v7095
      %v8282 = vpop.f32.mrf.mxu0
      %v8283 = vadd.f32 %v8170, %v8282
      %8284 = vmatmul.f32.gmra.mxu0 %v7098
      %v8285 = vpop.f32.mrf.mxu0
      %v8286 = vadd.f32 %v8173, %v8285
      %8287 = vmatmul.f32.gmra.mxu0 %v7100
      %v8288 = vpop.f32.mrf.mxu0
      %v8289 = vadd.f32 %v8176, %v8288
      %8290 = vmatmul.f32.gmra.mxu0 %v7103
      %v8291 = vpop.f32.mrf.mxu0
      %v8292 = vadd.f32 %v8179, %v8291
      %8293 = vmatmul.f32.gmra.mxu0 %v7105
      %v8294 = vpop.f32.mrf.mxu0
      %v8295 = vadd.f32 %v8182, %v8294
      %8296 = vmatmul.f32.gmra.mxu0 %v7108
      %v8297 = vpop.f32.mrf.mxu0
      %v8298 = vadd.f32 %v8185, %v8297
      %8299 = vmatmul.f32.gmra.mxu0 %v7110
      %v8300 = vpop.f32.mrf.mxu0
      %v8301 = vadd.f32 %v8188, %v8300
      %8302 = vmatmul.f32.gmra.mxu0 %v7113
      %v8303 = vpop.f32.mrf.mxu0
      %v8304 = vadd.f32 %v8191, %v8303
      %8305 = vmatmul.f32.gmra.mxu0 %v7115
      %v8306 = vpop.f32.mrf.mxu0
      %v8307 = vadd.f32 %v8194, %v8306
      %8308 = vmatmul.f32.gmra.mxu0 %v7118
      %v8309 = vpop.f32.mrf.mxu0
      %v8310 = vadd.f32 %v8197, %v8309
      %8311 = vmatmul.f32.gmra.mxu0 %v7120
      %v8312 = vpop.f32.mrf.mxu0
      %v8313 = vadd.f32 %v8200, %v8312
      %8314 = vmatmul.f32.gmra.mxu0 %v7123
      %v8315 = vpop.f32.mrf.mxu0
      %v8316 = vadd.f32 %v8203, %v8315
      %8317 = vmatmul.f32.gmra.mxu0 %v7125
      %v8318 = vpop.f32.mrf.mxu0
      %v8319 = vadd.f32 %v8206, %v8318
      %8320 = vmatmul.f32.gmra.mxu0 %v7128
      %v8321 = vpop.f32.mrf.mxu0
      %v8322 = vadd.f32 %v8209, %v8321
      %8323 = vmatmul.f32.gmra.mxu0 %v7130
      %v8324 = vpop.f32.mrf.mxu0
      %v8325 = vadd.f32 %v8212, %v8324
      %8326 = vmatmul.f32.gmra.mxu0 %v7133
      %v8327 = vpop.f32.mrf.mxu0
      %v8328 = vadd.f32 %v8215, %v8327
      %8329 = vmatmul.f32.gmra.mxu0 %v7135
      %v8330 = vpop.f32.mrf.mxu0
      %v8331 = vadd.f32 %v8218, %v8330
      %8332 = vmatmul.f32.gmra.mxu0 %v7138
      %v8333 = vpop.f32.mrf.mxu0
      %v8334 = vadd.f32 %v8221, %v8333
      %8335 = vmatmul.f32.gmra.mxu0 %v7140
      %v8336 = vpop.f32.mrf.mxu0
      %v8337 = vadd.f32 %v8224, %v8336
      %8338 = vmatmul.f32.gmra.mxu0 %v7143
      %v8339 = vpop.f32.mrf.mxu0
      %v8340 = vadd.f32 %v8227, %v8339
      %8341 = vmatmul.f32.gmra.mxu0 %v7145
      %v8342 = vpop.f32.mrf.mxu0
      %v8343 = vadd.f32 %v8230, %v8342
      %8344 = vmatmul.f32.gmra.mxu0 %v7187
      %v8345 = vpop.f32.mrf.mxu0
      %v8346 = vadd.f32 %v8233, %v8345
      %8347 = vmatmul.f32.gmra.mxu0 %v7189
      %v8348 = vpop.f32.mrf.mxu0
      %v8349 = vadd.f32 %v8236, %v8348
      %8350 = vmatmul.f32.gmra.mxu0 %v692
      %v8351 = vpop.f32.mrf.mxu0
      %v8352 = vadd.f32 %v8239, %v8351
      %8353 = vmatmul.f32.gmra.mxu0 %v692
      %v8354 = vpop.f32.mrf.mxu0
      %v8355 = vadd.f32 %v8242, %v8354
      %8356 = vdwg.mxu0
      %vm8357 = vcmask 7168
      %8358 = vst.msk [vmem:[%s388] sm:$0xff] %vm8357, %v8262
      %8359 = vst.msk [vmem:[%s388 + $0x8] sm:$0xff] %vm8357, %v8265
      %8360 = vst.msk [vmem:[%s388 + $0x10] sm:$0xff] %vm8357, %v8268
      %8361 = vst.msk [vmem:[%s388 + $0x18] sm:$0xff] %vm8357, %v8271
      %8362 = vst.msk [vmem:[%s388 + $0x20] sm:$0xff] %vm8357, %v8274
      %8363 = vst.msk [vmem:[%s388 + $0x28] sm:$0xff] %vm8357, %v8277
      %8364 = vst.msk [vmem:[%s388 + $0x30] sm:$0xff] %vm8357, %v8280
      %8365 = vst.msk [vmem:[%s388 + $0x38] sm:$0xff] %vm8357, %v8283
      %8366 = vst.msk [vmem:[%s388 + $0x40] sm:$0xff] %vm8357, %v8286
      %8367 = vst.msk [vmem:[%s388 + $0x48] sm:$0xff] %vm8357, %v8289
      %8368 = vst.msk [vmem:[%s388 + $0x50] sm:$0xff] %vm8357, %v8292
      %8369 = vst.msk [vmem:[%s388 + $0x58] sm:$0xff] %vm8357, %v8295
      %8370 = vst.msk [vmem:[%s388 + $0x60] sm:$0xff] %vm8357, %v8298
      %8371 = vst.msk [vmem:[%s388 + $0x68] sm:$0xff] %vm8357, %v8301
      %8372 = vst.msk [vmem:[%s388 + $0x70] sm:$0xff] %vm8357, %v8304
      %8373 = vst.msk [vmem:[%s388 + $0x78] sm:$0xff] %vm8357, %v8307
      %8374 = vst.msk [vmem:[%s388 + $0x80] sm:$0xff] %vm8357, %v8310
      %8375 = vst.msk [vmem:[%s388 + $0x88] sm:$0xff] %vm8357, %v8313
      %8376 = vst.msk [vmem:[%s388 + $0x90] sm:$0xff] %vm8357, %v8316
      %8377 = vst.msk [vmem:[%s388 + $0x98] sm:$0xff] %vm8357, %v8319
      %8378 = vst.msk [vmem:[%s388 + $0xa0] sm:$0xff] %vm8357, %v8322
      %8379 = vst.msk [vmem:[%s388 + $0xa8] sm:$0xff] %vm8357, %v8325
      %8380 = vst.msk [vmem:[%s388 + $0xb0] sm:$0xff] %vm8357, %v8328
      %8381 = vst.msk [vmem:[%s388 + $0xb8] sm:$0xff] %vm8357, %v8331
      %8382 = vst.msk [vmem:[%s388 + $0xc0] sm:$0xff] %vm8357, %v8334
      %8383 = vst.msk [vmem:[%s388 + $0xc8] sm:$0xff] %vm8357, %v8337
      %8384 = vst.msk [vmem:[%s388 + $0xd0] sm:$0xff] %vm8357, %v8340
      %8385 = vst.msk [vmem:[%s388 + $0xd8] sm:$0xff] %vm8357, %v8343
      %8386 = vst.msk [vmem:[%s388 + $0xe0] sm:$0xff] %vm8357, %v8346
      %8387 = vst.msk [vmem:[%s388 + $0xe8] sm:$0xff] %vm8357, %v8349
      %8388 = vst.msk [vmem:[%s388 + $0xf0] sm:$0xff] %vm8357, %v8352
      %8389 = vst.msk [vmem:[%s388 + $0xf8] sm:$0xff] %vm8357, %v8355
      %p8390 = scmp.lt.s32.totalorder %s24, 1
      %s8391 = scalar_select %p8390, %s24, 1
      %s8392 = smul.addr %s8391, 32
      %s8393 = smul.addr %s8392, 8
      %s8394 = scalar_lea.vmem %s11, %s8393
      // Predicated region
      $region65: #{tpu_custom_call.1} parent=63 // pred_check
        %p8395 = pneg %p278
      $region66: #{tpu_custom_call.1} parent=63 // pred_check_branch
        %8397 = sbr.rel (%p8395) target = $region68
      $region67: #{tpu_custom_call.1} parent=63 // pred_region
        _
      $region68: #{tpu_custom_call.1} parent=63 // pred_fallthru
        _
    $region64: #{tpu_custom_call.1} parent=5 // pred_fallthru
      _
    %p8398 = scmp.le.s32.totalorder 2, %s19
    // Predicated region
    $region69: #{tpu_custom_call.1} parent=5 // pred_check
      %p8399 = pneg %p8398
    $region70: #{tpu_custom_call.1} parent=5 // pred_check_branch
      %8401 = sbr.rel (%p8399) target = $region72
    $region71: #{tpu_custom_call.1} parent=5 // pred_region
      %s8402 = ssub.s32 %s19, 2
      // Predicated region
      $region73: #{tpu_custom_call.1} parent=71 // pred_check
        %p8403 = pneg %p284
      $region74: #{tpu_custom_call.1} parent=71 // pred_check_branch
        %8405 = sbr.rel (%p8403) target = $region76
      $region75: #{tpu_custom_call.1} parent=71 // pred_region
        %p8406 = scmp.lt.s32.totalorder %s25, 1
        %s8407 = scalar_select %p8406, %s25, 1
        %s8408 = smul.addr %s8407, 32
        %s8409 = smul.addr %s8408, 8
        %s8410 = scalar_lea.vmem %s11, %s8409
      $region76: #{tpu_custom_call.1} parent=71 // pred_fallthru
        _
    $region72: #{tpu_custom_call.1} parent=5 // pred_fallthru
      _
  $region6: #{tpu_custom_call.1} parent=0 // loop_footer
    %s23 = sadd.s32 1, %s19
  $region7: #{tpu_custom_call.1} parent=0 // loop_footer_branch
    %18 = sbr.rel target = $region3
  $region8: #{tpu_custom_call.1} parent=0 // loop_exit
    _

</llo_original>
